<compile_context>
chip_gen: v7x
topology: tpu7x:2x2x1
jax: 0.10.0
libtpu: 0.0.40
codegen_flags: <defaults>
</compile_context>

<pallas_src>
import jax
import jax.numpy as jnp
from jax.experimental import pallas as pl
from jax.experimental.pallas import tpu as pltpu

LEAKY_SLOPE = 0.1
BN_EPS = 1e-5
VMEM_LIMIT = 32 * 1024 * 1024


# --------------------------------------------------------------------------
# Kernels
# --------------------------------------------------------------------------

def _conv1_kernel(x_ref, w_ref, o_ref):
    """im2col matmul + LeakyReLU(0.1). Output N padded to 128 (lane-dense)."""
    y = jnp.dot(x_ref[...], w_ref[...], preferred_element_type=jnp.float32)
    o_ref[...] = jnp.where(y >= 0, y, LEAKY_SLOPE * y)


def _conv2_kernel(x_ref, w_ref, g_ref, b_ref, o_ref):
    """im2col matmul + train-mode BatchNorm2d (batch stats over rows =
    (b, oh, ow) per channel, biased variance) + LeakyReLU(0.1)."""
    y = jnp.dot(x_ref[...], w_ref[...], preferred_element_type=jnp.float32)
    mean = jnp.mean(y, axis=0, keepdims=True)
    var = jnp.mean((y - mean) ** 2, axis=0, keepdims=True)
    y = (y - mean) * jax.lax.rsqrt(var + BN_EPS) * g_ref[...] + b_ref[...]
    o_ref[...] = jnp.where(y >= 0, y, LEAKY_SLOPE * y)


def _tail_kernel(x_ref, w1_ref, b1_ref, g1_ref, be1_ref,
                 wh_ref, bh_ref, gq_ref, bq_ref, wq2_ref, bq2_ref,
                 d_ref, q_ref, acc_ref):
    """Fused tail: fc1 (K-accumulated) + BN1d + leaky, then both heads.

    Head weight columns: [0:2] = fcd logits (rest zero), [128:256] = fcq1.
    out_d = masked softmax over the 2 real fcd columns (padded to 128 lanes).
    out_q = fcq2( leaky( BN1d( fcq1 cols ) ) ), fcq2 N padded 12 -> 128.
    """
    k = pl.program_id(0)

    @pl.when(k == 0)
    def _():
        acc_ref[...] = jnp.zeros_like(acc_ref)

    acc_ref[...] += jnp.dot(x_ref[...], w1_ref[...],
                            preferred_element_type=jnp.float32)

    @pl.when(k == pl.num_programs(0) - 1)
    def _():
        # fc1 bias + BatchNorm1d(1024) (train-mode batch stats) + LeakyReLU(0.1)
        y = acc_ref[...] + b1_ref[...]
        mean = jnp.mean(y, axis=0, keepdims=True)
        var = jnp.mean((y - mean) ** 2, axis=0, keepdims=True)
        h = (y - mean) * jax.lax.rsqrt(var + BN_EPS) * g1_ref[...] + be1_ref[...]
        h = jnp.where(h >= 0, h, LEAKY_SLOPE * h)

        # fused heads: (B,1024) @ (1024,256)
        hh = jnp.dot(h, wh_ref[...], preferred_element_type=jnp.float32) + bh_ref[...]
        d = hh[:, :128]
        q = hh[:, 128:]

        # softmax over the 2 real fcd columns (mask the 126 padded lanes)
        lane = jax.lax.broadcasted_iota(jnp.int32, d.shape, 1)
        d = jnp.where(lane < 2, d, -jnp.inf)
        m = jnp.max(d, axis=-1, keepdims=True)
        e = jnp.exp(d - m)
        d_ref[...] = (e / jnp.sum(e, axis=-1, keepdims=True)).astype(d_ref.dtype)

        # q branch: BatchNorm1d(128) + LeakyReLU(0.1), then fcq2 (12 -> pad 128)
        qm = jnp.mean(q, axis=0, keepdims=True)
        qv = jnp.mean((q - qm) ** 2, axis=0, keepdims=True)
        q = (q - qm) * jax.lax.rsqrt(qv + BN_EPS) * gq_ref[...] + bq_ref[...]
        q = jnp.where(q >= 0, q, LEAKY_SLOPE * q)
        q_ref[...] = (jnp.dot(q, wq2_ref[...], preferred_element_type=jnp.float32)
                      + bq2_ref[...]).astype(q_ref.dtype)


# --------------------------------------------------------------------------
# Pallas wrappers
# --------------------------------------------------------------------------

def conv1_matmul(patches, w):
    M = patches.shape[0]
    return pl.pallas_call(
        _conv1_kernel,
        out_shape=jax.ShapeDtypeStruct((M, w.shape[1]), jnp.float32),
        compiler_params=pltpu.CompilerParams(vmem_limit_bytes=VMEM_LIMIT),
    )(patches, w)


def conv2_bn_matmul(patches, w, gamma, beta):
    M = patches.shape[0]
    return pl.pallas_call(
        _conv2_kernel,
        out_shape=jax.ShapeDtypeStruct((M, w.shape[1]), jnp.float32),
        compiler_params=pltpu.CompilerParams(vmem_limit_bytes=VMEM_LIMIT),
    )(patches, w, gamma, beta)


def tail_fused(x_flat, P, *, tk=896):
    """fc1 + BN1d + leaky + fused fcd/fcq1/fcq2 heads in one pallas_call."""
    B, K = x_flat.shape
    assert K % tk == 0 and tk % 128 == 0, (K, tk)
    grid = (K // tk,)
    d_pad, q_pad = pl.pallas_call(
        _tail_kernel,
        out_shape=(jax.ShapeDtypeStruct((B, 128), jnp.float32),
                   jax.ShapeDtypeStruct((B, 128), jnp.float32)),
        grid_spec=pltpu.PrefetchScalarGridSpec(
            num_scalar_prefetch=0,
            grid=grid,
            in_specs=[
                pl.BlockSpec((B, tk), lambda k: (0, k)),       # x_flat
                pl.BlockSpec((tk, 1024), lambda k: (k, 0)),    # fc1_w (pre-permuted)
                pl.BlockSpec((1, 1024), lambda k: (0, 0)),     # fc1_b
                pl.BlockSpec((1, 1024), lambda k: (0, 0)),     # bnfc1 gamma
                pl.BlockSpec((1, 1024), lambda k: (0, 0)),     # bnfc1 beta
                pl.BlockSpec((1024, 256), lambda k: (0, 0)),   # fused head weight
                pl.BlockSpec((1, 256), lambda k: (0, 0)),      # fused head bias
                pl.BlockSpec((1, 128), lambda k: (0, 0)),      # bnq1 gamma
                pl.BlockSpec((1, 128), lambda k: (0, 0)),      # bnq1 beta
                pl.BlockSpec((128, 128), lambda k: (0, 0)),    # fcq2 weight (padded)
                pl.BlockSpec((1, 128), lambda k: (0, 0)),      # fcq2 bias (padded)
            ],
            out_specs=(pl.BlockSpec((B, 128), lambda k: (0, 0)),
                       pl.BlockSpec((B, 128), lambda k: (0, 0))),
            scratch_shapes=[pltpu.VMEM((B, 1024), jnp.float32)],
        ),
        compiler_params=pltpu.CompilerParams(
            dimension_semantics=("arbitrary",),
            vmem_limit_bytes=VMEM_LIMIT,
        ),
    )(x_flat, P["fc1_w"], P["fc1_b"], P["bnfc1_g"], P["bnfc1_b"],
      P["w_head"], P["b_head"], P["bnq1_g"], P["bnq1_b"], P["wq2"], P["bq2"])
    return d_pad, q_pad


# --------------------------------------------------------------------------
# Plain-JAX glue (im2col) + one-time parameter re-layout
# --------------------------------------------------------------------------

def im2col_nhwc(x, kh=4, kw=4, stride=2, pad=1):
    """NHWC -> (B*OH*OW, kh*kw*C) patches, columns in (i, j, c) order."""
    B, H, W, C = x.shape
    OH = (H + 2 * pad - kh) // stride + 1
    OW = (W + 2 * pad - kw) // stride + 1
    xp = jnp.pad(x, ((0, 0), (pad, pad), (pad, pad), (0, 0)))
    cols = []
    for i in range(kh):
        for j in range(kw):
            cols.append(xp[:, i:i + stride * OH:stride, j:j + stride * OW:stride, :])
    patches = jnp.stack(cols, axis=3)                     # (B, OH, OW, kh*kw, C)
    return patches.reshape(B * OH * OW, kh * kw * C), OH, OW


def init_params(key):
    """Parameters in the original PyTorch layouts."""
    ks = jax.random.split(key, 16)

    def nrm(k, shape, s=0.05):
        return (s * jax.random.normal(k, shape)).astype(jnp.float32)

    p = {
        "conv1_w": nrm(ks[0], (64, 1, 4, 4)),          # Conv2d(1, 64, 4, 2, 1, bias=False)
        "conv2_w": nrm(ks[1], (128, 64, 4, 4)),        # Conv2d(64, 128, 4, 2, 1, bias=False)
        "bn2_g":   1.0 + 0.1 * jax.random.normal(ks[2], (128,)),
        "bn2_b":   0.1 * jax.random.normal(ks[3], (128,)),
        "fc1_w":   nrm(ks[4], (1024, 6272), 0.01),     # Linear(128*7*7, 1024)
        "fc1_b":   nrm(ks[5], (1024,), 0.01),
        "bnfc1_g": 1.0 + 0.1 * jax.random.normal(ks[6], (1024,)),
        "bnfc1_b": 0.1 * jax.random.normal(ks[7], (1024,)),
        "fcd_w":   nrm(ks[8], (2, 1024)),              # Linear(1024, 2)
        "fcd_b":   nrm(ks[9], (2,)),
        "fcq1_w":  nrm(ks[10], (128, 1024)),           # Linear(1024, 128)
        "fcq1_b":  nrm(ks[11], (128,)),
        "bnq1_g":  1.0 + 0.1 * jax.random.normal(ks[12], (128,)),
        "bnq1_b":  0.1 * jax.random.normal(ks[13], (128,)),
        "fcq2_w":  nrm(ks[14], (12, 128)),             # Linear(128, 12)
        "fcq2_b":  nrm(ks[15], (12,)),
    }
    return {k: v.astype(jnp.float32) for k, v in p.items()}


def prepare_params(params):
    """One-time (outside jit) layout prep: transpose, (i,j,c) column reorder,
    lane padding, head fusion. Done once; never re-run per forward."""
    P = {}
    # conv1: (64,1,4,4) -> (16, 64) with rows in (i,j,cin) order, pad N 64->128.
    w1 = params["conv1_w"].transpose(2, 3, 1, 0).reshape(16, 64)
    P["w1"] = jnp.pad(w1, ((0, 0), (0, 64)))                               # (16, 128)
    # conv2: (128,64,4,4) -> rows (i,j,cin) with cin padded 64->128 (padded
    # conv1 channels are exactly zero, so zero weight rows keep it exact).
    w2 = params["conv2_w"].transpose(2, 3, 1, 0)                           # (4,4,64,128)
    w2 = jnp.pad(w2, ((0, 0), (0, 0), (0, 64), (0, 0)))                    # (4,4,128,128)
    P["w2"] = w2.reshape(4 * 4 * 128, 128)                                 # (2048, 128)
    P["bn2_g"] = params["bn2_g"].reshape(1, 128)
    P["bn2_b"] = params["bn2_b"].reshape(1, 128)
    # fc1: PyTorch flattens NCHW as (c,h,w); we feed an (h,w,c) flatten, so
    # permute the 6272-columns of fc1_w accordingly, then pre-transpose.
    w = params["fc1_w"].reshape(1024, 128, 7, 7).transpose(0, 2, 3, 1).reshape(1024, 6272)
    P["fc1_w"] = w.T                                                       # (6272, 1024)
    P["fc1_b"] = params["fc1_b"].reshape(1, 1024)
    P["bnfc1_g"] = params["bnfc1_g"].reshape(1, 1024)
    P["bnfc1_b"] = params["bnfc1_b"].reshape(1, 1024)
    # fused head: cols [0:2] = fcd, cols [128:256] = fcq1.
    wh = jnp.zeros((1024, 256), jnp.float32)
    wh = wh.at[:, 0:2].set(params["fcd_w"].T)
    wh = wh.at[:, 128:256].set(params["fcq1_w"].T)
    bh = jnp.zeros((1, 256), jnp.float32)
    bh = bh.at[0, 0:2].set(params["fcd_b"])
    bh = bh.at[0, 128:256].set(params["fcq1_b"])
    P["w_head"], P["b_head"] = wh, bh
    P["bnq1_g"] = params["bnq1_g"].reshape(1, 128)
    P["bnq1_b"] = params["bnq1_b"].reshape(1, 128)
    # fcq2: (12,128) -> (128,128), real outputs in cols [0:12].
    P["wq2"] = jnp.pad(params["fcq2_w"].T, ((0, 0), (0, 116)))
    P["bq2"] = jnp.zeros((1, 128), jnp.float32).at[0, 0:12].set(params["fcq2_b"])
    return P


# --------------------------------------------------------------------------
# Forward pass
# --------------------------------------------------------------------------

def netD_forward(P, x):
    """x: (B, 1, 28, 28) NCHW f32 -> (out_d (B,2), out_q (B,12))."""
    B = x.shape[0]
    x = jnp.transpose(x, (0, 2, 3, 1))                          # NHWC (C=1, cheap)

    # conv1 (no bias) + leaky_relu(0.1); output channels zero-padded to 128
    p1, oh1, ow1 = im2col_nhwc(x)                               # (B*196, 16)
    h = conv1_matmul(p1, P["w1"])                               # (B*196, 128)

    # conv2 (no bias) + BatchNorm2d (train-mode) + leaky_relu(0.1)
    p2, oh2, ow2 = im2col_nhwc(h.reshape(B, oh1, ow1, 128))     # (B*49, 2048)
    h = conv2_bn_matmul(p2, P["w2"], P["bn2_g"], P["bn2_b"])    # (B*49, 128)

    # NHWC flatten; fc1_w columns were pre-permuted to match (h,w,c) order
    x_flat = h.reshape(B, oh2 * ow2 * 128)                      # (B, 6272)

    # fc1 + BN1d + leaky, fused with both heads (fcd softmax / fcq1 BN leaky / fcq2)
    d_pad, q_pad = tail_fused(x_flat, P)                        # (B,128), (B,128)
    return d_pad[:, :2], q_pad[:, :12]


# --------------------------------------------------------------------------
# Pure-JAX reference (PyTorch semantics, original layouts) for validation
# --------------------------------------------------------------------------

def netD_reference(params, x):
    HI = jax.lax.Precision.HIGHEST

    def conv(x, w):
        return jax.lax.conv_general_dilated(
            x, w, window_strides=(2, 2), padding=((1, 1), (1, 1)),
            dimension_numbers=("NCHW", "OIHW", "NCHW"), precision=HI)

    def bn(y, g, b, axes):
        mean = jnp.mean(y, axis=axes, keepdims=True)
        var = jnp.mean((y - mean) ** 2, axis=axes, keepdims=True)
        shape = [1] * y.ndim
        shape[1] = -1
        return (y - mean) * jax.lax.rsqrt(var + BN_EPS) * g.reshape(shape) + b.reshape(shape)

    def leaky(y):
        return jnp.where(y >= 0, y, LEAKY_SLOPE * y)

    B = x.shape[0]
    h = leaky(conv(x, params["conv1_w"]))
    h = leaky(bn(conv(h, params["conv2_w"]), params["bn2_g"], params["bn2_b"], (0, 2, 3)))
    h = h.reshape(B, -1)
    h = jnp.dot(h, params["fc1_w"].T, precision=HI) + params["fc1_b"]
    h = leaky(bn(h, params["bnfc1_g"], params["bnfc1_b"], (0,)))
    out_d = jax.nn.softmax(jnp.dot(h, params["fcd_w"].T, precision=HI) + params["fcd_b"], axis=-1)
    q = jnp.dot(h, params["fcq1_w"].T, precision=HI) + params["fcq1_b"]
    q = leaky(bn(q, params["bnq1_g"], params["bnq1_b"], (0,)))
    out_q = jnp.dot(q, params["fcq2_w"].T, precision=HI) + params["fcq2_b"]
    return out_d, out_q


if __name__ == "__main__":
    key = jax.random.PRNGKey(0)
    pkey, xkey = jax.random.split(key)
    params = init_params(pkey)
    prepped = prepare_params(params)        # one-time layout prep, outside jit

    # MNIST-shaped input: fc1 hard-codes 128*7*7, so spatial must be 28x28.
    x = jax.random.normal(xkey, (2, 1, 28, 28), jnp.float32)

    fwd = jax.jit(netD_forward)
    out_d, out_q = fwd(prepped, x)
    jax.block_until_ready((out_d, out_q))

    assert out_d.shape == (2, 2) and out_d.dtype == jnp.float32
    assert out_q.shape == (2, 12) and out_q.dtype == jnp.float32
    assert bool(jnp.all(jnp.isfinite(out_d))) and bool(jnp.all(jnp.isfinite(out_q)))
    assert bool(jnp.allclose(jnp.sum(out_d, axis=-1), 1.0, atol=1e-5))

    # numerical parity vs the plain-JAX reference of the PyTorch module
    ref_d, ref_q = netD_reference(params, x)
    assert bool(jnp.allclose(out_d, ref_d, atol=5e-3, rtol=5e-3)), "out_d mismatch"
    assert bool(jnp.allclose(out_q, ref_q, atol=5e-3, rtol=5e-3)), "out_q mismatch"

    print("KERNEL_OK")
</pallas_src>

<mosaic_0001>
module attributes {stable_mosaic.version = 11 : i64} {
  func.func @_conv1_kernel(%arg0: memref<392x16xf32, #tpu.memory_space<vmem>>, %arg1: memref<16x128xf32, #tpu.memory_space<vmem>>, %arg2: memref<392x128xf32, #tpu.memory_space<vmem>>) attributes {dimension_semantics = [], scalar_prefetch = 0 : i64, scratch_operands = 0 : i64, tpu.core_type = #tpu.core_type<tc>} {
    %c0 = arith.constant 0 : index
    %c0_0 = arith.constant 0 : index
    %0 = vector.load %arg0[%c0, %c0_0] : memref<392x16xf32, #tpu.memory_space<vmem>>, vector<392x16xf32>
    %c0_1 = arith.constant 0 : index
    %c0_2 = arith.constant 0 : index
    %1 = vector.load %arg1[%c0_1, %c0_2] : memref<16x128xf32, #tpu.memory_space<vmem>>, vector<16x128xf32>
    %cst = arith.constant dense<0.000000e+00> : vector<392x128xf32>
    %2 = tpu.matmul %0, %1, %cst {dimension_numbers = #tpu.dot_dimension_numbers<[1], [0], [0], [1], [0, 0, 1, 1], [], []>} : vector<392x16xf32>, vector<16x128xf32>, vector<392x128xf32> -> vector<392x128xf32>
    %cst_3 = arith.constant 0.000000e+00 : f32
    %3 = vector.broadcast %cst_3 : f32 to vector<392x128xf32>
    %4 = arith.cmpf oge, %2, %3 : vector<392x128xf32>
    %cst_4 = arith.constant 1.000000e-01 : f32
    %5 = vector.broadcast %cst_4 : f32 to vector<392x128xf32>
    %6 = arith.mulf %5, %2 : vector<392x128xf32>
    %7 = arith.select %4, %2, %6 : vector<392x128xi1>, vector<392x128xf32>
    %c0_5 = arith.constant 0 : index
    %c0_6 = arith.constant 0 : index
    %8 = vector.load %arg2[%c0_5, %c0_6] : memref<392x128xf32, #tpu.memory_space<vmem>>, vector<392x128xf32>
    tpu.vector_store %arg2[%c0_5, %c0_6], %7 {strides = array<i32>} : memref<392x128xf32, #tpu.memory_space<vmem>>, vector<392x128xf32>,
    return
  }
}

module attributes {stable_mosaic.version = 11 : i64} {
  func.func @_conv2_kernel(%arg0: memref<98x2048xf32, #tpu.memory_space<vmem>>, %arg1: memref<2048x128xf32, #tpu.memory_space<vmem>>, %arg2: memref<1x128xf32, #tpu.memory_space<vmem>>, %arg3: memref<1x128xf32, #tpu.memory_space<vmem>>, %arg4: memref<98x128xf32, #tpu.memory_space<vmem>>) attributes {dimension_semantics = [], scalar_prefetch = 0 : i64, scratch_operands = 0 : i64, tpu.core_type = #tpu.core_type<tc>} {
    %c0 = arith.constant 0 : index
    %c0_0 = arith.constant 0 : index
    %0 = vector.load %arg0[%c0, %c0_0] : memref<98x2048xf32, #tpu.memory_space<vmem>>, vector<98x2048xf32>
    %c0_1 = arith.constant 0 : index
    %c0_2 = arith.constant 0 : index
    %1 = vector.load %arg1[%c0_1, %c0_2] : memref<2048x128xf32, #tpu.memory_space<vmem>>, vector<2048x128xf32>
    %cst = arith.constant dense<0.000000e+00> : vector<98x128xf32>
    %2 = tpu.matmul %0, %1, %cst {dimension_numbers = #tpu.dot_dimension_numbers<[1], [0], [0], [1], [0, 0, 1, 1], [], []>} : vector<98x2048xf32>, vector<2048x128xf32>, vector<98x128xf32> -> vector<98x128xf32>
    %cst_3 = arith.constant dense<0.000000e+00> : vector<128xf32>
    %3 = vector.multi_reduction <add>, %2, %cst_3 [0] : vector<98x128xf32> to vector<128xf32>
    %4 = vector.shape_cast %3 : vector<128xf32> to vector<1x128xf32>
    %cst_4 = arith.constant 9.800000e+01 : f32
    %5 = vector.broadcast %cst_4 : f32 to vector<1x128xf32>
    %6 = arith.divf %4, %5 : vector<1x128xf32>
    %7 = vector.broadcast %6 : vector<1x128xf32> to vector<98x128xf32>
    %8 = arith.subf %2, %7 : vector<98x128xf32>
    %9 = arith.mulf %8, %8 : vector<98x128xf32>
    %cst_5 = arith.constant dense<0.000000e+00> : vector<128xf32>
    %10 = vector.multi_reduction <add>, %9, %cst_5 [0] : vector<98x128xf32> to vector<128xf32>
    %11 = vector.shape_cast %10 : vector<128xf32> to vector<1x128xf32>
    %cst_6 = arith.constant 9.800000e+01 : f32
    %12 = vector.broadcast %cst_6 : f32 to vector<1x128xf32>
    %13 = arith.divf %11, %12 : vector<1x128xf32>
    %14 = vector.broadcast %6 : vector<1x128xf32> to vector<98x128xf32>
    %15 = arith.subf %2, %14 : vector<98x128xf32>
    %cst_7 = arith.constant 9.99999974E-6 : f32
    %16 = vector.broadcast %cst_7 : f32 to vector<1x128xf32>
    %17 = arith.addf %13, %16 : vector<1x128xf32>
    %18 = math.rsqrt %17 : vector<1x128xf32>
    %19 = vector.broadcast %18 : vector<1x128xf32> to vector<98x128xf32>
    %20 = arith.mulf %15, %19 : vector<98x128xf32>
    %c0_8 = arith.constant 0 : index
    %c0_9 = arith.constant 0 : index
    %21 = vector.load %arg2[%c0_8, %c0_9] : memref<1x128xf32, #tpu.memory_space<vmem>>, vector<1x128xf32>
    %22 = vector.broadcast %21 : vector<1x128xf32> to vector<98x128xf32>
    %23 = arith.mulf %20, %22 : vector<98x128xf32>
    %c0_10 = arith.constant 0 : index
    %c0_11 = arith.constant 0 : index
    %24 = vector.load %arg3[%c0_10, %c0_11] : memref<1x128xf32, #tpu.memory_space<vmem>>, vector<1x128xf32>
    %25 = vector.broadcast %24 : vector<1x128xf32> to vector<98x128xf32>
    %26 = arith.addf %23, %25 : vector<98x128xf32>
    %cst_12 = arith.constant 0.000000e+00 : f32
    %27 = vector.broadcast %cst_12 : f32 to vector<98x128xf32>
    %28 = arith.cmpf oge, %26, %27 : vector<98x128xf32>
    %cst_13 = arith.constant 1.000000e-01 : f32
    %29 = vector.broadcast %cst_13 : f32 to vector<98x128xf32>
    %30 = arith.mulf %29, %26 : vector<98x128xf32>
    %31 = arith.select %28, %26, %30 : vector<98x128xi1>, vector<98x128xf32>
    %c0_14 = arith.constant 0 : index
    %c0_15 = arith.constant 0 : index
    %32 = vector.load %arg4[%c0_14, %c0_15] : memref<98x128xf32, #tpu.memory_space<vmem>>, vector<98x128xf32>
    tpu.vector_store %arg4[%c0_14, %c0_15], %31 {strides = array<i32>} : memref<98x128xf32, #tpu.memory_space<vmem>>, vector<98x128xf32>,
    return
  }
}

module attributes {stable_mosaic.version = 11 : i64} {
  func.func @_tail_kernel(%arg0: i32, %arg1: memref<2x896xf32, #tpu.memory_space<vmem>>, %arg2: memref<896x1024xf32, #tpu.memory_space<vmem>>, %arg3: memref<1x1024xf32, #tpu.memory_space<vmem>>, %arg4: memref<1x1024xf32, #tpu.memory_space<vmem>>, %arg5: memref<1x1024xf32, #tpu.memory_space<vmem>>, %arg6: memref<1024x256xf32, #tpu.memory_space<vmem>>, %arg7: memref<1x256xf32, #tpu.memory_space<vmem>>, %arg8: memref<1x128xf32, #tpu.memory_space<vmem>>, %arg9: memref<1x128xf32, #tpu.memory_space<vmem>>, %arg10: memref<128x128xf32, #tpu.memory_space<vmem>>, %arg11: memref<1x128xf32, #tpu.memory_space<vmem>>, %arg12: memref<2x128xf32, #tpu.memory_space<vmem>>, %arg13: memref<2x128xf32, #tpu.memory_space<vmem>>, %arg14: memref<2x1024xf32, #tpu.memory_space<vmem>>) attributes {dimension_semantics = [#tpu.dimension_semantics<arbitrary>], iteration_bounds = array<i64: 7>, scalar_prefetch = 0 : i64, scratch_operands = 1 : i64, tpu.core_type = #tpu.core_type<tc>, window_params = [{transform_indices = @transform_0, window_bounds = array<i64: 2, 896>}, {transform_indices = @transform_1, window_bounds = array<i64: 896, 1024>}, {pipeline_mode = #tpu.pipeline_mode<synchronous>, transform_indices = @transform_2, window_bounds = array<i64: 1, 1024>}, {pipeline_mode = #tpu.pipeline_mode<synchronous>, transform_indices = @transform_3, window_bounds = array<i64: 1, 1024>}, {pipeline_mode = #tpu.pipeline_mode<synchronous>, transform_indices = @transform_4, window_bounds = array<i64: 1, 1024>}, {pipeline_mode = #tpu.pipeline_mode<synchronous>, transform_indices = @transform_5, window_bounds = array<i64: 1024, 256>}, {pipeline_mode = #tpu.pipeline_mode<synchronous>, transform_indices = @transform_6, window_bounds = array<i64: 1, 256>}, {pipeline_mode = #tpu.pipeline_mode<synchronous>, transform_indices = @transform_7, window_bounds = array<i64: 1, 128>}, {pipeline_mode = #tpu.pipeline_mode<synchronous>, transform_indices = @transform_8, window_bounds = array<i64: 1, 128>}, {pipeline_mode = #tpu.pipeline_mode<synchronous>, transform_indices = @transform_9, window_bounds = array<i64: 128, 128>}, {pipeline_mode = #tpu.pipeline_mode<synchronous>, transform_indices = @transform_10, window_bounds = array<i64: 1, 128>}, {pipeline_mode = #tpu.pipeline_mode<synchronous>, transform_indices = @transform_11, window_bounds = array<i64: 2, 128>}, {pipeline_mode = #tpu.pipeline_mode<synchronous>, transform_indices = @transform_12, window_bounds = array<i64: 2, 128>}]} {
    %c0_i32 = arith.constant 0 : i32
    %0 = arith.cmpi eq, %arg0, %c0_i32 : i32
    %1 = arith.extui %0 : i1 to i32
    %c0_i32_0 = arith.constant 0 : i32
    %2 = arith.cmpi ne, %1, %c0_i32_0 : i32
    scf.if %2 {
      %cst_9 = arith.constant 0.000000e+00 : f32
      %12 = vector.broadcast %cst_9 : f32 to vector<2x1024xf32>
      %c0_10 = arith.constant 0 : index
      %c0_11 = arith.constant 0 : index
      %13 = vector.load %arg14[%c0_10, %c0_11] : memref<2x1024xf32, #tpu.memory_space<vmem>>, vector<2x1024xf32>
      tpu.vector_store %arg14[%c0_10, %c0_11], %12 {strides = array<i32>} : memref<2x1024xf32, #tpu.memory_space<vmem>>, vector<2x1024xf32>,
    } else {
    }
    %c0 = arith.constant 0 : index
    %c0_1 = arith.constant 0 : index
    %3 = vector.load %arg14[%c0, %c0_1] : memref<2x1024xf32, #tpu.memory_space<vmem>>, vector<2x1024xf32>
    %c0_2 = arith.constant 0 : index
    %c0_3 = arith.constant 0 : index
    %4 = vector.load %arg1[%c0_2, %c0_3] : memref<2x896xf32, #tpu.memory_space<vmem>>, vector<2x896xf32>
    %c0_4 = arith.constant 0 : index
    %c0_5 = arith.constant 0 : index
    %5 = vector.load %arg2[%c0_4, %c0_5] : memref<896x1024xf32, #tpu.memory_space<vmem>>, vector<896x1024xf32>
    %cst = arith.constant dense<0.000000e+00> : vector<2x1024xf32>
    %6 = tpu.matmul %4, %5, %cst {dimension_numbers = #tpu.dot_dimension_numbers<[1], [0], [0], [1], [0, 0, 1, 1], [], []>} : vector<2x896xf32>, vector<896x1024xf32>, vector<2x1024xf32> -> vector<2x1024xf32>
    %7 = arith.addf %3, %6 : vector<2x1024xf32>
    %c0_6 = arith.constant 0 : index
    %c0_7 = arith.constant 0 : index
    %8 = vector.load %arg14[%c0_6, %c0_7] : memref<2x1024xf32, #tpu.memory_space<vmem>>, vector<2x1024xf32>
    tpu.vector_store %arg14[%c0_6, %c0_7], %7 {strides = array<i32>} : memref<2x1024xf32, #tpu.memory_space<vmem>>, vector<2x1024xf32>,
    %c6_i32 = arith.constant 6 : i32
    %9 = arith.cmpi eq, %arg0, %c6_i32 : i32
    %10 = arith.extui %9 : i1 to i32
    %c0_i32_8 = arith.constant 0 : i32
    %11 = arith.cmpi ne, %10, %c0_i32_8 : i32
    scf.if %11 {
      %c0_9 = arith.constant 0 : index
      %c0_10 = arith.constant 0 : index
      %12 = vector.load %arg14[%c0_9, %c0_10] : memref<2x1024xf32, #tpu.memory_space<vmem>>, vector<2x1024xf32>
      %c0_11 = arith.constant 0 : index
      %c0_12 = arith.constant 0 : index
      %13 = vector.load %arg3[%c0_11, %c0_12] : memref<1x1024xf32, #tpu.memory_space<vmem>>, vector<1x1024xf32>
      %14 = vector.broadcast %13 : vector<1x1024xf32> to vector<2x1024xf32>
      %15 = arith.addf %12, %14 : vector<2x1024xf32>
      %cst_13 = arith.constant dense<0.000000e+00> : vector<1024xf32>
      %16 = vector.multi_reduction <add>, %15, %cst_13 [0] : vector<2x1024xf32> to vector<1024xf32>
      %17 = vector.shape_cast %16 : vector<1024xf32> to vector<1x1024xf32>
      %cst_14 = arith.constant 2.000000e+00 : f32
      %18 = vector.broadcast %cst_14 : f32 to vector<1x1024xf32>
      %19 = arith.divf %17, %18 : vector<1x1024xf32>
      %20 = vector.broadcast %19 : vector<1x1024xf32> to vector<2x1024xf32>
      %21 = arith.subf %15, %20 : vector<2x1024xf32>
      %22 = arith.mulf %21, %21 : vector<2x1024xf32>
      %cst_15 = arith.constant dense<0.000000e+00> : vector<1024xf32>
      %23 = vector.multi_reduction <add>, %22, %cst_15 [0] : vector<2x1024xf32> to vector<1024xf32>
      %24 = vector.shape_cast %23 : vector<1024xf32> to vector<1x1024xf32>
      %cst_16 = arith.constant 2.000000e+00 : f32
      %25 = vector.broadcast %cst_16 : f32 to vector<1x1024xf32>
      %26 = arith.divf %24, %25 : vector<1x1024xf32>
      %27 = vector.broadcast %19 : vector<1x1024xf32> to vector<2x1024xf32>
      %28 = arith.subf %15, %27 : vector<2x1024xf32>
      %cst_17 = arith.constant 9.99999974E-6 : f32
      %29 = vector.broadcast %cst_17 : f32 to vector<1x1024xf32>
      %30 = arith.addf %26, %29 : vector<1x1024xf32>
      %31 = math.rsqrt %30 : vector<1x1024xf32>
      %32 = vector.broadcast %31 : vector<1x1024xf32> to vector<2x1024xf32>
      %33 = arith.mulf %28, %32 : vector<2x1024xf32>
      %c0_18 = arith.constant 0 : index
      %c0_19 = arith.constant 0 : index
      %34 = vector.load %arg4[%c0_18, %c0_19] : memref<1x1024xf32, #tpu.memory_space<vmem>>, vector<1x1024xf32>
      %35 = vector.broadcast %34 : vector<1x1024xf32> to vector<2x1024xf32>
      %36 = arith.mulf %33, %35 : vector<2x1024xf32>
      %c0_20 = arith.constant 0 : index
      %c0_21 = arith.constant 0 : index
      %37 = vector.load %arg5[%c0_20, %c0_21] : memref<1x1024xf32, #tpu.memory_space<vmem>>, vector<1x1024xf32>
      %38 = vector.broadcast %37 : vector<1x1024xf32> to vector<2x1024xf32>
      %39 = arith.addf %36, %38 : vector<2x1024xf32>
      %cst_22 = arith.constant 0.000000e+00 : f32
      %40 = vector.broadcast %cst_22 : f32 to vector<2x1024xf32>
      %41 = arith.cmpf oge, %39, %40 : vector<2x1024xf32>
      %cst_23 = arith.constant 1.000000e-01 : f32
      %42 = vector.broadcast %cst_23 : f32 to vector<2x1024xf32>
      %43 = arith.mulf %42, %39 : vector<2x1024xf32>
      %44 = arith.select %41, %39, %43 : vector<2x1024xi1>, vector<2x1024xf32>
      %c0_24 = arith.constant 0 : index
      %c0_25 = arith.constant 0 : index
      %45 = vector.load %arg6[%c0_24, %c0_25] : memref<1024x256xf32, #tpu.memory_space<vmem>>, vector<1024x256xf32>
      %cst_26 = arith.constant dense<0.000000e+00> : vector<2x256xf32>
      %46 = tpu.matmul %44, %45, %cst_26 {dimension_numbers = #tpu.dot_dimension_numbers<[1], [0], [0], [1], [0, 0, 1, 1], [], []>} : vector<2x1024xf32>, vector<1024x256xf32>, vector<2x256xf32> -> vector<2x256xf32>
      %c0_27 = arith.constant 0 : index
      %c0_28 = arith.constant 0 : index
      %47 = vector.load %arg7[%c0_27, %c0_28] : memref<1x256xf32, #tpu.memory_space<vmem>>, vector<1x256xf32>
      %48 = vector.broadcast %47 : vector<1x256xf32> to vector<2x256xf32>
      %49 = arith.addf %46, %48 : vector<2x256xf32>
      %50 = vector.extract_strided_slice %49 {offsets = [0, 0], sizes = [2, 128], strides = [1, 1]} : vector<2x256xf32> to vector<2x128xf32>
      %51 = vector.extract_strided_slice %49 {offsets = [0, 128], sizes = [2, 128], strides = [1, 1]} : vector<2x256xf32> to vector<2x128xf32>
      %52 = tpu.iota {dimensions = array<i32: 1>} : vector<2x128xi32>
      %c2_i32 = arith.constant 2 : i32
      %53 = vector.broadcast %c2_i32 : i32 to vector<2x128xi32>
      %54 = arith.cmpi slt, %52, %53 : vector<2x128xi32>
      %cst_29 = arith.constant 0xFF800000 : f32
      %55 = vector.broadcast %cst_29 : f32 to vector<2x128xf32>
      %56 = arith.select %54, %50, %55 : vector<2x128xi1>, vector<2x128xf32>
      %cst_30 = arith.constant dense<0xFF800000> : vector<2xf32>
      %57 = vector.multi_reduction <maximumf>, %56, %cst_30 [1] : vector<2x128xf32> to vector<2xf32>
      %58 = vector.shape_cast %57 : vector<2xf32> to vector<2x1xf32>
      %59 = vector.broadcast %58 : vector<2x1xf32> to vector<2x128xf32>
      %60 = arith.subf %56, %59 : vector<2x128xf32>
      %61 = math.exp %60 : vector<2x128xf32>
      %cst_31 = arith.constant dense<0.000000e+00> : vector<2xf32>
      %62 = vector.multi_reduction <add>, %61, %cst_31 [1] : vector<2x128xf32> to vector<2xf32>
      %63 = vector.shape_cast %62 : vector<2xf32> to vector<2x1xf32>
      %64 = vector.broadcast %63 : vector<2x1xf32> to vector<2x128xf32>
      %65 = arith.divf %61, %64 : vector<2x128xf32>
      %c0_32 = arith.constant 0 : index
      %c0_33 = arith.constant 0 : index
      %66 = vector.load %arg12[%c0_32, %c0_33] : memref<2x128xf32, #tpu.memory_space<vmem>>, vector<2x128xf32>
      tpu.vector_store %arg12[%c0_32, %c0_33], %65 {strides = array<i32>} : memref<2x128xf32, #tpu.memory_space<vmem>>, vector<2x128xf32>,
      %cst_34 = arith.constant dense<0.000000e+00> : vector<128xf32>
      %67 = vector.multi_reduction <add>, %51, %cst_34 [0] : vector<2x128xf32> to vector<128xf32>
      %68 = vector.shape_cast %67 : vector<128xf32> to vector<1x128xf32>
      %cst_35 = arith.constant 2.000000e+00 : f32
      %69 = vector.broadcast %cst_35 : f32 to vector<1x128xf32>
      %70 = arith.divf %68, %69 : vector<1x128xf32>
      %71 = vector.broadcast %70 : vector<1x128xf32> to vector<2x128xf32>
      %72 = arith.subf %51, %71 : vector<2x128xf32>
      %73 = arith.mulf %72, %72 : vector<2x128xf32>
      %cst_36 = arith.constant dense<0.000000e+00> : vector<128xf32>
      %74 = vector.multi_reduction <add>, %73, %cst_36 [0] : vector<2x128xf32> to vector<128xf32>
      %75 = vector.shape_cast %74 : vector<128xf32> to vector<1x128xf32>
      %cst_37 = arith.constant 2.000000e+00 : f32
      %76 = vector.broadcast %cst_37 : f32 to vector<1x128xf32>
      %77 = arith.divf %75, %76 : vector<1x128xf32>
      %78 = vector.broadcast %70 : vector<1x128xf32> to vector<2x128xf32>
      %79 = arith.subf %51, %78 : vector<2x128xf32>
      %cst_38 = arith.constant 9.99999974E-6 : f32
      %80 = vector.broadcast %cst_38 : f32 to vector<1x128xf32>
      %81 = arith.addf %77, %80 : vector<1x128xf32>
      %82 = math.rsqrt %81 : vector<1x128xf32>
      %83 = vector.broadcast %82 : vector<1x128xf32> to vector<2x128xf32>
      %84 = arith.mulf %79, %83 : vector<2x128xf32>
      %c0_39 = arith.constant 0 : index
      %c0_40 = arith.constant 0 : index
      %85 = vector.load %arg8[%c0_39, %c0_40] : memref<1x128xf32, #tpu.memory_space<vmem>>, vector<1x128xf32>
      %86 = vector.broadcast %85 : vector<1x128xf32> to vector<2x128xf32>
      %87 = arith.mulf %84, %86 : vector<2x128xf32>
      %c0_41 = arith.constant 0 : index
      %c0_42 = arith.constant 0 : index
      %88 = vector.load %arg9[%c0_41, %c0_42] : memref<1x128xf32, #tpu.memory_space<vmem>>, vector<1x128xf32>
      %89 = vector.broadcast %88 : vector<1x128xf32> to vector<2x128xf32>
      %90 = arith.addf %87, %89 : vector<2x128xf32>
      %cst_43 = arith.constant 0.000000e+00 : f32
      %91 = vector.broadcast %cst_43 : f32 to vector<2x128xf32>
      %92 = arith.cmpf oge, %90, %91 : vector<2x128xf32>
      %cst_44 = arith.constant 1.000000e-01 : f32
      %93 = vector.broadcast %cst_44 : f32 to vector<2x128xf32>
      %94 = arith.mulf %93, %90 : vector<2x128xf32>
      %95 = arith.select %92, %90, %94 : vector<2x128xi1>, vector<2x128xf32>
      %c0_45 = arith.constant 0 : index
      %c0_46 = arith.constant 0 : index
      %96 = vector.load %arg10[%c0_45, %c0_46] : memref<128x128xf32, #tpu.memory_space<vmem>>, vector<128x128xf32>
      %cst_47 = arith.constant dense<0.000000e+00> : vector<2x128xf32>
      %97 = tpu.matmul %95, %96, %cst_47 {dimension_numbers = #tpu.dot_dimension_numbers<[1], [0], [0], [1], [0, 0, 1, 1], [], []>} : vector<2x128xf32>, vector<128x128xf32>, vector<2x128xf32> -> vector<2x128xf32>
      %c0_48 = arith.constant 0 : index
      %c0_49 = arith.constant 0 : index
      %98 = vector.load %arg11[%c0_48, %c0_49] : memref<1x128xf32, #tpu.memory_space<vmem>>, vector<1x128xf32>
      %99 = vector.broadcast %98 : vector<1x128xf32> to vector<2x128xf32>
      %100 = arith.addf %97, %99 : vector<2x128xf32>
      %c0_50 = arith.constant 0 : index
      %c0_51 = arith.constant 0 : index
      %101 = vector.load %arg13[%c0_50, %c0_51] : memref<2x128xf32, #tpu.memory_space<vmem>>, vector<2x128xf32>
      tpu.vector_store %arg13[%c0_50, %c0_51], %100 {strides = array<i32>} : memref<2x128xf32, #tpu.memory_space<vmem>>, vector<2x128xf32>,
    } else {
    }
    return
  }
  func.func @transform_0(%arg0: i32) -> (i32, i32) {
    %c0_i32 = arith.constant 0 : i32
    %c0_i32_0 = arith.constant 0 : i32
    return %c0_i32, %arg0 : i32, i32
  }
  func.func @transform_1(%arg0: i32) -> (i32, i32) {
    %c0_i32 = arith.constant 0 : i32
    %c0_i32_0 = arith.constant 0 : i32
    return %arg0, %c0_i32 : i32, i32
  }
  func.func @transform_2(%arg0: i32) -> (i32, i32) {
    %c0_i32 = arith.constant 0 : i32
    %c0_i32_0 = arith.constant 0 : i32
    %c0_i32_1 = arith.constant 0 : i32
    return %c0_i32, %c0_i32_0 : i32, i32
  }
  func.func @transform_3(%arg0: i32) -> (i32, i32) {
    %c0_i32 = arith.constant 0 : i32
    %c0_i32_0 = arith.constant 0 : i32
    %c0_i32_1 = arith.constant 0 : i32
    return %c0_i32, %c0_i32_0 : i32, i32
  }
  func.func @transform_4(%arg0: i32) -> (i32, i32) {
    %c0_i32 = arith.constant 0 : i32
    %c0_i32_0 = arith.constant 0 : i32
    %c0_i32_1 = arith.constant 0 : i32
    return %c0_i32, %c0_i32_0 : i32, i32
  }
  func.func @transform_5(%arg0: i32) -> (i32, i32) {
    %c0_i32 = arith.constant 0 : i32
    %c0_i32_0 = arith.constant 0 : i32
    %c0_i32_1 = arith.constant 0 : i32
    return %c0_i32, %c0_i32_0 : i32, i32
  }
  func.func @transform_6(%arg0: i32) -> (i32, i32) {
    %c0_i32 = arith.constant 0 : i32
    %c0_i32_0 = arith.constant 0 : i32
    %c0_i32_1 = arith.constant 0 : i32
    return %c0_i32, %c0_i32_0 : i32, i32
  }
  func.func @transform_7(%arg0: i32) -> (i32, i32) {
    %c0_i32 = arith.constant 0 : i32
    %c0_i32_0 = arith.constant 0 : i32
    %c0_i32_1 = arith.constant 0 : i32
    return %c0_i32, %c0_i32_0 : i32, i32
  }
  func.func @transform_8(%arg0: i32) -> (i32, i32) {
    %c0_i32 = arith.constant 0 : i32
    %c0_i32_0 = arith.constant 0 : i32
    %c0_i32_1 = arith.constant 0 : i32
    return %c0_i32, %c0_i32_0 : i32, i32
  }
  func.func @transform_9(%arg0: i32) -> (i32, i32) {
    %c0_i32 = arith.constant 0 : i32
    %c0_i32_0 = arith.constant 0 : i32
    %c0_i32_1 = arith.constant 0 : i32
    return %c0_i32, %c0_i32_0 : i32, i32
  }
  func.func @transform_10(%arg0: i32) -> (i32, i32) {
    %c0_i32 = arith.constant 0 : i32
    %c0_i32_0 = arith.constant 0 : i32
    %c0_i32_1 = arith.constant 0 : i32
    return %c0_i32, %c0_i32_0 : i32, i32
  }
  func.func @transform_11(%arg0: i32) -> (i32, i32) {
    %c0_i32 = arith.constant 0 : i32
    %c0_i32_0 = arith.constant 0 : i32
    %c0_i32_1 = arith.constant 0 : i32
    return %c0_i32, %c0_i32_0 : i32, i32
  }
  func.func @transform_12(%arg0: i32) -> (i32, i32) {
    %c0_i32 = arith.constant 0 : i32
    %c0_i32_0 = arith.constant 0 : i32
    %c0_i32_1 = arith.constant 0 : i32
    return %c0_i32, %c0_i32_0 : i32, i32
  }
}

</mosaic_0001>

<llo_original>
// kernel: netD_forward.3
$region0: #{netD_forward.3}
  #allocation0 [shape = 'u32[]', space=smem, size = 0x4, offset = 0x4, fixed_abs, tag = 'smem constant byte address 0x4 - core index']
  #allocation1 [shape = 'u32[144,128]{1,0:T(1,128)}', space=vmem, size = 0x12000, scoped, tag = 'internal scratch']
  %s0 = inlined_call_operand.vmem [shape: f32[392,16], index: 0, kind: input, shape index: {}]
  %s1 = inlined_call_operand.hbm [shape: f32[16,128], index: 1, kind: input, shape index: {}]
  %s2 = inlined_call_operand.vmem [shape: f32[392,128], index: 2, kind: output, shape index: {}]
  %s3 = sld [smem:[#allocation0]]
  $region22: #{netD_forward.3} parent=0
    _
  %s5 = ssub.s32 1, %s3
  %s6 = scalar_select 0, %s5, %s3
  $region1: #{netD_forward.3} parent=0
    #allocation2 [shape = 'u8[8192]{0}', space=vmem, size = 0x2000, scoped, tag = 'input window, operand 1, single buffered']
    #allocation3 [shape = 's32[1]{0}', space=sflag, size = 0x4, scoped, tag = 'scoped memory for netD_forward.3']
    %7 = vsyncpa [#allocation3], 0
    // Predicated region
    $region2: #{netD_forward.3} parent=1 // pred_check
      _
    $region3: #{netD_forward.3} parent=1 // pred_check_branch
      %9 = sbr.rel (0) target = $region5
    $region4: #{netD_forward.3} parent=1 // pred_region
      _
    $region5: #{netD_forward.3} parent=1 // pred_fallthru
      _
    // Predicated region
    $region6: #{netD_forward.3} parent=1 // pred_check
      _
    $region7: #{netD_forward.3} parent=1 // pred_check_branch
      %11 = sbr.rel (0) target = $region9
    $region8: #{netD_forward.3} parent=1 // pred_region
      %s13 = ssub.s32 256, 256
      %14 = vsyncadd [#allocation3], %s13
      %s15 = sshll.u32 [#allocation2], 4
      %s16 = int_to_ptr.vmem [resolvable:$true] %s15
      %21 = dma.hbm_to_vmem [thread:$0]  %s1, 256, %s16, [#allocation3], 128, 128, 8
    $region9: #{netD_forward.3} parent=1 // pred_fallthru
      _
    // Predicated region
    $region10: #{netD_forward.3} parent=1 // pred_check
      _
    $region11: #{netD_forward.3} parent=1 // pred_check_branch
      %23 = sbr.rel (0) target = $region13
    $region12: #{netD_forward.3} parent=1 // pred_region
      %24 = dma.done [#allocation3], 256
    $region13: #{netD_forward.3} parent=1 // pred_fallthru
      _
    %v25 = vld [vmem:[%s0] sm:$0xff]
    %v26 = vld [vmem:[%s0 + $0x8] sm:$0xff]
    %v27 = vld [vmem:[%s0 + $0x10] sm:$0xff]
    %v28 = vld [vmem:[%s0 + $0x18] sm:$0xff]
    %v29 = vld [vmem:[%s0 + $0x20] sm:$0xff]
    %v30 = vld [vmem:[%s0 + $0x28] sm:$0xff]
    %v31 = vld [vmem:[%s0 + $0x30] sm:$0xff]
    %v32 = vld [vmem:[%s0 + $0x38] sm:$0xff]
    %v33 = vld [vmem:[%s0 + $0x40] sm:$0xff]
    %v34 = vld [vmem:[%s0 + $0x48] sm:$0xff]
    %v35 = vld [vmem:[%s0 + $0x50] sm:$0xff]
    %v36 = vld [vmem:[%s0 + $0x58] sm:$0xff]
    %v37 = vld [vmem:[%s0 + $0x60] sm:$0xff]
    %v38 = vld [vmem:[%s0 + $0x68] sm:$0xff]
    %v39 = vld [vmem:[%s0 + $0x70] sm:$0xff]
    %v40 = vld [vmem:[%s0 + $0x78] sm:$0xff]
    %v41 = vld [vmem:[%s0 + $0x80] sm:$0xff]
    %v42 = vld [vmem:[%s0 + $0x88] sm:$0xff]
    %v43 = vld [vmem:[%s0 + $0x90] sm:$0xff]
    %v44 = vld [vmem:[%s0 + $0x98] sm:$0xff]
    %v45 = vld [vmem:[%s0 + $0xa0] sm:$0xff]
    %v46 = vld [vmem:[%s0 + $0xa8] sm:$0xff]
    %v47 = vld [vmem:[%s0 + $0xb0] sm:$0xff]
    %v48 = vld [vmem:[%s0 + $0xb8] sm:$0xff]
    %v49 = vld [vmem:[%s0 + $0xc0] sm:$0xff]
    %v50 = vld [vmem:[%s0 + $0xc8] sm:$0xff]
    %v51 = vld [vmem:[%s0 + $0xd0] sm:$0xff]
    %v52 = vld [vmem:[%s0 + $0xd8] sm:$0xff]
    %v53 = vld [vmem:[%s0 + $0xe0] sm:$0xff]
    %v54 = vld [vmem:[%s0 + $0xe8] sm:$0xff]
    %v55 = vld [vmem:[%s0 + $0xf0] sm:$0xff]
    %v56 = vld [vmem:[%s0 + $0xf8] sm:$0xff]
    %v57 = vld [vmem:[%s0 + $0x100] sm:$0xff]
    %v58 = vld [vmem:[%s0 + $0x108] sm:$0xff]
    %v59 = vld [vmem:[%s0 + $0x110] sm:$0xff]
    %v60 = vld [vmem:[%s0 + $0x118] sm:$0xff]
    %v61 = vld [vmem:[%s0 + $0x120] sm:$0xff]
    %v62 = vld [vmem:[%s0 + $0x128] sm:$0xff]
    %v63 = vld [vmem:[%s0 + $0x130] sm:$0xff]
    %v64 = vld [vmem:[%s0 + $0x138] sm:$0xff]
    %v65 = vld [vmem:[%s0 + $0x140] sm:$0xff]
    %v66 = vld [vmem:[%s0 + $0x148] sm:$0xff]
    %v67 = vld [vmem:[%s0 + $0x150] sm:$0xff]
    %v68 = vld [vmem:[%s0 + $0x158] sm:$0xff]
    %v69 = vld [vmem:[%s0 + $0x160] sm:$0xff]
    %v70 = vld [vmem:[%s0 + $0x168] sm:$0xff]
    %v71 = vld [vmem:[%s0 + $0x170] sm:$0xff]
    %v72 = vld [vmem:[%s0 + $0x178] sm:$0xff]
    %v73 = vld [vmem:[%s0 + $0x180] sm:$0xff]
    %v74 = vld [vmem:[#allocation2] sm:$0xff]
    %v75 = vld [vmem:[#allocation2 + $0x8] sm:$0xff]
    %vm76 = vcmask 130048
    %v78 = vsel %vm76, %v25, 0
    %v81 = vsel %vm76, %v26, 0
    %v84 = vsel %vm76, %v27, 0
    %v87 = vsel %vm76, %v28, 0
    %v90 = vsel %vm76, %v29, 0
    %v93 = vsel %vm76, %v30, 0
    %v96 = vsel %vm76, %v31, 0
    %v99 = vsel %vm76, %v32, 0
    %v102 = vsel %vm76, %v33, 0
    %v105 = vsel %vm76, %v34, 0
    %v108 = vsel %vm76, %v35, 0
    %v111 = vsel %vm76, %v36, 0
    %v114 = vsel %vm76, %v37, 0
    %v117 = vsel %vm76, %v38, 0
    %v120 = vsel %vm76, %v39, 0
    %v123 = vsel %vm76, %v40, 0
    %v126 = vsel %vm76, %v41, 0
    %v129 = vsel %vm76, %v42, 0
    %v132 = vsel %vm76, %v43, 0
    %v135 = vsel %vm76, %v44, 0
    %v138 = vsel %vm76, %v45, 0
    %v141 = vsel %vm76, %v46, 0
    %v144 = vsel %vm76, %v47, 0
    %v147 = vsel %vm76, %v48, 0
    %v150 = vsel %vm76, %v49, 0
    %v153 = vsel %vm76, %v50, 0
    %v156 = vsel %vm76, %v51, 0
    %v159 = vsel %vm76, %v52, 0
    %v162 = vsel %vm76, %v53, 0
    %v165 = vsel %vm76, %v54, 0
    %v168 = vsel %vm76, %v55, 0
    %v171 = vsel %vm76, %v56, 0
    %v174 = vsel %vm76, %v57, 0
    %v177 = vsel %vm76, %v58, 0
    %v180 = vsel %vm76, %v59, 0
    %v183 = vsel %vm76, %v60, 0
    %v186 = vsel %vm76, %v61, 0
    %v189 = vsel %vm76, %v62, 0
    %v192 = vsel %vm76, %v63, 0
    %v195 = vsel %vm76, %v64, 0
    %v198 = vsel %vm76, %v65, 0
    %v201 = vsel %vm76, %v66, 0
    %v204 = vsel %vm76, %v67, 0
    %v207 = vsel %vm76, %v68, 0
    %v210 = vsel %vm76, %v69, 0
    %v213 = vsel %vm76, %v70, 0
    %v216 = vsel %vm76, %v71, 0
    %v219 = vsel %vm76, %v72, 0
    %v222 = vsel %vm76, %v73, 0
    %224 = vmatprep.subr.mxu0 0.0
    %225 = vmatpush1.msra.mxu0 %v74
    %226 = vmatprep.subr.mxu0 0.0
    %227 = vmatpush1.msra.mxu0 %v75
    %228 = vmatprep.subr.mxu0 0.0
    %229 = vmatpush1.msra.mxu0 0.0
    %230 = vmatprep.subr.mxu0 0.0
    %231 = vmatpush1.msra.mxu0 0.0
    %232 = vmatprep.subr.mxu0 0.0
    %233 = vmatpush1.msra.mxu0 0.0
    %234 = vmatprep.subr.mxu0 0.0
    %235 = vmatpush1.msra.mxu0 0.0
    %236 = vmatprep.subr.mxu0 0.0
    %237 = vmatpush1.msra.mxu0 0.0
    %238 = vmatprep.subr.mxu0 0.0
    %239 = vmatpush1.msra.mxu0 0.0
    %240 = vmatprep.subr.mxu0 0.0
    %241 = vmatpush1.msra.mxu0 0.0
    %242 = vmatprep.subr.mxu0 0.0
    %243 = vmatpush1.msra.mxu0 0.0
    %244 = vmatprep.subr.mxu0 0.0
    %245 = vmatpush1.msra.mxu0 0.0
    %246 = vmatprep.subr.mxu0 0.0
    %247 = vmatpush1.msra.mxu0 0.0
    %248 = vmatprep.subr.mxu0 0.0
    %249 = vmatpush1.msra.mxu0 0.0
    %250 = vmatprep.subr.mxu0 0.0
    %251 = vmatpush1.msra.mxu0 0.0
    %252 = vmatprep.subr.mxu0 0.0
    %253 = vmatpush1.msra.mxu0 0.0
    %254 = vmatprep.subr.mxu0 0.0
    %255 = vmatpush1.msra.mxu0 0.0
    %256 = vmatprep.subr.mxu0 0.0
    %257 = vmatpush1.msra.mxu0 0.0
    %258 = vmatprep.subr.mxu0 0.0
    %259 = vmatpush1.msra.mxu0 0.0
    %260 = vmatprep.subr.mxu0 0.0
    %261 = vmatpush1.msra.mxu0 0.0
    %262 = vmatprep.subr.mxu0 0.0
    %263 = vmatpush1.msra.mxu0 0.0
    %264 = vmatprep.subr.mxu0 0.0
    %265 = vmatpush1.msra.mxu0 0.0
    %266 = vmatprep.subr.mxu0 0.0
    %267 = vmatpush1.msra.mxu0 0.0
    %268 = vmatprep.subr.mxu0 0.0
    %269 = vmatpush1.msra.mxu0 0.0
    %270 = vmatprep.subr.mxu0 0.0
    %271 = vmatpush1.msra.mxu0 0.0
    %272 = vmatprep.subr.mxu0 0.0
    %273 = vmatpush1.msra.mxu0 0.0
    %274 = vmatprep.subr.mxu0 0.0
    %275 = vmatpush1.msra.mxu0 0.0
    %276 = vmatprep.subr.mxu0 0.0
    %277 = vmatpush1.msra.mxu0 0.0
    %278 = vmatprep.subr.mxu0 0.0
    %279 = vmatpush1.msra.mxu0 0.0
    %280 = vmatprep.subr.mxu0 0.0
    %281 = vmatpush1.msra.mxu0 0.0
    %282 = vmatprep.subr.mxu0 0.0
    %283 = vmatpush1.msra.mxu0 0.0
    %284 = vmatprep.subr.mxu0 0.0
    %285 = vmatpush1.msra.mxu0 0.0
    %286 = vmatprep.subr.mxu0 0.0
    %287 = vmatpush1.msra.mxu0 0.0
    %288 = vmatprep.mubr.f32.mxu0 0.0
    %289 = vmatmul.mubr.f32.gmra.mrb[0].mxu0 %v78
    %v290 = vpop.f32.mrb[0].mxu0
    %v291 = vadd.f32 0.0, %v290
    %v292 = vpop.f32.mrb[0].mxu0
    %293 = vmatprep.mubr.f32.mxu0 0.0
    %294 = vmatmul.mubr.f32.gmra.mrb[0].mxu0 %v81
    %v295 = vpop.f32.mrb[0].mxu0
    %v296 = vadd.f32 0.0, %v295
    %v297 = vpop.f32.mrb[0].mxu0
    %298 = vmatprep.mubr.f32.mxu0 0.0
    %299 = vmatmul.mubr.f32.gmra.mrb[0].mxu0 %v84
    %v300 = vpop.f32.mrb[0].mxu0
    %v301 = vadd.f32 0.0, %v300
    %v302 = vpop.f32.mrb[0].mxu0
    %303 = vmatprep.mubr.f32.mxu0 0.0
    %304 = vmatmul.mubr.f32.gmra.mrb[0].mxu0 %v87
    %v305 = vpop.f32.mrb[0].mxu0
    %v306 = vadd.f32 0.0, %v305
    %v307 = vpop.f32.mrb[0].mxu0
    %308 = vmatprep.mubr.f32.mxu0 0.0
    %309 = vmatmul.mubr.f32.gmra.mrb[0].mxu0 %v90
    %v310 = vpop.f32.mrb[0].mxu0
    %v311 = vadd.f32 0.0, %v310
    %v312 = vpop.f32.mrb[0].mxu0
    %313 = vmatprep.mubr.f32.mxu0 0.0
    %314 = vmatmul.mubr.f32.gmra.mrb[0].mxu0 %v93
    %v315 = vpop.f32.mrb[0].mxu0
    %v316 = vadd.f32 0.0, %v315
    %v317 = vpop.f32.mrb[0].mxu0
    %318 = vmatprep.mubr.f32.mxu0 0.0
    %319 = vmatmul.mubr.f32.gmra.mrb[0].mxu0 %v96
    %v320 = vpop.f32.mrb[0].mxu0
    %v321 = vadd.f32 0.0, %v320
    %v322 = vpop.f32.mrb[0].mxu0
    %323 = vmatprep.mubr.f32.mxu0 0.0
    %324 = vmatmul.mubr.f32.gmra.mrb[0].mxu0 %v99
    %v325 = vpop.f32.mrb[0].mxu0
    %v326 = vadd.f32 0.0, %v325
    %v327 = vpop.f32.mrb[0].mxu0
    %328 = vmatprep.mubr.f32.mxu0 0.0
    %329 = vmatmul.mubr.f32.gmra.mrb[0].mxu0 %v102
    %v330 = vpop.f32.mrb[0].mxu0
    %v331 = vadd.f32 0.0, %v330
    %v332 = vpop.f32.mrb[0].mxu0
    %333 = vmatprep.mubr.f32.mxu0 0.0
    %334 = vmatmul.mubr.f32.gmra.mrb[0].mxu0 %v105
    %v335 = vpop.f32.mrb[0].mxu0
    %v336 = vadd.f32 0.0, %v335
    %v337 = vpop.f32.mrb[0].mxu0
    %338 = vmatprep.mubr.f32.mxu0 0.0
    %339 = vmatmul.mubr.f32.gmra.mrb[0].mxu0 %v108
    %v340 = vpop.f32.mrb[0].mxu0
    %v341 = vadd.f32 0.0, %v340
    %v342 = vpop.f32.mrb[0].mxu0
    %343 = vmatprep.mubr.f32.mxu0 0.0
    %344 = vmatmul.mubr.f32.gmra.mrb[0].mxu0 %v111
    %v345 = vpop.f32.mrb[0].mxu0
    %v346 = vadd.f32 0.0, %v345
    %v347 = vpop.f32.mrb[0].mxu0
    %348 = vmatprep.mubr.f32.mxu0 0.0
    %349 = vmatmul.mubr.f32.gmra.mrb[0].mxu0 %v114
    %v350 = vpop.f32.mrb[0].mxu0
    %v351 = vadd.f32 0.0, %v350
    %v352 = vpop.f32.mrb[0].mxu0
    %353 = vmatprep.mubr.f32.mxu0 0.0
    %354 = vmatmul.mubr.f32.gmra.mrb[0].mxu0 %v117
    %v355 = vpop.f32.mrb[0].mxu0
    %v356 = vadd.f32 0.0, %v355
    %v357 = vpop.f32.mrb[0].mxu0
    %358 = vmatprep.mubr.f32.mxu0 0.0
    %359 = vmatmul.mubr.f32.gmra.mrb[0].mxu0 %v120
    %v360 = vpop.f32.mrb[0].mxu0
    %v361 = vadd.f32 0.0, %v360
    %v362 = vpop.f32.mrb[0].mxu0
    %363 = vmatprep.mubr.f32.mxu0 0.0
    %364 = vmatmul.mubr.f32.gmra.mrb[0].mxu0 %v123
    %v365 = vpop.f32.mrb[0].mxu0
    %v366 = vadd.f32 0.0, %v365
    %v367 = vpop.f32.mrb[0].mxu0
    %368 = vmatprep.mubr.f32.mxu0 0.0
    %369 = vmatmul.mubr.f32.gmra.mrb[0].mxu0 %v126
    %v370 = vpop.f32.mrb[0].mxu0
    %v371 = vadd.f32 0.0, %v370
    %v372 = vpop.f32.mrb[0].mxu0
    %373 = vmatprep.mubr.f32.mxu0 0.0
    %374 = vmatmul.mubr.f32.gmra.mrb[0].mxu0 %v129
    %v375 = vpop.f32.mrb[0].mxu0
    %v376 = vadd.f32 0.0, %v375
    %v377 = vpop.f32.mrb[0].mxu0
    %378 = vmatprep.mubr.f32.mxu0 0.0
    %379 = vmatmul.mubr.f32.gmra.mrb[0].mxu0 %v132
    %v380 = vpop.f32.mrb[0].mxu0
    %v381 = vadd.f32 0.0, %v380
    %v382 = vpop.f32.mrb[0].mxu0
    %383 = vmatprep.mubr.f32.mxu0 0.0
    %384 = vmatmul.mubr.f32.gmra.mrb[0].mxu0 %v135
    %v385 = vpop.f32.mrb[0].mxu0
    %v386 = vadd.f32 0.0, %v385
    %v387 = vpop.f32.mrb[0].mxu0
    %388 = vmatprep.mubr.f32.mxu0 0.0
    %389 = vmatmul.mubr.f32.gmra.mrb[0].mxu0 %v138
    %v390 = vpop.f32.mrb[0].mxu0
    %v391 = vadd.f32 0.0, %v390
    %v392 = vpop.f32.mrb[0].mxu0
    %393 = vmatprep.mubr.f32.mxu0 0.0
    %394 = vmatmul.mubr.f32.gmra.mrb[0].mxu0 %v141
    %v395 = vpop.f32.mrb[0].mxu0
    %v396 = vadd.f32 0.0, %v395
    %v397 = vpop.f32.mrb[0].mxu0
    %398 = vmatprep.mubr.f32.mxu0 0.0
    %399 = vmatmul.mubr.f32.gmra.mrb[0].mxu0 %v144
    %v400 = vpop.f32.mrb[0].mxu0
    %v401 = vadd.f32 0.0, %v400
    %v402 = vpop.f32.mrb[0].mxu0
    %403 = vmatprep.mubr.f32.mxu0 0.0
    %404 = vmatmul.mubr.f32.gmra.mrb[0].mxu0 %v147
    %v405 = vpop.f32.mrb[0].mxu0
    %v406 = vadd.f32 0.0, %v405
    %v407 = vpop.f32.mrb[0].mxu0
    %408 = vmatprep.mubr.f32.mxu0 0.0
    %409 = vmatmul.mubr.f32.gmra.mrb[0].mxu0 %v150
    %v410 = vpop.f32.mrb[0].mxu0
    %v411 = vadd.f32 0.0, %v410
    %v412 = vpop.f32.mrb[0].mxu0
    %413 = vmatprep.mubr.f32.mxu0 0.0
    %414 = vmatmul.mubr.f32.gmra.mrb[0].mxu0 %v153
    %v415 = vpop.f32.mrb[0].mxu0
    %v416 = vadd.f32 0.0, %v415
    %v417 = vpop.f32.mrb[0].mxu0
    %418 = vmatprep.mubr.f32.mxu0 0.0
    %419 = vmatmul.mubr.f32.gmra.mrb[0].mxu0 %v156
    %v420 = vpop.f32.mrb[0].mxu0
    %v421 = vadd.f32 0.0, %v420
    %v422 = vpop.f32.mrb[0].mxu0
    %423 = vmatprep.mubr.f32.mxu0 0.0
    %424 = vmatmul.mubr.f32.gmra.mrb[0].mxu0 %v159
    %v425 = vpop.f32.mrb[0].mxu0
    %v426 = vadd.f32 0.0, %v425
    %v427 = vpop.f32.mrb[0].mxu0
    %428 = vmatprep.mubr.f32.mxu0 0.0
    %429 = vmatmul.mubr.f32.gmra.mrb[0].mxu0 %v162
    %v430 = vpop.f32.mrb[0].mxu0
    %v431 = vadd.f32 0.0, %v430
    %v432 = vpop.f32.mrb[0].mxu0
    %433 = vmatprep.mubr.f32.mxu0 0.0
    %434 = vmatmul.mubr.f32.gmra.mrb[0].mxu0 %v165
    %v435 = vpop.f32.mrb[0].mxu0
    %v436 = vadd.f32 0.0, %v435
    %v437 = vpop.f32.mrb[0].mxu0
    %438 = vmatprep.mubr.f32.mxu0 0.0
    %439 = vmatmul.mubr.f32.gmra.mrb[0].mxu0 %v168
    %v440 = vpop.f32.mrb[0].mxu0
    %v441 = vadd.f32 0.0, %v440
    %v442 = vpop.f32.mrb[0].mxu0
    %443 = vmatprep.mubr.f32.mxu0 0.0
    %444 = vmatmul.mubr.f32.gmra.mrb[0].mxu0 %v171
    %v445 = vpop.f32.mrb[0].mxu0
    %v446 = vadd.f32 0.0, %v445
    %v447 = vpop.f32.mrb[0].mxu0
    %448 = vmatprep.mubr.f32.mxu0 0.0
    %449 = vmatmul.mubr.f32.gmra.mrb[0].mxu0 %v174
    %v450 = vpop.f32.mrb[0].mxu0
    %v451 = vadd.f32 0.0, %v450
    %v452 = vpop.f32.mrb[0].mxu0
    %453 = vmatprep.mubr.f32.mxu0 0.0
    %454 = vmatmul.mubr.f32.gmra.mrb[0].mxu0 %v177
    %v455 = vpop.f32.mrb[0].mxu0
    %v456 = vadd.f32 0.0, %v455
    %v457 = vpop.f32.mrb[0].mxu0
    %458 = vmatprep.mubr.f32.mxu0 0.0
    %459 = vmatmul.mubr.f32.gmra.mrb[0].mxu0 %v180
    %v460 = vpop.f32.mrb[0].mxu0
    %v461 = vadd.f32 0.0, %v460
    %v462 = vpop.f32.mrb[0].mxu0
    %463 = vmatprep.mubr.f32.mxu0 0.0
    %464 = vmatmul.mubr.f32.gmra.mrb[0].mxu0 %v183
    %v465 = vpop.f32.mrb[0].mxu0
    %v466 = vadd.f32 0.0, %v465
    %v467 = vpop.f32.mrb[0].mxu0
    %468 = vmatprep.mubr.f32.mxu0 0.0
    %469 = vmatmul.mubr.f32.gmra.mrb[0].mxu0 %v186
    %v470 = vpop.f32.mrb[0].mxu0
    %v471 = vadd.f32 0.0, %v470
    %v472 = vpop.f32.mrb[0].mxu0
    %473 = vmatprep.mubr.f32.mxu0 0.0
    %474 = vmatmul.mubr.f32.gmra.mrb[0].mxu0 %v189
    %v475 = vpop.f32.mrb[0].mxu0
    %v476 = vadd.f32 0.0, %v475
    %v477 = vpop.f32.mrb[0].mxu0
    %478 = vmatprep.mubr.f32.mxu0 0.0
    %479 = vmatmul.mubr.f32.gmra.mrb[0].mxu0 %v192
    %v480 = vpop.f32.mrb[0].mxu0
    %v481 = vadd.f32 0.0, %v480
    %v482 = vpop.f32.mrb[0].mxu0
    %483 = vmatprep.mubr.f32.mxu0 0.0
    %484 = vmatmul.mubr.f32.gmra.mrb[0].mxu0 %v195
    %v485 = vpop.f32.mrb[0].mxu0
    %v486 = vadd.f32 0.0, %v485
    %v487 = vpop.f32.mrb[0].mxu0
    %488 = vmatprep.mubr.f32.mxu0 0.0
    %489 = vmatmul.mubr.f32.gmra.mrb[0].mxu0 %v198
    %v490 = vpop.f32.mrb[0].mxu0
    %v491 = vadd.f32 0.0, %v490
    %v492 = vpop.f32.mrb[0].mxu0
    %493 = vmatprep.mubr.f32.mxu0 0.0
    %494 = vmatmul.mubr.f32.gmra.mrb[0].mxu0 %v201
    %v495 = vpop.f32.mrb[0].mxu0
    %v496 = vadd.f32 0.0, %v495
    %v497 = vpop.f32.mrb[0].mxu0
    %498 = vmatprep.mubr.f32.mxu0 0.0
    %499 = vmatmul.mubr.f32.gmra.mrb[0].mxu0 %v204
    %v500 = vpop.f32.mrb[0].mxu0
    %v501 = vadd.f32 0.0, %v500
    %v502 = vpop.f32.mrb[0].mxu0
    %503 = vmatprep.mubr.f32.mxu0 0.0
    %504 = vmatmul.mubr.f32.gmra.mrb[0].mxu0 %v207
    %v505 = vpop.f32.mrb[0].mxu0
    %v506 = vadd.f32 0.0, %v505
    %v507 = vpop.f32.mrb[0].mxu0
    %508 = vmatprep.mubr.f32.mxu0 0.0
    %509 = vmatmul.mubr.f32.gmra.mrb[0].mxu0 %v210
    %v510 = vpop.f32.mrb[0].mxu0
    %v511 = vadd.f32 0.0, %v510
    %v512 = vpop.f32.mrb[0].mxu0
    %513 = vmatprep.mubr.f32.mxu0 0.0
    %514 = vmatmul.mubr.f32.gmra.mrb[0].mxu0 %v213
    %v515 = vpop.f32.mrb[0].mxu0
    %v516 = vadd.f32 0.0, %v515
    %v517 = vpop.f32.mrb[0].mxu0
    %518 = vmatprep.mubr.f32.mxu0 0.0
    %519 = vmatmul.mubr.f32.gmra.mrb[0].mxu0 %v216
    %v520 = vpop.f32.mrb[0].mxu0
    %v521 = vadd.f32 0.0, %v520
    %v522 = vpop.f32.mrb[0].mxu0
    %523 = vmatprep.mubr.f32.mxu0 0.0
    %524 = vmatmul.mubr.f32.gmra.mrb[0].mxu0 %v219
    %v525 = vpop.f32.mrb[0].mxu0
    %v526 = vadd.f32 0.0, %v525
    %v527 = vpop.f32.mrb[0].mxu0
    %528 = vmatprep.mubr.f32.mxu0 0.0
    %529 = vmatmul.mubr.f32.gmra.mrb[0].mxu0 %v222
    %v530 = vpop.f32.mrb[0].mxu0
    %v531 = vadd.f32 0.0, %v530
    %v532 = vpop.f32.mrb[0].mxu0
    %533 = vdwg.mxu0
    %vm534 = vcmp.ge.f32.partialorder %v291, 0.0
    %vm535 = vcmp.ge.f32.partialorder %v296, 0.0
    %vm536 = vcmp.ge.f32.partialorder %v301, 0.0
    %vm537 = vcmp.ge.f32.partialorder %v306, 0.0
    %vm538 = vcmp.ge.f32.partialorder %v311, 0.0
    %vm539 = vcmp.ge.f32.partialorder %v316, 0.0
    %vm540 = vcmp.ge.f32.partialorder %v321, 0.0
    %vm541 = vcmp.ge.f32.partialorder %v326, 0.0
    %vm542 = vcmp.ge.f32.partialorder %v331, 0.0
    %vm543 = vcmp.ge.f32.partialorder %v336, 0.0
    %vm544 = vcmp.ge.f32.partialorder %v341, 0.0
    %vm545 = vcmp.ge.f32.partialorder %v346, 0.0
    %vm546 = vcmp.ge.f32.partialorder %v351, 0.0
    %vm547 = vcmp.ge.f32.partialorder %v356, 0.0
    %vm548 = vcmp.ge.f32.partialorder %v361, 0.0
    %vm549 = vcmp.ge.f32.partialorder %v366, 0.0
    %vm550 = vcmp.ge.f32.partialorder %v371, 0.0
    %vm551 = vcmp.ge.f32.partialorder %v376, 0.0
    %vm552 = vcmp.ge.f32.partialorder %v381, 0.0
    %vm553 = vcmp.ge.f32.partialorder %v386, 0.0
    %vm554 = vcmp.ge.f32.partialorder %v391, 0.0
    %vm555 = vcmp.ge.f32.partialorder %v396, 0.0
    %vm556 = vcmp.ge.f32.partialorder %v401, 0.0
    %vm557 = vcmp.ge.f32.partialorder %v406, 0.0
    %vm558 = vcmp.ge.f32.partialorder %v411, 0.0
    %vm559 = vcmp.ge.f32.partialorder %v416, 0.0
    %vm560 = vcmp.ge.f32.partialorder %v421, 0.0
    %vm561 = vcmp.ge.f32.partialorder %v426, 0.0
    %vm562 = vcmp.ge.f32.partialorder %v431, 0.0
    %vm563 = vcmp.ge.f32.partialorder %v436, 0.0
    %vm564 = vcmp.ge.f32.partialorder %v441, 0.0
    %vm565 = vcmp.ge.f32.partialorder %v446, 0.0
    %vm566 = vcmp.ge.f32.partialorder %v451, 0.0
    %vm567 = vcmp.ge.f32.partialorder %v456, 0.0
    %vm568 = vcmp.ge.f32.partialorder %v461, 0.0
    %vm569 = vcmp.ge.f32.partialorder %v466, 0.0
    %vm570 = vcmp.ge.f32.partialorder %v471, 0.0
    %vm571 = vcmp.ge.f32.partialorder %v476, 0.0
    %vm572 = vcmp.ge.f32.partialorder %v481, 0.0
    %vm573 = vcmp.ge.f32.partialorder %v486, 0.0
    %vm574 = vcmp.ge.f32.partialorder %v491, 0.0
    %vm575 = vcmp.ge.f32.partialorder %v496, 0.0
    %vm576 = vcmp.ge.f32.partialorder %v501, 0.0
    %vm577 = vcmp.ge.f32.partialorder %v506, 0.0
    %vm578 = vcmp.ge.f32.partialorder %v511, 0.0
    %vm579 = vcmp.ge.f32.partialorder %v516, 0.0
    %vm580 = vcmp.ge.f32.partialorder %v521, 0.0
    %vm581 = vcmp.ge.f32.partialorder %v526, 0.0
    %vm582 = vcmp.ge.f32.partialorder %v531, 0.0
    %v583 = vmul.f32 %v291, 0.1
    %v584 = vmul.f32 %v296, 0.1
    %v585 = vmul.f32 %v301, 0.1
    %v586 = vmul.f32 %v306, 0.1
    %v587 = vmul.f32 %v311, 0.1
    %v588 = vmul.f32 %v316, 0.1
    %v589 = vmul.f32 %v321, 0.1
    %v590 = vmul.f32 %v326, 0.1
    %v591 = vmul.f32 %v331, 0.1
    %v592 = vmul.f32 %v336, 0.1
    %v593 = vmul.f32 %v341, 0.1
    %v594 = vmul.f32 %v346, 0.1
    %v595 = vmul.f32 %v351, 0.1
    %v596 = vmul.f32 %v356, 0.1
    %v597 = vmul.f32 %v361, 0.1
    %v598 = vmul.f32 %v366, 0.1
    %v599 = vmul.f32 %v371, 0.1
    %v600 = vmul.f32 %v376, 0.1
    %v601 = vmul.f32 %v381, 0.1
    %v602 = vmul.f32 %v386, 0.1
    %v603 = vmul.f32 %v391, 0.1
    %v604 = vmul.f32 %v396, 0.1
    %v605 = vmul.f32 %v401, 0.1
    %v606 = vmul.f32 %v406, 0.1
    %v607 = vmul.f32 %v411, 0.1
    %v608 = vmul.f32 %v416, 0.1
    %v609 = vmul.f32 %v421, 0.1
    %v610 = vmul.f32 %v426, 0.1
    %v611 = vmul.f32 %v431, 0.1
    %v612 = vmul.f32 %v436, 0.1
    %v613 = vmul.f32 %v441, 0.1
    %v614 = vmul.f32 %v446, 0.1
    %v615 = vmul.f32 %v451, 0.1
    %v616 = vmul.f32 %v456, 0.1
    %v617 = vmul.f32 %v461, 0.1
    %v618 = vmul.f32 %v466, 0.1
    %v619 = vmul.f32 %v471, 0.1
    %v620 = vmul.f32 %v476, 0.1
    %v621 = vmul.f32 %v481, 0.1
    %v622 = vmul.f32 %v486, 0.1
    %v623 = vmul.f32 %v491, 0.1
    %v624 = vmul.f32 %v496, 0.1
    %v625 = vmul.f32 %v501, 0.1
    %v626 = vmul.f32 %v506, 0.1
    %v627 = vmul.f32 %v511, 0.1
    %v628 = vmul.f32 %v516, 0.1
    %v629 = vmul.f32 %v521, 0.1
    %v630 = vmul.f32 %v526, 0.1
    %v631 = vmul.f32 %v531, 0.1
    %v632 = vsel %vm534, %v291, %v583
    %v633 = vsel %vm535, %v296, %v584
    %v634 = vsel %vm536, %v301, %v585
    %v635 = vsel %vm537, %v306, %v586
    %v636 = vsel %vm538, %v311, %v587
    %v637 = vsel %vm539, %v316, %v588
    %v638 = vsel %vm540, %v321, %v589
    %v639 = vsel %vm541, %v326, %v590
    %v640 = vsel %vm542, %v331, %v591
    %v641 = vsel %vm543, %v336, %v592
    %v642 = vsel %vm544, %v341, %v593
    %v643 = vsel %vm545, %v346, %v594
    %v644 = vsel %vm546, %v351, %v595
    %v645 = vsel %vm547, %v356, %v596
    %v646 = vsel %vm548, %v361, %v597
    %v647 = vsel %vm549, %v366, %v598
    %v648 = vsel %vm550, %v371, %v599
    %v649 = vsel %vm551, %v376, %v600
    %v650 = vsel %vm552, %v381, %v601
    %v651 = vsel %vm553, %v386, %v602
    %v652 = vsel %vm554, %v391, %v603
    %v653 = vsel %vm555, %v396, %v604
    %v654 = vsel %vm556, %v401, %v605
    %v655 = vsel %vm557, %v406, %v606
    %v656 = vsel %vm558, %v411, %v607
    %v657 = vsel %vm559, %v416, %v608
    %v658 = vsel %vm560, %v421, %v609
    %v659 = vsel %vm561, %v426, %v610
    %v660 = vsel %vm562, %v431, %v611
    %v661 = vsel %vm563, %v436, %v612
    %v662 = vsel %vm564, %v441, %v613
    %v663 = vsel %vm565, %v446, %v614
    %v664 = vsel %vm566, %v451, %v615
    %v665 = vsel %vm567, %v456, %v616
    %v666 = vsel %vm568, %v461, %v617
    %v667 = vsel %vm569, %v466, %v618
    %v668 = vsel %vm570, %v471, %v619
    %v669 = vsel %vm571, %v476, %v620
    %v670 = vsel %vm572, %v481, %v621
    %v671 = vsel %vm573, %v486, %v622
    %v672 = vsel %vm574, %v491, %v623
    %v673 = vsel %vm575, %v496, %v624
    %v674 = vsel %vm576, %v501, %v625
    %v675 = vsel %vm577, %v506, %v626
    %v676 = vsel %vm578, %v511, %v627
    %v677 = vsel %vm579, %v516, %v628
    %v678 = vsel %vm580, %v521, %v629
    %v679 = vsel %vm581, %v526, %v630
    %v680 = vsel %vm582, %v531, %v631
    %681 = vst [vmem:[%s2] sm:$0xff] %v632
    %682 = vst [vmem:[%s2 + $0x8] sm:$0xff] %v633
    %683 = vst [vmem:[%s2 + $0x10] sm:$0xff] %v634
    %684 = vst [vmem:[%s2 + $0x18] sm:$0xff] %v635
    %685 = vst [vmem:[%s2 + $0x20] sm:$0xff] %v636
    %686 = vst [vmem:[%s2 + $0x28] sm:$0xff] %v637
    %687 = vst [vmem:[%s2 + $0x30] sm:$0xff] %v638
    %688 = vst [vmem:[%s2 + $0x38] sm:$0xff] %v639
    %689 = vst [vmem:[%s2 + $0x40] sm:$0xff] %v640
    %690 = vst [vmem:[%s2 + $0x48] sm:$0xff] %v641
    %691 = vst [vmem:[%s2 + $0x50] sm:$0xff] %v642
    %692 = vst [vmem:[%s2 + $0x58] sm:$0xff] %v643
    %693 = vst [vmem:[%s2 + $0x60] sm:$0xff] %v644
    %694 = vst [vmem:[%s2 + $0x68] sm:$0xff] %v645
    %695 = vst [vmem:[%s2 + $0x70] sm:$0xff] %v646
    %696 = vst [vmem:[%s2 + $0x78] sm:$0xff] %v647
    %697 = vst [vmem:[%s2 + $0x80] sm:$0xff] %v648
    %698 = vst [vmem:[%s2 + $0x88] sm:$0xff] %v649
    %699 = vst [vmem:[%s2 + $0x90] sm:$0xff] %v650
    %700 = vst [vmem:[%s2 + $0x98] sm:$0xff] %v651
    %701 = vst [vmem:[%s2 + $0xa0] sm:$0xff] %v652
    %702 = vst [vmem:[%s2 + $0xa8] sm:$0xff] %v653
    %703 = vst [vmem:[%s2 + $0xb0] sm:$0xff] %v654
    %704 = vst [vmem:[%s2 + $0xb8] sm:$0xff] %v655
    %705 = vst [vmem:[%s2 + $0xc0] sm:$0xff] %v656
    %706 = vst [vmem:[%s2 + $0xc8] sm:$0xff] %v657
    %707 = vst [vmem:[%s2 + $0xd0] sm:$0xff] %v658
    %708 = vst [vmem:[%s2 + $0xd8] sm:$0xff] %v659
    %709 = vst [vmem:[%s2 + $0xe0] sm:$0xff] %v660
    %710 = vst [vmem:[%s2 + $0xe8] sm:$0xff] %v661
    %711 = vst [vmem:[%s2 + $0xf0] sm:$0xff] %v662
    %712 = vst [vmem:[%s2 + $0xf8] sm:$0xff] %v663
    %713 = vst [vmem:[%s2 + $0x100] sm:$0xff] %v664
    %714 = vst [vmem:[%s2 + $0x108] sm:$0xff] %v665
    %715 = vst [vmem:[%s2 + $0x110] sm:$0xff] %v666
    %716 = vst [vmem:[%s2 + $0x118] sm:$0xff] %v667
    %717 = vst [vmem:[%s2 + $0x120] sm:$0xff] %v668
    %718 = vst [vmem:[%s2 + $0x128] sm:$0xff] %v669
    %719 = vst [vmem:[%s2 + $0x130] sm:$0xff] %v670
    %720 = vst [vmem:[%s2 + $0x138] sm:$0xff] %v671
    %721 = vst [vmem:[%s2 + $0x140] sm:$0xff] %v672
    %722 = vst [vmem:[%s2 + $0x148] sm:$0xff] %v673
    %723 = vst [vmem:[%s2 + $0x150] sm:$0xff] %v674
    %724 = vst [vmem:[%s2 + $0x158] sm:$0xff] %v675
    %725 = vst [vmem:[%s2 + $0x160] sm:$0xff] %v676
    %726 = vst [vmem:[%s2 + $0x168] sm:$0xff] %v677
    %727 = vst [vmem:[%s2 + $0x170] sm:$0xff] %v678
    %728 = vst [vmem:[%s2 + $0x178] sm:$0xff] %v679
    %729 = vst [vmem:[%s2 + $0x180] sm:$0xff] %v680
    // Predicated region
    $region14: #{netD_forward.3} parent=1 // pred_check
      _
    $region15: #{netD_forward.3} parent=1 // pred_check_branch
      %731 = sbr.rel (0) target = $region17
    $region16: #{netD_forward.3} parent=1 // pred_region
      _
    $region17: #{netD_forward.3} parent=1 // pred_fallthru
      _
    // Predicated region
    $region18: #{netD_forward.3} parent=1 // pred_check
      _
    $region19: #{netD_forward.3} parent=1 // pred_check_branch
      %733 = sbr.rel (0) target = $region21
    $region20: #{netD_forward.3} parent=1 // pred_region
      _
    $region21: #{netD_forward.3} parent=1 // pred_fallthru
      _
    %734 = vsyncpa [#allocation3], 1

// kernel: netD_forward.4
$region0: #{netD_forward.4}
  #allocation0 [shape = 'u32[]', space=smem, size = 0x4, offset = 0x4, fixed_abs, tag = 'smem constant byte address 0x4 - core index']
  #allocation1 [shape = 'u32[144,128]{1,0:T(1,128)}', space=vmem, size = 0x12000, scoped, tag = 'internal scratch']
  %s0 = inlined_call_operand.vmem [shape: f32[98,2048], index: 0, kind: input, shape index: {}]
  %s1 = inlined_call_operand.hbm [shape: f32[2048,128], index: 1, kind: input, shape index: {}]
  %s2 = inlined_call_operand.hbm [shape: f32[1,128], index: 2, kind: input, shape index: {}]
  %s3 = inlined_call_operand.hbm [shape: f32[1,128], index: 3, kind: input, shape index: {}]
  %s4 = inlined_call_operand.vmem [shape: f32[98,128], index: 4, kind: output, shape index: {}]
  %s5 = sld [smem:[#allocation0]]
  $region38: #{netD_forward.4} parent=0
    _
  %s7 = ssub.s32 1, %s5
  %s8 = scalar_select 0, %s7, %s5
  $region1: #{netD_forward.4} parent=0
    #allocation2 [shape = 'u8[1048576]{0}', space=vmem, size = 0x100000, scoped, tag = 'input window, operand 1, single buffered']
    #allocation3 [shape = 's32[1]{0}', space=sflag, size = 0x4, scoped, tag = 'scoped memory for netD_forward.4']
    #allocation4 [shape = 'u8[512]{0}', space=vmem, size = 0x400, scoped, tag = 'input window, operand 2, single buffered']
    #allocation5 [shape = 's32[1]{0}', space=sflag, size = 0x4, scoped, tag = 'scoped memory for netD_forward.4']
    #allocation6 [shape = 'u8[512]{0}', space=vmem, size = 0x400, scoped, tag = 'input window, operand 3, single buffered']
    %9 = vsyncpa [#allocation3], 0
    %10 = vsyncpa [#allocation5], 0
    // Predicated region
    $region2: #{netD_forward.4} parent=1 // pred_check
      _
    $region3: #{netD_forward.4} parent=1 // pred_check_branch
      %12 = sbr.rel (0) target = $region5
    $region4: #{netD_forward.4} parent=1 // pred_region
      _
    $region5: #{netD_forward.4} parent=1 // pred_fallthru
      _
    // Predicated region
    $region6: #{netD_forward.4} parent=1 // pred_check
      _
    $region7: #{netD_forward.4} parent=1 // pred_check_branch
      %14 = sbr.rel (0) target = $region9
    $region8: #{netD_forward.4} parent=1 // pred_region
      %s16 = ssub.s32 32768, 32768
      %17 = vsyncadd [#allocation3], %s16
      %s18 = sshll.u32 [#allocation2], 4
      %s19 = int_to_ptr.vmem [resolvable:$true] %s18
      %24 = dma.hbm_to_vmem [thread:$0]  %s1, 32768, %s19, [#allocation3], 128, 128, 8
    $region9: #{netD_forward.4} parent=1 // pred_fallthru
      _
    // Predicated region
    $region10: #{netD_forward.4} parent=1 // pred_check
      _
    $region11: #{netD_forward.4} parent=1 // pred_check_branch
      %26 = sbr.rel (0) target = $region13
    $region12: #{netD_forward.4} parent=1 // pred_region
      %s28 = ssub.s32 16, 16
      %29 = vsyncadd [#allocation5], %s28
      %s31 = sshll.u32 [#allocation4], 4
      %s32 = int_to_ptr.vmem [resolvable:$true] %s31
      %34 = dma.hbm_to_vmem [thread:$0]  %s2, 16, %s32, [#allocation5]
    $region13: #{netD_forward.4} parent=1 // pred_fallthru
      _
    // Predicated region
    $region14: #{netD_forward.4} parent=1 // pred_check
      _
    $region15: #{netD_forward.4} parent=1 // pred_check_branch
      %36 = sbr.rel (0) target = $region17
    $region16: #{netD_forward.4} parent=1 // pred_region
      %s38 = ssub.s32 16, 16
      %39 = vsyncadd [#allocation5], %s38
      %s41 = sshll.u32 [#allocation6], 4
      %s42 = int_to_ptr.vmem [resolvable:$true] %s41
      %44 = dma.hbm_to_vmem [thread:$0]  %s3, 16, %s42, [#allocation5]
    $region17: #{netD_forward.4} parent=1 // pred_fallthru
      _
    // Predicated region
    $region18: #{netD_forward.4} parent=1 // pred_check
      _
    $region19: #{netD_forward.4} parent=1 // pred_check_branch
      %46 = sbr.rel (0) target = $region21
    $region20: #{netD_forward.4} parent=1 // pred_region
      %47 = dma.done [#allocation3], 32768
    $region21: #{netD_forward.4} parent=1 // pred_fallthru
      _
    // Predicated region
    $region22: #{netD_forward.4} parent=1 // pred_check
      _
    $region23: #{netD_forward.4} parent=1 // pred_check_branch
      %49 = sbr.rel (0) target = $region25
    $region24: #{netD_forward.4} parent=1 // pred_region
      %50 = dma.done [#allocation5], 16
    $region25: #{netD_forward.4} parent=1 // pred_fallthru
      _
    // Predicated region
    $region26: #{netD_forward.4} parent=1 // pred_check
      _
    $region27: #{netD_forward.4} parent=1 // pred_check_branch
      %52 = sbr.rel (0) target = $region29
    $region28: #{netD_forward.4} parent=1 // pred_region
      %53 = dma.done [#allocation5], 16
    $region29: #{netD_forward.4} parent=1 // pred_fallthru
      _
    %v54 = vld [vmem:[%s0] sm:$0xff]
    %v55 = vld [vmem:[%s0 + $0x8] sm:$0xff]
    %v56 = vld [vmem:[%s0 + $0x10] sm:$0xff]
    %v57 = vld [vmem:[%s0 + $0x18] sm:$0xff]
    %v58 = vld [vmem:[%s0 + $0x20] sm:$0xff]
    %v59 = vld [vmem:[%s0 + $0x28] sm:$0xff]
    %v60 = vld [vmem:[%s0 + $0x30] sm:$0xff]
    %v61 = vld [vmem:[%s0 + $0x38] sm:$0xff]
    %v62 = vld [vmem:[%s0 + $0x40] sm:$0xff]
    %v63 = vld [vmem:[%s0 + $0x48] sm:$0xff]
    %v64 = vld [vmem:[%s0 + $0x50] sm:$0xff]
    %v65 = vld [vmem:[%s0 + $0x58] sm:$0xff]
    %v66 = vld [vmem:[%s0 + $0x60] sm:$0xff]
    %v67 = vld [vmem:[%s0 + $0x68] sm:$0xff]
    %v68 = vld [vmem:[%s0 + $0x70] sm:$0xff]
    %v69 = vld [vmem:[%s0 + $0x78] sm:$0xff]
    %v70 = vld [vmem:[%s0 + $0x80] sm:$0xff]
    %v71 = vld [vmem:[%s0 + $0x88] sm:$0xff]
    %v72 = vld [vmem:[%s0 + $0x90] sm:$0xff]
    %v73 = vld [vmem:[%s0 + $0x98] sm:$0xff]
    %v74 = vld [vmem:[%s0 + $0xa0] sm:$0xff]
    %v75 = vld [vmem:[%s0 + $0xa8] sm:$0xff]
    %v76 = vld [vmem:[%s0 + $0xb0] sm:$0xff]
    %v77 = vld [vmem:[%s0 + $0xb8] sm:$0xff]
    %v78 = vld [vmem:[%s0 + $0xc0] sm:$0xff]
    %v79 = vld [vmem:[%s0 + $0xc8] sm:$0xff]
    %v80 = vld [vmem:[%s0 + $0xd0] sm:$0xff]
    %v81 = vld [vmem:[%s0 + $0xd8] sm:$0xff]
    %v82 = vld [vmem:[%s0 + $0xe0] sm:$0xff]
    %v83 = vld [vmem:[%s0 + $0xe8] sm:$0xff]
    %v84 = vld [vmem:[%s0 + $0xf0] sm:$0xff]
    %v85 = vld [vmem:[%s0 + $0xf8] sm:$0xff]
    %v86 = vld [vmem:[%s0 + $0x100] sm:$0xff]
    %v87 = vld [vmem:[%s0 + $0x108] sm:$0xff]
    %v88 = vld [vmem:[%s0 + $0x110] sm:$0xff]
    %v89 = vld [vmem:[%s0 + $0x118] sm:$0xff]
    %v90 = vld [vmem:[%s0 + $0x120] sm:$0xff]
    %v91 = vld [vmem:[%s0 + $0x128] sm:$0xff]
    %v92 = vld [vmem:[%s0 + $0x130] sm:$0xff]
    %v93 = vld [vmem:[%s0 + $0x138] sm:$0xff]
    %v94 = vld [vmem:[%s0 + $0x140] sm:$0xff]
    %v95 = vld [vmem:[%s0 + $0x148] sm:$0xff]
    %v96 = vld [vmem:[%s0 + $0x150] sm:$0xff]
    %v97 = vld [vmem:[%s0 + $0x158] sm:$0xff]
    %v98 = vld [vmem:[%s0 + $0x160] sm:$0xff]
    %v99 = vld [vmem:[%s0 + $0x168] sm:$0xff]
    %v100 = vld [vmem:[%s0 + $0x170] sm:$0xff]
    %v101 = vld [vmem:[%s0 + $0x178] sm:$0xff]
    %v102 = vld [vmem:[%s0 + $0x180] sm:$0xff]
    %v103 = vld [vmem:[%s0 + $0x188] sm:$0xff]
    %v104 = vld [vmem:[%s0 + $0x190] sm:$0xff]
    %v105 = vld [vmem:[%s0 + $0x198] sm:$0xff]
    %v106 = vld [vmem:[%s0 + $0x1a0] sm:$0xff]
    %v107 = vld [vmem:[%s0 + $0x1a8] sm:$0xff]
    %v108 = vld [vmem:[%s0 + $0x1b0] sm:$0xff]
    %v109 = vld [vmem:[%s0 + $0x1b8] sm:$0xff]
    %v110 = vld [vmem:[%s0 + $0x1c0] sm:$0xff]
    %v111 = vld [vmem:[%s0 + $0x1c8] sm:$0xff]
    %v112 = vld [vmem:[%s0 + $0x1d0] sm:$0xff]
    %v113 = vld [vmem:[%s0 + $0x1d8] sm:$0xff]
    %v114 = vld [vmem:[%s0 + $0x1e0] sm:$0xff]
    %v115 = vld [vmem:[%s0 + $0x1e8] sm:$0xff]
    %v116 = vld [vmem:[%s0 + $0x1f0] sm:$0xff]
    %v117 = vld [vmem:[%s0 + $0x1f8] sm:$0xff]
    %v118 = vld [vmem:[%s0 + $0x200] sm:$0xff]
    %v119 = vld [vmem:[%s0 + $0x208] sm:$0xff]
    %v120 = vld [vmem:[%s0 + $0x210] sm:$0xff]
    %v121 = vld [vmem:[%s0 + $0x218] sm:$0xff]
    %v122 = vld [vmem:[%s0 + $0x220] sm:$0xff]
    %v123 = vld [vmem:[%s0 + $0x228] sm:$0xff]
    %v124 = vld [vmem:[%s0 + $0x230] sm:$0xff]
    %v125 = vld [vmem:[%s0 + $0x238] sm:$0xff]
    %v126 = vld [vmem:[%s0 + $0x240] sm:$0xff]
    %v127 = vld [vmem:[%s0 + $0x248] sm:$0xff]
    %v128 = vld [vmem:[%s0 + $0x250] sm:$0xff]
    %v129 = vld [vmem:[%s0 + $0x258] sm:$0xff]
    %v130 = vld [vmem:[%s0 + $0x260] sm:$0xff]
    %v131 = vld [vmem:[%s0 + $0x268] sm:$0xff]
    %v132 = vld [vmem:[%s0 + $0x270] sm:$0xff]
    %v133 = vld [vmem:[%s0 + $0x278] sm:$0xff]
    %v134 = vld [vmem:[%s0 + $0x280] sm:$0xff]
    %v135 = vld [vmem:[%s0 + $0x288] sm:$0xff]
    %v136 = vld [vmem:[%s0 + $0x290] sm:$0xff]
    %v137 = vld [vmem:[%s0 + $0x298] sm:$0xff]
    %v138 = vld [vmem:[%s0 + $0x2a0] sm:$0xff]
    %v139 = vld [vmem:[%s0 + $0x2a8] sm:$0xff]
    %v140 = vld [vmem:[%s0 + $0x2b0] sm:$0xff]
    %v141 = vld [vmem:[%s0 + $0x2b8] sm:$0xff]
    %v142 = vld [vmem:[%s0 + $0x2c0] sm:$0xff]
    %v143 = vld [vmem:[%s0 + $0x2c8] sm:$0xff]
    %v144 = vld [vmem:[%s0 + $0x2d0] sm:$0xff]
    %v145 = vld [vmem:[%s0 + $0x2d8] sm:$0xff]
    %v146 = vld [vmem:[%s0 + $0x2e0] sm:$0xff]
    %v147 = vld [vmem:[%s0 + $0x2e8] sm:$0xff]
    %v148 = vld [vmem:[%s0 + $0x2f0] sm:$0xff]
    %v149 = vld [vmem:[%s0 + $0x2f8] sm:$0xff]
    %v150 = vld [vmem:[%s0 + $0x300] sm:$0xff]
    %v151 = vld [vmem:[%s0 + $0x308] sm:$0xff]
    %v152 = vld [vmem:[%s0 + $0x310] sm:$0xff]
    %v153 = vld [vmem:[%s0 + $0x318] sm:$0xff]
    %v154 = vld [vmem:[%s0 + $0x320] sm:$0xff]
    %v155 = vld [vmem:[%s0 + $0x328] sm:$0xff]
    %v156 = vld [vmem:[%s0 + $0x330] sm:$0xff]
    %v157 = vld [vmem:[%s0 + $0x338] sm:$0xff]
    %v158 = vld [vmem:[%s0 + $0x340] sm:$0xff]
    %v159 = vld [vmem:[%s0 + $0x348] sm:$0xff]
    %v160 = vld [vmem:[%s0 + $0x350] sm:$0xff]
    %v161 = vld [vmem:[%s0 + $0x358] sm:$0xff]
    %v162 = vld [vmem:[%s0 + $0x360] sm:$0xff]
    %v163 = vld [vmem:[%s0 + $0x368] sm:$0xff]
    %v164 = vld [vmem:[%s0 + $0x370] sm:$0xff]
    %v165 = vld [vmem:[%s0 + $0x378] sm:$0xff]
    %v166 = vld [vmem:[%s0 + $0x380] sm:$0xff]
    %v167 = vld [vmem:[%s0 + $0x388] sm:$0xff]
    %v168 = vld [vmem:[%s0 + $0x390] sm:$0xff]
    %v169 = vld [vmem:[%s0 + $0x398] sm:$0xff]
    %v170 = vld [vmem:[%s0 + $0x3a0] sm:$0xff]
    %v171 = vld [vmem:[%s0 + $0x3a8] sm:$0xff]
    %v172 = vld [vmem:[%s0 + $0x3b0] sm:$0xff]
    %v173 = vld [vmem:[%s0 + $0x3b8] sm:$0xff]
    %v174 = vld [vmem:[%s0 + $0x3c0] sm:$0xff]
    %v175 = vld [vmem:[%s0 + $0x3c8] sm:$0xff]
    %v176 = vld [vmem:[%s0 + $0x3d0] sm:$0xff]
    %v177 = vld [vmem:[%s0 + $0x3d8] sm:$0xff]
    %v178 = vld [vmem:[%s0 + $0x3e0] sm:$0xff]
    %v179 = vld [vmem:[%s0 + $0x3e8] sm:$0xff]
    %v180 = vld [vmem:[%s0 + $0x3f0] sm:$0xff]
    %v181 = vld [vmem:[%s0 + $0x3f8] sm:$0xff]
    %v182 = vld [vmem:[%s0 + $0x400] sm:$0xff]
    %v183 = vld [vmem:[%s0 + $0x408] sm:$0xff]
    %v184 = vld [vmem:[%s0 + $0x410] sm:$0xff]
    %v185 = vld [vmem:[%s0 + $0x418] sm:$0xff]
    %v186 = vld [vmem:[%s0 + $0x420] sm:$0xff]
    %v187 = vld [vmem:[%s0 + $0x428] sm:$0xff]
    %v188 = vld [vmem:[%s0 + $0x430] sm:$0xff]
    %v189 = vld [vmem:[%s0 + $0x438] sm:$0xff]
    %v190 = vld [vmem:[%s0 + $0x440] sm:$0xff]
    %v191 = vld [vmem:[%s0 + $0x448] sm:$0xff]
    %v192 = vld [vmem:[%s0 + $0x450] sm:$0xff]
    %v193 = vld [vmem:[%s0 + $0x458] sm:$0xff]
    %v194 = vld [vmem:[%s0 + $0x460] sm:$0xff]
    %v195 = vld [vmem:[%s0 + $0x468] sm:$0xff]
    %v196 = vld [vmem:[%s0 + $0x470] sm:$0xff]
    %v197 = vld [vmem:[%s0 + $0x478] sm:$0xff]
    %v198 = vld [vmem:[%s0 + $0x480] sm:$0xff]
    %v199 = vld [vmem:[%s0 + $0x488] sm:$0xff]
    %v200 = vld [vmem:[%s0 + $0x490] sm:$0xff]
    %v201 = vld [vmem:[%s0 + $0x498] sm:$0xff]
    %v202 = vld [vmem:[%s0 + $0x4a0] sm:$0xff]
    %v203 = vld [vmem:[%s0 + $0x4a8] sm:$0xff]
    %v204 = vld [vmem:[%s0 + $0x4b0] sm:$0xff]
    %v205 = vld [vmem:[%s0 + $0x4b8] sm:$0xff]
    %v206 = vld [vmem:[%s0 + $0x4c0] sm:$0xff]
    %v207 = vld [vmem:[%s0 + $0x4c8] sm:$0xff]
    %v208 = vld [vmem:[%s0 + $0x4d0] sm:$0xff]
    %v209 = vld [vmem:[%s0 + $0x4d8] sm:$0xff]
    %v210 = vld [vmem:[%s0 + $0x4e0] sm:$0xff]
    %v211 = vld [vmem:[%s0 + $0x4e8] sm:$0xff]
    %v212 = vld [vmem:[%s0 + $0x4f0] sm:$0xff]
    %v213 = vld [vmem:[%s0 + $0x4f8] sm:$0xff]
    %v214 = vld [vmem:[%s0 + $0x500] sm:$0xff]
    %v215 = vld [vmem:[%s0 + $0x508] sm:$0xff]
    %v216 = vld [vmem:[%s0 + $0x510] sm:$0xff]
    %v217 = vld [vmem:[%s0 + $0x518] sm:$0xff]
    %v218 = vld [vmem:[%s0 + $0x520] sm:$0xff]
    %v219 = vld [vmem:[%s0 + $0x528] sm:$0xff]
    %v220 = vld [vmem:[%s0 + $0x530] sm:$0xff]
    %v221 = vld [vmem:[%s0 + $0x538] sm:$0xff]
    %v222 = vld [vmem:[%s0 + $0x540] sm:$0xff]
    %v223 = vld [vmem:[%s0 + $0x548] sm:$0xff]
    %v224 = vld [vmem:[%s0 + $0x550] sm:$0xff]
    %v225 = vld [vmem:[%s0 + $0x558] sm:$0xff]
    %v226 = vld [vmem:[%s0 + $0x560] sm:$0xff]
    %v227 = vld [vmem:[%s0 + $0x568] sm:$0xff]
    %v228 = vld [vmem:[%s0 + $0x570] sm:$0xff]
    %v229 = vld [vmem:[%s0 + $0x578] sm:$0xff]
    %v230 = vld [vmem:[%s0 + $0x580] sm:$0xff]
    %v231 = vld [vmem:[%s0 + $0x588] sm:$0xff]
    %v232 = vld [vmem:[%s0 + $0x590] sm:$0xff]
    %v233 = vld [vmem:[%s0 + $0x598] sm:$0xff]
    %v234 = vld [vmem:[%s0 + $0x5a0] sm:$0xff]
    %v235 = vld [vmem:[%s0 + $0x5a8] sm:$0xff]
    %v236 = vld [vmem:[%s0 + $0x5b0] sm:$0xff]
    %v237 = vld [vmem:[%s0 + $0x5b8] sm:$0xff]
    %v238 = vld [vmem:[%s0 + $0x5c0] sm:$0xff]
    %v239 = vld [vmem:[%s0 + $0x5c8] sm:$0xff]
    %v240 = vld [vmem:[%s0 + $0x5d0] sm:$0xff]
    %v241 = vld [vmem:[%s0 + $0x5d8] sm:$0xff]
    %v242 = vld [vmem:[%s0 + $0x5e0] sm:$0xff]
    %v243 = vld [vmem:[%s0 + $0x5e8] sm:$0xff]
    %v244 = vld [vmem:[%s0 + $0x5f0] sm:$0xff]
    %v245 = vld [vmem:[%s0 + $0x5f8] sm:$0xff]
    %v246 = vld [vmem:[%s0 + $0x600] sm:$0x3]
    %v247 = vld [vmem:[%s0 + $0x608] sm:$0x3]
    %v248 = vld [vmem:[%s0 + $0x610] sm:$0x3]
    %v249 = vld [vmem:[%s0 + $0x618] sm:$0x3]
    %v250 = vld [vmem:[%s0 + $0x620] sm:$0x3]
    %v251 = vld [vmem:[%s0 + $0x628] sm:$0x3]
    %v252 = vld [vmem:[%s0 + $0x630] sm:$0x3]
    %v253 = vld [vmem:[%s0 + $0x638] sm:$0x3]
    %v254 = vld [vmem:[%s0 + $0x640] sm:$0x3]
    %v255 = vld [vmem:[%s0 + $0x648] sm:$0x3]
    %v256 = vld [vmem:[%s0 + $0x650] sm:$0x3]
    %v257 = vld [vmem:[%s0 + $0x658] sm:$0x3]
    %v258 = vld [vmem:[%s0 + $0x660] sm:$0x3]
    %v259 = vld [vmem:[%s0 + $0x668] sm:$0x3]
    %v260 = vld [vmem:[%s0 + $0x670] sm:$0x3]
    %v261 = vld [vmem:[%s0 + $0x678] sm:$0x3]
    %v262 = vld [vmem:[#allocation2] sm:$0xff]
    %v263 = vld [vmem:[#allocation2 + $0x8] sm:$0xff]
    %v264 = vld [vmem:[#allocation2 + $0x10] sm:$0xff]
    %v265 = vld [vmem:[#allocation2 + $0x18] sm:$0xff]
    %v266 = vld [vmem:[#allocation2 + $0x20] sm:$0xff]
    %v267 = vld [vmem:[#allocation2 + $0x28] sm:$0xff]
    %v268 = vld [vmem:[#allocation2 + $0x30] sm:$0xff]
    %v269 = vld [vmem:[#allocation2 + $0x38] sm:$0xff]
    %v270 = vld [vmem:[#allocation2 + $0x40] sm:$0xff]
    %v271 = vld [vmem:[#allocation2 + $0x48] sm:$0xff]
    %v272 = vld [vmem:[#allocation2 + $0x50] sm:$0xff]
    %v273 = vld [vmem:[#allocation2 + $0x58] sm:$0xff]
    %v274 = vld [vmem:[#allocation2 + $0x60] sm:$0xff]
    %v275 = vld [vmem:[#allocation2 + $0x68] sm:$0xff]
    %v276 = vld [vmem:[#allocation2 + $0x70] sm:$0xff]
    %v277 = vld [vmem:[#allocation2 + $0x78] sm:$0xff]
    %v278 = vld [vmem:[#allocation2 + $0x80] sm:$0xff]
    %v279 = vld [vmem:[#allocation2 + $0x88] sm:$0xff]
    %v280 = vld [vmem:[#allocation2 + $0x90] sm:$0xff]
    %v281 = vld [vmem:[#allocation2 + $0x98] sm:$0xff]
    %v282 = vld [vmem:[#allocation2 + $0xa0] sm:$0xff]
    %v283 = vld [vmem:[#allocation2 + $0xa8] sm:$0xff]
    %v284 = vld [vmem:[#allocation2 + $0xb0] sm:$0xff]
    %v285 = vld [vmem:[#allocation2 + $0xb8] sm:$0xff]
    %v286 = vld [vmem:[#allocation2 + $0xc0] sm:$0xff]
    %v287 = vld [vmem:[#allocation2 + $0xc8] sm:$0xff]
    %v288 = vld [vmem:[#allocation2 + $0xd0] sm:$0xff]
    %v289 = vld [vmem:[#allocation2 + $0xd8] sm:$0xff]
    %v290 = vld [vmem:[#allocation2 + $0xe0] sm:$0xff]
    %v291 = vld [vmem:[#allocation2 + $0xe8] sm:$0xff]
    %v292 = vld [vmem:[#allocation2 + $0xf0] sm:$0xff]
    %v293 = vld [vmem:[#allocation2 + $0xf8] sm:$0xff]
    %v294 = vld [vmem:[#allocation2 + $0x100] sm:$0xff]
    %v295 = vld [vmem:[#allocation2 + $0x108] sm:$0xff]
    %v296 = vld [vmem:[#allocation2 + $0x110] sm:$0xff]
    %v297 = vld [vmem:[#allocation2 + $0x118] sm:$0xff]
    %v298 = vld [vmem:[#allocation2 + $0x120] sm:$0xff]
    %v299 = vld [vmem:[#allocation2 + $0x128] sm:$0xff]
    %v300 = vld [vmem:[#allocation2 + $0x130] sm:$0xff]
    %v301 = vld [vmem:[#allocation2 + $0x138] sm:$0xff]
    %v302 = vld [vmem:[#allocation2 + $0x140] sm:$0xff]
    %v303 = vld [vmem:[#allocation2 + $0x148] sm:$0xff]
    %v304 = vld [vmem:[#allocation2 + $0x150] sm:$0xff]
    %v305 = vld [vmem:[#allocation2 + $0x158] sm:$0xff]
    %v306 = vld [vmem:[#allocation2 + $0x160] sm:$0xff]
    %v307 = vld [vmem:[#allocation2 + $0x168] sm:$0xff]
    %v308 = vld [vmem:[#allocation2 + $0x170] sm:$0xff]
    %v309 = vld [vmem:[#allocation2 + $0x178] sm:$0xff]
    %v310 = vld [vmem:[#allocation2 + $0x180] sm:$0xff]
    %v311 = vld [vmem:[#allocation2 + $0x188] sm:$0xff]
    %v312 = vld [vmem:[#allocation2 + $0x190] sm:$0xff]
    %v313 = vld [vmem:[#allocation2 + $0x198] sm:$0xff]
    %v314 = vld [vmem:[#allocation2 + $0x1a0] sm:$0xff]
    %v315 = vld [vmem:[#allocation2 + $0x1a8] sm:$0xff]
    %v316 = vld [vmem:[#allocation2 + $0x1b0] sm:$0xff]
    %v317 = vld [vmem:[#allocation2 + $0x1b8] sm:$0xff]
    %v318 = vld [vmem:[#allocation2 + $0x1c0] sm:$0xff]
    %v319 = vld [vmem:[#allocation2 + $0x1c8] sm:$0xff]
    %v320 = vld [vmem:[#allocation2 + $0x1d0] sm:$0xff]
    %v321 = vld [vmem:[#allocation2 + $0x1d8] sm:$0xff]
    %v322 = vld [vmem:[#allocation2 + $0x1e0] sm:$0xff]
    %v323 = vld [vmem:[#allocation2 + $0x1e8] sm:$0xff]
    %v324 = vld [vmem:[#allocation2 + $0x1f0] sm:$0xff]
    %v325 = vld [vmem:[#allocation2 + $0x1f8] sm:$0xff]
    %v326 = vld [vmem:[#allocation2 + $0x200] sm:$0xff]
    %v327 = vld [vmem:[#allocation2 + $0x208] sm:$0xff]
    %v328 = vld [vmem:[#allocation2 + $0x210] sm:$0xff]
    %v329 = vld [vmem:[#allocation2 + $0x218] sm:$0xff]
    %v330 = vld [vmem:[#allocation2 + $0x220] sm:$0xff]
    %v331 = vld [vmem:[#allocation2 + $0x228] sm:$0xff]
    %v332 = vld [vmem:[#allocation2 + $0x230] sm:$0xff]
    %v333 = vld [vmem:[#allocation2 + $0x238] sm:$0xff]
    %v334 = vld [vmem:[#allocation2 + $0x240] sm:$0xff]
    %v335 = vld [vmem:[#allocation2 + $0x248] sm:$0xff]
    %v336 = vld [vmem:[#allocation2 + $0x250] sm:$0xff]
    %v337 = vld [vmem:[#allocation2 + $0x258] sm:$0xff]
    %v338 = vld [vmem:[#allocation2 + $0x260] sm:$0xff]
    %v339 = vld [vmem:[#allocation2 + $0x268] sm:$0xff]
    %v340 = vld [vmem:[#allocation2 + $0x270] sm:$0xff]
    %v341 = vld [vmem:[#allocation2 + $0x278] sm:$0xff]
    %v342 = vld [vmem:[#allocation2 + $0x280] sm:$0xff]
    %v343 = vld [vmem:[#allocation2 + $0x288] sm:$0xff]
    %v344 = vld [vmem:[#allocation2 + $0x290] sm:$0xff]
    %v345 = vld [vmem:[#allocation2 + $0x298] sm:$0xff]
    %v346 = vld [vmem:[#allocation2 + $0x2a0] sm:$0xff]
    %v347 = vld [vmem:[#allocation2 + $0x2a8] sm:$0xff]
    %v348 = vld [vmem:[#allocation2 + $0x2b0] sm:$0xff]
    %v349 = vld [vmem:[#allocation2 + $0x2b8] sm:$0xff]
    %v350 = vld [vmem:[#allocation2 + $0x2c0] sm:$0xff]
    %v351 = vld [vmem:[#allocation2 + $0x2c8] sm:$0xff]
    %v352 = vld [vmem:[#allocation2 + $0x2d0] sm:$0xff]
    %v353 = vld [vmem:[#allocation2 + $0x2d8] sm:$0xff]
    %v354 = vld [vmem:[#allocation2 + $0x2e0] sm:$0xff]
    %v355 = vld [vmem:[#allocation2 + $0x2e8] sm:$0xff]
    %v356 = vld [vmem:[#allocation2 + $0x2f0] sm:$0xff]
    %v357 = vld [vmem:[#allocation2 + $0x2f8] sm:$0xff]
    %v358 = vld [vmem:[#allocation2 + $0x300] sm:$0xff]
    %v359 = vld [vmem:[#allocation2 + $0x308] sm:$0xff]
    %v360 = vld [vmem:[#allocation2 + $0x310] sm:$0xff]
    %v361 = vld [vmem:[#allocation2 + $0x318] sm:$0xff]
    %v362 = vld [vmem:[#allocation2 + $0x320] sm:$0xff]
    %v363 = vld [vmem:[#allocation2 + $0x328] sm:$0xff]
    %v364 = vld [vmem:[#allocation2 + $0x330] sm:$0xff]
    %v365 = vld [vmem:[#allocation2 + $0x338] sm:$0xff]
    %v366 = vld [vmem:[#allocation2 + $0x340] sm:$0xff]
    %v367 = vld [vmem:[#allocation2 + $0x348] sm:$0xff]
    %v368 = vld [vmem:[#allocation2 + $0x350] sm:$0xff]
    %v369 = vld [vmem:[#allocation2 + $0x358] sm:$0xff]
    %v370 = vld [vmem:[#allocation2 + $0x360] sm:$0xff]
    %v371 = vld [vmem:[#allocation2 + $0x368] sm:$0xff]
    %v372 = vld [vmem:[#allocation2 + $0x370] sm:$0xff]
    %v373 = vld [vmem:[#allocation2 + $0x378] sm:$0xff]
    %v374 = vld [vmem:[#allocation2 + $0x380] sm:$0xff]
    %v375 = vld [vmem:[#allocation2 + $0x388] sm:$0xff]
    %v376 = vld [vmem:[#allocation2 + $0x390] sm:$0xff]
    %v377 = vld [vmem:[#allocation2 + $0x398] sm:$0xff]
    %v378 = vld [vmem:[#allocation2 + $0x3a0] sm:$0xff]
    %v379 = vld [vmem:[#allocation2 + $0x3a8] sm:$0xff]
    %v380 = vld [vmem:[#allocation2 + $0x3b0] sm:$0xff]
    %v381 = vld [vmem:[#allocation2 + $0x3b8] sm:$0xff]
    %v382 = vld [vmem:[#allocation2 + $0x3c0] sm:$0xff]
    %v383 = vld [vmem:[#allocation2 + $0x3c8] sm:$0xff]
    %v384 = vld [vmem:[#allocation2 + $0x3d0] sm:$0xff]
    %v385 = vld [vmem:[#allocation2 + $0x3d8] sm:$0xff]
    %v386 = vld [vmem:[#allocation2 + $0x3e0] sm:$0xff]
    %v387 = vld [vmem:[#allocation2 + $0x3e8] sm:$0xff]
    %v388 = vld [vmem:[#allocation2 + $0x3f0] sm:$0xff]
    %v389 = vld [vmem:[#allocation2 + $0x3f8] sm:$0xff]
    %v390 = vld [vmem:[#allocation2 + $0x400] sm:$0xff]
    %v391 = vld [vmem:[#allocation2 + $0x408] sm:$0xff]
    %v392 = vld [vmem:[#allocation2 + $0x410] sm:$0xff]
    %v393 = vld [vmem:[#allocation2 + $0x418] sm:$0xff]
    %v394 = vld [vmem:[#allocation2 + $0x420] sm:$0xff]
    %v395 = vld [vmem:[#allocation2 + $0x428] sm:$0xff]
    %v396 = vld [vmem:[#allocation2 + $0x430] sm:$0xff]
    %v397 = vld [vmem:[#allocation2 + $0x438] sm:$0xff]
    %v398 = vld [vmem:[#allocation2 + $0x440] sm:$0xff]
    %v399 = vld [vmem:[#allocation2 + $0x448] sm:$0xff]
    %v400 = vld [vmem:[#allocation2 + $0x450] sm:$0xff]
    %v401 = vld [vmem:[#allocation2 + $0x458] sm:$0xff]
    %v402 = vld [vmem:[#allocation2 + $0x460] sm:$0xff]
    %v403 = vld [vmem:[#allocation2 + $0x468] sm:$0xff]
    %v404 = vld [vmem:[#allocation2 + $0x470] sm:$0xff]
    %v405 = vld [vmem:[#allocation2 + $0x478] sm:$0xff]
    %v406 = vld [vmem:[#allocation2 + $0x480] sm:$0xff]
    %v407 = vld [vmem:[#allocation2 + $0x488] sm:$0xff]
    %v408 = vld [vmem:[#allocation2 + $0x490] sm:$0xff]
    %v409 = vld [vmem:[#allocation2 + $0x498] sm:$0xff]
    %v410 = vld [vmem:[#allocation2 + $0x4a0] sm:$0xff]
    %v411 = vld [vmem:[#allocation2 + $0x4a8] sm:$0xff]
    %v412 = vld [vmem:[#allocation2 + $0x4b0] sm:$0xff]
    %v413 = vld [vmem:[#allocation2 + $0x4b8] sm:$0xff]
    %v414 = vld [vmem:[#allocation2 + $0x4c0] sm:$0xff]
    %v415 = vld [vmem:[#allocation2 + $0x4c8] sm:$0xff]
    %v416 = vld [vmem:[#allocation2 + $0x4d0] sm:$0xff]
    %v417 = vld [vmem:[#allocation2 + $0x4d8] sm:$0xff]
    %v418 = vld [vmem:[#allocation2 + $0x4e0] sm:$0xff]
    %v419 = vld [vmem:[#allocation2 + $0x4e8] sm:$0xff]
    %v420 = vld [vmem:[#allocation2 + $0x4f0] sm:$0xff]
    %v421 = vld [vmem:[#allocation2 + $0x4f8] sm:$0xff]
    %v422 = vld [vmem:[#allocation2 + $0x500] sm:$0xff]
    %v423 = vld [vmem:[#allocation2 + $0x508] sm:$0xff]
    %v424 = vld [vmem:[#allocation2 + $0x510] sm:$0xff]
    %v425 = vld [vmem:[#allocation2 + $0x518] sm:$0xff]
    %v426 = vld [vmem:[#allocation2 + $0x520] sm:$0xff]
    %v427 = vld [vmem:[#allocation2 + $0x528] sm:$0xff]
    %v428 = vld [vmem:[#allocation2 + $0x530] sm:$0xff]
    %v429 = vld [vmem:[#allocation2 + $0x538] sm:$0xff]
    %v430 = vld [vmem:[#allocation2 + $0x540] sm:$0xff]
    %v431 = vld [vmem:[#allocation2 + $0x548] sm:$0xff]
    %v432 = vld [vmem:[#allocation2 + $0x550] sm:$0xff]
    %v433 = vld [vmem:[#allocation2 + $0x558] sm:$0xff]
    %v434 = vld [vmem:[#allocation2 + $0x560] sm:$0xff]
    %v435 = vld [vmem:[#allocation2 + $0x568] sm:$0xff]
    %v436 = vld [vmem:[#allocation2 + $0x570] sm:$0xff]
    %v437 = vld [vmem:[#allocation2 + $0x578] sm:$0xff]
    %v438 = vld [vmem:[#allocation2 + $0x580] sm:$0xff]
    %v439 = vld [vmem:[#allocation2 + $0x588] sm:$0xff]
    %v440 = vld [vmem:[#allocation2 + $0x590] sm:$0xff]
    %v441 = vld [vmem:[#allocation2 + $0x598] sm:$0xff]
    %v442 = vld [vmem:[#allocation2 + $0x5a0] sm:$0xff]
    %v443 = vld [vmem:[#allocation2 + $0x5a8] sm:$0xff]
    %v444 = vld [vmem:[#allocation2 + $0x5b0] sm:$0xff]
    %v445 = vld [vmem:[#allocation2 + $0x5b8] sm:$0xff]
    %v446 = vld [vmem:[#allocation2 + $0x5c0] sm:$0xff]
    %v447 = vld [vmem:[#allocation2 + $0x5c8] sm:$0xff]
    %v448 = vld [vmem:[#allocation2 + $0x5d0] sm:$0xff]
    %v449 = vld [vmem:[#allocation2 + $0x5d8] sm:$0xff]
    %v450 = vld [vmem:[#allocation2 + $0x5e0] sm:$0xff]
    %v451 = vld [vmem:[#allocation2 + $0x5e8] sm:$0xff]
    %v452 = vld [vmem:[#allocation2 + $0x5f0] sm:$0xff]
    %v453 = vld [vmem:[#allocation2 + $0x5f8] sm:$0xff]
    %v454 = vld [vmem:[#allocation2 + $0x600] sm:$0xff]
    %v455 = vld [vmem:[#allocation2 + $0x608] sm:$0xff]
    %v456 = vld [vmem:[#allocation2 + $0x610] sm:$0xff]
    %v457 = vld [vmem:[#allocation2 + $0x618] sm:$0xff]
    %v458 = vld [vmem:[#allocation2 + $0x620] sm:$0xff]
    %v459 = vld [vmem:[#allocation2 + $0x628] sm:$0xff]
    %v460 = vld [vmem:[#allocation2 + $0x630] sm:$0xff]
    %v461 = vld [vmem:[#allocation2 + $0x638] sm:$0xff]
    %v462 = vld [vmem:[#allocation2 + $0x640] sm:$0xff]
    %v463 = vld [vmem:[#allocation2 + $0x648] sm:$0xff]
    %v464 = vld [vmem:[#allocation2 + $0x650] sm:$0xff]
    %v465 = vld [vmem:[#allocation2 + $0x658] sm:$0xff]
    %v466 = vld [vmem:[#allocation2 + $0x660] sm:$0xff]
    %v467 = vld [vmem:[#allocation2 + $0x668] sm:$0xff]
    %v468 = vld [vmem:[#allocation2 + $0x670] sm:$0xff]
    %v469 = vld [vmem:[#allocation2 + $0x678] sm:$0xff]
    %v470 = vld [vmem:[#allocation2 + $0x680] sm:$0xff]
    %v471 = vld [vmem:[#allocation2 + $0x688] sm:$0xff]
    %v472 = vld [vmem:[#allocation2 + $0x690] sm:$0xff]
    %v473 = vld [vmem:[#allocation2 + $0x698] sm:$0xff]
    %v474 = vld [vmem:[#allocation2 + $0x6a0] sm:$0xff]
    %v475 = vld [vmem:[#allocation2 + $0x6a8] sm:$0xff]
    %v476 = vld [vmem:[#allocation2 + $0x6b0] sm:$0xff]
    %v477 = vld [vmem:[#allocation2 + $0x6b8] sm:$0xff]
    %v478 = vld [vmem:[#allocation2 + $0x6c0] sm:$0xff]
    %v479 = vld [vmem:[#allocation2 + $0x6c8] sm:$0xff]
    %v480 = vld [vmem:[#allocation2 + $0x6d0] sm:$0xff]
    %v481 = vld [vmem:[#allocation2 + $0x6d8] sm:$0xff]
    %v482 = vld [vmem:[#allocation2 + $0x6e0] sm:$0xff]
    %v483 = vld [vmem:[#allocation2 + $0x6e8] sm:$0xff]
    %v484 = vld [vmem:[#allocation2 + $0x6f0] sm:$0xff]
    %v485 = vld [vmem:[#allocation2 + $0x6f8] sm:$0xff]
    %v486 = vld [vmem:[#allocation2 + $0x700] sm:$0xff]
    %v487 = vld [vmem:[#allocation2 + $0x708] sm:$0xff]
    %v488 = vld [vmem:[#allocation2 + $0x710] sm:$0xff]
    %v489 = vld [vmem:[#allocation2 + $0x718] sm:$0xff]
    %v490 = vld [vmem:[#allocation2 + $0x720] sm:$0xff]
    %v491 = vld [vmem:[#allocation2 + $0x728] sm:$0xff]
    %v492 = vld [vmem:[#allocation2 + $0x730] sm:$0xff]
    %v493 = vld [vmem:[#allocation2 + $0x738] sm:$0xff]
    %v494 = vld [vmem:[#allocation2 + $0x740] sm:$0xff]
    %v495 = vld [vmem:[#allocation2 + $0x748] sm:$0xff]
    %v496 = vld [vmem:[#allocation2 + $0x750] sm:$0xff]
    %v497 = vld [vmem:[#allocation2 + $0x758] sm:$0xff]
    %v498 = vld [vmem:[#allocation2 + $0x760] sm:$0xff]
    %v499 = vld [vmem:[#allocation2 + $0x768] sm:$0xff]
    %v500 = vld [vmem:[#allocation2 + $0x770] sm:$0xff]
    %v501 = vld [vmem:[#allocation2 + $0x778] sm:$0xff]
    %v502 = vld [vmem:[#allocation2 + $0x780] sm:$0xff]
    %v503 = vld [vmem:[#allocation2 + $0x788] sm:$0xff]
    %v504 = vld [vmem:[#allocation2 + $0x790] sm:$0xff]
    %v505 = vld [vmem:[#allocation2 + $0x798] sm:$0xff]
    %v506 = vld [vmem:[#allocation2 + $0x7a0] sm:$0xff]
    %v507 = vld [vmem:[#allocation2 + $0x7a8] sm:$0xff]
    %v508 = vld [vmem:[#allocation2 + $0x7b0] sm:$0xff]
    %v509 = vld [vmem:[#allocation2 + $0x7b8] sm:$0xff]
    %v510 = vld [vmem:[#allocation2 + $0x7c0] sm:$0xff]
    %v511 = vld [vmem:[#allocation2 + $0x7c8] sm:$0xff]
    %v512 = vld [vmem:[#allocation2 + $0x7d0] sm:$0xff]
    %v513 = vld [vmem:[#allocation2 + $0x7d8] sm:$0xff]
    %v514 = vld [vmem:[#allocation2 + $0x7e0] sm:$0xff]
    %v515 = vld [vmem:[#allocation2 + $0x7e8] sm:$0xff]
    %v516 = vld [vmem:[#allocation2 + $0x7f0] sm:$0xff]
    %v517 = vld [vmem:[#allocation2 + $0x7f8] sm:$0xff]
    %518 = vmatprep.subr.mxu0 0.0
    %519 = vmatpush1.msra.mxu0 %v262
    %520 = vmatprep.subr.mxu0 0.0
    %521 = vmatpush1.msra.mxu0 %v263
    %522 = vmatprep.subr.mxu0 0.0
    %523 = vmatpush1.msra.mxu0 %v264
    %524 = vmatprep.subr.mxu0 0.0
    %525 = vmatpush1.msra.mxu0 %v265
    %526 = vmatprep.subr.mxu0 0.0
    %527 = vmatpush1.msra.mxu0 %v266
    %528 = vmatprep.subr.mxu0 0.0
    %529 = vmatpush1.msra.mxu0 %v267
    %530 = vmatprep.subr.mxu0 0.0
    %531 = vmatpush1.msra.mxu0 %v268
    %532 = vmatprep.subr.mxu0 0.0
    %533 = vmatpush1.msra.mxu0 %v269
    %534 = vmatprep.subr.mxu0 0.0
    %535 = vmatpush1.msra.mxu0 %v270
    %536 = vmatprep.subr.mxu0 0.0
    %537 = vmatpush1.msra.mxu0 %v271
    %538 = vmatprep.subr.mxu0 0.0
    %539 = vmatpush1.msra.mxu0 %v272
    %540 = vmatprep.subr.mxu0 0.0
    %541 = vmatpush1.msra.mxu0 %v273
    %542 = vmatprep.subr.mxu0 0.0
    %543 = vmatpush1.msra.mxu0 %v274
    %544 = vmatprep.subr.mxu0 0.0
    %545 = vmatpush1.msra.mxu0 %v275
    %546 = vmatprep.subr.mxu0 0.0
    %547 = vmatpush1.msra.mxu0 %v276
    %548 = vmatprep.subr.mxu0 0.0
    %549 = vmatpush1.msra.mxu0 %v277
    %550 = vmatprep.subr.mxu0 0.0
    %551 = vmatpush1.msra.mxu0 %v278
    %552 = vmatprep.subr.mxu0 0.0
    %553 = vmatpush1.msra.mxu0 %v279
    %554 = vmatprep.subr.mxu0 0.0
    %555 = vmatpush1.msra.mxu0 %v280
    %556 = vmatprep.subr.mxu0 0.0
    %557 = vmatpush1.msra.mxu0 %v281
    %558 = vmatprep.subr.mxu0 0.0
    %559 = vmatpush1.msra.mxu0 %v282
    %560 = vmatprep.subr.mxu0 0.0
    %561 = vmatpush1.msra.mxu0 %v283
    %562 = vmatprep.subr.mxu0 0.0
    %563 = vmatpush1.msra.mxu0 %v284
    %564 = vmatprep.subr.mxu0 0.0
    %565 = vmatpush1.msra.mxu0 %v285
    %566 = vmatprep.subr.mxu0 0.0
    %567 = vmatpush1.msra.mxu0 %v286
    %568 = vmatprep.subr.mxu0 0.0
    %569 = vmatpush1.msra.mxu0 %v287
    %570 = vmatprep.subr.mxu0 0.0
    %571 = vmatpush1.msra.mxu0 %v288
    %572 = vmatprep.subr.mxu0 0.0
    %573 = vmatpush1.msra.mxu0 %v289
    %574 = vmatprep.subr.mxu0 0.0
    %575 = vmatpush1.msra.mxu0 %v290
    %576 = vmatprep.subr.mxu0 0.0
    %577 = vmatpush1.msra.mxu0 %v291
    %578 = vmatprep.subr.mxu0 0.0
    %579 = vmatpush1.msra.mxu0 %v292
    %580 = vmatprep.subr.mxu0 0.0
    %581 = vmatpush1.msra.mxu0 %v293
    %582 = vmatprep.mubr.f32.mxu0 %v55
    %583 = vmatmul.mubr.f32.gmra.mrb[0].mxu0 %v54
    %v584 = vpop.f32.mrb[0].mxu0
    %v585 = vadd.f32 0.0, %v584
    %v586 = vpop.f32.mrb[0].mxu0
    %587 = vmatprep.mubr.f32.mxu0 %v71
    %588 = vmatmul.mubr.f32.gmra.mrb[0].mxu0 %v70
    %v589 = vpop.f32.mrb[0].mxu0
    %v590 = vadd.f32 0.0, %v589
    %v591 = vpop.f32.mrb[0].mxu0
    %592 = vmatprep.mubr.f32.mxu0 %v87
    %593 = vmatmul.mubr.f32.gmra.mrb[0].mxu0 %v86
    %v594 = vpop.f32.mrb[0].mxu0
    %v595 = vadd.f32 0.0, %v594
    %v596 = vpop.f32.mrb[0].mxu0
    %597 = vmatprep.mubr.f32.mxu0 %v103
    %598 = vmatmul.mubr.f32.gmra.mrb[0].mxu0 %v102
    %v599 = vpop.f32.mrb[0].mxu0
    %v600 = vadd.f32 0.0, %v599
    %v601 = vpop.f32.mrb[0].mxu0
    %602 = vmatprep.mubr.f32.mxu0 %v119
    %603 = vmatmul.mubr.f32.gmra.mrb[0].mxu0 %v118
    %v604 = vpop.f32.mrb[0].mxu0
    %v605 = vadd.f32 0.0, %v604
    %v606 = vpop.f32.mrb[0].mxu0
    %607 = vmatprep.mubr.f32.mxu0 %v135
    %608 = vmatmul.mubr.f32.gmra.mrb[0].mxu0 %v134
    %v609 = vpop.f32.mrb[0].mxu0
    %v610 = vadd.f32 0.0, %v609
    %v611 = vpop.f32.mrb[0].mxu0
    %612 = vmatprep.mubr.f32.mxu0 %v151
    %613 = vmatmul.mubr.f32.gmra.mrb[0].mxu0 %v150
    %v614 = vpop.f32.mrb[0].mxu0
    %v615 = vadd.f32 0.0, %v614
    %v616 = vpop.f32.mrb[0].mxu0
    %617 = vmatprep.mubr.f32.mxu0 %v167
    %618 = vmatmul.mubr.f32.gmra.mrb[0].mxu0 %v166
    %v619 = vpop.f32.mrb[0].mxu0
    %v620 = vadd.f32 0.0, %v619
    %v621 = vpop.f32.mrb[0].mxu0
    %622 = vmatprep.mubr.f32.mxu0 %v183
    %623 = vmatmul.mubr.f32.gmra.mrb[0].mxu0 %v182
    %v624 = vpop.f32.mrb[0].mxu0
    %v625 = vadd.f32 0.0, %v624
    %v626 = vpop.f32.mrb[0].mxu0
    %627 = vmatprep.mubr.f32.mxu0 %v199
    %628 = vmatmul.mubr.f32.gmra.mrb[0].mxu0 %v198
    %v629 = vpop.f32.mrb[0].mxu0
    %v630 = vadd.f32 0.0, %v629
    %v631 = vpop.f32.mrb[0].mxu0
    %632 = vmatprep.mubr.f32.mxu0 %v215
    %633 = vmatmul.mubr.f32.gmra.mrb[0].mxu0 %v214
    %v634 = vpop.f32.mrb[0].mxu0
    %v635 = vadd.f32 0.0, %v634
    %v636 = vpop.f32.mrb[0].mxu0
    %637 = vmatprep.mubr.f32.mxu0 %v231
    %638 = vmatmul.mubr.f32.gmra.mrb[0].mxu0 %v230
    %v639 = vpop.f32.mrb[0].mxu0
    %v640 = vadd.f32 0.0, %v639
    %v641 = vpop.f32.mrb[0].mxu0
    %642 = vmatprep.mubr.f32.mxu0 %v247
    %643 = vmatmul.mubr.f32.gmra.mrb[0].mxu0 %v246
    %v644 = vpop.f32.mrb[0].mxu0
    %v645 = vadd.f32 0.0, %v644
    %v646 = vpop.f32.mrb[0].mxu0
    %647 = vdwg.mxu0
    %648 = vmatprep.subr.mxu0 0.0
    %649 = vmatpush1.msra.mxu0 %v294
    %650 = vmatprep.subr.mxu0 0.0
    %651 = vmatpush1.msra.mxu0 %v295
    %652 = vmatprep.subr.mxu0 0.0
    %653 = vmatpush1.msra.mxu0 %v296
    %654 = vmatprep.subr.mxu0 0.0
    %655 = vmatpush1.msra.mxu0 %v297
    %656 = vmatprep.subr.mxu0 0.0
    %657 = vmatpush1.msra.mxu0 %v298
    %658 = vmatprep.subr.mxu0 0.0
    %659 = vmatpush1.msra.mxu0 %v299
    %660 = vmatprep.subr.mxu0 0.0
    %661 = vmatpush1.msra.mxu0 %v300
    %662 = vmatprep.subr.mxu0 0.0
    %663 = vmatpush1.msra.mxu0 %v301
    %664 = vmatprep.subr.mxu0 0.0
    %665 = vmatpush1.msra.mxu0 %v302
    %666 = vmatprep.subr.mxu0 0.0
    %667 = vmatpush1.msra.mxu0 %v303
    %668 = vmatprep.subr.mxu0 0.0
    %669 = vmatpush1.msra.mxu0 %v304
    %670 = vmatprep.subr.mxu0 0.0
    %671 = vmatpush1.msra.mxu0 %v305
    %672 = vmatprep.subr.mxu0 0.0
    %673 = vmatpush1.msra.mxu0 %v306
    %674 = vmatprep.subr.mxu0 0.0
    %675 = vmatpush1.msra.mxu0 %v307
    %676 = vmatprep.subr.mxu0 0.0
    %677 = vmatpush1.msra.mxu0 %v308
    %678 = vmatprep.subr.mxu0 0.0
    %679 = vmatpush1.msra.mxu0 %v309
    %680 = vmatprep.subr.mxu0 0.0
    %681 = vmatpush1.msra.mxu0 %v310
    %682 = vmatprep.subr.mxu0 0.0
    %683 = vmatpush1.msra.mxu0 %v311
    %684 = vmatprep.subr.mxu0 0.0
    %685 = vmatpush1.msra.mxu0 %v312
    %686 = vmatprep.subr.mxu0 0.0
    %687 = vmatpush1.msra.mxu0 %v313
    %688 = vmatprep.subr.mxu0 0.0
    %689 = vmatpush1.msra.mxu0 %v314
    %690 = vmatprep.subr.mxu0 0.0
    %691 = vmatpush1.msra.mxu0 %v315
    %692 = vmatprep.subr.mxu0 0.0
    %693 = vmatpush1.msra.mxu0 %v316
    %694 = vmatprep.subr.mxu0 0.0
    %695 = vmatpush1.msra.mxu0 %v317
    %696 = vmatprep.subr.mxu0 0.0
    %697 = vmatpush1.msra.mxu0 %v318
    %698 = vmatprep.subr.mxu0 0.0
    %699 = vmatpush1.msra.mxu0 %v319
    %700 = vmatprep.subr.mxu0 0.0
    %701 = vmatpush1.msra.mxu0 %v320
    %702 = vmatprep.subr.mxu0 0.0
    %703 = vmatpush1.msra.mxu0 %v321
    %704 = vmatprep.subr.mxu0 0.0
    %705 = vmatpush1.msra.mxu0 %v322
    %706 = vmatprep.subr.mxu0 0.0
    %707 = vmatpush1.msra.mxu0 %v323
    %708 = vmatprep.subr.mxu0 0.0
    %709 = vmatpush1.msra.mxu0 %v324
    %710 = vmatprep.subr.mxu0 0.0
    %711 = vmatpush1.msra.mxu0 %v325
    %712 = vmatprep.mubr.f32.mxu0 %v57
    %713 = vmatmul.mubr.f32.gmra.mrb[0].mxu0 %v56
    %v714 = vpop.f32.mrb[0].mxu0
    %v715 = vadd.f32 %v585, %v714
    %v716 = vpop.f32.mrb[0].mxu0
    %717 = vmatprep.mubr.f32.mxu0 %v73
    %718 = vmatmul.mubr.f32.gmra.mrb[0].mxu0 %v72
    %v719 = vpop.f32.mrb[0].mxu0
    %v720 = vadd.f32 %v590, %v719
    %v721 = vpop.f32.mrb[0].mxu0
    %722 = vmatprep.mubr.f32.mxu0 %v89
    %723 = vmatmul.mubr.f32.gmra.mrb[0].mxu0 %v88
    %v724 = vpop.f32.mrb[0].mxu0
    %v725 = vadd.f32 %v595, %v724
    %v726 = vpop.f32.mrb[0].mxu0
    %727 = vmatprep.mubr.f32.mxu0 %v105
    %728 = vmatmul.mubr.f32.gmra.mrb[0].mxu0 %v104
    %v729 = vpop.f32.mrb[0].mxu0
    %v730 = vadd.f32 %v600, %v729
    %v731 = vpop.f32.mrb[0].mxu0
    %732 = vmatprep.mubr.f32.mxu0 %v121
    %733 = vmatmul.mubr.f32.gmra.mrb[0].mxu0 %v120
    %v734 = vpop.f32.mrb[0].mxu0
    %v735 = vadd.f32 %v605, %v734
    %v736 = vpop.f32.mrb[0].mxu0
    %737 = vmatprep.mubr.f32.mxu0 %v137
    %738 = vmatmul.mubr.f32.gmra.mrb[0].mxu0 %v136
    %v739 = vpop.f32.mrb[0].mxu0
    %v740 = vadd.f32 %v610, %v739
    %v741 = vpop.f32.mrb[0].mxu0
    %742 = vmatprep.mubr.f32.mxu0 %v153
    %743 = vmatmul.mubr.f32.gmra.mrb[0].mxu0 %v152
    %v744 = vpop.f32.mrb[0].mxu0
    %v745 = vadd.f32 %v615, %v744
    %v746 = vpop.f32.mrb[0].mxu0
    %747 = vmatprep.mubr.f32.mxu0 %v169
    %748 = vmatmul.mubr.f32.gmra.mrb[0].mxu0 %v168
    %v749 = vpop.f32.mrb[0].mxu0
    %v750 = vadd.f32 %v620, %v749
    %v751 = vpop.f32.mrb[0].mxu0
    %752 = vmatprep.mubr.f32.mxu0 %v185
    %753 = vmatmul.mubr.f32.gmra.mrb[0].mxu0 %v184
    %v754 = vpop.f32.mrb[0].mxu0
    %v755 = vadd.f32 %v625, %v754
    %v756 = vpop.f32.mrb[0].mxu0
    %757 = vmatprep.mubr.f32.mxu0 %v201
    %758 = vmatmul.mubr.f32.gmra.mrb[0].mxu0 %v200
    %v759 = vpop.f32.mrb[0].mxu0
    %v760 = vadd.f32 %v630, %v759
    %v761 = vpop.f32.mrb[0].mxu0
    %762 = vmatprep.mubr.f32.mxu0 %v217
    %763 = vmatmul.mubr.f32.gmra.mrb[0].mxu0 %v216
    %v764 = vpop.f32.mrb[0].mxu0
    %v765 = vadd.f32 %v635, %v764
    %v766 = vpop.f32.mrb[0].mxu0
    %767 = vmatprep.mubr.f32.mxu0 %v233
    %768 = vmatmul.mubr.f32.gmra.mrb[0].mxu0 %v232
    %v769 = vpop.f32.mrb[0].mxu0
    %v770 = vadd.f32 %v640, %v769
    %v771 = vpop.f32.mrb[0].mxu0
    %772 = vmatprep.mubr.f32.mxu0 %v249
    %773 = vmatmul.mubr.f32.gmra.mrb[0].mxu0 %v248
    %v774 = vpop.f32.mrb[0].mxu0
    %v775 = vadd.f32 %v645, %v774
    %v776 = vpop.f32.mrb[0].mxu0
    %777 = vdwg.mxu0
    %778 = vmatprep.subr.mxu0 0.0
    %779 = vmatpush1.msra.mxu0 %v326
    %780 = vmatprep.subr.mxu0 0.0
    %781 = vmatpush1.msra.mxu0 %v327
    %782 = vmatprep.subr.mxu0 0.0
    %783 = vmatpush1.msra.mxu0 %v328
    %784 = vmatprep.subr.mxu0 0.0
    %785 = vmatpush1.msra.mxu0 %v329
    %786 = vmatprep.subr.mxu0 0.0
    %787 = vmatpush1.msra.mxu0 %v330
    %788 = vmatprep.subr.mxu0 0.0
    %789 = vmatpush1.msra.mxu0 %v331
    %790 = vmatprep.subr.mxu0 0.0
    %791 = vmatpush1.msra.mxu0 %v332
    %792 = vmatprep.subr.mxu0 0.0
    %793 = vmatpush1.msra.mxu0 %v333
    %794 = vmatprep.subr.mxu0 0.0
    %795 = vmatpush1.msra.mxu0 %v334
    %796 = vmatprep.subr.mxu0 0.0
    %797 = vmatpush1.msra.mxu0 %v335
    %798 = vmatprep.subr.mxu0 0.0
    %799 = vmatpush1.msra.mxu0 %v336
    %800 = vmatprep.subr.mxu0 0.0
    %801 = vmatpush1.msra.mxu0 %v337
    %802 = vmatprep.subr.mxu0 0.0
    %803 = vmatpush1.msra.mxu0 %v338
    %804 = vmatprep.subr.mxu0 0.0
    %805 = vmatpush1.msra.mxu0 %v339
    %806 = vmatprep.subr.mxu0 0.0
    %807 = vmatpush1.msra.mxu0 %v340
    %808 = vmatprep.subr.mxu0 0.0
    %809 = vmatpush1.msra.mxu0 %v341
    %810 = vmatprep.subr.mxu0 0.0
    %811 = vmatpush1.msra.mxu0 %v342
    %812 = vmatprep.subr.mxu0 0.0
    %813 = vmatpush1.msra.mxu0 %v343
    %814 = vmatprep.subr.mxu0 0.0
    %815 = vmatpush1.msra.mxu0 %v344
    %816 = vmatprep.subr.mxu0 0.0
    %817 = vmatpush1.msra.mxu0 %v345
    %818 = vmatprep.subr.mxu0 0.0
    %819 = vmatpush1.msra.mxu0 %v346
    %820 = vmatprep.subr.mxu0 0.0
    %821 = vmatpush1.msra.mxu0 %v347
    %822 = vmatprep.subr.mxu0 0.0
    %823 = vmatpush1.msra.mxu0 %v348
    %824 = vmatprep.subr.mxu0 0.0
    %825 = vmatpush1.msra.mxu0 %v349
    %826 = vmatprep.subr.mxu0 0.0
    %827 = vmatpush1.msra.mxu0 %v350
    %828 = vmatprep.subr.mxu0 0.0
    %829 = vmatpush1.msra.mxu0 %v351
    %830 = vmatprep.subr.mxu0 0.0
    %831 = vmatpush1.msra.mxu0 %v352
    %832 = vmatprep.subr.mxu0 0.0
    %833 = vmatpush1.msra.mxu0 %v353
    %834 = vmatprep.subr.mxu0 0.0
    %835 = vmatpush1.msra.mxu0 %v354
    %836 = vmatprep.subr.mxu0 0.0
    %837 = vmatpush1.msra.mxu0 %v355
    %838 = vmatprep.subr.mxu0 0.0
    %839 = vmatpush1.msra.mxu0 %v356
    %840 = vmatprep.subr.mxu0 0.0
    %841 = vmatpush1.msra.mxu0 %v357
    %842 = vmatprep.mubr.f32.mxu0 %v59
    %843 = vmatmul.mubr.f32.gmra.mrb[0].mxu0 %v58
    %v844 = vpop.f32.mrb[0].mxu0
    %v845 = vadd.f32 %v715, %v844
    %v846 = vpop.f32.mrb[0].mxu0
    %847 = vmatprep.mubr.f32.mxu0 %v75
    %848 = vmatmul.mubr.f32.gmra.mrb[0].mxu0 %v74
    %v849 = vpop.f32.mrb[0].mxu0
    %v850 = vadd.f32 %v720, %v849
    %v851 = vpop.f32.mrb[0].mxu0
    %852 = vmatprep.mubr.f32.mxu0 %v91
    %853 = vmatmul.mubr.f32.gmra.mrb[0].mxu0 %v90
    %v854 = vpop.f32.mrb[0].mxu0
    %v855 = vadd.f32 %v725, %v854
    %v856 = vpop.f32.mrb[0].mxu0
    %857 = vmatprep.mubr.f32.mxu0 %v107
    %858 = vmatmul.mubr.f32.gmra.mrb[0].mxu0 %v106
    %v859 = vpop.f32.mrb[0].mxu0
    %v860 = vadd.f32 %v730, %v859
    %v861 = vpop.f32.mrb[0].mxu0
    %862 = vmatprep.mubr.f32.mxu0 %v123
    %863 = vmatmul.mubr.f32.gmra.mrb[0].mxu0 %v122
    %v864 = vpop.f32.mrb[0].mxu0
    %v865 = vadd.f32 %v735, %v864
    %v866 = vpop.f32.mrb[0].mxu0
    %867 = vmatprep.mubr.f32.mxu0 %v139
    %868 = vmatmul.mubr.f32.gmra.mrb[0].mxu0 %v138
    %v869 = vpop.f32.mrb[0].mxu0
    %v870 = vadd.f32 %v740, %v869
    %v871 = vpop.f32.mrb[0].mxu0
    %872 = vmatprep.mubr.f32.mxu0 %v155
    %873 = vmatmul.mubr.f32.gmra.mrb[0].mxu0 %v154
    %v874 = vpop.f32.mrb[0].mxu0
    %v875 = vadd.f32 %v745, %v874
    %v876 = vpop.f32.mrb[0].mxu0
    %877 = vmatprep.mubr.f32.mxu0 %v171
    %878 = vmatmul.mubr.f32.gmra.mrb[0].mxu0 %v170
    %v879 = vpop.f32.mrb[0].mxu0
    %v880 = vadd.f32 %v750, %v879
    %v881 = vpop.f32.mrb[0].mxu0
    %882 = vmatprep.mubr.f32.mxu0 %v187
    %883 = vmatmul.mubr.f32.gmra.mrb[0].mxu0 %v186
    %v884 = vpop.f32.mrb[0].mxu0
    %v885 = vadd.f32 %v755, %v884
    %v886 = vpop.f32.mrb[0].mxu0
    %887 = vmatprep.mubr.f32.mxu0 %v203
    %888 = vmatmul.mubr.f32.gmra.mrb[0].mxu0 %v202
    %v889 = vpop.f32.mrb[0].mxu0
    %v890 = vadd.f32 %v760, %v889
    %v891 = vpop.f32.mrb[0].mxu0
    %892 = vmatprep.mubr.f32.mxu0 %v219
    %893 = vmatmul.mubr.f32.gmra.mrb[0].mxu0 %v218
    %v894 = vpop.f32.mrb[0].mxu0
    %v895 = vadd.f32 %v765, %v894
    %v896 = vpop.f32.mrb[0].mxu0
    %897 = vmatprep.mubr.f32.mxu0 %v235
    %898 = vmatmul.mubr.f32.gmra.mrb[0].mxu0 %v234
    %v899 = vpop.f32.mrb[0].mxu0
    %v900 = vadd.f32 %v770, %v899
    %v901 = vpop.f32.mrb[0].mxu0
    %902 = vmatprep.mubr.f32.mxu0 %v251
    %903 = vmatmul.mubr.f32.gmra.mrb[0].mxu0 %v250
    %v904 = vpop.f32.mrb[0].mxu0
    %v905 = vadd.f32 %v775, %v904
    %v906 = vpop.f32.mrb[0].mxu0
    %907 = vdwg.mxu0
    %908 = vmatprep.subr.mxu0 0.0
    %909 = vmatpush1.msra.mxu0 %v358
    %910 = vmatprep.subr.mxu0 0.0
    %911 = vmatpush1.msra.mxu0 %v359
    %912 = vmatprep.subr.mxu0 0.0
    %913 = vmatpush1.msra.mxu0 %v360
    %914 = vmatprep.subr.mxu0 0.0
    %915 = vmatpush1.msra.mxu0 %v361
    %916 = vmatprep.subr.mxu0 0.0
    %917 = vmatpush1.msra.mxu0 %v362
    %918 = vmatprep.subr.mxu0 0.0
    %919 = vmatpush1.msra.mxu0 %v363
    %920 = vmatprep.subr.mxu0 0.0
    %921 = vmatpush1.msra.mxu0 %v364
    %922 = vmatprep.subr.mxu0 0.0
    %923 = vmatpush1.msra.mxu0 %v365
    %924 = vmatprep.subr.mxu0 0.0
    %925 = vmatpush1.msra.mxu0 %v366
    %926 = vmatprep.subr.mxu0 0.0
    %927 = vmatpush1.msra.mxu0 %v367
    %928 = vmatprep.subr.mxu0 0.0
    %929 = vmatpush1.msra.mxu0 %v368
    %930 = vmatprep.subr.mxu0 0.0
    %931 = vmatpush1.msra.mxu0 %v369
    %932 = vmatprep.subr.mxu0 0.0
    %933 = vmatpush1.msra.mxu0 %v370
    %934 = vmatprep.subr.mxu0 0.0
    %935 = vmatpush1.msra.mxu0 %v371
    %936 = vmatprep.subr.mxu0 0.0
    %937 = vmatpush1.msra.mxu0 %v372
    %938 = vmatprep.subr.mxu0 0.0
    %939 = vmatpush1.msra.mxu0 %v373
    %940 = vmatprep.subr.mxu0 0.0
    %941 = vmatpush1.msra.mxu0 %v374
    %942 = vmatprep.subr.mxu0 0.0
    %943 = vmatpush1.msra.mxu0 %v375
    %944 = vmatprep.subr.mxu0 0.0
    %945 = vmatpush1.msra.mxu0 %v376
    %946 = vmatprep.subr.mxu0 0.0
    %947 = vmatpush1.msra.mxu0 %v377
    %948 = vmatprep.subr.mxu0 0.0
    %949 = vmatpush1.msra.mxu0 %v378
    %950 = vmatprep.subr.mxu0 0.0
    %951 = vmatpush1.msra.mxu0 %v379
    %952 = vmatprep.subr.mxu0 0.0
    %953 = vmatpush1.msra.mxu0 %v380
    %954 = vmatprep.subr.mxu0 0.0
    %955 = vmatpush1.msra.mxu0 %v381
    %956 = vmatprep.subr.mxu0 0.0
    %957 = vmatpush1.msra.mxu0 %v382
    %958 = vmatprep.subr.mxu0 0.0
    %959 = vmatpush1.msra.mxu0 %v383
    %960 = vmatprep.subr.mxu0 0.0
    %961 = vmatpush1.msra.mxu0 %v384
    %962 = vmatprep.subr.mxu0 0.0
    %963 = vmatpush1.msra.mxu0 %v385
    %964 = vmatprep.subr.mxu0 0.0
    %965 = vmatpush1.msra.mxu0 %v386
    %966 = vmatprep.subr.mxu0 0.0
    %967 = vmatpush1.msra.mxu0 %v387
    %968 = vmatprep.subr.mxu0 0.0
    %969 = vmatpush1.msra.mxu0 %v388
    %970 = vmatprep.subr.mxu0 0.0
    %971 = vmatpush1.msra.mxu0 %v389
    %972 = vmatprep.mubr.f32.mxu0 %v61
    %973 = vmatmul.mubr.f32.gmra.mrb[0].mxu0 %v60
    %v974 = vpop.f32.mrb[0].mxu0
    %v975 = vadd.f32 %v845, %v974
    %v976 = vpop.f32.mrb[0].mxu0
    %977 = vmatprep.mubr.f32.mxu0 %v77
    %978 = vmatmul.mubr.f32.gmra.mrb[0].mxu0 %v76
    %v979 = vpop.f32.mrb[0].mxu0
    %v980 = vadd.f32 %v850, %v979
    %v981 = vpop.f32.mrb[0].mxu0
    %982 = vmatprep.mubr.f32.mxu0 %v93
    %983 = vmatmul.mubr.f32.gmra.mrb[0].mxu0 %v92
    %v984 = vpop.f32.mrb[0].mxu0
    %v985 = vadd.f32 %v855, %v984
    %v986 = vpop.f32.mrb[0].mxu0
    %987 = vmatprep.mubr.f32.mxu0 %v109
    %988 = vmatmul.mubr.f32.gmra.mrb[0].mxu0 %v108
    %v989 = vpop.f32.mrb[0].mxu0
    %v990 = vadd.f32 %v860, %v989
    %v991 = vpop.f32.mrb[0].mxu0
    %992 = vmatprep.mubr.f32.mxu0 %v125
    %993 = vmatmul.mubr.f32.gmra.mrb[0].mxu0 %v124
    %v994 = vpop.f32.mrb[0].mxu0
    %v995 = vadd.f32 %v865, %v994
    %v996 = vpop.f32.mrb[0].mxu0
    %997 = vmatprep.mubr.f32.mxu0 %v141
    %998 = vmatmul.mubr.f32.gmra.mrb[0].mxu0 %v140
    %v999 = vpop.f32.mrb[0].mxu0
    %v1000 = vadd.f32 %v870, %v999
    %v1001 = vpop.f32.mrb[0].mxu0
    %1002 = vmatprep.mubr.f32.mxu0 %v157
    %1003 = vmatmul.mubr.f32.gmra.mrb[0].mxu0 %v156
    %v1004 = vpop.f32.mrb[0].mxu0
    %v1005 = vadd.f32 %v875, %v1004
    %v1006 = vpop.f32.mrb[0].mxu0
    %1007 = vmatprep.mubr.f32.mxu0 %v173
    %1008 = vmatmul.mubr.f32.gmra.mrb[0].mxu0 %v172
    %v1009 = vpop.f32.mrb[0].mxu0
    %v1010 = vadd.f32 %v880, %v1009
    %v1011 = vpop.f32.mrb[0].mxu0
    %1012 = vmatprep.mubr.f32.mxu0 %v189
    %1013 = vmatmul.mubr.f32.gmra.mrb[0].mxu0 %v188
    %v1014 = vpop.f32.mrb[0].mxu0
    %v1015 = vadd.f32 %v885, %v1014
    %v1016 = vpop.f32.mrb[0].mxu0
    %1017 = vmatprep.mubr.f32.mxu0 %v205
    %1018 = vmatmul.mubr.f32.gmra.mrb[0].mxu0 %v204
    %v1019 = vpop.f32.mrb[0].mxu0
    %v1020 = vadd.f32 %v890, %v1019
    %v1021 = vpop.f32.mrb[0].mxu0
    %1022 = vmatprep.mubr.f32.mxu0 %v221
    %1023 = vmatmul.mubr.f32.gmra.mrb[0].mxu0 %v220
    %v1024 = vpop.f32.mrb[0].mxu0
    %v1025 = vadd.f32 %v895, %v1024
    %v1026 = vpop.f32.mrb[0].mxu0
    %1027 = vmatprep.mubr.f32.mxu0 %v237
    %1028 = vmatmul.mubr.f32.gmra.mrb[0].mxu0 %v236
    %v1029 = vpop.f32.mrb[0].mxu0
    %v1030 = vadd.f32 %v900, %v1029
    %v1031 = vpop.f32.mrb[0].mxu0
    %1032 = vmatprep.mubr.f32.mxu0 %v253
    %1033 = vmatmul.mubr.f32.gmra.mrb[0].mxu0 %v252
    %v1034 = vpop.f32.mrb[0].mxu0
    %v1035 = vadd.f32 %v905, %v1034
    %v1036 = vpop.f32.mrb[0].mxu0
    %1037 = vdwg.mxu0
    %1038 = vmatprep.subr.mxu0 0.0
    %1039 = vmatpush1.msra.mxu0 %v390
    %1040 = vmatprep.subr.mxu0 0.0
    %1041 = vmatpush1.msra.mxu0 %v391
    %1042 = vmatprep.subr.mxu0 0.0
    %1043 = vmatpush1.msra.mxu0 %v392
    %1044 = vmatprep.subr.mxu0 0.0
    %1045 = vmatpush1.msra.mxu0 %v393
    %1046 = vmatprep.subr.mxu0 0.0
    %1047 = vmatpush1.msra.mxu0 %v394
    %1048 = vmatprep.subr.mxu0 0.0
    %1049 = vmatpush1.msra.mxu0 %v395
    %1050 = vmatprep.subr.mxu0 0.0
    %1051 = vmatpush1.msra.mxu0 %v396
    %1052 = vmatprep.subr.mxu0 0.0
    %1053 = vmatpush1.msra.mxu0 %v397
    %1054 = vmatprep.subr.mxu0 0.0
    %1055 = vmatpush1.msra.mxu0 %v398
    %1056 = vmatprep.subr.mxu0 0.0
    %1057 = vmatpush1.msra.mxu0 %v399
    %1058 = vmatprep.subr.mxu0 0.0
    %1059 = vmatpush1.msra.mxu0 %v400
    %1060 = vmatprep.subr.mxu0 0.0
    %1061 = vmatpush1.msra.mxu0 %v401
    %1062 = vmatprep.subr.mxu0 0.0
    %1063 = vmatpush1.msra.mxu0 %v402
    %1064 = vmatprep.subr.mxu0 0.0
    %1065 = vmatpush1.msra.mxu0 %v403
    %1066 = vmatprep.subr.mxu0 0.0
    %1067 = vmatpush1.msra.mxu0 %v404
    %1068 = vmatprep.subr.mxu0 0.0
    %1069 = vmatpush1.msra.mxu0 %v405
    %1070 = vmatprep.subr.mxu0 0.0
    %1071 = vmatpush1.msra.mxu0 %v406
    %1072 = vmatprep.subr.mxu0 0.0
    %1073 = vmatpush1.msra.mxu0 %v407
    %1074 = vmatprep.subr.mxu0 0.0
    %1075 = vmatpush1.msra.mxu0 %v408
    %1076 = vmatprep.subr.mxu0 0.0
    %1077 = vmatpush1.msra.mxu0 %v409
    %1078 = vmatprep.subr.mxu0 0.0
    %1079 = vmatpush1.msra.mxu0 %v410
    %1080 = vmatprep.subr.mxu0 0.0
    %1081 = vmatpush1.msra.mxu0 %v411
    %1082 = vmatprep.subr.mxu0 0.0
    %1083 = vmatpush1.msra.mxu0 %v412
    %1084 = vmatprep.subr.mxu0 0.0
    %1085 = vmatpush1.msra.mxu0 %v413
    %1086 = vmatprep.subr.mxu0 0.0
    %1087 = vmatpush1.msra.mxu0 %v414
    %1088 = vmatprep.subr.mxu0 0.0
    %1089 = vmatpush1.msra.mxu0 %v415
    %1090 = vmatprep.subr.mxu0 0.0
    %1091 = vmatpush1.msra.mxu0 %v416
    %1092 = vmatprep.subr.mxu0 0.0
    %1093 = vmatpush1.msra.mxu0 %v417
    %1094 = vmatprep.subr.mxu0 0.0
    %1095 = vmatpush1.msra.mxu0 %v418
    %1096 = vmatprep.subr.mxu0 0.0
    %1097 = vmatpush1.msra.mxu0 %v419
    %1098 = vmatprep.subr.mxu0 0.0
    %1099 = vmatpush1.msra.mxu0 %v420
    %1100 = vmatprep.subr.mxu0 0.0
    %1101 = vmatpush1.msra.mxu0 %v421
    %1102 = vmatprep.mubr.f32.mxu0 %v63
    %1103 = vmatmul.mubr.f32.gmra.mrb[0].mxu0 %v62
    %v1104 = vpop.f32.mrb[0].mxu0
    %v1105 = vadd.f32 %v975, %v1104
    %v1106 = vpop.f32.mrb[0].mxu0
    %1107 = vmatprep.mubr.f32.mxu0 %v79
    %1108 = vmatmul.mubr.f32.gmra.mrb[0].mxu0 %v78
    %v1109 = vpop.f32.mrb[0].mxu0
    %v1110 = vadd.f32 %v980, %v1109
    %v1111 = vpop.f32.mrb[0].mxu0
    %1112 = vmatprep.mubr.f32.mxu0 %v95
    %1113 = vmatmul.mubr.f32.gmra.mrb[0].mxu0 %v94
    %v1114 = vpop.f32.mrb[0].mxu0
    %v1115 = vadd.f32 %v985, %v1114
    %v1116 = vpop.f32.mrb[0].mxu0
    %1117 = vmatprep.mubr.f32.mxu0 %v111
    %1118 = vmatmul.mubr.f32.gmra.mrb[0].mxu0 %v110
    %v1119 = vpop.f32.mrb[0].mxu0
    %v1120 = vadd.f32 %v990, %v1119
    %v1121 = vpop.f32.mrb[0].mxu0
    %1122 = vmatprep.mubr.f32.mxu0 %v127
    %1123 = vmatmul.mubr.f32.gmra.mrb[0].mxu0 %v126
    %v1124 = vpop.f32.mrb[0].mxu0
    %v1125 = vadd.f32 %v995, %v1124
    %v1126 = vpop.f32.mrb[0].mxu0
    %1127 = vmatprep.mubr.f32.mxu0 %v143
    %1128 = vmatmul.mubr.f32.gmra.mrb[0].mxu0 %v142
    %v1129 = vpop.f32.mrb[0].mxu0
    %v1130 = vadd.f32 %v1000, %v1129
    %v1131 = vpop.f32.mrb[0].mxu0
    %1132 = vmatprep.mubr.f32.mxu0 %v159
    %1133 = vmatmul.mubr.f32.gmra.mrb[0].mxu0 %v158
    %v1134 = vpop.f32.mrb[0].mxu0
    %v1135 = vadd.f32 %v1005, %v1134
    %v1136 = vpop.f32.mrb[0].mxu0
    %1137 = vmatprep.mubr.f32.mxu0 %v175
    %1138 = vmatmul.mubr.f32.gmra.mrb[0].mxu0 %v174
    %v1139 = vpop.f32.mrb[0].mxu0
    %v1140 = vadd.f32 %v1010, %v1139
    %v1141 = vpop.f32.mrb[0].mxu0
    %1142 = vmatprep.mubr.f32.mxu0 %v191
    %1143 = vmatmul.mubr.f32.gmra.mrb[0].mxu0 %v190
    %v1144 = vpop.f32.mrb[0].mxu0
    %v1145 = vadd.f32 %v1015, %v1144
    %v1146 = vpop.f32.mrb[0].mxu0
    %1147 = vmatprep.mubr.f32.mxu0 %v207
    %1148 = vmatmul.mubr.f32.gmra.mrb[0].mxu0 %v206
    %v1149 = vpop.f32.mrb[0].mxu0
    %v1150 = vadd.f32 %v1020, %v1149
    %v1151 = vpop.f32.mrb[0].mxu0
    %1152 = vmatprep.mubr.f32.mxu0 %v223
    %1153 = vmatmul.mubr.f32.gmra.mrb[0].mxu0 %v222
    %v1154 = vpop.f32.mrb[0].mxu0
    %v1155 = vadd.f32 %v1025, %v1154
    %v1156 = vpop.f32.mrb[0].mxu0
    %1157 = vmatprep.mubr.f32.mxu0 %v239
    %1158 = vmatmul.mubr.f32.gmra.mrb[0].mxu0 %v238
    %v1159 = vpop.f32.mrb[0].mxu0
    %v1160 = vadd.f32 %v1030, %v1159
    %v1161 = vpop.f32.mrb[0].mxu0
    %1162 = vmatprep.mubr.f32.mxu0 %v255
    %1163 = vmatmul.mubr.f32.gmra.mrb[0].mxu0 %v254
    %v1164 = vpop.f32.mrb[0].mxu0
    %v1165 = vadd.f32 %v1035, %v1164
    %v1166 = vpop.f32.mrb[0].mxu0
    %1167 = vdwg.mxu0
    %1168 = vmatprep.subr.mxu0 0.0
    %1169 = vmatpush1.msra.mxu0 %v422
    %1170 = vmatprep.subr.mxu0 0.0
    %1171 = vmatpush1.msra.mxu0 %v423
    %1172 = vmatprep.subr.mxu0 0.0
    %1173 = vmatpush1.msra.mxu0 %v424
    %1174 = vmatprep.subr.mxu0 0.0
    %1175 = vmatpush1.msra.mxu0 %v425
    %1176 = vmatprep.subr.mxu0 0.0
    %1177 = vmatpush1.msra.mxu0 %v426
    %1178 = vmatprep.subr.mxu0 0.0
    %1179 = vmatpush1.msra.mxu0 %v427
    %1180 = vmatprep.subr.mxu0 0.0
    %1181 = vmatpush1.msra.mxu0 %v428
    %1182 = vmatprep.subr.mxu0 0.0
    %1183 = vmatpush1.msra.mxu0 %v429
    %1184 = vmatprep.subr.mxu0 0.0
    %1185 = vmatpush1.msra.mxu0 %v430
    %1186 = vmatprep.subr.mxu0 0.0
    %1187 = vmatpush1.msra.mxu0 %v431
    %1188 = vmatprep.subr.mxu0 0.0
    %1189 = vmatpush1.msra.mxu0 %v432
    %1190 = vmatprep.subr.mxu0 0.0
    %1191 = vmatpush1.msra.mxu0 %v433
    %1192 = vmatprep.subr.mxu0 0.0
    %1193 = vmatpush1.msra.mxu0 %v434
    %1194 = vmatprep.subr.mxu0 0.0
    %1195 = vmatpush1.msra.mxu0 %v435
    %1196 = vmatprep.subr.mxu0 0.0
    %1197 = vmatpush1.msra.mxu0 %v436
    %1198 = vmatprep.subr.mxu0 0.0
    %1199 = vmatpush1.msra.mxu0 %v437
    %1200 = vmatprep.subr.mxu0 0.0
    %1201 = vmatpush1.msra.mxu0 %v438
    %1202 = vmatprep.subr.mxu0 0.0
    %1203 = vmatpush1.msra.mxu0 %v439
    %1204 = vmatprep.subr.mxu0 0.0
    %1205 = vmatpush1.msra.mxu0 %v440
    %1206 = vmatprep.subr.mxu0 0.0
    %1207 = vmatpush1.msra.mxu0 %v441
    %1208 = vmatprep.subr.mxu0 0.0
    %1209 = vmatpush1.msra.mxu0 %v442
    %1210 = vmatprep.subr.mxu0 0.0
    %1211 = vmatpush1.msra.mxu0 %v443
    %1212 = vmatprep.subr.mxu0 0.0
    %1213 = vmatpush1.msra.mxu0 %v444
    %1214 = vmatprep.subr.mxu0 0.0
    %1215 = vmatpush1.msra.mxu0 %v445
    %1216 = vmatprep.subr.mxu0 0.0
    %1217 = vmatpush1.msra.mxu0 %v446
    %1218 = vmatprep.subr.mxu0 0.0
    %1219 = vmatpush1.msra.mxu0 %v447
    %1220 = vmatprep.subr.mxu0 0.0
    %1221 = vmatpush1.msra.mxu0 %v448
    %1222 = vmatprep.subr.mxu0 0.0
    %1223 = vmatpush1.msra.mxu0 %v449
    %1224 = vmatprep.subr.mxu0 0.0
    %1225 = vmatpush1.msra.mxu0 %v450
    %1226 = vmatprep.subr.mxu0 0.0
    %1227 = vmatpush1.msra.mxu0 %v451
    %1228 = vmatprep.subr.mxu0 0.0
    %1229 = vmatpush1.msra.mxu0 %v452
    %1230 = vmatprep.subr.mxu0 0.0
    %1231 = vmatpush1.msra.mxu0 %v453
    %1232 = vmatprep.mubr.f32.mxu0 %v65
    %1233 = vmatmul.mubr.f32.gmra.mrb[0].mxu0 %v64
    %v1234 = vpop.f32.mrb[0].mxu0
    %v1235 = vadd.f32 %v1105, %v1234
    %v1236 = vpop.f32.mrb[0].mxu0
    %1237 = vmatprep.mubr.f32.mxu0 %v81
    %1238 = vmatmul.mubr.f32.gmra.mrb[0].mxu0 %v80
    %v1239 = vpop.f32.mrb[0].mxu0
    %v1240 = vadd.f32 %v1110, %v1239
    %v1241 = vpop.f32.mrb[0].mxu0
    %1242 = vmatprep.mubr.f32.mxu0 %v97
    %1243 = vmatmul.mubr.f32.gmra.mrb[0].mxu0 %v96
    %v1244 = vpop.f32.mrb[0].mxu0
    %v1245 = vadd.f32 %v1115, %v1244
    %v1246 = vpop.f32.mrb[0].mxu0
    %1247 = vmatprep.mubr.f32.mxu0 %v113
    %1248 = vmatmul.mubr.f32.gmra.mrb[0].mxu0 %v112
    %v1249 = vpop.f32.mrb[0].mxu0
    %v1250 = vadd.f32 %v1120, %v1249
    %v1251 = vpop.f32.mrb[0].mxu0
    %1252 = vmatprep.mubr.f32.mxu0 %v129
    %1253 = vmatmul.mubr.f32.gmra.mrb[0].mxu0 %v128
    %v1254 = vpop.f32.mrb[0].mxu0
    %v1255 = vadd.f32 %v1125, %v1254
    %v1256 = vpop.f32.mrb[0].mxu0
    %1257 = vmatprep.mubr.f32.mxu0 %v145
    %1258 = vmatmul.mubr.f32.gmra.mrb[0].mxu0 %v144
    %v1259 = vpop.f32.mrb[0].mxu0
    %v1260 = vadd.f32 %v1130, %v1259
    %v1261 = vpop.f32.mrb[0].mxu0
    %1262 = vmatprep.mubr.f32.mxu0 %v161
    %1263 = vmatmul.mubr.f32.gmra.mrb[0].mxu0 %v160
    %v1264 = vpop.f32.mrb[0].mxu0
    %v1265 = vadd.f32 %v1135, %v1264
    %v1266 = vpop.f32.mrb[0].mxu0
    %1267 = vmatprep.mubr.f32.mxu0 %v177
    %1268 = vmatmul.mubr.f32.gmra.mrb[0].mxu0 %v176
    %v1269 = vpop.f32.mrb[0].mxu0
    %v1270 = vadd.f32 %v1140, %v1269
    %v1271 = vpop.f32.mrb[0].mxu0
    %1272 = vmatprep.mubr.f32.mxu0 %v193
    %1273 = vmatmul.mubr.f32.gmra.mrb[0].mxu0 %v192
    %v1274 = vpop.f32.mrb[0].mxu0
    %v1275 = vadd.f32 %v1145, %v1274
    %v1276 = vpop.f32.mrb[0].mxu0
    %1277 = vmatprep.mubr.f32.mxu0 %v209
    %1278 = vmatmul.mubr.f32.gmra.mrb[0].mxu0 %v208
    %v1279 = vpop.f32.mrb[0].mxu0
    %v1280 = vadd.f32 %v1150, %v1279
    %v1281 = vpop.f32.mrb[0].mxu0
    %1282 = vmatprep.mubr.f32.mxu0 %v225
    %1283 = vmatmul.mubr.f32.gmra.mrb[0].mxu0 %v224
    %v1284 = vpop.f32.mrb[0].mxu0
    %v1285 = vadd.f32 %v1155, %v1284
    %v1286 = vpop.f32.mrb[0].mxu0
    %1287 = vmatprep.mubr.f32.mxu0 %v241
    %1288 = vmatmul.mubr.f32.gmra.mrb[0].mxu0 %v240
    %v1289 = vpop.f32.mrb[0].mxu0
    %v1290 = vadd.f32 %v1160, %v1289
    %v1291 = vpop.f32.mrb[0].mxu0
    %1292 = vmatprep.mubr.f32.mxu0 %v257
    %1293 = vmatmul.mubr.f32.gmra.mrb[0].mxu0 %v256
    %v1294 = vpop.f32.mrb[0].mxu0
    %v1295 = vadd.f32 %v1165, %v1294
    %v1296 = vpop.f32.mrb[0].mxu0
    %1297 = vdwg.mxu0
    %1298 = vmatprep.subr.mxu0 0.0
    %1299 = vmatpush1.msra.mxu0 %v454
    %1300 = vmatprep.subr.mxu0 0.0
    %1301 = vmatpush1.msra.mxu0 %v455
    %1302 = vmatprep.subr.mxu0 0.0
    %1303 = vmatpush1.msra.mxu0 %v456
    %1304 = vmatprep.subr.mxu0 0.0
    %1305 = vmatpush1.msra.mxu0 %v457
    %1306 = vmatprep.subr.mxu0 0.0
    %1307 = vmatpush1.msra.mxu0 %v458
    %1308 = vmatprep.subr.mxu0 0.0
    %1309 = vmatpush1.msra.mxu0 %v459
    %1310 = vmatprep.subr.mxu0 0.0
    %1311 = vmatpush1.msra.mxu0 %v460
    %1312 = vmatprep.subr.mxu0 0.0
    %1313 = vmatpush1.msra.mxu0 %v461
    %1314 = vmatprep.subr.mxu0 0.0
    %1315 = vmatpush1.msra.mxu0 %v462
    %1316 = vmatprep.subr.mxu0 0.0
    %1317 = vmatpush1.msra.mxu0 %v463
    %1318 = vmatprep.subr.mxu0 0.0
    %1319 = vmatpush1.msra.mxu0 %v464
    %1320 = vmatprep.subr.mxu0 0.0
    %1321 = vmatpush1.msra.mxu0 %v465
    %1322 = vmatprep.subr.mxu0 0.0
    %1323 = vmatpush1.msra.mxu0 %v466
    %1324 = vmatprep.subr.mxu0 0.0
    %1325 = vmatpush1.msra.mxu0 %v467
    %1326 = vmatprep.subr.mxu0 0.0
    %1327 = vmatpush1.msra.mxu0 %v468
    %1328 = vmatprep.subr.mxu0 0.0
    %1329 = vmatpush1.msra.mxu0 %v469
    %1330 = vmatprep.subr.mxu0 0.0
    %1331 = vmatpush1.msra.mxu0 %v470
    %1332 = vmatprep.subr.mxu0 0.0
    %1333 = vmatpush1.msra.mxu0 %v471
    %1334 = vmatprep.subr.mxu0 0.0
    %1335 = vmatpush1.msra.mxu0 %v472
    %1336 = vmatprep.subr.mxu0 0.0
    %1337 = vmatpush1.msra.mxu0 %v473
    %1338 = vmatprep.subr.mxu0 0.0
    %1339 = vmatpush1.msra.mxu0 %v474
    %1340 = vmatprep.subr.mxu0 0.0
    %1341 = vmatpush1.msra.mxu0 %v475
    %1342 = vmatprep.subr.mxu0 0.0
    %1343 = vmatpush1.msra.mxu0 %v476
    %1344 = vmatprep.subr.mxu0 0.0
    %1345 = vmatpush1.msra.mxu0 %v477
    %1346 = vmatprep.subr.mxu0 0.0
    %1347 = vmatpush1.msra.mxu0 %v478
    %1348 = vmatprep.subr.mxu0 0.0
    %1349 = vmatpush1.msra.mxu0 %v479
    %1350 = vmatprep.subr.mxu0 0.0
    %1351 = vmatpush1.msra.mxu0 %v480
    %1352 = vmatprep.subr.mxu0 0.0
    %1353 = vmatpush1.msra.mxu0 %v481
    %1354 = vmatprep.subr.mxu0 0.0
    %1355 = vmatpush1.msra.mxu0 %v482
    %1356 = vmatprep.subr.mxu0 0.0
    %1357 = vmatpush1.msra.mxu0 %v483
    %1358 = vmatprep.subr.mxu0 0.0
    %1359 = vmatpush1.msra.mxu0 %v484
    %1360 = vmatprep.subr.mxu0 0.0
    %1361 = vmatpush1.msra.mxu0 %v485
    %1362 = vmatprep.mubr.f32.mxu0 %v67
    %1363 = vmatmul.mubr.f32.gmra.mrb[0].mxu0 %v66
    %v1364 = vpop.f32.mrb[0].mxu0
    %v1365 = vadd.f32 %v1235, %v1364
    %v1366 = vpop.f32.mrb[0].mxu0
    %1367 = vmatprep.mubr.f32.mxu0 %v83
    %1368 = vmatmul.mubr.f32.gmra.mrb[0].mxu0 %v82
    %v1369 = vpop.f32.mrb[0].mxu0
    %v1370 = vadd.f32 %v1240, %v1369
    %v1371 = vpop.f32.mrb[0].mxu0
    %1372 = vmatprep.mubr.f32.mxu0 %v99
    %1373 = vmatmul.mubr.f32.gmra.mrb[0].mxu0 %v98
    %v1374 = vpop.f32.mrb[0].mxu0
    %v1375 = vadd.f32 %v1245, %v1374
    %v1376 = vpop.f32.mrb[0].mxu0
    %1377 = vmatprep.mubr.f32.mxu0 %v115
    %1378 = vmatmul.mubr.f32.gmra.mrb[0].mxu0 %v114
    %v1379 = vpop.f32.mrb[0].mxu0
    %v1380 = vadd.f32 %v1250, %v1379
    %v1381 = vpop.f32.mrb[0].mxu0
    %1382 = vmatprep.mubr.f32.mxu0 %v131
    %1383 = vmatmul.mubr.f32.gmra.mrb[0].mxu0 %v130
    %v1384 = vpop.f32.mrb[0].mxu0
    %v1385 = vadd.f32 %v1255, %v1384
    %v1386 = vpop.f32.mrb[0].mxu0
    %1387 = vmatprep.mubr.f32.mxu0 %v147
    %1388 = vmatmul.mubr.f32.gmra.mrb[0].mxu0 %v146
    %v1389 = vpop.f32.mrb[0].mxu0
    %v1390 = vadd.f32 %v1260, %v1389
    %v1391 = vpop.f32.mrb[0].mxu0
    %1392 = vmatprep.mubr.f32.mxu0 %v163
    %1393 = vmatmul.mubr.f32.gmra.mrb[0].mxu0 %v162
    %v1394 = vpop.f32.mrb[0].mxu0
    %v1395 = vadd.f32 %v1265, %v1394
    %v1396 = vpop.f32.mrb[0].mxu0
    %1397 = vmatprep.mubr.f32.mxu0 %v179
    %1398 = vmatmul.mubr.f32.gmra.mrb[0].mxu0 %v178
    %v1399 = vpop.f32.mrb[0].mxu0
    %v1400 = vadd.f32 %v1270, %v1399
    %v1401 = vpop.f32.mrb[0].mxu0
    %1402 = vmatprep.mubr.f32.mxu0 %v195
    %1403 = vmatmul.mubr.f32.gmra.mrb[0].mxu0 %v194
    %v1404 = vpop.f32.mrb[0].mxu0
    %v1405 = vadd.f32 %v1275, %v1404
    %v1406 = vpop.f32.mrb[0].mxu0
    %1407 = vmatprep.mubr.f32.mxu0 %v211
    %1408 = vmatmul.mubr.f32.gmra.mrb[0].mxu0 %v210
    %v1409 = vpop.f32.mrb[0].mxu0
    %v1410 = vadd.f32 %v1280, %v1409
    %v1411 = vpop.f32.mrb[0].mxu0
    %1412 = vmatprep.mubr.f32.mxu0 %v227
    %1413 = vmatmul.mubr.f32.gmra.mrb[0].mxu0 %v226
    %v1414 = vpop.f32.mrb[0].mxu0
    %v1415 = vadd.f32 %v1285, %v1414
    %v1416 = vpop.f32.mrb[0].mxu0
    %1417 = vmatprep.mubr.f32.mxu0 %v243
    %1418 = vmatmul.mubr.f32.gmra.mrb[0].mxu0 %v242
    %v1419 = vpop.f32.mrb[0].mxu0
    %v1420 = vadd.f32 %v1290, %v1419
    %v1421 = vpop.f32.mrb[0].mxu0
    %1422 = vmatprep.mubr.f32.mxu0 %v259
    %1423 = vmatmul.mubr.f32.gmra.mrb[0].mxu0 %v258
    %v1424 = vpop.f32.mrb[0].mxu0
    %v1425 = vadd.f32 %v1295, %v1424
    %v1426 = vpop.f32.mrb[0].mxu0
    %1427 = vdwg.mxu0
    %1428 = vmatprep.subr.mxu0 0.0
    %1429 = vmatpush1.msra.mxu0 %v486
    %1430 = vmatprep.subr.mxu0 0.0
    %1431 = vmatpush1.msra.mxu0 %v487
    %1432 = vmatprep.subr.mxu0 0.0
    %1433 = vmatpush1.msra.mxu0 %v488
    %1434 = vmatprep.subr.mxu0 0.0
    %1435 = vmatpush1.msra.mxu0 %v489
    %1436 = vmatprep.subr.mxu0 0.0
    %1437 = vmatpush1.msra.mxu0 %v490
    %1438 = vmatprep.subr.mxu0 0.0
    %1439 = vmatpush1.msra.mxu0 %v491
    %1440 = vmatprep.subr.mxu0 0.0
    %1441 = vmatpush1.msra.mxu0 %v492
    %1442 = vmatprep.subr.mxu0 0.0
    %1443 = vmatpush1.msra.mxu0 %v493
    %1444 = vmatprep.subr.mxu0 0.0
    %1445 = vmatpush1.msra.mxu0 %v494
    %1446 = vmatprep.subr.mxu0 0.0
    %1447 = vmatpush1.msra.mxu0 %v495
    %1448 = vmatprep.subr.mxu0 0.0
    %1449 = vmatpush1.msra.mxu0 %v496
    %1450 = vmatprep.subr.mxu0 0.0
    %1451 = vmatpush1.msra.mxu0 %v497
    %1452 = vmatprep.subr.mxu0 0.0
    %1453 = vmatpush1.msra.mxu0 %v498
    %1454 = vmatprep.subr.mxu0 0.0
    %1455 = vmatpush1.msra.mxu0 %v499
    %1456 = vmatprep.subr.mxu0 0.0
    %1457 = vmatpush1.msra.mxu0 %v500
    %1458 = vmatprep.subr.mxu0 0.0
    %1459 = vmatpush1.msra.mxu0 %v501
    %1460 = vmatprep.subr.mxu0 0.0
    %1461 = vmatpush1.msra.mxu0 %v502
    %1462 = vmatprep.subr.mxu0 0.0
    %1463 = vmatpush1.msra.mxu0 %v503
    %1464 = vmatprep.subr.mxu0 0.0
    %1465 = vmatpush1.msra.mxu0 %v504
    %1466 = vmatprep.subr.mxu0 0.0
    %1467 = vmatpush1.msra.mxu0 %v505
    %1468 = vmatprep.subr.mxu0 0.0
    %1469 = vmatpush1.msra.mxu0 %v506
    %1470 = vmatprep.subr.mxu0 0.0
    %1471 = vmatpush1.msra.mxu0 %v507
    %1472 = vmatprep.subr.mxu0 0.0
    %1473 = vmatpush1.msra.mxu0 %v508
    %1474 = vmatprep.subr.mxu0 0.0
    %1475 = vmatpush1.msra.mxu0 %v509
    %1476 = vmatprep.subr.mxu0 0.0
    %1477 = vmatpush1.msra.mxu0 %v510
    %1478 = vmatprep.subr.mxu0 0.0
    %1479 = vmatpush1.msra.mxu0 %v511
    %1480 = vmatprep.subr.mxu0 0.0
    %1481 = vmatpush1.msra.mxu0 %v512
    %1482 = vmatprep.subr.mxu0 0.0
    %1483 = vmatpush1.msra.mxu0 %v513
    %1484 = vmatprep.subr.mxu0 0.0
    %1485 = vmatpush1.msra.mxu0 %v514
    %1486 = vmatprep.subr.mxu0 0.0
    %1487 = vmatpush1.msra.mxu0 %v515
    %1488 = vmatprep.subr.mxu0 0.0
    %1489 = vmatpush1.msra.mxu0 %v516
    %1490 = vmatprep.subr.mxu0 0.0
    %1491 = vmatpush1.msra.mxu0 %v517
    %1492 = vmatprep.mubr.f32.mxu0 %v69
    %1493 = vmatmul.mubr.f32.gmra.mrb[0].mxu0 %v68
    %v1494 = vpop.f32.mrb[0].mxu0
    %v1495 = vadd.f32 %v1365, %v1494
    %v1496 = vpop.f32.mrb[0].mxu0
    %1497 = vmatprep.mubr.f32.mxu0 %v85
    %1498 = vmatmul.mubr.f32.gmra.mrb[0].mxu0 %v84
    %v1499 = vpop.f32.mrb[0].mxu0
    %v1500 = vadd.f32 %v1370, %v1499
    %v1501 = vpop.f32.mrb[0].mxu0
    %1502 = vmatprep.mubr.f32.mxu0 %v101
    %1503 = vmatmul.mubr.f32.gmra.mrb[0].mxu0 %v100
    %v1504 = vpop.f32.mrb[0].mxu0
    %v1505 = vadd.f32 %v1375, %v1504
    %v1506 = vpop.f32.mrb[0].mxu0
    %1507 = vmatprep.mubr.f32.mxu0 %v117
    %1508 = vmatmul.mubr.f32.gmra.mrb[0].mxu0 %v116
    %v1509 = vpop.f32.mrb[0].mxu0
    %v1510 = vadd.f32 %v1380, %v1509
    %v1511 = vpop.f32.mrb[0].mxu0
    %1512 = vmatprep.mubr.f32.mxu0 %v133
    %1513 = vmatmul.mubr.f32.gmra.mrb[0].mxu0 %v132
    %v1514 = vpop.f32.mrb[0].mxu0
    %v1515 = vadd.f32 %v1385, %v1514
    %v1516 = vpop.f32.mrb[0].mxu0
    %1517 = vmatprep.mubr.f32.mxu0 %v149
    %1518 = vmatmul.mubr.f32.gmra.mrb[0].mxu0 %v148
    %v1519 = vpop.f32.mrb[0].mxu0
    %v1520 = vadd.f32 %v1390, %v1519
    %v1521 = vpop.f32.mrb[0].mxu0
    %1522 = vmatprep.mubr.f32.mxu0 %v165
    %1523 = vmatmul.mubr.f32.gmra.mrb[0].mxu0 %v164
    %v1524 = vpop.f32.mrb[0].mxu0
    %v1525 = vadd.f32 %v1395, %v1524
    %v1526 = vpop.f32.mrb[0].mxu0
    %1527 = vmatprep.mubr.f32.mxu0 %v181
    %1528 = vmatmul.mubr.f32.gmra.mrb[0].mxu0 %v180
    %v1529 = vpop.f32.mrb[0].mxu0
    %v1530 = vadd.f32 %v1400, %v1529
    %v1531 = vpop.f32.mrb[0].mxu0
    %1532 = vmatprep.mubr.f32.mxu0 %v197
    %1533 = vmatmul.mubr.f32.gmra.mrb[0].mxu0 %v196
    %v1534 = vpop.f32.mrb[0].mxu0
    %v1535 = vadd.f32 %v1405, %v1534
    %v1536 = vpop.f32.mrb[0].mxu0
    %1537 = vmatprep.mubr.f32.mxu0 %v213
    %1538 = vmatmul.mubr.f32.gmra.mrb[0].mxu0 %v212
    %v1539 = vpop.f32.mrb[0].mxu0
    %v1540 = vadd.f32 %v1410, %v1539
    %v1541 = vpop.f32.mrb[0].mxu0
    %1542 = vmatprep.mubr.f32.mxu0 %v229
    %1543 = vmatmul.mubr.f32.gmra.mrb[0].mxu0 %v228
    %v1544 = vpop.f32.mrb[0].mxu0
    %v1545 = vadd.f32 %v1415, %v1544
    %v1546 = vpop.f32.mrb[0].mxu0
    %1547 = vmatprep.mubr.f32.mxu0 %v245
    %1548 = vmatmul.mubr.f32.gmra.mrb[0].mxu0 %v244
    %v1549 = vpop.f32.mrb[0].mxu0
    %v1550 = vadd.f32 %v1420, %v1549
    %v1551 = vpop.f32.mrb[0].mxu0
    %1552 = vmatprep.mubr.f32.mxu0 %v261
    %1553 = vmatmul.mubr.f32.gmra.mrb[0].mxu0 %v260
    %v1554 = vpop.f32.mrb[0].mxu0
    %v1555 = vadd.f32 %v1425, %v1554
    %v1556 = vpop.f32.mrb[0].mxu0
    %1557 = vdwg.mxu0
    %v1558 = vadd.f32 %v1495, %v1500
    %v1559 = vadd.f32 %v1558, %v1505
    %v1560 = vadd.f32 %v1559, %v1510
    %v1561 = vadd.f32 %v1560, %v1515
    %v1562 = vadd.f32 %v1561, %v1520
    %v1563 = vadd.f32 %v1562, %v1525
    %v1564 = vadd.f32 %v1563, %v1530
    %v1565 = vadd.f32 %v1564, %v1535
    %v1566 = vadd.f32 %v1565, %v1540
    %v1567 = vadd.f32 %v1566, %v1545
    %v1568 = vadd.f32 %v1567, %v1550
    %vm1569 = vcmask 1041408
    %v1570 = vsel %vm1569, %v1555, 0.0
    %v1571 = vadd.f32 %v1568, %v1570
    %v1572 = vrot.slane %v1571, 4
    %v1573 = vadd.f32 %v1571, %v1572
    %v1574 = vrot.slane %v1573, 2
    %v1575 = vadd.f32 %v1573, %v1574
    %v1576 = vrot.slane %v1575, 1
    %v1577 = vadd.f32 %v1575, %v1576
    %v1578 = vrcp.pop 98.0
    %v1579 = vmul.f32 %v1577, %v1578
    %v1580 = vsub.f32 %v1495, %v1579
    %v1581 = vsub.f32 %v1500, %v1579
    %v1582 = vsub.f32 %v1505, %v1579
    %v1583 = vsub.f32 %v1510, %v1579
    %v1584 = vsub.f32 %v1515, %v1579
    %v1585 = vsub.f32 %v1520, %v1579
    %v1586 = vsub.f32 %v1525, %v1579
    %v1587 = vsub.f32 %v1530, %v1579
    %v1588 = vsub.f32 %v1535, %v1579
    %v1589 = vsub.f32 %v1540, %v1579
    %v1590 = vsub.f32 %v1545, %v1579
    %v1591 = vsub.f32 %v1550, %v1579
    %v1592 = vsub.f32 %v1555, %v1579
    %v1593 = vmul.f32 %v1580, %v1580
    %v1594 = vmul.f32 %v1581, %v1581
    %v1595 = vmul.f32 %v1582, %v1582
    %v1596 = vmul.f32 %v1583, %v1583
    %v1597 = vmul.f32 %v1584, %v1584
    %v1598 = vmul.f32 %v1585, %v1585
    %v1599 = vmul.f32 %v1586, %v1586
    %v1600 = vmul.f32 %v1587, %v1587
    %v1601 = vmul.f32 %v1588, %v1588
    %v1602 = vmul.f32 %v1589, %v1589
    %v1603 = vmul.f32 %v1590, %v1590
    %v1604 = vmul.f32 %v1591, %v1591
    %v1605 = vmul.f32 %v1592, %v1592
    %v1606 = vadd.f32 %v1593, %v1594
    %v1607 = vadd.f32 %v1606, %v1595
    %v1608 = vadd.f32 %v1607, %v1596
    %v1609 = vadd.f32 %v1608, %v1597
    %v1610 = vadd.f32 %v1609, %v1598
    %v1611 = vadd.f32 %v1610, %v1599
    %v1612 = vadd.f32 %v1611, %v1600
    %v1613 = vadd.f32 %v1612, %v1601
    %v1614 = vadd.f32 %v1613, %v1602
    %v1615 = vadd.f32 %v1614, %v1603
    %v1616 = vadd.f32 %v1615, %v1604
    %v1617 = vsel %vm1569, %v1605, 0.0
    %v1618 = vadd.f32 %v1616, %v1617
    %v1619 = vrot.slane %v1618, 4
    %v1620 = vadd.f32 %v1618, %v1619
    %v1621 = vrot.slane %v1620, 2
    %v1622 = vadd.f32 %v1620, %v1621
    %v1623 = vrot.slane %v1622, 1
    %v1624 = vadd.f32 %v1622, %v1623
    %v1625 = vmul.f32 %v1624, %v1578
    %v1626 = vadd.f32 %v1625, 1e-05
    %v1627 = vrsqrt.pop %v1626
    %v1628 = vmul.f32 %v1580, %v1627
    %v1629 = vmul.f32 %v1581, %v1627
    %v1630 = vmul.f32 %v1582, %v1627
    %v1631 = vmul.f32 %v1583, %v1627
    %v1632 = vmul.f32 %v1584, %v1627
    %v1633 = vmul.f32 %v1585, %v1627
    %v1634 = vmul.f32 %v1586, %v1627
    %v1635 = vmul.f32 %v1587, %v1627
    %v1636 = vmul.f32 %v1588, %v1627
    %v1637 = vmul.f32 %v1589, %v1627
    %v1638 = vmul.f32 %v1590, %v1627
    %v1639 = vmul.f32 %v1591, %v1627
    %v1640 = vmul.f32 %v1592, %v1627
    %v1641 = vld [vmem:[#allocation4] sm:$0x1]
    %v1643 = vlaneseq
    %v1644 = vshrl.u32 %v1643, 7
    %v1645 = vsub.s32 0, %v1644
    %v1646 = vrot.slane %v1641, %v1645
    %v1648 = vmul.f32 %v1628, %v1646
    %v1649 = vmul.f32 %v1629, %v1646
    %v1650 = vmul.f32 %v1630, %v1646
    %v1651 = vmul.f32 %v1631, %v1646
    %v1652 = vmul.f32 %v1632, %v1646
    %v1653 = vmul.f32 %v1633, %v1646
    %v1654 = vmul.f32 %v1634, %v1646
    %v1655 = vmul.f32 %v1635, %v1646
    %v1656 = vmul.f32 %v1636, %v1646
    %v1657 = vmul.f32 %v1637, %v1646
    %v1658 = vmul.f32 %v1638, %v1646
    %v1659 = vmul.f32 %v1639, %v1646
    %v1660 = vmul.f32 %v1640, %v1646
    %v1661 = vld [vmem:[#allocation6] sm:$0x1]
    %v1663 = vlaneseq
    %v1664 = vshrl.u32 %v1663, 7
    %v1665 = vsub.s32 0, %v1664
    %v1666 = vrot.slane %v1661, %v1665
    %v1668 = vadd.f32 %v1648, %v1666
    %v1669 = vadd.f32 %v1649, %v1666
    %v1670 = vadd.f32 %v1650, %v1666
    %v1671 = vadd.f32 %v1651, %v1666
    %v1672 = vadd.f32 %v1652, %v1666
    %v1673 = vadd.f32 %v1653, %v1666
    %v1674 = vadd.f32 %v1654, %v1666
    %v1675 = vadd.f32 %v1655, %v1666
    %v1676 = vadd.f32 %v1656, %v1666
    %v1677 = vadd.f32 %v1657, %v1666
    %v1678 = vadd.f32 %v1658, %v1666
    %v1679 = vadd.f32 %v1659, %v1666
    %v1680 = vadd.f32 %v1660, %v1666
    %vm1681 = vcmp.ge.f32.partialorder %v1668, 0.0
    %vm1682 = vcmp.ge.f32.partialorder %v1669, 0.0
    %vm1683 = vcmp.ge.f32.partialorder %v1670, 0.0
    %vm1684 = vcmp.ge.f32.partialorder %v1671, 0.0
    %vm1685 = vcmp.ge.f32.partialorder %v1672, 0.0
    %vm1686 = vcmp.ge.f32.partialorder %v1673, 0.0
    %vm1687 = vcmp.ge.f32.partialorder %v1674, 0.0
    %vm1688 = vcmp.ge.f32.partialorder %v1675, 0.0
    %vm1689 = vcmp.ge.f32.partialorder %v1676, 0.0
    %vm1690 = vcmp.ge.f32.partialorder %v1677, 0.0
    %vm1691 = vcmp.ge.f32.partialorder %v1678, 0.0
    %vm1692 = vcmp.ge.f32.partialorder %v1679, 0.0
    %vm1693 = vcmp.ge.f32.partialorder %v1680, 0.0
    %v1694 = vmul.f32 %v1668, 0.1
    %v1695 = vmul.f32 %v1669, 0.1
    %v1696 = vmul.f32 %v1670, 0.1
    %v1697 = vmul.f32 %v1671, 0.1
    %v1698 = vmul.f32 %v1672, 0.1
    %v1699 = vmul.f32 %v1673, 0.1
    %v1700 = vmul.f32 %v1674, 0.1
    %v1701 = vmul.f32 %v1675, 0.1
    %v1702 = vmul.f32 %v1676, 0.1
    %v1703 = vmul.f32 %v1677, 0.1
    %v1704 = vmul.f32 %v1678, 0.1
    %v1705 = vmul.f32 %v1679, 0.1
    %v1706 = vmul.f32 %v1680, 0.1
    %v1707 = vsel %vm1681, %v1668, %v1694
    %v1708 = vsel %vm1682, %v1669, %v1695
    %v1709 = vsel %vm1683, %v1670, %v1696
    %v1710 = vsel %vm1684, %v1671, %v1697
    %v1711 = vsel %vm1685, %v1672, %v1698
    %v1712 = vsel %vm1686, %v1673, %v1699
    %v1713 = vsel %vm1687, %v1674, %v1700
    %v1714 = vsel %vm1688, %v1675, %v1701
    %v1715 = vsel %vm1689, %v1676, %v1702
    %v1716 = vsel %vm1690, %v1677, %v1703
    %v1717 = vsel %vm1691, %v1678, %v1704
    %v1718 = vsel %vm1692, %v1679, %v1705
    %v1719 = vsel %vm1693, %v1680, %v1706
    %1720 = vst [vmem:[%s4] sm:$0xff] %v1707
    %1721 = vst [vmem:[%s4 + $0x8] sm:$0xff] %v1708
    %1722 = vst [vmem:[%s4 + $0x10] sm:$0xff] %v1709
    %1723 = vst [vmem:[%s4 + $0x18] sm:$0xff] %v1710
    %1724 = vst [vmem:[%s4 + $0x20] sm:$0xff] %v1711
    %1725 = vst [vmem:[%s4 + $0x28] sm:$0xff] %v1712
    %1726 = vst [vmem:[%s4 + $0x30] sm:$0xff] %v1713
    %1727 = vst [vmem:[%s4 + $0x38] sm:$0xff] %v1714
    %1728 = vst [vmem:[%s4 + $0x40] sm:$0xff] %v1715
    %1729 = vst [vmem:[%s4 + $0x48] sm:$0xff] %v1716
    %1730 = vst [vmem:[%s4 + $0x50] sm:$0xff] %v1717
    %1731 = vst [vmem:[%s4 + $0x58] sm:$0xff] %v1718
    %1732 = vst [vmem:[%s4 + $0x60] sm:$0x3] %v1719
    // Predicated region
    $region30: #{netD_forward.4} parent=1 // pred_check
      _
    $region31: #{netD_forward.4} parent=1 // pred_check_branch
      %1734 = sbr.rel (0) target = $region33
    $region32: #{netD_forward.4} parent=1 // pred_region
      _
    $region33: #{netD_forward.4} parent=1 // pred_fallthru
      _
    // Predicated region
    $region34: #{netD_forward.4} parent=1 // pred_check
      _
    $region35: #{netD_forward.4} parent=1 // pred_check_branch
      %1736 = sbr.rel (0) target = $region37
    $region36: #{netD_forward.4} parent=1 // pred_region
      _
    $region37: #{netD_forward.4} parent=1 // pred_fallthru
      _
    %1737 = vsyncpa [#allocation3], 1
    %1738 = vsyncpa [#allocation5], 1

// kernel: netD_forward.5
$region0: #{netD_forward.5}
  #allocation0 [shape = 'u32[]', space=smem, size = 0x4, offset = 0x4, fixed_abs, tag = 'smem constant byte address 0x4 - core index']
  #allocation1 [shape = 'u32[144,128]{1,0:T(1,128)}', space=vmem, size = 0x12000, scoped, tag = 'internal scratch']
  #allocation2 [shape = 'f32[2,1024]{1,0:T(2,128)}', space=vmem, size = 0x2000, scoped, tag = 'scratch operand']
  %s0 = inlined_call_operand.vmem [shape: f32[2,6272], index: 0, kind: input, shape index: {}]
  %s1 = inlined_call_operand.hbm [shape: f32[6272,1024], index: 1, kind: input, shape index: {}]
  %s2 = inlined_call_operand.hbm [shape: f32[1,1024], index: 2, kind: input, shape index: {}]
  %s3 = inlined_call_operand.hbm [shape: f32[1,1024], index: 3, kind: input, shape index: {}]
  %s4 = inlined_call_operand.hbm [shape: f32[1,1024], index: 4, kind: input, shape index: {}]
  %s5 = inlined_call_operand.hbm [shape: f32[1024,256], index: 5, kind: input, shape index: {}]
  %s6 = inlined_call_operand.hbm [shape: f32[1,256], index: 6, kind: input, shape index: {}]
  %s7 = inlined_call_operand.hbm [shape: f32[1,128], index: 7, kind: input, shape index: {}]
  %s8 = inlined_call_operand.hbm [shape: f32[1,128], index: 8, kind: input, shape index: {}]
  %s9 = inlined_call_operand.hbm [shape: f32[128,128], index: 9, kind: input, shape index: {}]
  %s10 = inlined_call_operand.hbm [shape: f32[1,128], index: 10, kind: input, shape index: {}]
  %s11 = inlined_call_operand.hbm [shape: f32[2,128], index: 11, kind: output, shape index: {0}]
  %s12 = inlined_call_operand.hbm [shape: f32[2,128], index: 12, kind: output, shape index: {1}]
  %13 = xla_tuple %s11, %s12
  %s14 = sld [smem:[#allocation0]]
  $region133: #{netD_forward.5} parent=0
    _
  %s16 = ssub.s32 1, %s14
  %s17 = scalar_select 0, %s16, %s14
  $region1: #{netD_forward.5} parent=0
    #allocation3 [shape = 'u8[7340032]{0}', space=vmem, size = 0x700000, scoped, tag = 'input window, operand 1']
    #allocation4 [shape = 's32[2]{0}', space=sflag, size = 0x8, scoped, tag = 'scoped memory for netD_forward.5']
    #allocation5 [shape = 's32[2]{0}', space=sflag, size = 0x8, scoped, tag = 'scoped memory for netD_forward.5']
    #allocation6 [shape = 'u8[4096]{0}', space=vmem, size = 0x1000, scoped, tag = 'input window, operand 2, single buffered']
    #allocation7 [shape = 's32[1]{0}', space=sflag, size = 0x4, scoped, tag = 'scoped memory for netD_forward.5']
    #allocation8 [shape = 'u8[4096]{0}', space=vmem, size = 0x1000, scoped, tag = 'input window, operand 3, single buffered']
    #allocation9 [shape = 'u8[4096]{0}', space=vmem, size = 0x1000, scoped, tag = 'input window, operand 4, single buffered']
    #allocation10 [shape = 's32[1]{0}', space=sflag, size = 0x4, scoped, tag = 'scoped memory for netD_forward.5']
    #allocation11 [shape = 'u8[1048576]{0}', space=vmem, size = 0x100000, scoped, tag = 'input window, operand 5, single buffered']
    #allocation12 [shape = 'u8[1024]{0}', space=vmem, size = 0x400, scoped, tag = 'input window, operand 6, single buffered']
    #allocation13 [shape = 's32[1]{0}', space=sflag, size = 0x4, scoped, tag = 'scoped memory for netD_forward.5']
    #allocation14 [shape = 'u8[512]{0}', space=vmem, size = 0x400, scoped, tag = 'input window, operand 7, single buffered']
    #allocation15 [shape = 'u8[512]{0}', space=vmem, size = 0x400, scoped, tag = 'input window, operand 8, single buffered']
    #allocation16 [shape = 's32[1]{0}', space=sflag, size = 0x4, scoped, tag = 'scoped memory for netD_forward.5']
    #allocation17 [shape = 'u8[65536]{0}', space=vmem, size = 0x10000, scoped, tag = 'input window, operand 9, single buffered']
    #allocation18 [shape = 'u8[512]{0}', space=vmem, size = 0x400, scoped, tag = 'input window, operand 10, single buffered']
    #allocation19 [shape = 's32[1]{0}', space=sflag, size = 0x4, scoped, tag = 'scoped memory for netD_forward.5']
    #allocation20 [shape = 'u8[1024]{0}', space=vmem, size = 0x400, scoped, tag = 'output window, operand 0, single buffered']
    #allocation21 [shape = 'u8[1024]{0}', space=vmem, size = 0x400, scoped, tag = 'output window, operand 1, single buffered']
    #allocation22 [shape = 's32[1]{0}', space=sflag, size = 0x4, scoped, tag = 'scoped memory for netD_forward.5']
    %18 = vsyncpa [#allocation4], 0
    %s19 = scalar_lea.sflag [#allocation4], 1
    %20 = vsyncpa %s19, 0
    %21 = vsyncpa [#allocation7], 0
    %22 = vsyncpa [#allocation10], 0
    %23 = vsyncpa [#allocation13], 0
    %24 = vsyncpa [#allocation16], 0
    %25 = vsyncpa [#allocation19], 0
    %26 = vsyncpa [#allocation5], 0
    %27 = vsyncpa [#allocation22], 0
    loop: start=0, step=1, limit=9
    $region2: #{netD_forward.5} parent=1 // loop_pre_header
      _
    $region3: #{netD_forward.5} parent=1 // loop_header
      %s29 = sphi 0, %s33
      %p30 = scmp.ge.s32.totalorder %s29, 9
      %s39 = sphi 0, %s41
      %s42 = sphi 0, %s39
      %s43 = sphi 0, %s42
      %s59 = sphi 0, %s43
      %s65 = sphi 0, %s67
      %s68 = sphi 0, %s65
      %s69 = sphi 0, %s68
      %s85 = sphi 0, %s69
      %s89 = sphi 0, %s89
      %s91 = sphi 0, %s89
      %s92 = sphi 0, %s91
      %s106 = sphi 0, %s92
      %s110 = sphi 0, %s110
      %s112 = sphi 0, %s110
      %s113 = sphi 0, %s112
      %s127 = sphi 0, %s113
      %s131 = sphi 0, %s131
      %s133 = sphi 0, %s131
      %s134 = sphi 0, %s133
      %s148 = sphi 0, %s134
      %s152 = sphi 0, %s152
      %s154 = sphi 0, %s152
      %s155 = sphi 0, %s154
      %s169 = sphi 0, %s155
      %s173 = sphi 0, %s173
      %s175 = sphi 0, %s173
      %s176 = sphi 0, %s175
      %s190 = sphi 0, %s176
      %s194 = sphi 0, %s194
      %s196 = sphi 0, %s194
      %s197 = sphi 0, %s196
      %s211 = sphi 0, %s197
      %s215 = sphi 0, %s215
      %s217 = sphi 0, %s215
      %s218 = sphi 0, %s217
      %s232 = sphi 0, %s218
      %s236 = sphi 0, %s236
      %s238 = sphi 0, %s236
      %s239 = sphi 0, %s238
      %s253 = sphi 0, %s239
      %s257 = sphi 0, %s257
      %s259 = sphi 0, %s257
      %s260 = sphi 0, %s259
      %s274 = sphi 0, %s260
      %s278 = sphi 0, %s278
      %s280 = sphi 0, %s278
      %s281 = sphi 0, %s280
      %s295 = sphi 0, %s281
      %s299 = sphi 0, %s299
      %s301 = sphi 0, %s299
      %s302 = sphi 0, %s301
      %s316 = sphi 0, %s302
    $region4: #{netD_forward.5} parent=1 // loop_header_branch
      %32 = sbr.rel (%p30) target = $region8
    $region5: #{netD_forward.5} parent=1 // loop_body
      %s34 = ssub.s32 %s29, 1
      %s35 = ssub.s32 %s29, 2
      %s36 = sadd.s32 %s29, 1
      %s37 = ssub.s32 %s29, %s36
      %p38 = scmp.eq.s32.totalorder %s37, 0
      %s40 = sadd.s32 %s39, 1
      %s41 = scalar_select %p38, %s39, %s40
      %p44 = pneg %p38
      %p45 = scmp.eq.s32.totalorder %s29, 6
      %p46 = por %p44, %p45
      %p47 = scmp.ne.s32.totalorder %s39, %s42
      %p48 = scmp.eq.s32.totalorder %s29, 0
      %p49 = por %p47, %p48
      %p50 = scmp.ne.s32.totalorder %s39, %s42
      %p51 = scmp.eq.s32.totalorder %s34, 6
      %p52 = por %p50, %p51
      %p53 = scmp.ne.s32.totalorder %s42, %s43
      %p54 = scmp.eq.s32.totalorder %s34, 0
      %p55 = por %p53, %p54
      %p56 = scmp.ne.s32.totalorder %s42, %s43
      %p57 = scmp.eq.s32.totalorder %s35, 6
      %p58 = por %p56, %p57
      %p60 = scmp.ne.s32.totalorder %s43, %s59
      %p61 = scmp.eq.s32.totalorder %s35, 0
      %p62 = por %p60, %p61
      %s63 = ssub.s32 %s29, %s36
      %p64 = scmp.eq.s32.totalorder %s63, 0
      %s66 = sadd.s32 %s65, 1
      %s67 = scalar_select %p64, %s65, %s66
      %p70 = pneg %p64
      %p71 = scmp.eq.s32.totalorder %s29, 6
      %p72 = por %p70, %p71
      %p73 = scmp.ne.s32.totalorder %s65, %s68
      %p74 = scmp.eq.s32.totalorder %s29, 0
      %p75 = por %p73, %p74
      %p76 = scmp.ne.s32.totalorder %s65, %s68
      %p77 = scmp.eq.s32.totalorder %s34, 6
      %p78 = por %p76, %p77
      %p79 = scmp.ne.s32.totalorder %s68, %s69
      %p80 = scmp.eq.s32.totalorder %s34, 0
      %p81 = por %p79, %p80
      %p82 = scmp.ne.s32.totalorder %s68, %s69
      %p83 = scmp.eq.s32.totalorder %s35, 6
      %p84 = por %p82, %p83
      %p86 = scmp.ne.s32.totalorder %s69, %s85
      %p87 = scmp.eq.s32.totalorder %s35, 0
      %p88 = por %p86, %p87
      %s90 = sadd.s32 %s89, 1
      %p93 = scmp.eq.s32.totalorder %s29, 6
      %p94 = scmp.ne.s32.totalorder %s89, %s91
      %p95 = scmp.eq.s32.totalorder %s29, 0
      %p96 = por %p94, %p95
      %p97 = scmp.ne.s32.totalorder %s89, %s91
      %p98 = scmp.eq.s32.totalorder %s34, 6
      %p99 = por %p97, %p98
      %p100 = scmp.ne.s32.totalorder %s91, %s92
      %p101 = scmp.eq.s32.totalorder %s34, 0
      %p102 = por %p100, %p101
      %p103 = scmp.ne.s32.totalorder %s91, %s92
      %p104 = scmp.eq.s32.totalorder %s35, 6
      %p105 = por %p103, %p104
      %p107 = scmp.ne.s32.totalorder %s92, %s106
      %p108 = scmp.eq.s32.totalorder %s35, 0
      %p109 = por %p107, %p108
      %s111 = sadd.s32 %s110, 1
      %p114 = scmp.eq.s32.totalorder %s29, 6
      %p115 = scmp.ne.s32.totalorder %s110, %s112
      %p116 = scmp.eq.s32.totalorder %s29, 0
      %p117 = por %p115, %p116
      %p118 = scmp.ne.s32.totalorder %s110, %s112
      %p119 = scmp.eq.s32.totalorder %s34, 6
      %p120 = por %p118, %p119
      %p121 = scmp.ne.s32.totalorder %s112, %s113
      %p122 = scmp.eq.s32.totalorder %s34, 0
      %p123 = por %p121, %p122
      %p124 = scmp.ne.s32.totalorder %s112, %s113
      %p125 = scmp.eq.s32.totalorder %s35, 6
      %p126 = por %p124, %p125
      %p128 = scmp.ne.s32.totalorder %s113, %s127
      %p129 = scmp.eq.s32.totalorder %s35, 0
      %p130 = por %p128, %p129
      %s132 = sadd.s32 %s131, 1
      %p135 = scmp.eq.s32.totalorder %s29, 6
      %p136 = scmp.ne.s32.totalorder %s131, %s133
      %p137 = scmp.eq.s32.totalorder %s29, 0
      %p138 = por %p136, %p137
      %p139 = scmp.ne.s32.totalorder %s131, %s133
      %p140 = scmp.eq.s32.totalorder %s34, 6
      %p141 = por %p139, %p140
      %p142 = scmp.ne.s32.totalorder %s133, %s134
      %p143 = scmp.eq.s32.totalorder %s34, 0
      %p144 = por %p142, %p143
      %p145 = scmp.ne.s32.totalorder %s133, %s134
      %p146 = scmp.eq.s32.totalorder %s35, 6
      %p147 = por %p145, %p146
      %p149 = scmp.ne.s32.totalorder %s134, %s148
      %p150 = scmp.eq.s32.totalorder %s35, 0
      %p151 = por %p149, %p150
      %s153 = sadd.s32 %s152, 1
      %p156 = scmp.eq.s32.totalorder %s29, 6
      %p157 = scmp.ne.s32.totalorder %s152, %s154
      %p158 = scmp.eq.s32.totalorder %s29, 0
      %p159 = por %p157, %p158
      %p160 = scmp.ne.s32.totalorder %s152, %s154
      %p161 = scmp.eq.s32.totalorder %s34, 6
      %p162 = por %p160, %p161
      %p163 = scmp.ne.s32.totalorder %s154, %s155
      %p164 = scmp.eq.s32.totalorder %s34, 0
      %p165 = por %p163, %p164
      %p166 = scmp.ne.s32.totalorder %s154, %s155
      %p167 = scmp.eq.s32.totalorder %s35, 6
      %p168 = por %p166, %p167
      %p170 = scmp.ne.s32.totalorder %s155, %s169
      %p171 = scmp.eq.s32.totalorder %s35, 0
      %p172 = por %p170, %p171
      %s174 = sadd.s32 %s173, 1
      %p177 = scmp.eq.s32.totalorder %s29, 6
      %p178 = scmp.ne.s32.totalorder %s173, %s175
      %p179 = scmp.eq.s32.totalorder %s29, 0
      %p180 = por %p178, %p179
      %p181 = scmp.ne.s32.totalorder %s173, %s175
      %p182 = scmp.eq.s32.totalorder %s34, 6
      %p183 = por %p181, %p182
      %p184 = scmp.ne.s32.totalorder %s175, %s176
      %p185 = scmp.eq.s32.totalorder %s34, 0
      %p186 = por %p184, %p185
      %p187 = scmp.ne.s32.totalorder %s175, %s176
      %p188 = scmp.eq.s32.totalorder %s35, 6
      %p189 = por %p187, %p188
      %p191 = scmp.ne.s32.totalorder %s176, %s190
      %p192 = scmp.eq.s32.totalorder %s35, 0
      %p193 = por %p191, %p192
      %s195 = sadd.s32 %s194, 1
      %p198 = scmp.eq.s32.totalorder %s29, 6
      %p199 = scmp.ne.s32.totalorder %s194, %s196
      %p200 = scmp.eq.s32.totalorder %s29, 0
      %p201 = por %p199, %p200
      %p202 = scmp.ne.s32.totalorder %s194, %s196
      %p203 = scmp.eq.s32.totalorder %s34, 6
      %p204 = por %p202, %p203
      %p205 = scmp.ne.s32.totalorder %s196, %s197
      %p206 = scmp.eq.s32.totalorder %s34, 0
      %p207 = por %p205, %p206
      %p208 = scmp.ne.s32.totalorder %s196, %s197
      %p209 = scmp.eq.s32.totalorder %s35, 6
      %p210 = por %p208, %p209
      %p212 = scmp.ne.s32.totalorder %s197, %s211
      %p213 = scmp.eq.s32.totalorder %s35, 0
      %p214 = por %p212, %p213
      %s216 = sadd.s32 %s215, 1
      %p219 = scmp.eq.s32.totalorder %s29, 6
      %p220 = scmp.ne.s32.totalorder %s215, %s217
      %p221 = scmp.eq.s32.totalorder %s29, 0
      %p222 = por %p220, %p221
      %p223 = scmp.ne.s32.totalorder %s215, %s217
      %p224 = scmp.eq.s32.totalorder %s34, 6
      %p225 = por %p223, %p224
      %p226 = scmp.ne.s32.totalorder %s217, %s218
      %p227 = scmp.eq.s32.totalorder %s34, 0
      %p228 = por %p226, %p227
      %p229 = scmp.ne.s32.totalorder %s217, %s218
      %p230 = scmp.eq.s32.totalorder %s35, 6
      %p231 = por %p229, %p230
      %p233 = scmp.ne.s32.totalorder %s218, %s232
      %p234 = scmp.eq.s32.totalorder %s35, 0
      %p235 = por %p233, %p234
      %s237 = sadd.s32 %s236, 1
      %p240 = scmp.eq.s32.totalorder %s29, 6
      %p241 = scmp.ne.s32.totalorder %s236, %s238
      %p242 = scmp.eq.s32.totalorder %s29, 0
      %p243 = por %p241, %p242
      %p244 = scmp.ne.s32.totalorder %s236, %s238
      %p245 = scmp.eq.s32.totalorder %s34, 6
      %p246 = por %p244, %p245
      %p247 = scmp.ne.s32.totalorder %s238, %s239
      %p248 = scmp.eq.s32.totalorder %s34, 0
      %p249 = por %p247, %p248
      %p250 = scmp.ne.s32.totalorder %s238, %s239
      %p251 = scmp.eq.s32.totalorder %s35, 6
      %p252 = por %p250, %p251
      %p254 = scmp.ne.s32.totalorder %s239, %s253
      %p255 = scmp.eq.s32.totalorder %s35, 0
      %p256 = por %p254, %p255
      %s258 = sadd.s32 %s257, 1
      %p261 = scmp.eq.s32.totalorder %s29, 6
      %p262 = scmp.ne.s32.totalorder %s257, %s259
      %p263 = scmp.eq.s32.totalorder %s29, 0
      %p264 = por %p262, %p263
      %p265 = scmp.ne.s32.totalorder %s257, %s259
      %p266 = scmp.eq.s32.totalorder %s34, 6
      %p267 = por %p265, %p266
      %p268 = scmp.ne.s32.totalorder %s259, %s260
      %p269 = scmp.eq.s32.totalorder %s34, 0
      %p270 = por %p268, %p269
      %p271 = scmp.ne.s32.totalorder %s259, %s260
      %p272 = scmp.eq.s32.totalorder %s35, 6
      %p273 = por %p271, %p272
      %p275 = scmp.ne.s32.totalorder %s260, %s274
      %p276 = scmp.eq.s32.totalorder %s35, 0
      %p277 = por %p275, %p276
      %s279 = sadd.s32 %s278, 1
      %p282 = scmp.eq.s32.totalorder %s29, 6
      %p283 = scmp.ne.s32.totalorder %s278, %s280
      %p284 = scmp.eq.s32.totalorder %s29, 0
      %p285 = por %p283, %p284
      %p286 = scmp.ne.s32.totalorder %s278, %s280
      %p287 = scmp.eq.s32.totalorder %s34, 6
      %p288 = por %p286, %p287
      %p289 = scmp.ne.s32.totalorder %s280, %s281
      %p290 = scmp.eq.s32.totalorder %s34, 0
      %p291 = por %p289, %p290
      %p292 = scmp.ne.s32.totalorder %s280, %s281
      %p293 = scmp.eq.s32.totalorder %s35, 6
      %p294 = por %p292, %p293
      %p296 = scmp.ne.s32.totalorder %s281, %s295
      %p297 = scmp.eq.s32.totalorder %s35, 0
      %p298 = por %p296, %p297
      %s300 = sadd.s32 %s299, 1
      %p303 = scmp.eq.s32.totalorder %s29, 6
      %p304 = scmp.ne.s32.totalorder %s299, %s301
      %p305 = scmp.eq.s32.totalorder %s29, 0
      %p306 = por %p304, %p305
      %p307 = scmp.ne.s32.totalorder %s299, %s301
      %p308 = scmp.eq.s32.totalorder %s34, 6
      %p309 = por %p307, %p308
      %p310 = scmp.ne.s32.totalorder %s301, %s302
      %p311 = scmp.eq.s32.totalorder %s34, 0
      %p312 = por %p310, %p311
      %p313 = scmp.ne.s32.totalorder %s301, %s302
      %p314 = scmp.eq.s32.totalorder %s35, 6
      %p315 = por %p313, %p314
      %p317 = scmp.ne.s32.totalorder %s302, %s316
      %p318 = scmp.eq.s32.totalorder %s35, 0
      %p319 = por %p317, %p318
      %p320 = scmp.le.s32.totalorder 1, %s29
      %p321 = scmp.lt.s32.totalorder %s29, 8
      %p322 = pnand %p320, %p321
      %p323 = pneg %p322
      // Predicated region
      $region9: #{netD_forward.5} parent=5 // pred_check
        _
      $region10: #{netD_forward.5} parent=5 // pred_check_branch
        %325 = sbr.rel (%p322) target = $region12
      $region11: #{netD_forward.5} parent=5 // pred_region
        %s326 = ssub.s32 %s29, 1
        // Predicated region
        $region13: #{netD_forward.5} parent=11 // pred_check
          %p327 = pneg %p102
        $region14: #{netD_forward.5} parent=11 // pred_check_branch
          %329 = sbr.rel (%p327) target = $region16
        $region15: #{netD_forward.5} parent=11 // pred_region
          %s331 = ssub.s32 128, 128
          %332 = vsyncadd [#allocation7], %s331
          %s334 = sshll.u32 [#allocation6], 4
          %s335 = int_to_ptr.vmem [resolvable:$true] %s334
          %337 = dma.hbm_to_vmem [thread:$0]  %s2, 128, %s335, [#allocation7]
        $region16: #{netD_forward.5} parent=11 // pred_fallthru
          _
        // Predicated region
        $region17: #{netD_forward.5} parent=11 // pred_check
          %p338 = pneg %p123
        $region18: #{netD_forward.5} parent=11 // pred_check_branch
          %340 = sbr.rel (%p338) target = $region20
        $region19: #{netD_forward.5} parent=11 // pred_region
          %s342 = ssub.s32 128, 128
          %343 = vsyncadd [#allocation7], %s342
          %s345 = sshll.u32 [#allocation8], 4
          %s346 = int_to_ptr.vmem [resolvable:$true] %s345
          %348 = dma.hbm_to_vmem [thread:$0]  %s3, 128, %s346, [#allocation7]
        $region20: #{netD_forward.5} parent=11 // pred_fallthru
          _
        // Predicated region
        $region21: #{netD_forward.5} parent=11 // pred_check
          %p349 = pneg %p144
        $region22: #{netD_forward.5} parent=11 // pred_check_branch
          %351 = sbr.rel (%p349) target = $region24
        $region23: #{netD_forward.5} parent=11 // pred_region
          %s353 = ssub.s32 128, 128
          %354 = vsyncadd [#allocation10], %s353
          %s356 = sshll.u32 [#allocation9], 4
          %s357 = int_to_ptr.vmem [resolvable:$true] %s356
          %359 = dma.hbm_to_vmem [thread:$0]  %s4, 128, %s357, [#allocation10]
        $region24: #{netD_forward.5} parent=11 // pred_fallthru
          _
        // Predicated region
        $region25: #{netD_forward.5} parent=11 // pred_check
          %p360 = pneg %p165
        $region26: #{netD_forward.5} parent=11 // pred_check_branch
          %362 = sbr.rel (%p360) target = $region28
        $region27: #{netD_forward.5} parent=11 // pred_region
          %s364 = ssub.s32 32768, 32768
          %365 = vsyncadd [#allocation10], %s364
          %s366 = sshll.u32 [#allocation11], 4
          %s367 = int_to_ptr.vmem [resolvable:$true] %s366
          %372 = dma.hbm_to_vmem [thread:$0]  %s5, 32768, %s367, [#allocation10], 256, 256, 16
        $region28: #{netD_forward.5} parent=11 // pred_fallthru
          _
        // Predicated region
        $region29: #{netD_forward.5} parent=11 // pred_check
          %p373 = pneg %p186
        $region30: #{netD_forward.5} parent=11 // pred_check_branch
          %375 = sbr.rel (%p373) target = $region32
        $region31: #{netD_forward.5} parent=11 // pred_region
          %s377 = ssub.s32 32, 32
          %378 = vsyncadd [#allocation13], %s377
          %s380 = sshll.u32 [#allocation12], 4
          %s381 = int_to_ptr.vmem [resolvable:$true] %s380
          %383 = dma.hbm_to_vmem [thread:$0]  %s6, 32, %s381, [#allocation13]
        $region32: #{netD_forward.5} parent=11 // pred_fallthru
          _
        // Predicated region
        $region33: #{netD_forward.5} parent=11 // pred_check
          %p384 = pneg %p207
        $region34: #{netD_forward.5} parent=11 // pred_check_branch
          %386 = sbr.rel (%p384) target = $region36
        $region35: #{netD_forward.5} parent=11 // pred_region
          %s388 = ssub.s32 16, 16
          %389 = vsyncadd [#allocation13], %s388
          %s391 = sshll.u32 [#allocation14], 4
          %s392 = int_to_ptr.vmem [resolvable:$true] %s391
          %394 = dma.hbm_to_vmem [thread:$0]  %s7, 16, %s392, [#allocation13]
        $region36: #{netD_forward.5} parent=11 // pred_fallthru
          _
        // Predicated region
        $region37: #{netD_forward.5} parent=11 // pred_check
          %p395 = pneg %p228
        $region38: #{netD_forward.5} parent=11 // pred_check_branch
          %397 = sbr.rel (%p395) target = $region40
        $region39: #{netD_forward.5} parent=11 // pred_region
          %s399 = ssub.s32 16, 16
          %400 = vsyncadd [#allocation16], %s399
          %s402 = sshll.u32 [#allocation15], 4
          %s403 = int_to_ptr.vmem [resolvable:$true] %s402
          %405 = dma.hbm_to_vmem [thread:$0]  %s8, 16, %s403, [#allocation16]
        $region40: #{netD_forward.5} parent=11 // pred_fallthru
          _
        // Predicated region
        $region41: #{netD_forward.5} parent=11 // pred_check
          %p406 = pneg %p249
        $region42: #{netD_forward.5} parent=11 // pred_check_branch
          %408 = sbr.rel (%p406) target = $region44
        $region43: #{netD_forward.5} parent=11 // pred_region
          %s410 = ssub.s32 2048, 2048
          %411 = vsyncadd [#allocation16], %s410
          %s412 = sshll.u32 [#allocation17], 4
          %s413 = int_to_ptr.vmem [resolvable:$true] %s412
          %418 = dma.hbm_to_vmem [thread:$0]  %s9, 2048, %s413, [#allocation16], 128, 128, 8
        $region44: #{netD_forward.5} parent=11 // pred_fallthru
          _
        // Predicated region
        $region45: #{netD_forward.5} parent=11 // pred_check
          %p419 = pneg %p270
        $region46: #{netD_forward.5} parent=11 // pred_check_branch
          %421 = sbr.rel (%p419) target = $region48
        $region47: #{netD_forward.5} parent=11 // pred_region
          %s423 = ssub.s32 16, 16
          %424 = vsyncadd [#allocation19], %s423
          %s426 = sshll.u32 [#allocation18], 4
          %s427 = int_to_ptr.vmem [resolvable:$true] %s426
          %429 = dma.hbm_to_vmem [thread:$0]  %s10, 16, %s427, [#allocation19]
        $region48: #{netD_forward.5} parent=11 // pred_fallthru
          _
      $region12: #{netD_forward.5} parent=5 // pred_fallthru
        _
      %p430 = scmp.lt.s32.totalorder %s29, 7
      // Predicated region
      $region49: #{netD_forward.5} parent=5 // pred_check
        %p431 = pneg %p430
      $region50: #{netD_forward.5} parent=5 // pred_check_branch
        %433 = sbr.rel (%p431) target = $region52
      $region51: #{netD_forward.5} parent=5 // pred_region
        // Predicated region
        $region53: #{netD_forward.5} parent=51 // pred_check
          %p434 = pneg %p49
        $region54: #{netD_forward.5} parent=51 // pred_check_branch
          %436 = sbr.rel (%p434) target = $region56
        $region55: #{netD_forward.5} parent=51 // pred_region
          %s437 = smul.u32 7, %s29
          %p438 = scmp.lt.s32.totalorder %s437, 48
          %s439 = scalar_select %p438, %s437, 48
          %s440 = smul.addr %s439, 2
          %s441 = scalar_lea.vmem %s0, %s440
          %s442 = smul.u32 7, %s29
        $region56: #{netD_forward.5} parent=51 // pred_fallthru
          _
        // Predicated region
        $region57: #{netD_forward.5} parent=51 // pred_check
          %p443 = pneg %p75
        $region58: #{netD_forward.5} parent=51 // pred_check_branch
          %445 = sbr.rel (%p443) target = $region60
        $region59: #{netD_forward.5} parent=51 // pred_region
          %s446 = sand.u32 %s65, 1
          %s447 = scalar_lea.sflag [#allocation4], %s446
          %s448 = sand.u32 %s65, 1
          %s449 = smul.addr %s448, 7168
          %s450 = scalar_lea.vmem [#allocation3], %s449
          %s451 = smul.u32 112, %s29
          %s453 = ssub.s32 114688, 114688
          %454 = vsyncadd %s447, %s453
          %s455 = smul.addr %s451, 8
          %s456 = smul.addr %s455, 128
          %s457 = scalar_lea.hbm %s1, %s456
          %s458 = sshll.u32 %s450, 4
          %s459 = int_to_ptr.vmem [resolvable:$true] %s458
          %464 = dma.hbm_to_vmem [thread:$0]  %s457, 114688, %s459, %s447, 1024, 1024, 64
        $region60: #{netD_forward.5} parent=51 // pred_fallthru
          _
      $region52: #{netD_forward.5} parent=5 // pred_fallthru
        _
      %p465 = scmp.le.s32.totalorder 1, %s29
      %p466 = scmp.lt.s32.totalorder %s29, 8
      %p467 = pnand %p465, %p466
      %p468 = pneg %p467
      // Predicated region
      $region61: #{netD_forward.5} parent=5 // pred_check
        _
      $region62: #{netD_forward.5} parent=5 // pred_check_branch
        %470 = sbr.rel (%p467) target = $region64
      $region63: #{netD_forward.5} parent=5 // pred_region
        %s471 = ssub.s32 %s29, 1
        %s472 = sand.u32 %s68, 1
        %s473 = scalar_lea.sflag [#allocation4], %s472
        %s474 = sand.u32 %s68, 1
        %s475 = smul.addr %s474, 7168
        %s476 = scalar_lea.vmem [#allocation3], %s475
        // Predicated region
        $region65: #{netD_forward.5} parent=63 // pred_check
          %p477 = pneg %p81
        $region66: #{netD_forward.5} parent=63 // pred_check_branch
          %479 = sbr.rel (%p477) target = $region68
        $region67: #{netD_forward.5} parent=63 // pred_region
          %480 = dma.done %s473, 114688
        $region68: #{netD_forward.5} parent=63 // pred_fallthru
          _
        // Predicated region
        $region69: #{netD_forward.5} parent=63 // pred_check
          %p481 = pneg %p102
        $region70: #{netD_forward.5} parent=63 // pred_check_branch
          %483 = sbr.rel (%p481) target = $region72
        $region71: #{netD_forward.5} parent=63 // pred_region
          %484 = dma.done [#allocation7], 128
        $region72: #{netD_forward.5} parent=63 // pred_fallthru
          _
        // Predicated region
        $region73: #{netD_forward.5} parent=63 // pred_check
          %p485 = pneg %p123
        $region74: #{netD_forward.5} parent=63 // pred_check_branch
          %487 = sbr.rel (%p485) target = $region76
        $region75: #{netD_forward.5} parent=63 // pred_region
          %488 = dma.done [#allocation7], 128
        $region76: #{netD_forward.5} parent=63 // pred_fallthru
          _
        // Predicated region
        $region77: #{netD_forward.5} parent=63 // pred_check
          %p489 = pneg %p144
        $region78: #{netD_forward.5} parent=63 // pred_check_branch
          %491 = sbr.rel (%p489) target = $region80
        $region79: #{netD_forward.5} parent=63 // pred_region
          %492 = dma.done [#allocation10], 128
        $region80: #{netD_forward.5} parent=63 // pred_fallthru
          _
        // Predicated region
        $region81: #{netD_forward.5} parent=63 // pred_check
          %p493 = pneg %p165
        $region82: #{netD_forward.5} parent=63 // pred_check_branch
          %495 = sbr.rel (%p493) target = $region84
        $region83: #{netD_forward.5} parent=63 // pred_region
          %496 = dma.done [#allocation10], 32768
        $region84: #{netD_forward.5} parent=63 // pred_fallthru
          _
        // Predicated region
        $region85: #{netD_forward.5} parent=63 // pred_check
          %p497 = pneg %p186
        $region86: #{netD_forward.5} parent=63 // pred_check_branch
          %499 = sbr.rel (%p497) target = $region88
        $region87: #{netD_forward.5} parent=63 // pred_region
          %500 = dma.done [#allocation13], 32
        $region88: #{netD_forward.5} parent=63 // pred_fallthru
          _
        // Predicated region
        $region89: #{netD_forward.5} parent=63 // pred_check
          %p501 = pneg %p207
        $region90: #{netD_forward.5} parent=63 // pred_check_branch
          %503 = sbr.rel (%p501) target = $region92
        $region91: #{netD_forward.5} parent=63 // pred_region
          %504 = dma.done [#allocation13], 16
        $region92: #{netD_forward.5} parent=63 // pred_fallthru
          _
        // Predicated region
        $region93: #{netD_forward.5} parent=63 // pred_check
          %p505 = pneg %p228
        $region94: #{netD_forward.5} parent=63 // pred_check_branch
          %507 = sbr.rel (%p505) target = $region96
        $region95: #{netD_forward.5} parent=63 // pred_region
          %508 = dma.done [#allocation16], 16
        $region96: #{netD_forward.5} parent=63 // pred_fallthru
          _
        // Predicated region
        $region97: #{netD_forward.5} parent=63 // pred_check
          %p509 = pneg %p249
        $region98: #{netD_forward.5} parent=63 // pred_check_branch
          %511 = sbr.rel (%p509) target = $region100
        $region99: #{netD_forward.5} parent=63 // pred_region
          %512 = dma.done [#allocation16], 2048
        $region100: #{netD_forward.5} parent=63 // pred_fallthru
          _
        // Predicated region
        $region101: #{netD_forward.5} parent=63 // pred_check
          %p513 = pneg %p270
        $region102: #{netD_forward.5} parent=63 // pred_check_branch
          %515 = sbr.rel (%p513) target = $region104
        $region103: #{netD_forward.5} parent=63 // pred_region
          %516 = dma.done [#allocation19], 16
        $region104: #{netD_forward.5} parent=63 // pred_fallthru
          _
        %s517 = smul.u32 7, %s34
        %p518 = scmp.lt.s32.totalorder %s517, 48
        %s519 = scalar_select %p518, %s517, 48
        %s520 = smul.addr %s519, 2
        %s521 = scalar_lea.vmem %s0, %s520
        %p522 = pneg %p55
        %p523 = pneg %p52
        %s524 = sand.u32 %s68, 1
        %s525 = scalar_lea.sflag [#allocation4], %s524
        %s526 = sand.u32 %s68, 1
        %s527 = smul.addr %s526, 7168
        %s528 = scalar_lea.vmem [#allocation3], %s527
        %p529 = pneg %p81
        %p530 = pneg %p78
        %p531 = pneg %p102
        %p532 = pneg %p99
        %p533 = pneg %p123
        %p534 = pneg %p120
        %p535 = pneg %p144
        %p536 = pneg %p141
        %p537 = pneg %p165
        %p538 = pneg %p162
        %p539 = pneg %p186
        %p540 = pneg %p183
        %p541 = pneg %p207
        %p542 = pneg %p204
        %p543 = pneg %p228
        %p544 = pneg %p225
        %p545 = pneg %p249
        %p546 = pneg %p246
        %p547 = pneg %p270
        %p548 = pneg %p267
        %p549 = pneg %p291
        %p550 = pneg %p288
        %p551 = pneg %p312
        %p552 = pneg %p309
        %s553 = smul.u32 7, %s34
        %p554 = scmp.lt.s32.totalorder %s553, 48
        %s555 = scalar_select %p554, %s553, 48
        %s556 = smul.addr %s555, 2
        %s557 = scalar_lea.vmem %s0, %s556
        %s558 = smul.u32 7, %s34
        %s559 = smul.u32 112, %s34
        %p560 = scmp.eq.s32.totalorder %s34, 0
        // Predicated region
        $region105: #{netD_forward.5} parent=63 // pred_check
          %p561 = pneg %p560
        $region106: #{netD_forward.5} parent=63 // pred_check_branch
          %563 = sbr.rel (%p561) target = $region108
        $region107: #{netD_forward.5} parent=63 // pred_region
          %564 = vst [vmem:[#allocation2] sm:$0xff] 0.0
          %565 = vst [vmem:[#allocation2 + $0x8] sm:$0xff] 0.0
        $region108: #{netD_forward.5} parent=63 // pred_fallthru
          _
        %v566 = vld [vmem:[#allocation2] sm:$0xff]
        %v567 = vld [vmem:[#allocation2 + $0x8] sm:$0xff]
        %v568 = vld [vmem:[%s557] sm:$0xff]
        %v569 = vld [vmem:[%s557 + $0x8] sm:$0x3f]
        %v570 = vld [vmem:[%s476] sm:$0xff]
        %v571 = vld [vmem:[%s476 + $0x8] sm:$0xff]
        %v572 = vld [vmem:[%s476 + $0x10] sm:$0xff]
        %v573 = vld [vmem:[%s476 + $0x18] sm:$0xff]
        %v574 = vld [vmem:[%s476 + $0x20] sm:$0xff]
        %v575 = vld [vmem:[%s476 + $0x28] sm:$0xff]
        %v576 = vld [vmem:[%s476 + $0x30] sm:$0xff]
        %v577 = vld [vmem:[%s476 + $0x38] sm:$0xff]
        %v578 = vld [vmem:[%s476 + $0x40] sm:$0xff]
        %v579 = vld [vmem:[%s476 + $0x48] sm:$0xff]
        %v580 = vld [vmem:[%s476 + $0x50] sm:$0xff]
        %v581 = vld [vmem:[%s476 + $0x58] sm:$0xff]
        %v582 = vld [vmem:[%s476 + $0x60] sm:$0xff]
        %v583 = vld [vmem:[%s476 + $0x68] sm:$0xff]
        %v584 = vld [vmem:[%s476 + $0x70] sm:$0xff]
        %v585 = vld [vmem:[%s476 + $0x78] sm:$0xff]
        %v586 = vld [vmem:[%s476 + $0x80] sm:$0xff]
        %v587 = vld [vmem:[%s476 + $0x88] sm:$0xff]
        %v588 = vld [vmem:[%s476 + $0x90] sm:$0xff]
        %v589 = vld [vmem:[%s476 + $0x98] sm:$0xff]
        %v590 = vld [vmem:[%s476 + $0xa0] sm:$0xff]
        %v591 = vld [vmem:[%s476 + $0xa8] sm:$0xff]
        %v592 = vld [vmem:[%s476 + $0xb0] sm:$0xff]
        %v593 = vld [vmem:[%s476 + $0xb8] sm:$0xff]
        %v594 = vld [vmem:[%s476 + $0xc0] sm:$0xff]
        %v595 = vld [vmem:[%s476 + $0xc8] sm:$0xff]
        %v596 = vld [vmem:[%s476 + $0xd0] sm:$0xff]
        %v597 = vld [vmem:[%s476 + $0xd8] sm:$0xff]
        %v598 = vld [vmem:[%s476 + $0xe0] sm:$0xff]
        %v599 = vld [vmem:[%s476 + $0xe8] sm:$0xff]
        %v600 = vld [vmem:[%s476 + $0xf0] sm:$0xff]
        %v601 = vld [vmem:[%s476 + $0xf8] sm:$0xff]
        %v602 = vld [vmem:[%s476 + $0x100] sm:$0xff]
        %v603 = vld [vmem:[%s476 + $0x108] sm:$0xff]
        %v604 = vld [vmem:[%s476 + $0x110] sm:$0xff]
        %v605 = vld [vmem:[%s476 + $0x118] sm:$0xff]
        %v606 = vld [vmem:[%s476 + $0x120] sm:$0xff]
        %v607 = vld [vmem:[%s476 + $0x128] sm:$0xff]
        %v608 = vld [vmem:[%s476 + $0x130] sm:$0xff]
        %v609 = vld [vmem:[%s476 + $0x138] sm:$0xff]
        %v610 = vld [vmem:[%s476 + $0x140] sm:$0xff]
        %v611 = vld [vmem:[%s476 + $0x148] sm:$0xff]
        %v612 = vld [vmem:[%s476 + $0x150] sm:$0xff]
        %v613 = vld [vmem:[%s476 + $0x158] sm:$0xff]
        %v614 = vld [vmem:[%s476 + $0x160] sm:$0xff]
        %v615 = vld [vmem:[%s476 + $0x168] sm:$0xff]
        %v616 = vld [vmem:[%s476 + $0x170] sm:$0xff]
        %v617 = vld [vmem:[%s476 + $0x178] sm:$0xff]
        %v618 = vld [vmem:[%s476 + $0x180] sm:$0xff]
        %v619 = vld [vmem:[%s476 + $0x188] sm:$0xff]
        %v620 = vld [vmem:[%s476 + $0x190] sm:$0xff]
        %v621 = vld [vmem:[%s476 + $0x198] sm:$0xff]
        %v622 = vld [vmem:[%s476 + $0x1a0] sm:$0xff]
        %v623 = vld [vmem:[%s476 + $0x1a8] sm:$0xff]
        %v624 = vld [vmem:[%s476 + $0x1b0] sm:$0xff]
        %v625 = vld [vmem:[%s476 + $0x1b8] sm:$0xff]
        %v626 = vld [vmem:[%s476 + $0x1c0] sm:$0xff]
        %v627 = vld [vmem:[%s476 + $0x1c8] sm:$0xff]
        %v628 = vld [vmem:[%s476 + $0x1d0] sm:$0xff]
        %v629 = vld [vmem:[%s476 + $0x1d8] sm:$0xff]
        %v630 = vld [vmem:[%s476 + $0x1e0] sm:$0xff]
        %v631 = vld [vmem:[%s476 + $0x1e8] sm:$0xff]
        %v632 = vld [vmem:[%s476 + $0x1f0] sm:$0xff]
        %v633 = vld [vmem:[%s476 + $0x1f8] sm:$0xff]
        %v634 = vld [vmem:[%s476 + $0x200] sm:$0xff]
        %v635 = vld [vmem:[%s476 + $0x208] sm:$0xff]
        %v636 = vld [vmem:[%s476 + $0x210] sm:$0xff]
        %v637 = vld [vmem:[%s476 + $0x218] sm:$0xff]
        %v638 = vld [vmem:[%s476 + $0x220] sm:$0xff]
        %v639 = vld [vmem:[%s476 + $0x228] sm:$0xff]
        %v640 = vld [vmem:[%s476 + $0x230] sm:$0xff]
        %v641 = vld [vmem:[%s476 + $0x238] sm:$0xff]
        %v642 = vld [vmem:[%s476 + $0x240] sm:$0xff]
        %v643 = vld [vmem:[%s476 + $0x248] sm:$0xff]
        %v644 = vld [vmem:[%s476 + $0x250] sm:$0xff]
        %v645 = vld [vmem:[%s476 + $0x258] sm:$0xff]
        %v646 = vld [vmem:[%s476 + $0x260] sm:$0xff]
        %v647 = vld [vmem:[%s476 + $0x268] sm:$0xff]
        %v648 = vld [vmem:[%s476 + $0x270] sm:$0xff]
        %v649 = vld [vmem:[%s476 + $0x278] sm:$0xff]
        %v650 = vld [vmem:[%s476 + $0x280] sm:$0xff]
        %v651 = vld [vmem:[%s476 + $0x288] sm:$0xff]
        %v652 = vld [vmem:[%s476 + $0x290] sm:$0xff]
        %v653 = vld [vmem:[%s476 + $0x298] sm:$0xff]
        %v654 = vld [vmem:[%s476 + $0x2a0] sm:$0xff]
        %v655 = vld [vmem:[%s476 + $0x2a8] sm:$0xff]
        %v656 = vld [vmem:[%s476 + $0x2b0] sm:$0xff]
        %v657 = vld [vmem:[%s476 + $0x2b8] sm:$0xff]
        %v658 = vld [vmem:[%s476 + $0x2c0] sm:$0xff]
        %v659 = vld [vmem:[%s476 + $0x2c8] sm:$0xff]
        %v660 = vld [vmem:[%s476 + $0x2d0] sm:$0xff]
        %v661 = vld [vmem:[%s476 + $0x2d8] sm:$0xff]
        %v662 = vld [vmem:[%s476 + $0x2e0] sm:$0xff]
        %v663 = vld [vmem:[%s476 + $0x2e8] sm:$0xff]
        %v664 = vld [vmem:[%s476 + $0x2f0] sm:$0xff]
        %v665 = vld [vmem:[%s476 + $0x2f8] sm:$0xff]
        %v666 = vld [vmem:[%s476 + $0x300] sm:$0xff]
        %v667 = vld [vmem:[%s476 + $0x308] sm:$0xff]
        %v668 = vld [vmem:[%s476 + $0x310] sm:$0xff]
        %v669 = vld [vmem:[%s476 + $0x318] sm:$0xff]
        %v670 = vld [vmem:[%s476 + $0x320] sm:$0xff]
        %v671 = vld [vmem:[%s476 + $0x328] sm:$0xff]
        %v672 = vld [vmem:[%s476 + $0x330] sm:$0xff]
        %v673 = vld [vmem:[%s476 + $0x338] sm:$0xff]
        %v674 = vld [vmem:[%s476 + $0x340] sm:$0xff]
        %v675 = vld [vmem:[%s476 + $0x348] sm:$0xff]
        %v676 = vld [vmem:[%s476 + $0x350] sm:$0xff]
        %v677 = vld [vmem:[%s476 + $0x358] sm:$0xff]
        %v678 = vld [vmem:[%s476 + $0x360] sm:$0xff]
        %v679 = vld [vmem:[%s476 + $0x368] sm:$0xff]
        %v680 = vld [vmem:[%s476 + $0x370] sm:$0xff]
        %v681 = vld [vmem:[%s476 + $0x378] sm:$0xff]
        %v682 = vld [vmem:[%s476 + $0x380] sm:$0xff]
        %v683 = vld [vmem:[%s476 + $0x388] sm:$0xff]
        %v684 = vld [vmem:[%s476 + $0x390] sm:$0xff]
        %v685 = vld [vmem:[%s476 + $0x398] sm:$0xff]
        %v686 = vld [vmem:[%s476 + $0x3a0] sm:$0xff]
        %v687 = vld [vmem:[%s476 + $0x3a8] sm:$0xff]
        %v688 = vld [vmem:[%s476 + $0x3b0] sm:$0xff]
        %v689 = vld [vmem:[%s476 + $0x3b8] sm:$0xff]
        %v690 = vld [vmem:[%s476 + $0x3c0] sm:$0xff]
        %v691 = vld [vmem:[%s476 + $0x3c8] sm:$0xff]
        %v692 = vld [vmem:[%s476 + $0x3d0] sm:$0xff]
        %v693 = vld [vmem:[%s476 + $0x3d8] sm:$0xff]
        %v694 = vld [vmem:[%s476 + $0x3e0] sm:$0xff]
        %v695 = vld [vmem:[%s476 + $0x3e8] sm:$0xff]
        %v696 = vld [vmem:[%s476 + $0x3f0] sm:$0xff]
        %v697 = vld [vmem:[%s476 + $0x3f8] sm:$0xff]
        %v698 = vld [vmem:[%s476 + $0x400] sm:$0xff]
        %v699 = vld [vmem:[%s476 + $0x408] sm:$0xff]
        %v700 = vld [vmem:[%s476 + $0x410] sm:$0xff]
        %v701 = vld [vmem:[%s476 + $0x418] sm:$0xff]
        %v702 = vld [vmem:[%s476 + $0x420] sm:$0xff]
        %v703 = vld [vmem:[%s476 + $0x428] sm:$0xff]
        %v704 = vld [vmem:[%s476 + $0x430] sm:$0xff]
        %v705 = vld [vmem:[%s476 + $0x438] sm:$0xff]
        %v706 = vld [vmem:[%s476 + $0x440] sm:$0xff]
        %v707 = vld [vmem:[%s476 + $0x448] sm:$0xff]
        %v708 = vld [vmem:[%s476 + $0x450] sm:$0xff]
        %v709 = vld [vmem:[%s476 + $0x458] sm:$0xff]
        %v710 = vld [vmem:[%s476 + $0x460] sm:$0xff]
        %v711 = vld [vmem:[%s476 + $0x468] sm:$0xff]
        %v712 = vld [vmem:[%s476 + $0x470] sm:$0xff]
        %v713 = vld [vmem:[%s476 + $0x478] sm:$0xff]
        %v714 = vld [vmem:[%s476 + $0x480] sm:$0xff]
        %v715 = vld [vmem:[%s476 + $0x488] sm:$0xff]
        %v716 = vld [vmem:[%s476 + $0x490] sm:$0xff]
        %v717 = vld [vmem:[%s476 + $0x498] sm:$0xff]
        %v718 = vld [vmem:[%s476 + $0x4a0] sm:$0xff]
        %v719 = vld [vmem:[%s476 + $0x4a8] sm:$0xff]
        %v720 = vld [vmem:[%s476 + $0x4b0] sm:$0xff]
        %v721 = vld [vmem:[%s476 + $0x4b8] sm:$0xff]
        %v722 = vld [vmem:[%s476 + $0x4c0] sm:$0xff]
        %v723 = vld [vmem:[%s476 + $0x4c8] sm:$0xff]
        %v724 = vld [vmem:[%s476 + $0x4d0] sm:$0xff]
        %v725 = vld [vmem:[%s476 + $0x4d8] sm:$0xff]
        %v726 = vld [vmem:[%s476 + $0x4e0] sm:$0xff]
        %v727 = vld [vmem:[%s476 + $0x4e8] sm:$0xff]
        %v728 = vld [vmem:[%s476 + $0x4f0] sm:$0xff]
        %v729 = vld [vmem:[%s476 + $0x4f8] sm:$0xff]
        %v730 = vld [vmem:[%s476 + $0x500] sm:$0xff]
        %v731 = vld [vmem:[%s476 + $0x508] sm:$0xff]
        %v732 = vld [vmem:[%s476 + $0x510] sm:$0xff]
        %v733 = vld [vmem:[%s476 + $0x518] sm:$0xff]
        %v734 = vld [vmem:[%s476 + $0x520] sm:$0xff]
        %v735 = vld [vmem:[%s476 + $0x528] sm:$0xff]
        %v736 = vld [vmem:[%s476 + $0x530] sm:$0xff]
        %v737 = vld [vmem:[%s476 + $0x538] sm:$0xff]
        %v738 = vld [vmem:[%s476 + $0x540] sm:$0xff]
        %v739 = vld [vmem:[%s476 + $0x548] sm:$0xff]
        %v740 = vld [vmem:[%s476 + $0x550] sm:$0xff]
        %v741 = vld [vmem:[%s476 + $0x558] sm:$0xff]
        %v742 = vld [vmem:[%s476 + $0x560] sm:$0xff]
        %v743 = vld [vmem:[%s476 + $0x568] sm:$0xff]
        %v744 = vld [vmem:[%s476 + $0x570] sm:$0xff]
        %v745 = vld [vmem:[%s476 + $0x578] sm:$0xff]
        %v746 = vld [vmem:[%s476 + $0x580] sm:$0xff]
        %v747 = vld [vmem:[%s476 + $0x588] sm:$0xff]
        %v748 = vld [vmem:[%s476 + $0x590] sm:$0xff]
        %v749 = vld [vmem:[%s476 + $0x598] sm:$0xff]
        %v750 = vld [vmem:[%s476 + $0x5a0] sm:$0xff]
        %v751 = vld [vmem:[%s476 + $0x5a8] sm:$0xff]
        %v752 = vld [vmem:[%s476 + $0x5b0] sm:$0xff]
        %v753 = vld [vmem:[%s476 + $0x5b8] sm:$0xff]
        %v754 = vld [vmem:[%s476 + $0x5c0] sm:$0xff]
        %v755 = vld [vmem:[%s476 + $0x5c8] sm:$0xff]
        %v756 = vld [vmem:[%s476 + $0x5d0] sm:$0xff]
        %v757 = vld [vmem:[%s476 + $0x5d8] sm:$0xff]
        %v758 = vld [vmem:[%s476 + $0x5e0] sm:$0xff]
        %v759 = vld [vmem:[%s476 + $0x5e8] sm:$0xff]
        %v760 = vld [vmem:[%s476 + $0x5f0] sm:$0xff]
        %v761 = vld [vmem:[%s476 + $0x5f8] sm:$0xff]
        %v762 = vld [vmem:[%s476 + $0x600] sm:$0xff]
        %v763 = vld [vmem:[%s476 + $0x608] sm:$0xff]
        %v764 = vld [vmem:[%s476 + $0x610] sm:$0xff]
        %v765 = vld [vmem:[%s476 + $0x618] sm:$0xff]
        %v766 = vld [vmem:[%s476 + $0x620] sm:$0xff]
        %v767 = vld [vmem:[%s476 + $0x628] sm:$0xff]
        %v768 = vld [vmem:[%s476 + $0x630] sm:$0xff]
        %v769 = vld [vmem:[%s476 + $0x638] sm:$0xff]
        %v770 = vld [vmem:[%s476 + $0x640] sm:$0xff]
        %v771 = vld [vmem:[%s476 + $0x648] sm:$0xff]
        %v772 = vld [vmem:[%s476 + $0x650] sm:$0xff]
        %v773 = vld [vmem:[%s476 + $0x658] sm:$0xff]
        %v774 = vld [vmem:[%s476 + $0x660] sm:$0xff]
        %v775 = vld [vmem:[%s476 + $0x668] sm:$0xff]
        %v776 = vld [vmem:[%s476 + $0x670] sm:$0xff]
        %v777 = vld [vmem:[%s476 + $0x678] sm:$0xff]
        %v778 = vld [vmem:[%s476 + $0x680] sm:$0xff]
        %v779 = vld [vmem:[%s476 + $0x688] sm:$0xff]
        %v780 = vld [vmem:[%s476 + $0x690] sm:$0xff]
        %v781 = vld [vmem:[%s476 + $0x698] sm:$0xff]
        %v782 = vld [vmem:[%s476 + $0x6a0] sm:$0xff]
        %v783 = vld [vmem:[%s476 + $0x6a8] sm:$0xff]
        %v784 = vld [vmem:[%s476 + $0x6b0] sm:$0xff]
        %v785 = vld [vmem:[%s476 + $0x6b8] sm:$0xff]
        %v786 = vld [vmem:[%s476 + $0x6c0] sm:$0xff]
        %v787 = vld [vmem:[%s476 + $0x6c8] sm:$0xff]
        %v788 = vld [vmem:[%s476 + $0x6d0] sm:$0xff]
        %v789 = vld [vmem:[%s476 + $0x6d8] sm:$0xff]
        %v790 = vld [vmem:[%s476 + $0x6e0] sm:$0xff]
        %v791 = vld [vmem:[%s476 + $0x6e8] sm:$0xff]
        %v792 = vld [vmem:[%s476 + $0x6f0] sm:$0xff]
        %v793 = vld [vmem:[%s476 + $0x6f8] sm:$0xff]
        %v794 = vld [vmem:[%s476 + $0x700] sm:$0xff]
        %v795 = vld [vmem:[%s476 + $0x708] sm:$0xff]
        %v796 = vld [vmem:[%s476 + $0x710] sm:$0xff]
        %v797 = vld [vmem:[%s476 + $0x718] sm:$0xff]
        %v798 = vld [vmem:[%s476 + $0x720] sm:$0xff]
        %v799 = vld [vmem:[%s476 + $0x728] sm:$0xff]
        %v800 = vld [vmem:[%s476 + $0x730] sm:$0xff]
        %v801 = vld [vmem:[%s476 + $0x738] sm:$0xff]
        %v802 = vld [vmem:[%s476 + $0x740] sm:$0xff]
        %v803 = vld [vmem:[%s476 + $0x748] sm:$0xff]
        %v804 = vld [vmem:[%s476 + $0x750] sm:$0xff]
        %v805 = vld [vmem:[%s476 + $0x758] sm:$0xff]
        %v806 = vld [vmem:[%s476 + $0x760] sm:$0xff]
        %v807 = vld [vmem:[%s476 + $0x768] sm:$0xff]
        %v808 = vld [vmem:[%s476 + $0x770] sm:$0xff]
        %v809 = vld [vmem:[%s476 + $0x778] sm:$0xff]
        %v810 = vld [vmem:[%s476 + $0x780] sm:$0xff]
        %v811 = vld [vmem:[%s476 + $0x788] sm:$0xff]
        %v812 = vld [vmem:[%s476 + $0x790] sm:$0xff]
        %v813 = vld [vmem:[%s476 + $0x798] sm:$0xff]
        %v814 = vld [vmem:[%s476 + $0x7a0] sm:$0xff]
        %v815 = vld [vmem:[%s476 + $0x7a8] sm:$0xff]
        %v816 = vld [vmem:[%s476 + $0x7b0] sm:$0xff]
        %v817 = vld [vmem:[%s476 + $0x7b8] sm:$0xff]
        %v818 = vld [vmem:[%s476 + $0x7c0] sm:$0xff]
        %v819 = vld [vmem:[%s476 + $0x7c8] sm:$0xff]
        %v820 = vld [vmem:[%s476 + $0x7d0] sm:$0xff]
        %v821 = vld [vmem:[%s476 + $0x7d8] sm:$0xff]
        %v822 = vld [vmem:[%s476 + $0x7e0] sm:$0xff]
        %v823 = vld [vmem:[%s476 + $0x7e8] sm:$0xff]
        %v824 = vld [vmem:[%s476 + $0x7f0] sm:$0xff]
        %v825 = vld [vmem:[%s476 + $0x7f8] sm:$0xff]
        %v826 = vld [vmem:[%s476 + $0x800] sm:$0xff]
        %v827 = vld [vmem:[%s476 + $0x808] sm:$0xff]
        %v828 = vld [vmem:[%s476 + $0x810] sm:$0xff]
        %v829 = vld [vmem:[%s476 + $0x818] sm:$0xff]
        %v830 = vld [vmem:[%s476 + $0x820] sm:$0xff]
        %v831 = vld [vmem:[%s476 + $0x828] sm:$0xff]
        %v832 = vld [vmem:[%s476 + $0x830] sm:$0xff]
        %v833 = vld [vmem:[%s476 + $0x838] sm:$0xff]
        %v834 = vld [vmem:[%s476 + $0x840] sm:$0xff]
        %v835 = vld [vmem:[%s476 + $0x848] sm:$0xff]
        %v836 = vld [vmem:[%s476 + $0x850] sm:$0xff]
        %v837 = vld [vmem:[%s476 + $0x858] sm:$0xff]
        %v838 = vld [vmem:[%s476 + $0x860] sm:$0xff]
        %v839 = vld [vmem:[%s476 + $0x868] sm:$0xff]
        %v840 = vld [vmem:[%s476 + $0x870] sm:$0xff]
        %v841 = vld [vmem:[%s476 + $0x878] sm:$0xff]
        %v842 = vld [vmem:[%s476 + $0x880] sm:$0xff]
        %v843 = vld [vmem:[%s476 + $0x888] sm:$0xff]
        %v844 = vld [vmem:[%s476 + $0x890] sm:$0xff]
        %v845 = vld [vmem:[%s476 + $0x898] sm:$0xff]
        %v846 = vld [vmem:[%s476 + $0x8a0] sm:$0xff]
        %v847 = vld [vmem:[%s476 + $0x8a8] sm:$0xff]
        %v848 = vld [vmem:[%s476 + $0x8b0] sm:$0xff]
        %v849 = vld [vmem:[%s476 + $0x8b8] sm:$0xff]
        %v850 = vld [vmem:[%s476 + $0x8c0] sm:$0xff]
        %v851 = vld [vmem:[%s476 + $0x8c8] sm:$0xff]
        %v852 = vld [vmem:[%s476 + $0x8d0] sm:$0xff]
        %v853 = vld [vmem:[%s476 + $0x8d8] sm:$0xff]
        %v854 = vld [vmem:[%s476 + $0x8e0] sm:$0xff]
        %v855 = vld [vmem:[%s476 + $0x8e8] sm:$0xff]
        %v856 = vld [vmem:[%s476 + $0x8f0] sm:$0xff]
        %v857 = vld [vmem:[%s476 + $0x8f8] sm:$0xff]
        %v858 = vld [vmem:[%s476 + $0x900] sm:$0xff]
        %v859 = vld [vmem:[%s476 + $0x908] sm:$0xff]
        %v860 = vld [vmem:[%s476 + $0x910] sm:$0xff]
        %v861 = vld [vmem:[%s476 + $0x918] sm:$0xff]
        %v862 = vld [vmem:[%s476 + $0x920] sm:$0xff]
        %v863 = vld [vmem:[%s476 + $0x928] sm:$0xff]
        %v864 = vld [vmem:[%s476 + $0x930] sm:$0xff]
        %v865 = vld [vmem:[%s476 + $0x938] sm:$0xff]
        %v866 = vld [vmem:[%s476 + $0x940] sm:$0xff]
        %v867 = vld [vmem:[%s476 + $0x948] sm:$0xff]
        %v868 = vld [vmem:[%s476 + $0x950] sm:$0xff]
        %v869 = vld [vmem:[%s476 + $0x958] sm:$0xff]
        %v870 = vld [vmem:[%s476 + $0x960] sm:$0xff]
        %v871 = vld [vmem:[%s476 + $0x968] sm:$0xff]
        %v872 = vld [vmem:[%s476 + $0x970] sm:$0xff]
        %v873 = vld [vmem:[%s476 + $0x978] sm:$0xff]
        %v874 = vld [vmem:[%s476 + $0x980] sm:$0xff]
        %v875 = vld [vmem:[%s476 + $0x988] sm:$0xff]
        %v876 = vld [vmem:[%s476 + $0x990] sm:$0xff]
        %v877 = vld [vmem:[%s476 + $0x998] sm:$0xff]
        %v878 = vld [vmem:[%s476 + $0x9a0] sm:$0xff]
        %v879 = vld [vmem:[%s476 + $0x9a8] sm:$0xff]
        %v880 = vld [vmem:[%s476 + $0x9b0] sm:$0xff]
        %v881 = vld [vmem:[%s476 + $0x9b8] sm:$0xff]
        %v882 = vld [vmem:[%s476 + $0x9c0] sm:$0xff]
        %v883 = vld [vmem:[%s476 + $0x9c8] sm:$0xff]
        %v884 = vld [vmem:[%s476 + $0x9d0] sm:$0xff]
        %v885 = vld [vmem:[%s476 + $0x9d8] sm:$0xff]
        %v886 = vld [vmem:[%s476 + $0x9e0] sm:$0xff]
        %v887 = vld [vmem:[%s476 + $0x9e8] sm:$0xff]
        %v888 = vld [vmem:[%s476 + $0x9f0] sm:$0xff]
        %v889 = vld [vmem:[%s476 + $0x9f8] sm:$0xff]
        %v890 = vld [vmem:[%s476 + $0xa00] sm:$0xff]
        %v891 = vld [vmem:[%s476 + $0xa08] sm:$0xff]
        %v892 = vld [vmem:[%s476 + $0xa10] sm:$0xff]
        %v893 = vld [vmem:[%s476 + $0xa18] sm:$0xff]
        %v894 = vld [vmem:[%s476 + $0xa20] sm:$0xff]
        %v895 = vld [vmem:[%s476 + $0xa28] sm:$0xff]
        %v896 = vld [vmem:[%s476 + $0xa30] sm:$0xff]
        %v897 = vld [vmem:[%s476 + $0xa38] sm:$0xff]
        %v898 = vld [vmem:[%s476 + $0xa40] sm:$0xff]
        %v899 = vld [vmem:[%s476 + $0xa48] sm:$0xff]
        %v900 = vld [vmem:[%s476 + $0xa50] sm:$0xff]
        %v901 = vld [vmem:[%s476 + $0xa58] sm:$0xff]
        %v902 = vld [vmem:[%s476 + $0xa60] sm:$0xff]
        %v903 = vld [vmem:[%s476 + $0xa68] sm:$0xff]
        %v904 = vld [vmem:[%s476 + $0xa70] sm:$0xff]
        %v905 = vld [vmem:[%s476 + $0xa78] sm:$0xff]
        %v906 = vld [vmem:[%s476 + $0xa80] sm:$0xff]
        %v907 = vld [vmem:[%s476 + $0xa88] sm:$0xff]
        %v908 = vld [vmem:[%s476 + $0xa90] sm:$0xff]
        %v909 = vld [vmem:[%s476 + $0xa98] sm:$0xff]
        %v910 = vld [vmem:[%s476 + $0xaa0] sm:$0xff]
        %v911 = vld [vmem:[%s476 + $0xaa8] sm:$0xff]
        %v912 = vld [vmem:[%s476 + $0xab0] sm:$0xff]
        %v913 = vld [vmem:[%s476 + $0xab8] sm:$0xff]
        %v914 = vld [vmem:[%s476 + $0xac0] sm:$0xff]
        %v915 = vld [vmem:[%s476 + $0xac8] sm:$0xff]
        %v916 = vld [vmem:[%s476 + $0xad0] sm:$0xff]
        %v917 = vld [vmem:[%s476 + $0xad8] sm:$0xff]
        %v918 = vld [vmem:[%s476 + $0xae0] sm:$0xff]
        %v919 = vld [vmem:[%s476 + $0xae8] sm:$0xff]
        %v920 = vld [vmem:[%s476 + $0xaf0] sm:$0xff]
        %v921 = vld [vmem:[%s476 + $0xaf8] sm:$0xff]
        %v922 = vld [vmem:[%s476 + $0xb00] sm:$0xff]
        %v923 = vld [vmem:[%s476 + $0xb08] sm:$0xff]
        %v924 = vld [vmem:[%s476 + $0xb10] sm:$0xff]
        %v925 = vld [vmem:[%s476 + $0xb18] sm:$0xff]
        %v926 = vld [vmem:[%s476 + $0xb20] sm:$0xff]
        %v927 = vld [vmem:[%s476 + $0xb28] sm:$0xff]
        %v928 = vld [vmem:[%s476 + $0xb30] sm:$0xff]
        %v929 = vld [vmem:[%s476 + $0xb38] sm:$0xff]
        %v930 = vld [vmem:[%s476 + $0xb40] sm:$0xff]
        %v931 = vld [vmem:[%s476 + $0xb48] sm:$0xff]
        %v932 = vld [vmem:[%s476 + $0xb50] sm:$0xff]
        %v933 = vld [vmem:[%s476 + $0xb58] sm:$0xff]
        %v934 = vld [vmem:[%s476 + $0xb60] sm:$0xff]
        %v935 = vld [vmem:[%s476 + $0xb68] sm:$0xff]
        %v936 = vld [vmem:[%s476 + $0xb70] sm:$0xff]
        %v937 = vld [vmem:[%s476 + $0xb78] sm:$0xff]
        %v938 = vld [vmem:[%s476 + $0xb80] sm:$0xff]
        %v939 = vld [vmem:[%s476 + $0xb88] sm:$0xff]
        %v940 = vld [vmem:[%s476 + $0xb90] sm:$0xff]
        %v941 = vld [vmem:[%s476 + $0xb98] sm:$0xff]
        %v942 = vld [vmem:[%s476 + $0xba0] sm:$0xff]
        %v943 = vld [vmem:[%s476 + $0xba8] sm:$0xff]
        %v944 = vld [vmem:[%s476 + $0xbb0] sm:$0xff]
        %v945 = vld [vmem:[%s476 + $0xbb8] sm:$0xff]
        %v946 = vld [vmem:[%s476 + $0xbc0] sm:$0xff]
        %v947 = vld [vmem:[%s476 + $0xbc8] sm:$0xff]
        %v948 = vld [vmem:[%s476 + $0xbd0] sm:$0xff]
        %v949 = vld [vmem:[%s476 + $0xbd8] sm:$0xff]
        %v950 = vld [vmem:[%s476 + $0xbe0] sm:$0xff]
        %v951 = vld [vmem:[%s476 + $0xbe8] sm:$0xff]
        %v952 = vld [vmem:[%s476 + $0xbf0] sm:$0xff]
        %v953 = vld [vmem:[%s476 + $0xbf8] sm:$0xff]
        %v954 = vld [vmem:[%s476 + $0xc00] sm:$0xff]
        %v955 = vld [vmem:[%s476 + $0xc08] sm:$0xff]
        %v956 = vld [vmem:[%s476 + $0xc10] sm:$0xff]
        %v957 = vld [vmem:[%s476 + $0xc18] sm:$0xff]
        %v958 = vld [vmem:[%s476 + $0xc20] sm:$0xff]
        %v959 = vld [vmem:[%s476 + $0xc28] sm:$0xff]
        %v960 = vld [vmem:[%s476 + $0xc30] sm:$0xff]
        %v961 = vld [vmem:[%s476 + $0xc38] sm:$0xff]
        %v962 = vld [vmem:[%s476 + $0xc40] sm:$0xff]
        %v963 = vld [vmem:[%s476 + $0xc48] sm:$0xff]
        %v964 = vld [vmem:[%s476 + $0xc50] sm:$0xff]
        %v965 = vld [vmem:[%s476 + $0xc58] sm:$0xff]
        %v966 = vld [vmem:[%s476 + $0xc60] sm:$0xff]
        %v967 = vld [vmem:[%s476 + $0xc68] sm:$0xff]
        %v968 = vld [vmem:[%s476 + $0xc70] sm:$0xff]
        %v969 = vld [vmem:[%s476 + $0xc78] sm:$0xff]
        %v970 = vld [vmem:[%s476 + $0xc80] sm:$0xff]
        %v971 = vld [vmem:[%s476 + $0xc88] sm:$0xff]
        %v972 = vld [vmem:[%s476 + $0xc90] sm:$0xff]
        %v973 = vld [vmem:[%s476 + $0xc98] sm:$0xff]
        %v974 = vld [vmem:[%s476 + $0xca0] sm:$0xff]
        %v975 = vld [vmem:[%s476 + $0xca8] sm:$0xff]
        %v976 = vld [vmem:[%s476 + $0xcb0] sm:$0xff]
        %v977 = vld [vmem:[%s476 + $0xcb8] sm:$0xff]
        %v978 = vld [vmem:[%s476 + $0xcc0] sm:$0xff]
        %v979 = vld [vmem:[%s476 + $0xcc8] sm:$0xff]
        %v980 = vld [vmem:[%s476 + $0xcd0] sm:$0xff]
        %v981 = vld [vmem:[%s476 + $0xcd8] sm:$0xff]
        %v982 = vld [vmem:[%s476 + $0xce0] sm:$0xff]
        %v983 = vld [vmem:[%s476 + $0xce8] sm:$0xff]
        %v984 = vld [vmem:[%s476 + $0xcf0] sm:$0xff]
        %v985 = vld [vmem:[%s476 + $0xcf8] sm:$0xff]
        %v986 = vld [vmem:[%s476 + $0xd00] sm:$0xff]
        %v987 = vld [vmem:[%s476 + $0xd08] sm:$0xff]
        %v988 = vld [vmem:[%s476 + $0xd10] sm:$0xff]
        %v989 = vld [vmem:[%s476 + $0xd18] sm:$0xff]
        %v990 = vld [vmem:[%s476 + $0xd20] sm:$0xff]
        %v991 = vld [vmem:[%s476 + $0xd28] sm:$0xff]
        %v992 = vld [vmem:[%s476 + $0xd30] sm:$0xff]
        %v993 = vld [vmem:[%s476 + $0xd38] sm:$0xff]
        %v994 = vld [vmem:[%s476 + $0xd40] sm:$0xff]
        %v995 = vld [vmem:[%s476 + $0xd48] sm:$0xff]
        %v996 = vld [vmem:[%s476 + $0xd50] sm:$0xff]
        %v997 = vld [vmem:[%s476 + $0xd58] sm:$0xff]
        %v998 = vld [vmem:[%s476 + $0xd60] sm:$0xff]
        %v999 = vld [vmem:[%s476 + $0xd68] sm:$0xff]
        %v1000 = vld [vmem:[%s476 + $0xd70] sm:$0xff]
        %v1001 = vld [vmem:[%s476 + $0xd78] sm:$0xff]
        %v1002 = vld [vmem:[%s476 + $0xd80] sm:$0xff]
        %v1003 = vld [vmem:[%s476 + $0xd88] sm:$0xff]
        %v1004 = vld [vmem:[%s476 + $0xd90] sm:$0xff]
        %v1005 = vld [vmem:[%s476 + $0xd98] sm:$0xff]
        %v1006 = vld [vmem:[%s476 + $0xda0] sm:$0xff]
        %v1007 = vld [vmem:[%s476 + $0xda8] sm:$0xff]
        %v1008 = vld [vmem:[%s476 + $0xdb0] sm:$0xff]
        %v1009 = vld [vmem:[%s476 + $0xdb8] sm:$0xff]
        %v1010 = vld [vmem:[%s476 + $0xdc0] sm:$0xff]
        %v1011 = vld [vmem:[%s476 + $0xdc8] sm:$0xff]
        %v1012 = vld [vmem:[%s476 + $0xdd0] sm:$0xff]
        %v1013 = vld [vmem:[%s476 + $0xdd8] sm:$0xff]
        %v1014 = vld [vmem:[%s476 + $0xde0] sm:$0xff]
        %v1015 = vld [vmem:[%s476 + $0xde8] sm:$0xff]
        %v1016 = vld [vmem:[%s476 + $0xdf0] sm:$0xff]
        %v1017 = vld [vmem:[%s476 + $0xdf8] sm:$0xff]
        %v1018 = vld [vmem:[%s476 + $0xe00] sm:$0xff]
        %v1019 = vld [vmem:[%s476 + $0xe08] sm:$0xff]
        %v1020 = vld [vmem:[%s476 + $0xe10] sm:$0xff]
        %v1021 = vld [vmem:[%s476 + $0xe18] sm:$0xff]
        %v1022 = vld [vmem:[%s476 + $0xe20] sm:$0xff]
        %v1023 = vld [vmem:[%s476 + $0xe28] sm:$0xff]
        %v1024 = vld [vmem:[%s476 + $0xe30] sm:$0xff]
        %v1025 = vld [vmem:[%s476 + $0xe38] sm:$0xff]
        %v1026 = vld [vmem:[%s476 + $0xe40] sm:$0xff]
        %v1027 = vld [vmem:[%s476 + $0xe48] sm:$0xff]
        %v1028 = vld [vmem:[%s476 + $0xe50] sm:$0xff]
        %v1029 = vld [vmem:[%s476 + $0xe58] sm:$0xff]
        %v1030 = vld [vmem:[%s476 + $0xe60] sm:$0xff]
        %v1031 = vld [vmem:[%s476 + $0xe68] sm:$0xff]
        %v1032 = vld [vmem:[%s476 + $0xe70] sm:$0xff]
        %v1033 = vld [vmem:[%s476 + $0xe78] sm:$0xff]
        %v1034 = vld [vmem:[%s476 + $0xe80] sm:$0xff]
        %v1035 = vld [vmem:[%s476 + $0xe88] sm:$0xff]
        %v1036 = vld [vmem:[%s476 + $0xe90] sm:$0xff]
        %v1037 = vld [vmem:[%s476 + $0xe98] sm:$0xff]
        %v1038 = vld [vmem:[%s476 + $0xea0] sm:$0xff]
        %v1039 = vld [vmem:[%s476 + $0xea8] sm:$0xff]
        %v1040 = vld [vmem:[%s476 + $0xeb0] sm:$0xff]
        %v1041 = vld [vmem:[%s476 + $0xeb8] sm:$0xff]
        %v1042 = vld [vmem:[%s476 + $0xec0] sm:$0xff]
        %v1043 = vld [vmem:[%s476 + $0xec8] sm:$0xff]
        %v1044 = vld [vmem:[%s476 + $0xed0] sm:$0xff]
        %v1045 = vld [vmem:[%s476 + $0xed8] sm:$0xff]
        %v1046 = vld [vmem:[%s476 + $0xee0] sm:$0xff]
        %v1047 = vld [vmem:[%s476 + $0xee8] sm:$0xff]
        %v1048 = vld [vmem:[%s476 + $0xef0] sm:$0xff]
        %v1049 = vld [vmem:[%s476 + $0xef8] sm:$0xff]
        %v1050 = vld [vmem:[%s476 + $0xf00] sm:$0xff]
        %v1051 = vld [vmem:[%s476 + $0xf08] sm:$0xff]
        %v1052 = vld [vmem:[%s476 + $0xf10] sm:$0xff]
        %v1053 = vld [vmem:[%s476 + $0xf18] sm:$0xff]
        %v1054 = vld [vmem:[%s476 + $0xf20] sm:$0xff]
        %v1055 = vld [vmem:[%s476 + $0xf28] sm:$0xff]
        %v1056 = vld [vmem:[%s476 + $0xf30] sm:$0xff]
        %v1057 = vld [vmem:[%s476 + $0xf38] sm:$0xff]
        %v1058 = vld [vmem:[%s476 + $0xf40] sm:$0xff]
        %v1059 = vld [vmem:[%s476 + $0xf48] sm:$0xff]
        %v1060 = vld [vmem:[%s476 + $0xf50] sm:$0xff]
        %v1061 = vld [vmem:[%s476 + $0xf58] sm:$0xff]
        %v1062 = vld [vmem:[%s476 + $0xf60] sm:$0xff]
        %v1063 = vld [vmem:[%s476 + $0xf68] sm:$0xff]
        %v1064 = vld [vmem:[%s476 + $0xf70] sm:$0xff]
        %v1065 = vld [vmem:[%s476 + $0xf78] sm:$0xff]
        %v1066 = vld [vmem:[%s476 + $0xf80] sm:$0xff]
        %v1067 = vld [vmem:[%s476 + $0xf88] sm:$0xff]
        %v1068 = vld [vmem:[%s476 + $0xf90] sm:$0xff]
        %v1069 = vld [vmem:[%s476 + $0xf98] sm:$0xff]
        %v1070 = vld [vmem:[%s476 + $0xfa0] sm:$0xff]
        %v1071 = vld [vmem:[%s476 + $0xfa8] sm:$0xff]
        %v1072 = vld [vmem:[%s476 + $0xfb0] sm:$0xff]
        %v1073 = vld [vmem:[%s476 + $0xfb8] sm:$0xff]
        %v1074 = vld [vmem:[%s476 + $0xfc0] sm:$0xff]
        %v1075 = vld [vmem:[%s476 + $0xfc8] sm:$0xff]
        %v1076 = vld [vmem:[%s476 + $0xfd0] sm:$0xff]
        %v1077 = vld [vmem:[%s476 + $0xfd8] sm:$0xff]
        %v1078 = vld [vmem:[%s476 + $0xfe0] sm:$0xff]
        %v1079 = vld [vmem:[%s476 + $0xfe8] sm:$0xff]
        %v1080 = vld [vmem:[%s476 + $0xff0] sm:$0xff]
        %v1081 = vld [vmem:[%s476 + $0xff8] sm:$0xff]
        %v1082 = vld [vmem:[%s476 + $0x1000] sm:$0xff]
        %v1083 = vld [vmem:[%s476 + $0x1008] sm:$0xff]
        %v1084 = vld [vmem:[%s476 + $0x1010] sm:$0xff]
        %v1085 = vld [vmem:[%s476 + $0x1018] sm:$0xff]
        %v1086 = vld [vmem:[%s476 + $0x1020] sm:$0xff]
        %v1087 = vld [vmem:[%s476 + $0x1028] sm:$0xff]
        %v1088 = vld [vmem:[%s476 + $0x1030] sm:$0xff]
        %v1089 = vld [vmem:[%s476 + $0x1038] sm:$0xff]
        %v1090 = vld [vmem:[%s476 + $0x1040] sm:$0xff]
        %v1091 = vld [vmem:[%s476 + $0x1048] sm:$0xff]
        %v1092 = vld [vmem:[%s476 + $0x1050] sm:$0xff]
        %v1093 = vld [vmem:[%s476 + $0x1058] sm:$0xff]
        %v1094 = vld [vmem:[%s476 + $0x1060] sm:$0xff]
        %v1095 = vld [vmem:[%s476 + $0x1068] sm:$0xff]
        %v1096 = vld [vmem:[%s476 + $0x1070] sm:$0xff]
        %v1097 = vld [vmem:[%s476 + $0x1078] sm:$0xff]
        %v1098 = vld [vmem:[%s476 + $0x1080] sm:$0xff]
        %v1099 = vld [vmem:[%s476 + $0x1088] sm:$0xff]
        %v1100 = vld [vmem:[%s476 + $0x1090] sm:$0xff]
        %v1101 = vld [vmem:[%s476 + $0x1098] sm:$0xff]
        %v1102 = vld [vmem:[%s476 + $0x10a0] sm:$0xff]
        %v1103 = vld [vmem:[%s476 + $0x10a8] sm:$0xff]
        %v1104 = vld [vmem:[%s476 + $0x10b0] sm:$0xff]
        %v1105 = vld [vmem:[%s476 + $0x10b8] sm:$0xff]
        %v1106 = vld [vmem:[%s476 + $0x10c0] sm:$0xff]
        %v1107 = vld [vmem:[%s476 + $0x10c8] sm:$0xff]
        %v1108 = vld [vmem:[%s476 + $0x10d0] sm:$0xff]
        %v1109 = vld [vmem:[%s476 + $0x10d8] sm:$0xff]
        %v1110 = vld [vmem:[%s476 + $0x10e0] sm:$0xff]
        %v1111 = vld [vmem:[%s476 + $0x10e8] sm:$0xff]
        %v1112 = vld [vmem:[%s476 + $0x10f0] sm:$0xff]
        %v1113 = vld [vmem:[%s476 + $0x10f8] sm:$0xff]
        %v1114 = vld [vmem:[%s476 + $0x1100] sm:$0xff]
        %v1115 = vld [vmem:[%s476 + $0x1108] sm:$0xff]
        %v1116 = vld [vmem:[%s476 + $0x1110] sm:$0xff]
        %v1117 = vld [vmem:[%s476 + $0x1118] sm:$0xff]
        %v1118 = vld [vmem:[%s476 + $0x1120] sm:$0xff]
        %v1119 = vld [vmem:[%s476 + $0x1128] sm:$0xff]
        %v1120 = vld [vmem:[%s476 + $0x1130] sm:$0xff]
        %v1121 = vld [vmem:[%s476 + $0x1138] sm:$0xff]
        %v1122 = vld [vmem:[%s476 + $0x1140] sm:$0xff]
        %v1123 = vld [vmem:[%s476 + $0x1148] sm:$0xff]
        %v1124 = vld [vmem:[%s476 + $0x1150] sm:$0xff]
        %v1125 = vld [vmem:[%s476 + $0x1158] sm:$0xff]
        %v1126 = vld [vmem:[%s476 + $0x1160] sm:$0xff]
        %v1127 = vld [vmem:[%s476 + $0x1168] sm:$0xff]
        %v1128 = vld [vmem:[%s476 + $0x1170] sm:$0xff]
        %v1129 = vld [vmem:[%s476 + $0x1178] sm:$0xff]
        %v1130 = vld [vmem:[%s476 + $0x1180] sm:$0xff]
        %v1131 = vld [vmem:[%s476 + $0x1188] sm:$0xff]
        %v1132 = vld [vmem:[%s476 + $0x1190] sm:$0xff]
        %v1133 = vld [vmem:[%s476 + $0x1198] sm:$0xff]
        %v1134 = vld [vmem:[%s476 + $0x11a0] sm:$0xff]
        %v1135 = vld [vmem:[%s476 + $0x11a8] sm:$0xff]
        %v1136 = vld [vmem:[%s476 + $0x11b0] sm:$0xff]
        %v1137 = vld [vmem:[%s476 + $0x11b8] sm:$0xff]
        %v1138 = vld [vmem:[%s476 + $0x11c0] sm:$0xff]
        %v1139 = vld [vmem:[%s476 + $0x11c8] sm:$0xff]
        %v1140 = vld [vmem:[%s476 + $0x11d0] sm:$0xff]
        %v1141 = vld [vmem:[%s476 + $0x11d8] sm:$0xff]
        %v1142 = vld [vmem:[%s476 + $0x11e0] sm:$0xff]
        %v1143 = vld [vmem:[%s476 + $0x11e8] sm:$0xff]
        %v1144 = vld [vmem:[%s476 + $0x11f0] sm:$0xff]
        %v1145 = vld [vmem:[%s476 + $0x11f8] sm:$0xff]
        %v1146 = vld [vmem:[%s476 + $0x1200] sm:$0xff]
        %v1147 = vld [vmem:[%s476 + $0x1208] sm:$0xff]
        %v1148 = vld [vmem:[%s476 + $0x1210] sm:$0xff]
        %v1149 = vld [vmem:[%s476 + $0x1218] sm:$0xff]
        %v1150 = vld [vmem:[%s476 + $0x1220] sm:$0xff]
        %v1151 = vld [vmem:[%s476 + $0x1228] sm:$0xff]
        %v1152 = vld [vmem:[%s476 + $0x1230] sm:$0xff]
        %v1153 = vld [vmem:[%s476 + $0x1238] sm:$0xff]
        %v1154 = vld [vmem:[%s476 + $0x1240] sm:$0xff]
        %v1155 = vld [vmem:[%s476 + $0x1248] sm:$0xff]
        %v1156 = vld [vmem:[%s476 + $0x1250] sm:$0xff]
        %v1157 = vld [vmem:[%s476 + $0x1258] sm:$0xff]
        %v1158 = vld [vmem:[%s476 + $0x1260] sm:$0xff]
        %v1159 = vld [vmem:[%s476 + $0x1268] sm:$0xff]
        %v1160 = vld [vmem:[%s476 + $0x1270] sm:$0xff]
        %v1161 = vld [vmem:[%s476 + $0x1278] sm:$0xff]
        %v1162 = vld [vmem:[%s476 + $0x1280] sm:$0xff]
        %v1163 = vld [vmem:[%s476 + $0x1288] sm:$0xff]
        %v1164 = vld [vmem:[%s476 + $0x1290] sm:$0xff]
        %v1165 = vld [vmem:[%s476 + $0x1298] sm:$0xff]
        %v1166 = vld [vmem:[%s476 + $0x12a0] sm:$0xff]
        %v1167 = vld [vmem:[%s476 + $0x12a8] sm:$0xff]
        %v1168 = vld [vmem:[%s476 + $0x12b0] sm:$0xff]
        %v1169 = vld [vmem:[%s476 + $0x12b8] sm:$0xff]
        %v1170 = vld [vmem:[%s476 + $0x12c0] sm:$0xff]
        %v1171 = vld [vmem:[%s476 + $0x12c8] sm:$0xff]
        %v1172 = vld [vmem:[%s476 + $0x12d0] sm:$0xff]
        %v1173 = vld [vmem:[%s476 + $0x12d8] sm:$0xff]
        %v1174 = vld [vmem:[%s476 + $0x12e0] sm:$0xff]
        %v1175 = vld [vmem:[%s476 + $0x12e8] sm:$0xff]
        %v1176 = vld [vmem:[%s476 + $0x12f0] sm:$0xff]
        %v1177 = vld [vmem:[%s476 + $0x12f8] sm:$0xff]
        %v1178 = vld [vmem:[%s476 + $0x1300] sm:$0xff]
        %v1179 = vld [vmem:[%s476 + $0x1308] sm:$0xff]
        %v1180 = vld [vmem:[%s476 + $0x1310] sm:$0xff]
        %v1181 = vld [vmem:[%s476 + $0x1318] sm:$0xff]
        %v1182 = vld [vmem:[%s476 + $0x1320] sm:$0xff]
        %v1183 = vld [vmem:[%s476 + $0x1328] sm:$0xff]
        %v1184 = vld [vmem:[%s476 + $0x1330] sm:$0xff]
        %v1185 = vld [vmem:[%s476 + $0x1338] sm:$0xff]
        %v1186 = vld [vmem:[%s476 + $0x1340] sm:$0xff]
        %v1187 = vld [vmem:[%s476 + $0x1348] sm:$0xff]
        %v1188 = vld [vmem:[%s476 + $0x1350] sm:$0xff]
        %v1189 = vld [vmem:[%s476 + $0x1358] sm:$0xff]
        %v1190 = vld [vmem:[%s476 + $0x1360] sm:$0xff]
        %v1191 = vld [vmem:[%s476 + $0x1368] sm:$0xff]
        %v1192 = vld [vmem:[%s476 + $0x1370] sm:$0xff]
        %v1193 = vld [vmem:[%s476 + $0x1378] sm:$0xff]
        %v1194 = vld [vmem:[%s476 + $0x1380] sm:$0xff]
        %v1195 = vld [vmem:[%s476 + $0x1388] sm:$0xff]
        %v1196 = vld [vmem:[%s476 + $0x1390] sm:$0xff]
        %v1197 = vld [vmem:[%s476 + $0x1398] sm:$0xff]
        %v1198 = vld [vmem:[%s476 + $0x13a0] sm:$0xff]
        %v1199 = vld [vmem:[%s476 + $0x13a8] sm:$0xff]
        %v1200 = vld [vmem:[%s476 + $0x13b0] sm:$0xff]
        %v1201 = vld [vmem:[%s476 + $0x13b8] sm:$0xff]
        %v1202 = vld [vmem:[%s476 + $0x13c0] sm:$0xff]
        %v1203 = vld [vmem:[%s476 + $0x13c8] sm:$0xff]
        %v1204 = vld [vmem:[%s476 + $0x13d0] sm:$0xff]
        %v1205 = vld [vmem:[%s476 + $0x13d8] sm:$0xff]
        %v1206 = vld [vmem:[%s476 + $0x13e0] sm:$0xff]
        %v1207 = vld [vmem:[%s476 + $0x13e8] sm:$0xff]
        %v1208 = vld [vmem:[%s476 + $0x13f0] sm:$0xff]
        %v1209 = vld [vmem:[%s476 + $0x13f8] sm:$0xff]
        %v1210 = vld [vmem:[%s476 + $0x1400] sm:$0xff]
        %v1211 = vld [vmem:[%s476 + $0x1408] sm:$0xff]
        %v1212 = vld [vmem:[%s476 + $0x1410] sm:$0xff]
        %v1213 = vld [vmem:[%s476 + $0x1418] sm:$0xff]
        %v1214 = vld [vmem:[%s476 + $0x1420] sm:$0xff]
        %v1215 = vld [vmem:[%s476 + $0x1428] sm:$0xff]
        %v1216 = vld [vmem:[%s476 + $0x1430] sm:$0xff]
        %v1217 = vld [vmem:[%s476 + $0x1438] sm:$0xff]
        %v1218 = vld [vmem:[%s476 + $0x1440] sm:$0xff]
        %v1219 = vld [vmem:[%s476 + $0x1448] sm:$0xff]
        %v1220 = vld [vmem:[%s476 + $0x1450] sm:$0xff]
        %v1221 = vld [vmem:[%s476 + $0x1458] sm:$0xff]
        %v1222 = vld [vmem:[%s476 + $0x1460] sm:$0xff]
        %v1223 = vld [vmem:[%s476 + $0x1468] sm:$0xff]
        %v1224 = vld [vmem:[%s476 + $0x1470] sm:$0xff]
        %v1225 = vld [vmem:[%s476 + $0x1478] sm:$0xff]
        %v1226 = vld [vmem:[%s476 + $0x1480] sm:$0xff]
        %v1227 = vld [vmem:[%s476 + $0x1488] sm:$0xff]
        %v1228 = vld [vmem:[%s476 + $0x1490] sm:$0xff]
        %v1229 = vld [vmem:[%s476 + $0x1498] sm:$0xff]
        %v1230 = vld [vmem:[%s476 + $0x14a0] sm:$0xff]
        %v1231 = vld [vmem:[%s476 + $0x14a8] sm:$0xff]
        %v1232 = vld [vmem:[%s476 + $0x14b0] sm:$0xff]
        %v1233 = vld [vmem:[%s476 + $0x14b8] sm:$0xff]
        %v1234 = vld [vmem:[%s476 + $0x14c0] sm:$0xff]
        %v1235 = vld [vmem:[%s476 + $0x14c8] sm:$0xff]
        %v1236 = vld [vmem:[%s476 + $0x14d0] sm:$0xff]
        %v1237 = vld [vmem:[%s476 + $0x14d8] sm:$0xff]
        %v1238 = vld [vmem:[%s476 + $0x14e0] sm:$0xff]
        %v1239 = vld [vmem:[%s476 + $0x14e8] sm:$0xff]
        %v1240 = vld [vmem:[%s476 + $0x14f0] sm:$0xff]
        %v1241 = vld [vmem:[%s476 + $0x14f8] sm:$0xff]
        %v1242 = vld [vmem:[%s476 + $0x1500] sm:$0xff]
        %v1243 = vld [vmem:[%s476 + $0x1508] sm:$0xff]
        %v1244 = vld [vmem:[%s476 + $0x1510] sm:$0xff]
        %v1245 = vld [vmem:[%s476 + $0x1518] sm:$0xff]
        %v1246 = vld [vmem:[%s476 + $0x1520] sm:$0xff]
        %v1247 = vld [vmem:[%s476 + $0x1528] sm:$0xff]
        %v1248 = vld [vmem:[%s476 + $0x1530] sm:$0xff]
        %v1249 = vld [vmem:[%s476 + $0x1538] sm:$0xff]
        %v1250 = vld [vmem:[%s476 + $0x1540] sm:$0xff]
        %v1251 = vld [vmem:[%s476 + $0x1548] sm:$0xff]
        %v1252 = vld [vmem:[%s476 + $0x1550] sm:$0xff]
        %v1253 = vld [vmem:[%s476 + $0x1558] sm:$0xff]
        %v1254 = vld [vmem:[%s476 + $0x1560] sm:$0xff]
        %v1255 = vld [vmem:[%s476 + $0x1568] sm:$0xff]
        %v1256 = vld [vmem:[%s476 + $0x1570] sm:$0xff]
        %v1257 = vld [vmem:[%s476 + $0x1578] sm:$0xff]
        %v1258 = vld [vmem:[%s476 + $0x1580] sm:$0xff]
        %v1259 = vld [vmem:[%s476 + $0x1588] sm:$0xff]
        %v1260 = vld [vmem:[%s476 + $0x1590] sm:$0xff]
        %v1261 = vld [vmem:[%s476 + $0x1598] sm:$0xff]
        %v1262 = vld [vmem:[%s476 + $0x15a0] sm:$0xff]
        %v1263 = vld [vmem:[%s476 + $0x15a8] sm:$0xff]
        %v1264 = vld [vmem:[%s476 + $0x15b0] sm:$0xff]
        %v1265 = vld [vmem:[%s476 + $0x15b8] sm:$0xff]
        %v1266 = vld [vmem:[%s476 + $0x15c0] sm:$0xff]
        %v1267 = vld [vmem:[%s476 + $0x15c8] sm:$0xff]
        %v1268 = vld [vmem:[%s476 + $0x15d0] sm:$0xff]
        %v1269 = vld [vmem:[%s476 + $0x15d8] sm:$0xff]
        %v1270 = vld [vmem:[%s476 + $0x15e0] sm:$0xff]
        %v1271 = vld [vmem:[%s476 + $0x15e8] sm:$0xff]
        %v1272 = vld [vmem:[%s476 + $0x15f0] sm:$0xff]
        %v1273 = vld [vmem:[%s476 + $0x15f8] sm:$0xff]
        %v1274 = vld [vmem:[%s476 + $0x1600] sm:$0xff]
        %v1275 = vld [vmem:[%s476 + $0x1608] sm:$0xff]
        %v1276 = vld [vmem:[%s476 + $0x1610] sm:$0xff]
        %v1277 = vld [vmem:[%s476 + $0x1618] sm:$0xff]
        %v1278 = vld [vmem:[%s476 + $0x1620] sm:$0xff]
        %v1279 = vld [vmem:[%s476 + $0x1628] sm:$0xff]
        %v1280 = vld [vmem:[%s476 + $0x1630] sm:$0xff]
        %v1281 = vld [vmem:[%s476 + $0x1638] sm:$0xff]
        %v1282 = vld [vmem:[%s476 + $0x1640] sm:$0xff]
        %v1283 = vld [vmem:[%s476 + $0x1648] sm:$0xff]
        %v1284 = vld [vmem:[%s476 + $0x1650] sm:$0xff]
        %v1285 = vld [vmem:[%s476 + $0x1658] sm:$0xff]
        %v1286 = vld [vmem:[%s476 + $0x1660] sm:$0xff]
        %v1287 = vld [vmem:[%s476 + $0x1668] sm:$0xff]
        %v1288 = vld [vmem:[%s476 + $0x1670] sm:$0xff]
        %v1289 = vld [vmem:[%s476 + $0x1678] sm:$0xff]
        %v1290 = vld [vmem:[%s476 + $0x1680] sm:$0xff]
        %v1291 = vld [vmem:[%s476 + $0x1688] sm:$0xff]
        %v1292 = vld [vmem:[%s476 + $0x1690] sm:$0xff]
        %v1293 = vld [vmem:[%s476 + $0x1698] sm:$0xff]
        %v1294 = vld [vmem:[%s476 + $0x16a0] sm:$0xff]
        %v1295 = vld [vmem:[%s476 + $0x16a8] sm:$0xff]
        %v1296 = vld [vmem:[%s476 + $0x16b0] sm:$0xff]
        %v1297 = vld [vmem:[%s476 + $0x16b8] sm:$0xff]
        %v1298 = vld [vmem:[%s476 + $0x16c0] sm:$0xff]
        %v1299 = vld [vmem:[%s476 + $0x16c8] sm:$0xff]
        %v1300 = vld [vmem:[%s476 + $0x16d0] sm:$0xff]
        %v1301 = vld [vmem:[%s476 + $0x16d8] sm:$0xff]
        %v1302 = vld [vmem:[%s476 + $0x16e0] sm:$0xff]
        %v1303 = vld [vmem:[%s476 + $0x16e8] sm:$0xff]
        %v1304 = vld [vmem:[%s476 + $0x16f0] sm:$0xff]
        %v1305 = vld [vmem:[%s476 + $0x16f8] sm:$0xff]
        %v1306 = vld [vmem:[%s476 + $0x1700] sm:$0xff]
        %v1307 = vld [vmem:[%s476 + $0x1708] sm:$0xff]
        %v1308 = vld [vmem:[%s476 + $0x1710] sm:$0xff]
        %v1309 = vld [vmem:[%s476 + $0x1718] sm:$0xff]
        %v1310 = vld [vmem:[%s476 + $0x1720] sm:$0xff]
        %v1311 = vld [vmem:[%s476 + $0x1728] sm:$0xff]
        %v1312 = vld [vmem:[%s476 + $0x1730] sm:$0xff]
        %v1313 = vld [vmem:[%s476 + $0x1738] sm:$0xff]
        %v1314 = vld [vmem:[%s476 + $0x1740] sm:$0xff]
        %v1315 = vld [vmem:[%s476 + $0x1748] sm:$0xff]
        %v1316 = vld [vmem:[%s476 + $0x1750] sm:$0xff]
        %v1317 = vld [vmem:[%s476 + $0x1758] sm:$0xff]
        %v1318 = vld [vmem:[%s476 + $0x1760] sm:$0xff]
        %v1319 = vld [vmem:[%s476 + $0x1768] sm:$0xff]
        %v1320 = vld [vmem:[%s476 + $0x1770] sm:$0xff]
        %v1321 = vld [vmem:[%s476 + $0x1778] sm:$0xff]
        %v1322 = vld [vmem:[%s476 + $0x1780] sm:$0xff]
        %v1323 = vld [vmem:[%s476 + $0x1788] sm:$0xff]
        %v1324 = vld [vmem:[%s476 + $0x1790] sm:$0xff]
        %v1325 = vld [vmem:[%s476 + $0x1798] sm:$0xff]
        %v1326 = vld [vmem:[%s476 + $0x17a0] sm:$0xff]
        %v1327 = vld [vmem:[%s476 + $0x17a8] sm:$0xff]
        %v1328 = vld [vmem:[%s476 + $0x17b0] sm:$0xff]
        %v1329 = vld [vmem:[%s476 + $0x17b8] sm:$0xff]
        %v1330 = vld [vmem:[%s476 + $0x17c0] sm:$0xff]
        %v1331 = vld [vmem:[%s476 + $0x17c8] sm:$0xff]
        %v1332 = vld [vmem:[%s476 + $0x17d0] sm:$0xff]
        %v1333 = vld [vmem:[%s476 + $0x17d8] sm:$0xff]
        %v1334 = vld [vmem:[%s476 + $0x17e0] sm:$0xff]
        %v1335 = vld [vmem:[%s476 + $0x17e8] sm:$0xff]
        %v1336 = vld [vmem:[%s476 + $0x17f0] sm:$0xff]
        %v1337 = vld [vmem:[%s476 + $0x17f8] sm:$0xff]
        %v1338 = vld [vmem:[%s476 + $0x1800] sm:$0xff]
        %v1339 = vld [vmem:[%s476 + $0x1808] sm:$0xff]
        %v1340 = vld [vmem:[%s476 + $0x1810] sm:$0xff]
        %v1341 = vld [vmem:[%s476 + $0x1818] sm:$0xff]
        %v1342 = vld [vmem:[%s476 + $0x1820] sm:$0xff]
        %v1343 = vld [vmem:[%s476 + $0x1828] sm:$0xff]
        %v1344 = vld [vmem:[%s476 + $0x1830] sm:$0xff]
        %v1345 = vld [vmem:[%s476 + $0x1838] sm:$0xff]
        %v1346 = vld [vmem:[%s476 + $0x1840] sm:$0xff]
        %v1347 = vld [vmem:[%s476 + $0x1848] sm:$0xff]
        %v1348 = vld [vmem:[%s476 + $0x1850] sm:$0xff]
        %v1349 = vld [vmem:[%s476 + $0x1858] sm:$0xff]
        %v1350 = vld [vmem:[%s476 + $0x1860] sm:$0xff]
        %v1351 = vld [vmem:[%s476 + $0x1868] sm:$0xff]
        %v1352 = vld [vmem:[%s476 + $0x1870] sm:$0xff]
        %v1353 = vld [vmem:[%s476 + $0x1878] sm:$0xff]
        %v1354 = vld [vmem:[%s476 + $0x1880] sm:$0xff]
        %v1355 = vld [vmem:[%s476 + $0x1888] sm:$0xff]
        %v1356 = vld [vmem:[%s476 + $0x1890] sm:$0xff]
        %v1357 = vld [vmem:[%s476 + $0x1898] sm:$0xff]
        %v1358 = vld [vmem:[%s476 + $0x18a0] sm:$0xff]
        %v1359 = vld [vmem:[%s476 + $0x18a8] sm:$0xff]
        %v1360 = vld [vmem:[%s476 + $0x18b0] sm:$0xff]
        %v1361 = vld [vmem:[%s476 + $0x18b8] sm:$0xff]
        %v1362 = vld [vmem:[%s476 + $0x18c0] sm:$0xff]
        %v1363 = vld [vmem:[%s476 + $0x18c8] sm:$0xff]
        %v1364 = vld [vmem:[%s476 + $0x18d0] sm:$0xff]
        %v1365 = vld [vmem:[%s476 + $0x18d8] sm:$0xff]
        %v1366 = vld [vmem:[%s476 + $0x18e0] sm:$0xff]
        %v1367 = vld [vmem:[%s476 + $0x18e8] sm:$0xff]
        %v1368 = vld [vmem:[%s476 + $0x18f0] sm:$0xff]
        %v1369 = vld [vmem:[%s476 + $0x18f8] sm:$0xff]
        %v1370 = vld [vmem:[%s476 + $0x1900] sm:$0xff]
        %v1371 = vld [vmem:[%s476 + $0x1908] sm:$0xff]
        %v1372 = vld [vmem:[%s476 + $0x1910] sm:$0xff]
        %v1373 = vld [vmem:[%s476 + $0x1918] sm:$0xff]
        %v1374 = vld [vmem:[%s476 + $0x1920] sm:$0xff]
        %v1375 = vld [vmem:[%s476 + $0x1928] sm:$0xff]
        %v1376 = vld [vmem:[%s476 + $0x1930] sm:$0xff]
        %v1377 = vld [vmem:[%s476 + $0x1938] sm:$0xff]
        %v1378 = vld [vmem:[%s476 + $0x1940] sm:$0xff]
        %v1379 = vld [vmem:[%s476 + $0x1948] sm:$0xff]
        %v1380 = vld [vmem:[%s476 + $0x1950] sm:$0xff]
        %v1381 = vld [vmem:[%s476 + $0x1958] sm:$0xff]
        %v1382 = vld [vmem:[%s476 + $0x1960] sm:$0xff]
        %v1383 = vld [vmem:[%s476 + $0x1968] sm:$0xff]
        %v1384 = vld [vmem:[%s476 + $0x1970] sm:$0xff]
        %v1385 = vld [vmem:[%s476 + $0x1978] sm:$0xff]
        %v1386 = vld [vmem:[%s476 + $0x1980] sm:$0xff]
        %v1387 = vld [vmem:[%s476 + $0x1988] sm:$0xff]
        %v1388 = vld [vmem:[%s476 + $0x1990] sm:$0xff]
        %v1389 = vld [vmem:[%s476 + $0x1998] sm:$0xff]
        %v1390 = vld [vmem:[%s476 + $0x19a0] sm:$0xff]
        %v1391 = vld [vmem:[%s476 + $0x19a8] sm:$0xff]
        %v1392 = vld [vmem:[%s476 + $0x19b0] sm:$0xff]
        %v1393 = vld [vmem:[%s476 + $0x19b8] sm:$0xff]
        %v1394 = vld [vmem:[%s476 + $0x19c0] sm:$0xff]
        %v1395 = vld [vmem:[%s476 + $0x19c8] sm:$0xff]
        %v1396 = vld [vmem:[%s476 + $0x19d0] sm:$0xff]
        %v1397 = vld [vmem:[%s476 + $0x19d8] sm:$0xff]
        %v1398 = vld [vmem:[%s476 + $0x19e0] sm:$0xff]
        %v1399 = vld [vmem:[%s476 + $0x19e8] sm:$0xff]
        %v1400 = vld [vmem:[%s476 + $0x19f0] sm:$0xff]
        %v1401 = vld [vmem:[%s476 + $0x19f8] sm:$0xff]
        %v1402 = vld [vmem:[%s476 + $0x1a00] sm:$0xff]
        %v1403 = vld [vmem:[%s476 + $0x1a08] sm:$0xff]
        %v1404 = vld [vmem:[%s476 + $0x1a10] sm:$0xff]
        %v1405 = vld [vmem:[%s476 + $0x1a18] sm:$0xff]
        %v1406 = vld [vmem:[%s476 + $0x1a20] sm:$0xff]
        %v1407 = vld [vmem:[%s476 + $0x1a28] sm:$0xff]
        %v1408 = vld [vmem:[%s476 + $0x1a30] sm:$0xff]
        %v1409 = vld [vmem:[%s476 + $0x1a38] sm:$0xff]
        %v1410 = vld [vmem:[%s476 + $0x1a40] sm:$0xff]
        %v1411 = vld [vmem:[%s476 + $0x1a48] sm:$0xff]
        %v1412 = vld [vmem:[%s476 + $0x1a50] sm:$0xff]
        %v1413 = vld [vmem:[%s476 + $0x1a58] sm:$0xff]
        %v1414 = vld [vmem:[%s476 + $0x1a60] sm:$0xff]
        %v1415 = vld [vmem:[%s476 + $0x1a68] sm:$0xff]
        %v1416 = vld [vmem:[%s476 + $0x1a70] sm:$0xff]
        %v1417 = vld [vmem:[%s476 + $0x1a78] sm:$0xff]
        %v1418 = vld [vmem:[%s476 + $0x1a80] sm:$0xff]
        %v1419 = vld [vmem:[%s476 + $0x1a88] sm:$0xff]
        %v1420 = vld [vmem:[%s476 + $0x1a90] sm:$0xff]
        %v1421 = vld [vmem:[%s476 + $0x1a98] sm:$0xff]
        %v1422 = vld [vmem:[%s476 + $0x1aa0] sm:$0xff]
        %v1423 = vld [vmem:[%s476 + $0x1aa8] sm:$0xff]
        %v1424 = vld [vmem:[%s476 + $0x1ab0] sm:$0xff]
        %v1425 = vld [vmem:[%s476 + $0x1ab8] sm:$0xff]
        %v1426 = vld [vmem:[%s476 + $0x1ac0] sm:$0xff]
        %v1427 = vld [vmem:[%s476 + $0x1ac8] sm:$0xff]
        %v1428 = vld [vmem:[%s476 + $0x1ad0] sm:$0xff]
        %v1429 = vld [vmem:[%s476 + $0x1ad8] sm:$0xff]
        %v1430 = vld [vmem:[%s476 + $0x1ae0] sm:$0xff]
        %v1431 = vld [vmem:[%s476 + $0x1ae8] sm:$0xff]
        %v1432 = vld [vmem:[%s476 + $0x1af0] sm:$0xff]
        %v1433 = vld [vmem:[%s476 + $0x1af8] sm:$0xff]
        %v1434 = vld [vmem:[%s476 + $0x1b00] sm:$0xff]
        %v1435 = vld [vmem:[%s476 + $0x1b08] sm:$0xff]
        %v1436 = vld [vmem:[%s476 + $0x1b10] sm:$0xff]
        %v1437 = vld [vmem:[%s476 + $0x1b18] sm:$0xff]
        %v1438 = vld [vmem:[%s476 + $0x1b20] sm:$0xff]
        %v1439 = vld [vmem:[%s476 + $0x1b28] sm:$0xff]
        %v1440 = vld [vmem:[%s476 + $0x1b30] sm:$0xff]
        %v1441 = vld [vmem:[%s476 + $0x1b38] sm:$0xff]
        %v1442 = vld [vmem:[%s476 + $0x1b40] sm:$0xff]
        %v1443 = vld [vmem:[%s476 + $0x1b48] sm:$0xff]
        %v1444 = vld [vmem:[%s476 + $0x1b50] sm:$0xff]
        %v1445 = vld [vmem:[%s476 + $0x1b58] sm:$0xff]
        %v1446 = vld [vmem:[%s476 + $0x1b60] sm:$0xff]
        %v1447 = vld [vmem:[%s476 + $0x1b68] sm:$0xff]
        %v1448 = vld [vmem:[%s476 + $0x1b70] sm:$0xff]
        %v1449 = vld [vmem:[%s476 + $0x1b78] sm:$0xff]
        %v1450 = vld [vmem:[%s476 + $0x1b80] sm:$0xff]
        %v1451 = vld [vmem:[%s476 + $0x1b88] sm:$0xff]
        %v1452 = vld [vmem:[%s476 + $0x1b90] sm:$0xff]
        %v1453 = vld [vmem:[%s476 + $0x1b98] sm:$0xff]
        %v1454 = vld [vmem:[%s476 + $0x1ba0] sm:$0xff]
        %v1455 = vld [vmem:[%s476 + $0x1ba8] sm:$0xff]
        %v1456 = vld [vmem:[%s476 + $0x1bb0] sm:$0xff]
        %v1457 = vld [vmem:[%s476 + $0x1bb8] sm:$0xff]
        %v1458 = vld [vmem:[%s476 + $0x1bc0] sm:$0xff]
        %v1459 = vld [vmem:[%s476 + $0x1bc8] sm:$0xff]
        %v1460 = vld [vmem:[%s476 + $0x1bd0] sm:$0xff]
        %v1461 = vld [vmem:[%s476 + $0x1bd8] sm:$0xff]
        %v1462 = vld [vmem:[%s476 + $0x1be0] sm:$0xff]
        %v1463 = vld [vmem:[%s476 + $0x1be8] sm:$0xff]
        %v1464 = vld [vmem:[%s476 + $0x1bf0] sm:$0xff]
        %v1465 = vld [vmem:[%s476 + $0x1bf8] sm:$0xff]
        %v1468 = vcombine.high %v568, %v568
        %v1470 = vunpack.c.l.s4 1983009808
        %v1471 = vunpack.c.0.s8 %v1470
        %v1472 = vlaneseq
        %v1473 = vshrl.u32 %v1472, 7
        %v1474 = vsub.s32 %v1471, %v1473
        %v1475 = vrot.slane %v568, %v1474
        %v1477 = vunpack.c.l.s4 1983009808
        %v1478 = vunpack.c.0.s8 %v1477
        %v1479 = vlaneseq
        %v1480 = vshrl.u32 %v1479, 7
        %v1481 = vsub.s32 %v1478, %v1480
        %v1482 = vrot.slane %v1468, %v1481
        %v1483 = vcombine.high %v1475, %v1475
        %v1484 = vcombine.high %v1482, %v1482
        %v1485 = vcombine.high %v569, %v569
        %v1487 = vunpack.c.l.s4 1983009808
        %v1488 = vunpack.c.0.s8 %v1487
        %v1489 = vlaneseq
        %v1490 = vshrl.u32 %v1489, 7
        %v1491 = vsub.s32 %v1488, %v1490
        %v1492 = vrot.slane %v569, %v1491
        %v1494 = vunpack.c.l.s4 1983009808
        %v1495 = vunpack.c.0.s8 %v1494
        %v1496 = vlaneseq
        %v1497 = vshrl.u32 %v1496, 7
        %v1498 = vsub.s32 %v1495, %v1497
        %v1499 = vrot.slane %v1485, %v1498
        %v1500 = vcombine.high %v1492, %v1492
        %1508 = vmatprep.subr.mxu0 %v571
        %1509 = vmatpush1.msra.mxu0 %v570
        %1510 = vmatprep.subr.mxu0 %v579
        %1511 = vmatpush1.msra.mxu0 %v578
        %1512 = vmatprep.subr.mxu0 %v587
        %1513 = vmatpush1.msra.mxu0 %v586
        %1514 = vmatprep.subr.mxu0 %v595
        %1515 = vmatpush1.msra.mxu0 %v594
        %1516 = vmatprep.subr.mxu0 %v603
        %1517 = vmatpush1.msra.mxu0 %v602
        %1518 = vmatprep.subr.mxu0 %v611
        %1519 = vmatpush1.msra.mxu0 %v610
        %1520 = vmatprep.subr.mxu0 %v619
        %1521 = vmatpush1.msra.mxu0 %v618
        %1522 = vmatprep.subr.mxu0 %v627
        %1523 = vmatpush1.msra.mxu0 %v626
        %1524 = vmatprep.subr.mxu0 %v635
        %1525 = vmatpush1.msra.mxu0 %v634
        %1526 = vmatprep.subr.mxu0 %v643
        %1527 = vmatpush1.msra.mxu0 %v642
        %1528 = vmatprep.subr.mxu0 %v651
        %1529 = vmatpush1.msra.mxu0 %v650
        %1530 = vmatprep.subr.mxu0 %v659
        %1531 = vmatpush1.msra.mxu0 %v658
        %1532 = vmatprep.subr.mxu0 %v667
        %1533 = vmatpush1.msra.mxu0 %v666
        %1534 = vmatprep.subr.mxu0 %v675
        %1535 = vmatpush1.msra.mxu0 %v674
        %1536 = vmatprep.subr.mxu0 %v683
        %1537 = vmatpush1.msra.mxu0 %v682
        %1538 = vmatprep.subr.mxu0 %v691
        %1539 = vmatpush1.msra.mxu0 %v690
        %1540 = vmatprep.subr.mxu0 %v699
        %1541 = vmatpush1.msra.mxu0 %v698
        %1542 = vmatprep.subr.mxu0 %v707
        %1543 = vmatpush1.msra.mxu0 %v706
        %1544 = vmatprep.subr.mxu0 %v715
        %1545 = vmatpush1.msra.mxu0 %v714
        %1546 = vmatprep.subr.mxu0 %v723
        %1547 = vmatpush1.msra.mxu0 %v722
        %1548 = vmatprep.subr.mxu0 %v731
        %1549 = vmatpush1.msra.mxu0 %v730
        %1550 = vmatprep.subr.mxu0 %v739
        %1551 = vmatpush1.msra.mxu0 %v738
        %1552 = vmatprep.subr.mxu0 %v747
        %1553 = vmatpush1.msra.mxu0 %v746
        %1554 = vmatprep.subr.mxu0 %v755
        %1555 = vmatpush1.msra.mxu0 %v754
        %1556 = vmatprep.subr.mxu0 %v763
        %1557 = vmatpush1.msra.mxu0 %v762
        %1558 = vmatprep.subr.mxu0 %v771
        %1559 = vmatpush1.msra.mxu0 %v770
        %1560 = vmatprep.subr.mxu0 %v779
        %1561 = vmatpush1.msra.mxu0 %v778
        %1562 = vmatprep.subr.mxu0 %v787
        %1563 = vmatpush1.msra.mxu0 %v786
        %1564 = vmatprep.subr.mxu0 %v795
        %1565 = vmatpush1.msra.mxu0 %v794
        %1566 = vmatprep.subr.mxu0 %v803
        %1567 = vmatpush1.msra.mxu0 %v802
        %1568 = vmatprep.subr.mxu0 %v811
        %1569 = vmatpush1.msra.mxu0 %v810
        %1570 = vmatprep.subr.mxu0 %v819
        %1571 = vmatpush1.msra.mxu0 %v818
        %1572 = vmatprep.mubr.f32.mxu0 %v1483
        %1573 = vmatmul.mubr.f32.gmra.mrb[0].mxu0 %v1475
        %v1574 = vpop.f32.mrb[0].mxu0
        %v1575 = vadd.f32 0.0, %v1574
        %v1576 = vpop.f32.mrb[0].mxu0
        %v1577 = vadd.f32 0.0, %v1576
        %1578 = vdwg.mxu0
        %1579 = vmatprep.subr.mxu0 %v827
        %1580 = vmatpush1.msra.mxu0 %v826
        %1581 = vmatprep.subr.mxu0 %v835
        %1582 = vmatpush1.msra.mxu0 %v834
        %1583 = vmatprep.subr.mxu0 %v843
        %1584 = vmatpush1.msra.mxu0 %v842
        %1585 = vmatprep.subr.mxu0 %v851
        %1586 = vmatpush1.msra.mxu0 %v850
        %1587 = vmatprep.subr.mxu0 %v859
        %1588 = vmatpush1.msra.mxu0 %v858
        %1589 = vmatprep.subr.mxu0 %v867
        %1590 = vmatpush1.msra.mxu0 %v866
        %1591 = vmatprep.subr.mxu0 %v875
        %1592 = vmatpush1.msra.mxu0 %v874
        %1593 = vmatprep.subr.mxu0 %v883
        %1594 = vmatpush1.msra.mxu0 %v882
        %1595 = vmatprep.subr.mxu0 %v891
        %1596 = vmatpush1.msra.mxu0 %v890
        %1597 = vmatprep.subr.mxu0 %v899
        %1598 = vmatpush1.msra.mxu0 %v898
        %1599 = vmatprep.subr.mxu0 %v907
        %1600 = vmatpush1.msra.mxu0 %v906
        %1601 = vmatprep.subr.mxu0 %v915
        %1602 = vmatpush1.msra.mxu0 %v914
        %1603 = vmatprep.subr.mxu0 %v923
        %1604 = vmatpush1.msra.mxu0 %v922
        %1605 = vmatprep.subr.mxu0 %v931
        %1606 = vmatpush1.msra.mxu0 %v930
        %1607 = vmatprep.subr.mxu0 %v939
        %1608 = vmatpush1.msra.mxu0 %v938
        %1609 = vmatprep.subr.mxu0 %v947
        %1610 = vmatpush1.msra.mxu0 %v946
        %1611 = vmatprep.subr.mxu0 %v955
        %1612 = vmatpush1.msra.mxu0 %v954
        %1613 = vmatprep.subr.mxu0 %v963
        %1614 = vmatpush1.msra.mxu0 %v962
        %1615 = vmatprep.subr.mxu0 %v971
        %1616 = vmatpush1.msra.mxu0 %v970
        %1617 = vmatprep.subr.mxu0 %v979
        %1618 = vmatpush1.msra.mxu0 %v978
        %1619 = vmatprep.subr.mxu0 %v987
        %1620 = vmatpush1.msra.mxu0 %v986
        %1621 = vmatprep.subr.mxu0 %v995
        %1622 = vmatpush1.msra.mxu0 %v994
        %1623 = vmatprep.subr.mxu0 %v1003
        %1624 = vmatpush1.msra.mxu0 %v1002
        %1625 = vmatprep.subr.mxu0 %v1011
        %1626 = vmatpush1.msra.mxu0 %v1010
        %1627 = vmatprep.subr.mxu0 %v1019
        %1628 = vmatpush1.msra.mxu0 %v1018
        %1629 = vmatprep.subr.mxu0 %v1027
        %1630 = vmatpush1.msra.mxu0 %v1026
        %1631 = vmatprep.subr.mxu0 %v1035
        %1632 = vmatpush1.msra.mxu0 %v1034
        %1633 = vmatprep.subr.mxu0 %v1043
        %1634 = vmatpush1.msra.mxu0 %v1042
        %1635 = vmatprep.subr.mxu0 %v1051
        %1636 = vmatpush1.msra.mxu0 %v1050
        %1637 = vmatprep.subr.mxu0 %v1059
        %1638 = vmatpush1.msra.mxu0 %v1058
        %1639 = vmatprep.subr.mxu0 %v1067
        %1640 = vmatpush1.msra.mxu0 %v1066
        %1641 = vmatprep.subr.mxu0 %v1075
        %1642 = vmatpush1.msra.mxu0 %v1074
        %1643 = vmatprep.mubr.f32.mxu0 %v1484
        %1644 = vmatmul.mubr.f32.gmra.mrb[0].mxu0 %v1482
        %v1645 = vpop.f32.mrb[0].mxu0
        %v1646 = vadd.f32 %v1575, %v1645
        %v1647 = vpop.f32.mrb[0].mxu0
        %v1648 = vadd.f32 %v1577, %v1647
        %1649 = vdwg.mxu0
        %1650 = vmatprep.subr.mxu0 %v1083
        %1651 = vmatpush1.msra.mxu0 %v1082
        %1652 = vmatprep.subr.mxu0 %v1091
        %1653 = vmatpush1.msra.mxu0 %v1090
        %1654 = vmatprep.subr.mxu0 %v1099
        %1655 = vmatpush1.msra.mxu0 %v1098
        %1656 = vmatprep.subr.mxu0 %v1107
        %1657 = vmatpush1.msra.mxu0 %v1106
        %1658 = vmatprep.subr.mxu0 %v1115
        %1659 = vmatpush1.msra.mxu0 %v1114
        %1660 = vmatprep.subr.mxu0 %v1123
        %1661 = vmatpush1.msra.mxu0 %v1122
        %1662 = vmatprep.subr.mxu0 %v1131
        %1663 = vmatpush1.msra.mxu0 %v1130
        %1664 = vmatprep.subr.mxu0 %v1139
        %1665 = vmatpush1.msra.mxu0 %v1138
        %1666 = vmatprep.subr.mxu0 %v1147
        %1667 = vmatpush1.msra.mxu0 %v1146
        %1668 = vmatprep.subr.mxu0 %v1155
        %1669 = vmatpush1.msra.mxu0 %v1154
        %1670 = vmatprep.subr.mxu0 %v1163
        %1671 = vmatpush1.msra.mxu0 %v1162
        %1672 = vmatprep.subr.mxu0 %v1171
        %1673 = vmatpush1.msra.mxu0 %v1170
        %1674 = vmatprep.subr.mxu0 %v1179
        %1675 = vmatpush1.msra.mxu0 %v1178
        %1676 = vmatprep.subr.mxu0 %v1187
        %1677 = vmatpush1.msra.mxu0 %v1186
        %1678 = vmatprep.subr.mxu0 %v1195
        %1679 = vmatpush1.msra.mxu0 %v1194
        %1680 = vmatprep.subr.mxu0 %v1203
        %1681 = vmatpush1.msra.mxu0 %v1202
        %1682 = vmatprep.subr.mxu0 %v1211
        %1683 = vmatpush1.msra.mxu0 %v1210
        %1684 = vmatprep.subr.mxu0 %v1219
        %1685 = vmatpush1.msra.mxu0 %v1218
        %1686 = vmatprep.subr.mxu0 %v1227
        %1687 = vmatpush1.msra.mxu0 %v1226
        %1688 = vmatprep.subr.mxu0 %v1235
        %1689 = vmatpush1.msra.mxu0 %v1234
        %1690 = vmatprep.subr.mxu0 %v1243
        %1691 = vmatpush1.msra.mxu0 %v1242
        %1692 = vmatprep.subr.mxu0 %v1251
        %1693 = vmatpush1.msra.mxu0 %v1250
        %1694 = vmatprep.subr.mxu0 %v1259
        %1695 = vmatpush1.msra.mxu0 %v1258
        %1696 = vmatprep.subr.mxu0 %v1267
        %1697 = vmatpush1.msra.mxu0 %v1266
        %1698 = vmatprep.subr.mxu0 %v1275
        %1699 = vmatpush1.msra.mxu0 %v1274
        %1700 = vmatprep.subr.mxu0 %v1283
        %1701 = vmatpush1.msra.mxu0 %v1282
        %1702 = vmatprep.subr.mxu0 %v1291
        %1703 = vmatpush1.msra.mxu0 %v1290
        %1704 = vmatprep.subr.mxu0 %v1299
        %1705 = vmatpush1.msra.mxu0 %v1298
        %1706 = vmatprep.subr.mxu0 %v1307
        %1707 = vmatpush1.msra.mxu0 %v1306
        %1708 = vmatprep.subr.mxu0 %v1315
        %1709 = vmatpush1.msra.mxu0 %v1314
        %1710 = vmatprep.subr.mxu0 %v1323
        %1711 = vmatpush1.msra.mxu0 %v1322
        %1712 = vmatprep.subr.mxu0 %v1331
        %1713 = vmatpush1.msra.mxu0 %v1330
        %1714 = vmatprep.mubr.f32.mxu0 %v1500
        %1715 = vmatmul.mubr.f32.gmra.mrb[0].mxu0 %v1492
        %v1716 = vpop.f32.mrb[0].mxu0
        %v1717 = vadd.f32 %v1646, %v1716
        %v1718 = vpop.f32.mrb[0].mxu0
        %v1719 = vadd.f32 %v1648, %v1718
        %1720 = vdwg.mxu0
        %1721 = vmatprep.subr.mxu0 %v1339
        %1722 = vmatpush1.msra.mxu0 %v1338
        %1723 = vmatprep.subr.mxu0 %v1347
        %1724 = vmatpush1.msra.mxu0 %v1346
        %1725 = vmatprep.subr.mxu0 %v1355
        %1726 = vmatpush1.msra.mxu0 %v1354
        %1727 = vmatprep.subr.mxu0 %v1363
        %1728 = vmatpush1.msra.mxu0 %v1362
        %1729 = vmatprep.subr.mxu0 %v1371
        %1730 = vmatpush1.msra.mxu0 %v1370
        %1731 = vmatprep.subr.mxu0 %v1379
        %1732 = vmatpush1.msra.mxu0 %v1378
        %1733 = vmatprep.subr.mxu0 %v1387
        %1734 = vmatpush1.msra.mxu0 %v1386
        %1735 = vmatprep.subr.mxu0 %v1395
        %1736 = vmatpush1.msra.mxu0 %v1394
        %1737 = vmatprep.subr.mxu0 %v1403
        %1738 = vmatpush1.msra.mxu0 %v1402
        %1739 = vmatprep.subr.mxu0 %v1411
        %1740 = vmatpush1.msra.mxu0 %v1410
        %1741 = vmatprep.subr.mxu0 %v1419
        %1742 = vmatpush1.msra.mxu0 %v1418
        %1743 = vmatprep.subr.mxu0 %v1427
        %1744 = vmatpush1.msra.mxu0 %v1426
        %1745 = vmatprep.subr.mxu0 %v1435
        %1746 = vmatpush1.msra.mxu0 %v1434
        %1747 = vmatprep.subr.mxu0 %v1443
        %1748 = vmatpush1.msra.mxu0 %v1442
        %1749 = vmatprep.subr.mxu0 %v1451
        %1750 = vmatpush1.msra.mxu0 %v1450
        %1751 = vmatprep.subr.mxu0 %v1459
        %1752 = vmatpush1.msra.mxu0 %v1458
        %1753 = vmatprep.subr.mxu0 0.0
        %1754 = vmatpush1.msra.mxu0 0.0
        %1755 = vmatprep.subr.mxu0 0.0
        %1756 = vmatpush1.msra.mxu0 0.0
        %1757 = vmatprep.subr.mxu0 0.0
        %1758 = vmatpush1.msra.mxu0 0.0
        %1759 = vmatprep.subr.mxu0 0.0
        %1760 = vmatpush1.msra.mxu0 0.0
        %1761 = vmatprep.subr.mxu0 0.0
        %1762 = vmatpush1.msra.mxu0 0.0
        %1763 = vmatprep.subr.mxu0 0.0
        %1764 = vmatpush1.msra.mxu0 0.0
        %1765 = vmatprep.subr.mxu0 0.0
        %1766 = vmatpush1.msra.mxu0 0.0
        %1767 = vmatprep.subr.mxu0 0.0
        %1768 = vmatpush1.msra.mxu0 0.0
        %1769 = vmatprep.subr.mxu0 0.0
        %1770 = vmatpush1.msra.mxu0 0.0
        %1771 = vmatprep.subr.mxu0 0.0
        %1772 = vmatpush1.msra.mxu0 0.0
        %1773 = vmatprep.subr.mxu0 0.0
        %1774 = vmatpush1.msra.mxu0 0.0
        %1775 = vmatprep.subr.mxu0 0.0
        %1776 = vmatpush1.msra.mxu0 0.0
        %1777 = vmatprep.subr.mxu0 0.0
        %1778 = vmatpush1.msra.mxu0 0.0
        %1779 = vmatprep.subr.mxu0 0.0
        %1780 = vmatpush1.msra.mxu0 0.0
        %1781 = vmatprep.subr.mxu0 0.0
        %1782 = vmatpush1.msra.mxu0 0.0
        %1783 = vmatprep.subr.mxu0 0.0
        %1784 = vmatpush1.msra.mxu0 0.0
        %1785 = vmatprep.mubr.f32.mxu0 0.0
        %1786 = vmatmul.mubr.f32.gmra.mrb[0].mxu0 %v1499
        %v1787 = vpop.f32.mrb[0].mxu0
        %v1788 = vadd.f32 %v1717, %v1787
        %v1789 = vpop.f32.mrb[0].mxu0
        %v1790 = vadd.f32 %v1719, %v1789
        %1791 = vdwg.mxu0
        %1792 = vmatprep.subr.mxu0 %v573
        %1793 = vmatpush1.msra.mxu0 %v572
        %1794 = vmatprep.subr.mxu0 %v581
        %1795 = vmatpush1.msra.mxu0 %v580
        %1796 = vmatprep.subr.mxu0 %v589
        %1797 = vmatpush1.msra.mxu0 %v588
        %1798 = vmatprep.subr.mxu0 %v597
        %1799 = vmatpush1.msra.mxu0 %v596
        %1800 = vmatprep.subr.mxu0 %v605
        %1801 = vmatpush1.msra.mxu0 %v604
        %1802 = vmatprep.subr.mxu0 %v613
        %1803 = vmatpush1.msra.mxu0 %v612
        %1804 = vmatprep.subr.mxu0 %v621
        %1805 = vmatpush1.msra.mxu0 %v620
        %1806 = vmatprep.subr.mxu0 %v629
        %1807 = vmatpush1.msra.mxu0 %v628
        %1808 = vmatprep.subr.mxu0 %v637
        %1809 = vmatpush1.msra.mxu0 %v636
        %1810 = vmatprep.subr.mxu0 %v645
        %1811 = vmatpush1.msra.mxu0 %v644
        %1812 = vmatprep.subr.mxu0 %v653
        %1813 = vmatpush1.msra.mxu0 %v652
        %1814 = vmatprep.subr.mxu0 %v661
        %1815 = vmatpush1.msra.mxu0 %v660
        %1816 = vmatprep.subr.mxu0 %v669
        %1817 = vmatpush1.msra.mxu0 %v668
        %1818 = vmatprep.subr.mxu0 %v677
        %1819 = vmatpush1.msra.mxu0 %v676
        %1820 = vmatprep.subr.mxu0 %v685
        %1821 = vmatpush1.msra.mxu0 %v684
        %1822 = vmatprep.subr.mxu0 %v693
        %1823 = vmatpush1.msra.mxu0 %v692
        %1824 = vmatprep.subr.mxu0 %v701
        %1825 = vmatpush1.msra.mxu0 %v700
        %1826 = vmatprep.subr.mxu0 %v709
        %1827 = vmatpush1.msra.mxu0 %v708
        %1828 = vmatprep.subr.mxu0 %v717
        %1829 = vmatpush1.msra.mxu0 %v716
        %1830 = vmatprep.subr.mxu0 %v725
        %1831 = vmatpush1.msra.mxu0 %v724
        %1832 = vmatprep.subr.mxu0 %v733
        %1833 = vmatpush1.msra.mxu0 %v732
        %1834 = vmatprep.subr.mxu0 %v741
        %1835 = vmatpush1.msra.mxu0 %v740
        %1836 = vmatprep.subr.mxu0 %v749
        %1837 = vmatpush1.msra.mxu0 %v748
        %1838 = vmatprep.subr.mxu0 %v757
        %1839 = vmatpush1.msra.mxu0 %v756
        %1840 = vmatprep.subr.mxu0 %v765
        %1841 = vmatpush1.msra.mxu0 %v764
        %1842 = vmatprep.subr.mxu0 %v773
        %1843 = vmatpush1.msra.mxu0 %v772
        %1844 = vmatprep.subr.mxu0 %v781
        %1845 = vmatpush1.msra.mxu0 %v780
        %1846 = vmatprep.subr.mxu0 %v789
        %1847 = vmatpush1.msra.mxu0 %v788
        %1848 = vmatprep.subr.mxu0 %v797
        %1849 = vmatpush1.msra.mxu0 %v796
        %1850 = vmatprep.subr.mxu0 %v805
        %1851 = vmatpush1.msra.mxu0 %v804
        %1852 = vmatprep.subr.mxu0 %v813
        %1853 = vmatpush1.msra.mxu0 %v812
        %1854 = vmatprep.subr.mxu0 %v821
        %1855 = vmatpush1.msra.mxu0 %v820
        %1856 = vmatprep.mubr.f32.mxu0 %v1483
        %1857 = vmatmul.mubr.f32.gmra.mrb[0].mxu0 %v1475
        %v1858 = vpop.f32.mrb[0].mxu0
        %v1859 = vadd.f32 0.0, %v1858
        %v1860 = vpop.f32.mrb[0].mxu0
        %v1861 = vadd.f32 0.0, %v1860
        %1862 = vdwg.mxu0
        %1863 = vmatprep.subr.mxu0 %v829
        %1864 = vmatpush1.msra.mxu0 %v828
        %1865 = vmatprep.subr.mxu0 %v837
        %1866 = vmatpush1.msra.mxu0 %v836
        %1867 = vmatprep.subr.mxu0 %v845
        %1868 = vmatpush1.msra.mxu0 %v844
        %1869 = vmatprep.subr.mxu0 %v853
        %1870 = vmatpush1.msra.mxu0 %v852
        %1871 = vmatprep.subr.mxu0 %v861
        %1872 = vmatpush1.msra.mxu0 %v860
        %1873 = vmatprep.subr.mxu0 %v869
        %1874 = vmatpush1.msra.mxu0 %v868
        %1875 = vmatprep.subr.mxu0 %v877
        %1876 = vmatpush1.msra.mxu0 %v876
        %1877 = vmatprep.subr.mxu0 %v885
        %1878 = vmatpush1.msra.mxu0 %v884
        %1879 = vmatprep.subr.mxu0 %v893
        %1880 = vmatpush1.msra.mxu0 %v892
        %1881 = vmatprep.subr.mxu0 %v901
        %1882 = vmatpush1.msra.mxu0 %v900
        %1883 = vmatprep.subr.mxu0 %v909
        %1884 = vmatpush1.msra.mxu0 %v908
        %1885 = vmatprep.subr.mxu0 %v917
        %1886 = vmatpush1.msra.mxu0 %v916
        %1887 = vmatprep.subr.mxu0 %v925
        %1888 = vmatpush1.msra.mxu0 %v924
        %1889 = vmatprep.subr.mxu0 %v933
        %1890 = vmatpush1.msra.mxu0 %v932
        %1891 = vmatprep.subr.mxu0 %v941
        %1892 = vmatpush1.msra.mxu0 %v940
        %1893 = vmatprep.subr.mxu0 %v949
        %1894 = vmatpush1.msra.mxu0 %v948
        %1895 = vmatprep.subr.mxu0 %v957
        %1896 = vmatpush1.msra.mxu0 %v956
        %1897 = vmatprep.subr.mxu0 %v965
        %1898 = vmatpush1.msra.mxu0 %v964
        %1899 = vmatprep.subr.mxu0 %v973
        %1900 = vmatpush1.msra.mxu0 %v972
        %1901 = vmatprep.subr.mxu0 %v981
        %1902 = vmatpush1.msra.mxu0 %v980
        %1903 = vmatprep.subr.mxu0 %v989
        %1904 = vmatpush1.msra.mxu0 %v988
        %1905 = vmatprep.subr.mxu0 %v997
        %1906 = vmatpush1.msra.mxu0 %v996
        %1907 = vmatprep.subr.mxu0 %v1005
        %1908 = vmatpush1.msra.mxu0 %v1004
        %1909 = vmatprep.subr.mxu0 %v1013
        %1910 = vmatpush1.msra.mxu0 %v1012
        %1911 = vmatprep.subr.mxu0 %v1021
        %1912 = vmatpush1.msra.mxu0 %v1020
        %1913 = vmatprep.subr.mxu0 %v1029
        %1914 = vmatpush1.msra.mxu0 %v1028
        %1915 = vmatprep.subr.mxu0 %v1037
        %1916 = vmatpush1.msra.mxu0 %v1036
        %1917 = vmatprep.subr.mxu0 %v1045
        %1918 = vmatpush1.msra.mxu0 %v1044
        %1919 = vmatprep.subr.mxu0 %v1053
        %1920 = vmatpush1.msra.mxu0 %v1052
        %1921 = vmatprep.subr.mxu0 %v1061
        %1922 = vmatpush1.msra.mxu0 %v1060
        %1923 = vmatprep.subr.mxu0 %v1069
        %1924 = vmatpush1.msra.mxu0 %v1068
        %1925 = vmatprep.subr.mxu0 %v1077
        %1926 = vmatpush1.msra.mxu0 %v1076
        %1927 = vmatprep.mubr.f32.mxu0 %v1484
        %1928 = vmatmul.mubr.f32.gmra.mrb[0].mxu0 %v1482
        %v1929 = vpop.f32.mrb[0].mxu0
        %v1930 = vadd.f32 %v1859, %v1929
        %v1931 = vpop.f32.mrb[0].mxu0
        %v1932 = vadd.f32 %v1861, %v1931
        %1933 = vdwg.mxu0
        %1934 = vmatprep.subr.mxu0 %v1085
        %1935 = vmatpush1.msra.mxu0 %v1084
        %1936 = vmatprep.subr.mxu0 %v1093
        %1937 = vmatpush1.msra.mxu0 %v1092
        %1938 = vmatprep.subr.mxu0 %v1101
        %1939 = vmatpush1.msra.mxu0 %v1100
        %1940 = vmatprep.subr.mxu0 %v1109
        %1941 = vmatpush1.msra.mxu0 %v1108
        %1942 = vmatprep.subr.mxu0 %v1117
        %1943 = vmatpush1.msra.mxu0 %v1116
        %1944 = vmatprep.subr.mxu0 %v1125
        %1945 = vmatpush1.msra.mxu0 %v1124
        %1946 = vmatprep.subr.mxu0 %v1133
        %1947 = vmatpush1.msra.mxu0 %v1132
        %1948 = vmatprep.subr.mxu0 %v1141
        %1949 = vmatpush1.msra.mxu0 %v1140
        %1950 = vmatprep.subr.mxu0 %v1149
        %1951 = vmatpush1.msra.mxu0 %v1148
        %1952 = vmatprep.subr.mxu0 %v1157
        %1953 = vmatpush1.msra.mxu0 %v1156
        %1954 = vmatprep.subr.mxu0 %v1165
        %1955 = vmatpush1.msra.mxu0 %v1164
        %1956 = vmatprep.subr.mxu0 %v1173
        %1957 = vmatpush1.msra.mxu0 %v1172
        %1958 = vmatprep.subr.mxu0 %v1181
        %1959 = vmatpush1.msra.mxu0 %v1180
        %1960 = vmatprep.subr.mxu0 %v1189
        %1961 = vmatpush1.msra.mxu0 %v1188
        %1962 = vmatprep.subr.mxu0 %v1197
        %1963 = vmatpush1.msra.mxu0 %v1196
        %1964 = vmatprep.subr.mxu0 %v1205
        %1965 = vmatpush1.msra.mxu0 %v1204
        %1966 = vmatprep.subr.mxu0 %v1213
        %1967 = vmatpush1.msra.mxu0 %v1212
        %1968 = vmatprep.subr.mxu0 %v1221
        %1969 = vmatpush1.msra.mxu0 %v1220
        %1970 = vmatprep.subr.mxu0 %v1229
        %1971 = vmatpush1.msra.mxu0 %v1228
        %1972 = vmatprep.subr.mxu0 %v1237
        %1973 = vmatpush1.msra.mxu0 %v1236
        %1974 = vmatprep.subr.mxu0 %v1245
        %1975 = vmatpush1.msra.mxu0 %v1244
        %1976 = vmatprep.subr.mxu0 %v1253
        %1977 = vmatpush1.msra.mxu0 %v1252
        %1978 = vmatprep.subr.mxu0 %v1261
        %1979 = vmatpush1.msra.mxu0 %v1260
        %1980 = vmatprep.subr.mxu0 %v1269
        %1981 = vmatpush1.msra.mxu0 %v1268
        %1982 = vmatprep.subr.mxu0 %v1277
        %1983 = vmatpush1.msra.mxu0 %v1276
        %1984 = vmatprep.subr.mxu0 %v1285
        %1985 = vmatpush1.msra.mxu0 %v1284
        %1986 = vmatprep.subr.mxu0 %v1293
        %1987 = vmatpush1.msra.mxu0 %v1292
        %1988 = vmatprep.subr.mxu0 %v1301
        %1989 = vmatpush1.msra.mxu0 %v1300
        %1990 = vmatprep.subr.mxu0 %v1309
        %1991 = vmatpush1.msra.mxu0 %v1308
        %1992 = vmatprep.subr.mxu0 %v1317
        %1993 = vmatpush1.msra.mxu0 %v1316
        %1994 = vmatprep.subr.mxu0 %v1325
        %1995 = vmatpush1.msra.mxu0 %v1324
        %1996 = vmatprep.subr.mxu0 %v1333
        %1997 = vmatpush1.msra.mxu0 %v1332
        %1998 = vmatprep.mubr.f32.mxu0 %v1500
        %1999 = vmatmul.mubr.f32.gmra.mrb[0].mxu0 %v1492
        %v2000 = vpop.f32.mrb[0].mxu0
        %v2001 = vadd.f32 %v1930, %v2000
        %v2002 = vpop.f32.mrb[0].mxu0
        %v2003 = vadd.f32 %v1932, %v2002
        %2004 = vdwg.mxu0
        %2005 = vmatprep.subr.mxu0 %v1341
        %2006 = vmatpush1.msra.mxu0 %v1340
        %2007 = vmatprep.subr.mxu0 %v1349
        %2008 = vmatpush1.msra.mxu0 %v1348
        %2009 = vmatprep.subr.mxu0 %v1357
        %2010 = vmatpush1.msra.mxu0 %v1356
        %2011 = vmatprep.subr.mxu0 %v1365
        %2012 = vmatpush1.msra.mxu0 %v1364
        %2013 = vmatprep.subr.mxu0 %v1373
        %2014 = vmatpush1.msra.mxu0 %v1372
        %2015 = vmatprep.subr.mxu0 %v1381
        %2016 = vmatpush1.msra.mxu0 %v1380
        %2017 = vmatprep.subr.mxu0 %v1389
        %2018 = vmatpush1.msra.mxu0 %v1388
        %2019 = vmatprep.subr.mxu0 %v1397
        %2020 = vmatpush1.msra.mxu0 %v1396
        %2021 = vmatprep.subr.mxu0 %v1405
        %2022 = vmatpush1.msra.mxu0 %v1404
        %2023 = vmatprep.subr.mxu0 %v1413
        %2024 = vmatpush1.msra.mxu0 %v1412
        %2025 = vmatprep.subr.mxu0 %v1421
        %2026 = vmatpush1.msra.mxu0 %v1420
        %2027 = vmatprep.subr.mxu0 %v1429
        %2028 = vmatpush1.msra.mxu0 %v1428
        %2029 = vmatprep.subr.mxu0 %v1437
        %2030 = vmatpush1.msra.mxu0 %v1436
        %2031 = vmatprep.subr.mxu0 %v1445
        %2032 = vmatpush1.msra.mxu0 %v1444
        %2033 = vmatprep.subr.mxu0 %v1453
        %2034 = vmatpush1.msra.mxu0 %v1452
        %2035 = vmatprep.subr.mxu0 %v1461
        %2036 = vmatpush1.msra.mxu0 %v1460
        %2037 = vmatprep.subr.mxu0 0.0
        %2038 = vmatpush1.msra.mxu0 0.0
        %2039 = vmatprep.subr.mxu0 0.0
        %2040 = vmatpush1.msra.mxu0 0.0
        %2041 = vmatprep.subr.mxu0 0.0
        %2042 = vmatpush1.msra.mxu0 0.0
        %2043 = vmatprep.subr.mxu0 0.0
        %2044 = vmatpush1.msra.mxu0 0.0
        %2045 = vmatprep.subr.mxu0 0.0
        %2046 = vmatpush1.msra.mxu0 0.0
        %2047 = vmatprep.subr.mxu0 0.0
        %2048 = vmatpush1.msra.mxu0 0.0
        %2049 = vmatprep.subr.mxu0 0.0
        %2050 = vmatpush1.msra.mxu0 0.0
        %2051 = vmatprep.subr.mxu0 0.0
        %2052 = vmatpush1.msra.mxu0 0.0
        %2053 = vmatprep.subr.mxu0 0.0
        %2054 = vmatpush1.msra.mxu0 0.0
        %2055 = vmatprep.subr.mxu0 0.0
        %2056 = vmatpush1.msra.mxu0 0.0
        %2057 = vmatprep.subr.mxu0 0.0
        %2058 = vmatpush1.msra.mxu0 0.0
        %2059 = vmatprep.subr.mxu0 0.0
        %2060 = vmatpush1.msra.mxu0 0.0
        %2061 = vmatprep.subr.mxu0 0.0
        %2062 = vmatpush1.msra.mxu0 0.0
        %2063 = vmatprep.subr.mxu0 0.0
        %2064 = vmatpush1.msra.mxu0 0.0
        %2065 = vmatprep.subr.mxu0 0.0
        %2066 = vmatpush1.msra.mxu0 0.0
        %2067 = vmatprep.subr.mxu0 0.0
        %2068 = vmatpush1.msra.mxu0 0.0
        %2069 = vmatprep.mubr.f32.mxu0 0.0
        %2070 = vmatmul.mubr.f32.gmra.mrb[0].mxu0 %v1499
        %v2071 = vpop.f32.mrb[0].mxu0
        %v2072 = vadd.f32 %v2001, %v2071
        %v2073 = vpop.f32.mrb[0].mxu0
        %v2074 = vadd.f32 %v2003, %v2073
        %2075 = vdwg.mxu0
        %2076 = vmatprep.subr.mxu0 %v575
        %2077 = vmatpush1.msra.mxu0 %v574
        %2078 = vmatprep.subr.mxu0 %v583
        %2079 = vmatpush1.msra.mxu0 %v582
        %2080 = vmatprep.subr.mxu0 %v591
        %2081 = vmatpush1.msra.mxu0 %v590
        %2082 = vmatprep.subr.mxu0 %v599
        %2083 = vmatpush1.msra.mxu0 %v598
        %2084 = vmatprep.subr.mxu0 %v607
        %2085 = vmatpush1.msra.mxu0 %v606
        %2086 = vmatprep.subr.mxu0 %v615
        %2087 = vmatpush1.msra.mxu0 %v614
        %2088 = vmatprep.subr.mxu0 %v623
        %2089 = vmatpush1.msra.mxu0 %v622
        %2090 = vmatprep.subr.mxu0 %v631
        %2091 = vmatpush1.msra.mxu0 %v630
        %2092 = vmatprep.subr.mxu0 %v639
        %2093 = vmatpush1.msra.mxu0 %v638
        %2094 = vmatprep.subr.mxu0 %v647
        %2095 = vmatpush1.msra.mxu0 %v646
        %2096 = vmatprep.subr.mxu0 %v655
        %2097 = vmatpush1.msra.mxu0 %v654
        %2098 = vmatprep.subr.mxu0 %v663
        %2099 = vmatpush1.msra.mxu0 %v662
        %2100 = vmatprep.subr.mxu0 %v671
        %2101 = vmatpush1.msra.mxu0 %v670
        %2102 = vmatprep.subr.mxu0 %v679
        %2103 = vmatpush1.msra.mxu0 %v678
        %2104 = vmatprep.subr.mxu0 %v687
        %2105 = vmatpush1.msra.mxu0 %v686
        %2106 = vmatprep.subr.mxu0 %v695
        %2107 = vmatpush1.msra.mxu0 %v694
        %2108 = vmatprep.subr.mxu0 %v703
        %2109 = vmatpush1.msra.mxu0 %v702
        %2110 = vmatprep.subr.mxu0 %v711
        %2111 = vmatpush1.msra.mxu0 %v710
        %2112 = vmatprep.subr.mxu0 %v719
        %2113 = vmatpush1.msra.mxu0 %v718
        %2114 = vmatprep.subr.mxu0 %v727
        %2115 = vmatpush1.msra.mxu0 %v726
        %2116 = vmatprep.subr.mxu0 %v735
        %2117 = vmatpush1.msra.mxu0 %v734
        %2118 = vmatprep.subr.mxu0 %v743
        %2119 = vmatpush1.msra.mxu0 %v742
        %2120 = vmatprep.subr.mxu0 %v751
        %2121 = vmatpush1.msra.mxu0 %v750
        %2122 = vmatprep.subr.mxu0 %v759
        %2123 = vmatpush1.msra.mxu0 %v758
        %2124 = vmatprep.subr.mxu0 %v767
        %2125 = vmatpush1.msra.mxu0 %v766
        %2126 = vmatprep.subr.mxu0 %v775
        %2127 = vmatpush1.msra.mxu0 %v774
        %2128 = vmatprep.subr.mxu0 %v783
        %2129 = vmatpush1.msra.mxu0 %v782
        %2130 = vmatprep.subr.mxu0 %v791
        %2131 = vmatpush1.msra.mxu0 %v790
        %2132 = vmatprep.subr.mxu0 %v799
        %2133 = vmatpush1.msra.mxu0 %v798
        %2134 = vmatprep.subr.mxu0 %v807
        %2135 = vmatpush1.msra.mxu0 %v806
        %2136 = vmatprep.subr.mxu0 %v815
        %2137 = vmatpush1.msra.mxu0 %v814
        %2138 = vmatprep.subr.mxu0 %v823
        %2139 = vmatpush1.msra.mxu0 %v822
        %2140 = vmatprep.mubr.f32.mxu0 %v1483
        %2141 = vmatmul.mubr.f32.gmra.mrb[0].mxu0 %v1475
        %v2142 = vpop.f32.mrb[0].mxu0
        %v2143 = vadd.f32 0.0, %v2142
        %v2144 = vpop.f32.mrb[0].mxu0
        %v2145 = vadd.f32 0.0, %v2144
        %2146 = vdwg.mxu0
        %2147 = vmatprep.subr.mxu0 %v831
        %2148 = vmatpush1.msra.mxu0 %v830
        %2149 = vmatprep.subr.mxu0 %v839
        %2150 = vmatpush1.msra.mxu0 %v838
        %2151 = vmatprep.subr.mxu0 %v847
        %2152 = vmatpush1.msra.mxu0 %v846
        %2153 = vmatprep.subr.mxu0 %v855
        %2154 = vmatpush1.msra.mxu0 %v854
        %2155 = vmatprep.subr.mxu0 %v863
        %2156 = vmatpush1.msra.mxu0 %v862
        %2157 = vmatprep.subr.mxu0 %v871
        %2158 = vmatpush1.msra.mxu0 %v870
        %2159 = vmatprep.subr.mxu0 %v879
        %2160 = vmatpush1.msra.mxu0 %v878
        %2161 = vmatprep.subr.mxu0 %v887
        %2162 = vmatpush1.msra.mxu0 %v886
        %2163 = vmatprep.subr.mxu0 %v895
        %2164 = vmatpush1.msra.mxu0 %v894
        %2165 = vmatprep.subr.mxu0 %v903
        %2166 = vmatpush1.msra.mxu0 %v902
        %2167 = vmatprep.subr.mxu0 %v911
        %2168 = vmatpush1.msra.mxu0 %v910
        %2169 = vmatprep.subr.mxu0 %v919
        %2170 = vmatpush1.msra.mxu0 %v918
        %2171 = vmatprep.subr.mxu0 %v927
        %2172 = vmatpush1.msra.mxu0 %v926
        %2173 = vmatprep.subr.mxu0 %v935
        %2174 = vmatpush1.msra.mxu0 %v934
        %2175 = vmatprep.subr.mxu0 %v943
        %2176 = vmatpush1.msra.mxu0 %v942
        %2177 = vmatprep.subr.mxu0 %v951
        %2178 = vmatpush1.msra.mxu0 %v950
        %2179 = vmatprep.subr.mxu0 %v959
        %2180 = vmatpush1.msra.mxu0 %v958
        %2181 = vmatprep.subr.mxu0 %v967
        %2182 = vmatpush1.msra.mxu0 %v966
        %2183 = vmatprep.subr.mxu0 %v975
        %2184 = vmatpush1.msra.mxu0 %v974
        %2185 = vmatprep.subr.mxu0 %v983
        %2186 = vmatpush1.msra.mxu0 %v982
        %2187 = vmatprep.subr.mxu0 %v991
        %2188 = vmatpush1.msra.mxu0 %v990
        %2189 = vmatprep.subr.mxu0 %v999
        %2190 = vmatpush1.msra.mxu0 %v998
        %2191 = vmatprep.subr.mxu0 %v1007
        %2192 = vmatpush1.msra.mxu0 %v1006
        %2193 = vmatprep.subr.mxu0 %v1015
        %2194 = vmatpush1.msra.mxu0 %v1014
        %2195 = vmatprep.subr.mxu0 %v1023
        %2196 = vmatpush1.msra.mxu0 %v1022
        %2197 = vmatprep.subr.mxu0 %v1031
        %2198 = vmatpush1.msra.mxu0 %v1030
        %2199 = vmatprep.subr.mxu0 %v1039
        %2200 = vmatpush1.msra.mxu0 %v1038
        %2201 = vmatprep.subr.mxu0 %v1047
        %2202 = vmatpush1.msra.mxu0 %v1046
        %2203 = vmatprep.subr.mxu0 %v1055
        %2204 = vmatpush1.msra.mxu0 %v1054
        %2205 = vmatprep.subr.mxu0 %v1063
        %2206 = vmatpush1.msra.mxu0 %v1062
        %2207 = vmatprep.subr.mxu0 %v1071
        %2208 = vmatpush1.msra.mxu0 %v1070
        %2209 = vmatprep.subr.mxu0 %v1079
        %2210 = vmatpush1.msra.mxu0 %v1078
        %2211 = vmatprep.mubr.f32.mxu0 %v1484
        %2212 = vmatmul.mubr.f32.gmra.mrb[0].mxu0 %v1482
        %v2213 = vpop.f32.mrb[0].mxu0
        %v2214 = vadd.f32 %v2143, %v2213
        %v2215 = vpop.f32.mrb[0].mxu0
        %v2216 = vadd.f32 %v2145, %v2215
        %2217 = vdwg.mxu0
        %2218 = vmatprep.subr.mxu0 %v1087
        %2219 = vmatpush1.msra.mxu0 %v1086
        %2220 = vmatprep.subr.mxu0 %v1095
        %2221 = vmatpush1.msra.mxu0 %v1094
        %2222 = vmatprep.subr.mxu0 %v1103
        %2223 = vmatpush1.msra.mxu0 %v1102
        %2224 = vmatprep.subr.mxu0 %v1111
        %2225 = vmatpush1.msra.mxu0 %v1110
        %2226 = vmatprep.subr.mxu0 %v1119
        %2227 = vmatpush1.msra.mxu0 %v1118
        %2228 = vmatprep.subr.mxu0 %v1127
        %2229 = vmatpush1.msra.mxu0 %v1126
        %2230 = vmatprep.subr.mxu0 %v1135
        %2231 = vmatpush1.msra.mxu0 %v1134
        %2232 = vmatprep.subr.mxu0 %v1143
        %2233 = vmatpush1.msra.mxu0 %v1142
        %2234 = vmatprep.subr.mxu0 %v1151
        %2235 = vmatpush1.msra.mxu0 %v1150
        %2236 = vmatprep.subr.mxu0 %v1159
        %2237 = vmatpush1.msra.mxu0 %v1158
        %2238 = vmatprep.subr.mxu0 %v1167
        %2239 = vmatpush1.msra.mxu0 %v1166
        %2240 = vmatprep.subr.mxu0 %v1175
        %2241 = vmatpush1.msra.mxu0 %v1174
        %2242 = vmatprep.subr.mxu0 %v1183
        %2243 = vmatpush1.msra.mxu0 %v1182
        %2244 = vmatprep.subr.mxu0 %v1191
        %2245 = vmatpush1.msra.mxu0 %v1190
        %2246 = vmatprep.subr.mxu0 %v1199
        %2247 = vmatpush1.msra.mxu0 %v1198
        %2248 = vmatprep.subr.mxu0 %v1207
        %2249 = vmatpush1.msra.mxu0 %v1206
        %2250 = vmatprep.subr.mxu0 %v1215
        %2251 = vmatpush1.msra.mxu0 %v1214
        %2252 = vmatprep.subr.mxu0 %v1223
        %2253 = vmatpush1.msra.mxu0 %v1222
        %2254 = vmatprep.subr.mxu0 %v1231
        %2255 = vmatpush1.msra.mxu0 %v1230
        %2256 = vmatprep.subr.mxu0 %v1239
        %2257 = vmatpush1.msra.mxu0 %v1238
        %2258 = vmatprep.subr.mxu0 %v1247
        %2259 = vmatpush1.msra.mxu0 %v1246
        %2260 = vmatprep.subr.mxu0 %v1255
        %2261 = vmatpush1.msra.mxu0 %v1254
        %2262 = vmatprep.subr.mxu0 %v1263
        %2263 = vmatpush1.msra.mxu0 %v1262
        %2264 = vmatprep.subr.mxu0 %v1271
        %2265 = vmatpush1.msra.mxu0 %v1270
        %2266 = vmatprep.subr.mxu0 %v1279
        %2267 = vmatpush1.msra.mxu0 %v1278
        %2268 = vmatprep.subr.mxu0 %v1287
        %2269 = vmatpush1.msra.mxu0 %v1286
        %2270 = vmatprep.subr.mxu0 %v1295
        %2271 = vmatpush1.msra.mxu0 %v1294
        %2272 = vmatprep.subr.mxu0 %v1303
        %2273 = vmatpush1.msra.mxu0 %v1302
        %2274 = vmatprep.subr.mxu0 %v1311
        %2275 = vmatpush1.msra.mxu0 %v1310
        %2276 = vmatprep.subr.mxu0 %v1319
        %2277 = vmatpush1.msra.mxu0 %v1318
        %2278 = vmatprep.subr.mxu0 %v1327
        %2279 = vmatpush1.msra.mxu0 %v1326
        %2280 = vmatprep.subr.mxu0 %v1335
        %2281 = vmatpush1.msra.mxu0 %v1334
        %2282 = vmatprep.mubr.f32.mxu0 %v1500
        %2283 = vmatmul.mubr.f32.gmra.mrb[0].mxu0 %v1492
        %v2284 = vpop.f32.mrb[0].mxu0
        %v2285 = vadd.f32 %v2214, %v2284
        %v2286 = vpop.f32.mrb[0].mxu0
        %v2287 = vadd.f32 %v2216, %v2286
        %2288 = vdwg.mxu0
        %2289 = vmatprep.subr.mxu0 %v1343
        %2290 = vmatpush1.msra.mxu0 %v1342
        %2291 = vmatprep.subr.mxu0 %v1351
        %2292 = vmatpush1.msra.mxu0 %v1350
        %2293 = vmatprep.subr.mxu0 %v1359
        %2294 = vmatpush1.msra.mxu0 %v1358
        %2295 = vmatprep.subr.mxu0 %v1367
        %2296 = vmatpush1.msra.mxu0 %v1366
        %2297 = vmatprep.subr.mxu0 %v1375
        %2298 = vmatpush1.msra.mxu0 %v1374
        %2299 = vmatprep.subr.mxu0 %v1383
        %2300 = vmatpush1.msra.mxu0 %v1382
        %2301 = vmatprep.subr.mxu0 %v1391
        %2302 = vmatpush1.msra.mxu0 %v1390
        %2303 = vmatprep.subr.mxu0 %v1399
        %2304 = vmatpush1.msra.mxu0 %v1398
        %2305 = vmatprep.subr.mxu0 %v1407
        %2306 = vmatpush1.msra.mxu0 %v1406
        %2307 = vmatprep.subr.mxu0 %v1415
        %2308 = vmatpush1.msra.mxu0 %v1414
        %2309 = vmatprep.subr.mxu0 %v1423
        %2310 = vmatpush1.msra.mxu0 %v1422
        %2311 = vmatprep.subr.mxu0 %v1431
        %2312 = vmatpush1.msra.mxu0 %v1430
        %2313 = vmatprep.subr.mxu0 %v1439
        %2314 = vmatpush1.msra.mxu0 %v1438
        %2315 = vmatprep.subr.mxu0 %v1447
        %2316 = vmatpush1.msra.mxu0 %v1446
        %2317 = vmatprep.subr.mxu0 %v1455
        %2318 = vmatpush1.msra.mxu0 %v1454
        %2319 = vmatprep.subr.mxu0 %v1463
        %2320 = vmatpush1.msra.mxu0 %v1462
        %2321 = vmatprep.subr.mxu0 0.0
        %2322 = vmatpush1.msra.mxu0 0.0
        %2323 = vmatprep.subr.mxu0 0.0
        %2324 = vmatpush1.msra.mxu0 0.0
        %2325 = vmatprep.subr.mxu0 0.0
        %2326 = vmatpush1.msra.mxu0 0.0
        %2327 = vmatprep.subr.mxu0 0.0
        %2328 = vmatpush1.msra.mxu0 0.0
        %2329 = vmatprep.subr.mxu0 0.0
        %2330 = vmatpush1.msra.mxu0 0.0
        %2331 = vmatprep.subr.mxu0 0.0
        %2332 = vmatpush1.msra.mxu0 0.0
        %2333 = vmatprep.subr.mxu0 0.0
        %2334 = vmatpush1.msra.mxu0 0.0
        %2335 = vmatprep.subr.mxu0 0.0
        %2336 = vmatpush1.msra.mxu0 0.0
        %2337 = vmatprep.subr.mxu0 0.0
        %2338 = vmatpush1.msra.mxu0 0.0
        %2339 = vmatprep.subr.mxu0 0.0
        %2340 = vmatpush1.msra.mxu0 0.0
        %2341 = vmatprep.subr.mxu0 0.0
        %2342 = vmatpush1.msra.mxu0 0.0
        %2343 = vmatprep.subr.mxu0 0.0
        %2344 = vmatpush1.msra.mxu0 0.0
        %2345 = vmatprep.subr.mxu0 0.0
        %2346 = vmatpush1.msra.mxu0 0.0
        %2347 = vmatprep.subr.mxu0 0.0
        %2348 = vmatpush1.msra.mxu0 0.0
        %2349 = vmatprep.subr.mxu0 0.0
        %2350 = vmatpush1.msra.mxu0 0.0
        %2351 = vmatprep.subr.mxu0 0.0
        %2352 = vmatpush1.msra.mxu0 0.0
        %2353 = vmatprep.mubr.f32.mxu0 0.0
        %2354 = vmatmul.mubr.f32.gmra.mrb[0].mxu0 %v1499
        %v2355 = vpop.f32.mrb[0].mxu0
        %v2356 = vadd.f32 %v2285, %v2355
        %v2357 = vpop.f32.mrb[0].mxu0
        %v2358 = vadd.f32 %v2287, %v2357
        %2359 = vdwg.mxu0
        %2360 = vmatprep.subr.mxu0 %v577
        %2361 = vmatpush1.msra.mxu0 %v576
        %2362 = vmatprep.subr.mxu0 %v585
        %2363 = vmatpush1.msra.mxu0 %v584
        %2364 = vmatprep.subr.mxu0 %v593
        %2365 = vmatpush1.msra.mxu0 %v592
        %2366 = vmatprep.subr.mxu0 %v601
        %2367 = vmatpush1.msra.mxu0 %v600
        %2368 = vmatprep.subr.mxu0 %v609
        %2369 = vmatpush1.msra.mxu0 %v608
        %2370 = vmatprep.subr.mxu0 %v617
        %2371 = vmatpush1.msra.mxu0 %v616
        %2372 = vmatprep.subr.mxu0 %v625
        %2373 = vmatpush1.msra.mxu0 %v624
        %2374 = vmatprep.subr.mxu0 %v633
        %2375 = vmatpush1.msra.mxu0 %v632
        %2376 = vmatprep.subr.mxu0 %v641
        %2377 = vmatpush1.msra.mxu0 %v640
        %2378 = vmatprep.subr.mxu0 %v649
        %2379 = vmatpush1.msra.mxu0 %v648
        %2380 = vmatprep.subr.mxu0 %v657
        %2381 = vmatpush1.msra.mxu0 %v656
        %2382 = vmatprep.subr.mxu0 %v665
        %2383 = vmatpush1.msra.mxu0 %v664
        %2384 = vmatprep.subr.mxu0 %v673
        %2385 = vmatpush1.msra.mxu0 %v672
        %2386 = vmatprep.subr.mxu0 %v681
        %2387 = vmatpush1.msra.mxu0 %v680
        %2388 = vmatprep.subr.mxu0 %v689
        %2389 = vmatpush1.msra.mxu0 %v688
        %2390 = vmatprep.subr.mxu0 %v697
        %2391 = vmatpush1.msra.mxu0 %v696
        %2392 = vmatprep.subr.mxu0 %v705
        %2393 = vmatpush1.msra.mxu0 %v704
        %2394 = vmatprep.subr.mxu0 %v713
        %2395 = vmatpush1.msra.mxu0 %v712
        %2396 = vmatprep.subr.mxu0 %v721
        %2397 = vmatpush1.msra.mxu0 %v720
        %2398 = vmatprep.subr.mxu0 %v729
        %2399 = vmatpush1.msra.mxu0 %v728
        %2400 = vmatprep.subr.mxu0 %v737
        %2401 = vmatpush1.msra.mxu0 %v736
        %2402 = vmatprep.subr.mxu0 %v745
        %2403 = vmatpush1.msra.mxu0 %v744
        %2404 = vmatprep.subr.mxu0 %v753
        %2405 = vmatpush1.msra.mxu0 %v752
        %2406 = vmatprep.subr.mxu0 %v761
        %2407 = vmatpush1.msra.mxu0 %v760
        %2408 = vmatprep.subr.mxu0 %v769
        %2409 = vmatpush1.msra.mxu0 %v768
        %2410 = vmatprep.subr.mxu0 %v777
        %2411 = vmatpush1.msra.mxu0 %v776
        %2412 = vmatprep.subr.mxu0 %v785
        %2413 = vmatpush1.msra.mxu0 %v784
        %2414 = vmatprep.subr.mxu0 %v793
        %2415 = vmatpush1.msra.mxu0 %v792
        %2416 = vmatprep.subr.mxu0 %v801
        %2417 = vmatpush1.msra.mxu0 %v800
        %2418 = vmatprep.subr.mxu0 %v809
        %2419 = vmatpush1.msra.mxu0 %v808
        %2420 = vmatprep.subr.mxu0 %v817
        %2421 = vmatpush1.msra.mxu0 %v816
        %2422 = vmatprep.subr.mxu0 %v825
        %2423 = vmatpush1.msra.mxu0 %v824
        %2424 = vmatprep.mubr.f32.mxu0 %v1483
        %2425 = vmatmul.mubr.f32.gmra.mrb[0].mxu0 %v1475
        %v2426 = vpop.f32.mrb[0].mxu0
        %v2427 = vadd.f32 0.0, %v2426
        %v2428 = vpop.f32.mrb[0].mxu0
        %v2429 = vadd.f32 0.0, %v2428
        %2430 = vdwg.mxu0
        %2431 = vmatprep.subr.mxu0 %v833
        %2432 = vmatpush1.msra.mxu0 %v832
        %2433 = vmatprep.subr.mxu0 %v841
        %2434 = vmatpush1.msra.mxu0 %v840
        %2435 = vmatprep.subr.mxu0 %v849
        %2436 = vmatpush1.msra.mxu0 %v848
        %2437 = vmatprep.subr.mxu0 %v857
        %2438 = vmatpush1.msra.mxu0 %v856
        %2439 = vmatprep.subr.mxu0 %v865
        %2440 = vmatpush1.msra.mxu0 %v864
        %2441 = vmatprep.subr.mxu0 %v873
        %2442 = vmatpush1.msra.mxu0 %v872
        %2443 = vmatprep.subr.mxu0 %v881
        %2444 = vmatpush1.msra.mxu0 %v880
        %2445 = vmatprep.subr.mxu0 %v889
        %2446 = vmatpush1.msra.mxu0 %v888
        %2447 = vmatprep.subr.mxu0 %v897
        %2448 = vmatpush1.msra.mxu0 %v896
        %2449 = vmatprep.subr.mxu0 %v905
        %2450 = vmatpush1.msra.mxu0 %v904
        %2451 = vmatprep.subr.mxu0 %v913
        %2452 = vmatpush1.msra.mxu0 %v912
        %2453 = vmatprep.subr.mxu0 %v921
        %2454 = vmatpush1.msra.mxu0 %v920
        %2455 = vmatprep.subr.mxu0 %v929
        %2456 = vmatpush1.msra.mxu0 %v928
        %2457 = vmatprep.subr.mxu0 %v937
        %2458 = vmatpush1.msra.mxu0 %v936
        %2459 = vmatprep.subr.mxu0 %v945
        %2460 = vmatpush1.msra.mxu0 %v944
        %2461 = vmatprep.subr.mxu0 %v953
        %2462 = vmatpush1.msra.mxu0 %v952
        %2463 = vmatprep.subr.mxu0 %v961
        %2464 = vmatpush1.msra.mxu0 %v960
        %2465 = vmatprep.subr.mxu0 %v969
        %2466 = vmatpush1.msra.mxu0 %v968
        %2467 = vmatprep.subr.mxu0 %v977
        %2468 = vmatpush1.msra.mxu0 %v976
        %2469 = vmatprep.subr.mxu0 %v985
        %2470 = vmatpush1.msra.mxu0 %v984
        %2471 = vmatprep.subr.mxu0 %v993
        %2472 = vmatpush1.msra.mxu0 %v992
        %2473 = vmatprep.subr.mxu0 %v1001
        %2474 = vmatpush1.msra.mxu0 %v1000
        %2475 = vmatprep.subr.mxu0 %v1009
        %2476 = vmatpush1.msra.mxu0 %v1008
        %2477 = vmatprep.subr.mxu0 %v1017
        %2478 = vmatpush1.msra.mxu0 %v1016
        %2479 = vmatprep.subr.mxu0 %v1025
        %2480 = vmatpush1.msra.mxu0 %v1024
        %2481 = vmatprep.subr.mxu0 %v1033
        %2482 = vmatpush1.msra.mxu0 %v1032
        %2483 = vmatprep.subr.mxu0 %v1041
        %2484 = vmatpush1.msra.mxu0 %v1040
        %2485 = vmatprep.subr.mxu0 %v1049
        %2486 = vmatpush1.msra.mxu0 %v1048
        %2487 = vmatprep.subr.mxu0 %v1057
        %2488 = vmatpush1.msra.mxu0 %v1056
        %2489 = vmatprep.subr.mxu0 %v1065
        %2490 = vmatpush1.msra.mxu0 %v1064
        %2491 = vmatprep.subr.mxu0 %v1073
        %2492 = vmatpush1.msra.mxu0 %v1072
        %2493 = vmatprep.subr.mxu0 %v1081
        %2494 = vmatpush1.msra.mxu0 %v1080
        %2495 = vmatprep.mubr.f32.mxu0 %v1484
        %2496 = vmatmul.mubr.f32.gmra.mrb[0].mxu0 %v1482
        %v2497 = vpop.f32.mrb[0].mxu0
        %v2498 = vadd.f32 %v2427, %v2497
        %v2499 = vpop.f32.mrb[0].mxu0
        %v2500 = vadd.f32 %v2429, %v2499
        %2501 = vdwg.mxu0
        %2502 = vmatprep.subr.mxu0 %v1089
        %2503 = vmatpush1.msra.mxu0 %v1088
        %2504 = vmatprep.subr.mxu0 %v1097
        %2505 = vmatpush1.msra.mxu0 %v1096
        %2506 = vmatprep.subr.mxu0 %v1105
        %2507 = vmatpush1.msra.mxu0 %v1104
        %2508 = vmatprep.subr.mxu0 %v1113
        %2509 = vmatpush1.msra.mxu0 %v1112
        %2510 = vmatprep.subr.mxu0 %v1121
        %2511 = vmatpush1.msra.mxu0 %v1120
        %2512 = vmatprep.subr.mxu0 %v1129
        %2513 = vmatpush1.msra.mxu0 %v1128
        %2514 = vmatprep.subr.mxu0 %v1137
        %2515 = vmatpush1.msra.mxu0 %v1136
        %2516 = vmatprep.subr.mxu0 %v1145
        %2517 = vmatpush1.msra.mxu0 %v1144
        %2518 = vmatprep.subr.mxu0 %v1153
        %2519 = vmatpush1.msra.mxu0 %v1152
        %2520 = vmatprep.subr.mxu0 %v1161
        %2521 = vmatpush1.msra.mxu0 %v1160
        %2522 = vmatprep.subr.mxu0 %v1169
        %2523 = vmatpush1.msra.mxu0 %v1168
        %2524 = vmatprep.subr.mxu0 %v1177
        %2525 = vmatpush1.msra.mxu0 %v1176
        %2526 = vmatprep.subr.mxu0 %v1185
        %2527 = vmatpush1.msra.mxu0 %v1184
        %2528 = vmatprep.subr.mxu0 %v1193
        %2529 = vmatpush1.msra.mxu0 %v1192
        %2530 = vmatprep.subr.mxu0 %v1201
        %2531 = vmatpush1.msra.mxu0 %v1200
        %2532 = vmatprep.subr.mxu0 %v1209
        %2533 = vmatpush1.msra.mxu0 %v1208
        %2534 = vmatprep.subr.mxu0 %v1217
        %2535 = vmatpush1.msra.mxu0 %v1216
        %2536 = vmatprep.subr.mxu0 %v1225
        %2537 = vmatpush1.msra.mxu0 %v1224
        %2538 = vmatprep.subr.mxu0 %v1233
        %2539 = vmatpush1.msra.mxu0 %v1232
        %2540 = vmatprep.subr.mxu0 %v1241
        %2541 = vmatpush1.msra.mxu0 %v1240
        %2542 = vmatprep.subr.mxu0 %v1249
        %2543 = vmatpush1.msra.mxu0 %v1248
        %2544 = vmatprep.subr.mxu0 %v1257
        %2545 = vmatpush1.msra.mxu0 %v1256
        %2546 = vmatprep.subr.mxu0 %v1265
        %2547 = vmatpush1.msra.mxu0 %v1264
        %2548 = vmatprep.subr.mxu0 %v1273
        %2549 = vmatpush1.msra.mxu0 %v1272
        %2550 = vmatprep.subr.mxu0 %v1281
        %2551 = vmatpush1.msra.mxu0 %v1280
        %2552 = vmatprep.subr.mxu0 %v1289
        %2553 = vmatpush1.msra.mxu0 %v1288
        %2554 = vmatprep.subr.mxu0 %v1297
        %2555 = vmatpush1.msra.mxu0 %v1296
        %2556 = vmatprep.subr.mxu0 %v1305
        %2557 = vmatpush1.msra.mxu0 %v1304
        %2558 = vmatprep.subr.mxu0 %v1313
        %2559 = vmatpush1.msra.mxu0 %v1312
        %2560 = vmatprep.subr.mxu0 %v1321
        %2561 = vmatpush1.msra.mxu0 %v1320
        %2562 = vmatprep.subr.mxu0 %v1329
        %2563 = vmatpush1.msra.mxu0 %v1328
        %2564 = vmatprep.subr.mxu0 %v1337
        %2565 = vmatpush1.msra.mxu0 %v1336
        %2566 = vmatprep.mubr.f32.mxu0 %v1500
        %2567 = vmatmul.mubr.f32.gmra.mrb[0].mxu0 %v1492
        %v2568 = vpop.f32.mrb[0].mxu0
        %v2569 = vadd.f32 %v2498, %v2568
        %v2570 = vpop.f32.mrb[0].mxu0
        %v2571 = vadd.f32 %v2500, %v2570
        %2572 = vdwg.mxu0
        %2573 = vmatprep.subr.mxu0 %v1345
        %2574 = vmatpush1.msra.mxu0 %v1344
        %2575 = vmatprep.subr.mxu0 %v1353
        %2576 = vmatpush1.msra.mxu0 %v1352
        %2577 = vmatprep.subr.mxu0 %v1361
        %2578 = vmatpush1.msra.mxu0 %v1360
        %2579 = vmatprep.subr.mxu0 %v1369
        %2580 = vmatpush1.msra.mxu0 %v1368
        %2581 = vmatprep.subr.mxu0 %v1377
        %2582 = vmatpush1.msra.mxu0 %v1376
        %2583 = vmatprep.subr.mxu0 %v1385
        %2584 = vmatpush1.msra.mxu0 %v1384
        %2585 = vmatprep.subr.mxu0 %v1393
        %2586 = vmatpush1.msra.mxu0 %v1392
        %2587 = vmatprep.subr.mxu0 %v1401
        %2588 = vmatpush1.msra.mxu0 %v1400
        %2589 = vmatprep.subr.mxu0 %v1409
        %2590 = vmatpush1.msra.mxu0 %v1408
        %2591 = vmatprep.subr.mxu0 %v1417
        %2592 = vmatpush1.msra.mxu0 %v1416
        %2593 = vmatprep.subr.mxu0 %v1425
        %2594 = vmatpush1.msra.mxu0 %v1424
        %2595 = vmatprep.subr.mxu0 %v1433
        %2596 = vmatpush1.msra.mxu0 %v1432
        %2597 = vmatprep.subr.mxu0 %v1441
        %2598 = vmatpush1.msra.mxu0 %v1440
        %2599 = vmatprep.subr.mxu0 %v1449
        %2600 = vmatpush1.msra.mxu0 %v1448
        %2601 = vmatprep.subr.mxu0 %v1457
        %2602 = vmatpush1.msra.mxu0 %v1456
        %2603 = vmatprep.subr.mxu0 %v1465
        %2604 = vmatpush1.msra.mxu0 %v1464
        %2605 = vmatprep.subr.mxu0 0.0
        %2606 = vmatpush1.msra.mxu0 0.0
        %2607 = vmatprep.subr.mxu0 0.0
        %2608 = vmatpush1.msra.mxu0 0.0
        %2609 = vmatprep.subr.mxu0 0.0
        %2610 = vmatpush1.msra.mxu0 0.0
        %2611 = vmatprep.subr.mxu0 0.0
        %2612 = vmatpush1.msra.mxu0 0.0
        %2613 = vmatprep.subr.mxu0 0.0
        %2614 = vmatpush1.msra.mxu0 0.0
        %2615 = vmatprep.subr.mxu0 0.0
        %2616 = vmatpush1.msra.mxu0 0.0
        %2617 = vmatprep.subr.mxu0 0.0
        %2618 = vmatpush1.msra.mxu0 0.0
        %2619 = vmatprep.subr.mxu0 0.0
        %2620 = vmatpush1.msra.mxu0 0.0
        %2621 = vmatprep.subr.mxu0 0.0
        %2622 = vmatpush1.msra.mxu0 0.0
        %2623 = vmatprep.subr.mxu0 0.0
        %2624 = vmatpush1.msra.mxu0 0.0
        %2625 = vmatprep.subr.mxu0 0.0
        %2626 = vmatpush1.msra.mxu0 0.0
        %2627 = vmatprep.subr.mxu0 0.0
        %2628 = vmatpush1.msra.mxu0 0.0
        %2629 = vmatprep.subr.mxu0 0.0
        %2630 = vmatpush1.msra.mxu0 0.0
        %2631 = vmatprep.subr.mxu0 0.0
        %2632 = vmatpush1.msra.mxu0 0.0
        %2633 = vmatprep.subr.mxu0 0.0
        %2634 = vmatpush1.msra.mxu0 0.0
        %2635 = vmatprep.subr.mxu0 0.0
        %2636 = vmatpush1.msra.mxu0 0.0
        %2637 = vmatprep.mubr.f32.mxu0 0.0
        %2638 = vmatmul.mubr.f32.gmra.mrb[0].mxu0 %v1499
        %v2639 = vpop.f32.mrb[0].mxu0
        %v2640 = vadd.f32 %v2569, %v2639
        %v2641 = vpop.f32.mrb[0].mxu0
        %v2642 = vadd.f32 %v2571, %v2641
        %2643 = vdwg.mxu0
        %v2652 = vcombine.low %v1788, %v1790
        %v2653 = vcombine.low %v2072, %v2074
        %v2655 = vunpack.c.l.s4 1983009808
        %v2656 = vunpack.c.0.s8 %v2655
        %v2657 = vlaneseq
        %v2658 = vshrl.u32 %v2657, 7
        %v2659 = vsub.s32 %v2656, %v2658
        %v2660 = vrot.slane %v2652, %v2659
        %v2662 = vunpack.c.l.s4 1983009808
        %v2663 = vunpack.c.0.s8 %v2662
        %v2664 = vlaneseq
        %v2665 = vshrl.u32 %v2664, 7
        %v2666 = vsub.s32 %v2663, %v2665
        %v2667 = vrot.slane %v2653, %v2666
        %v2668 = vcombine.low %v2660, %v2667
        %v2669 = vcombine.low %v2356, %v2358
        %v2670 = vcombine.low %v2640, %v2642
        %v2672 = vunpack.c.l.s4 1983009808
        %v2673 = vunpack.c.0.s8 %v2672
        %v2674 = vlaneseq
        %v2675 = vshrl.u32 %v2674, 7
        %v2676 = vsub.s32 %v2673, %v2675
        %v2677 = vrot.slane %v2669, %v2676
        %v2679 = vunpack.c.l.s4 1983009808
        %v2680 = vunpack.c.0.s8 %v2679
        %v2681 = vlaneseq
        %v2682 = vshrl.u32 %v2681, 7
        %v2683 = vsub.s32 %v2680, %v2682
        %v2684 = vrot.slane %v2670, %v2683
        %v2685 = vcombine.low %v2677, %v2684
        %v2688 = vadd.f32 %v566, %v2668
        %v2689 = vadd.f32 %v567, %v2685
        %2690 = vst [vmem:[#allocation2] sm:$0xff] %v2688
        %2691 = vst [vmem:[#allocation2 + $0x8] sm:$0xff] %v2689
        %p2692 = scmp.eq.s32.totalorder %s34, 6
        // Predicated region
        $region109: #{netD_forward.5} parent=63 // pred_check
          %p2693 = pneg %p2692
        $region110: #{netD_forward.5} parent=63 // pred_check_branch
          %2695 = sbr.rel (%p2693) target = $region112
        $region111: #{netD_forward.5} parent=63 // pred_region
          %v2696 = vld [vmem:[#allocation2] sm:$0xff]
          %v2697 = vld [vmem:[#allocation2 + $0x8] sm:$0xff]
          %v2698 = vld [vmem:[#allocation6] sm:$0xff]
          %v2700 = vlaneseq
          %v2701 = vshrl.u32 %v2700, 7
          %v2702 = vsub.s32 0, %v2701
          %v2703 = vrot.slane %v2698, %v2702
          %v2704 = vlaneseq
          %v2705 = vshrl.u32 %v2704, 7
          %v2706 = vsub.s32 1, %v2705
          %v2707 = vrot.slane %v2698, %v2706
          %v2708 = vlaneseq
          %v2709 = vshrl.u32 %v2708, 7
          %v2710 = vsub.s32 2, %v2709
          %v2711 = vrot.slane %v2698, %v2710
          %v2712 = vlaneseq
          %v2713 = vshrl.u32 %v2712, 7
          %v2714 = vsub.s32 3, %v2713
          %v2715 = vrot.slane %v2698, %v2714
          %v2716 = vlaneseq
          %v2717 = vshrl.u32 %v2716, 7
          %v2718 = vsub.s32 4, %v2717
          %v2719 = vrot.slane %v2698, %v2718
          %v2720 = vlaneseq
          %v2721 = vshrl.u32 %v2720, 7
          %v2722 = vsub.s32 5, %v2721
          %v2723 = vrot.slane %v2698, %v2722
          %v2724 = vlaneseq
          %v2725 = vshrl.u32 %v2724, 7
          %v2726 = vsub.s32 6, %v2725
          %v2727 = vrot.slane %v2698, %v2726
          %v2728 = vlaneseq
          %v2729 = vshrl.u32 %v2728, 7
          %v2730 = vsub.s32 7, %v2729
          %v2731 = vrot.slane %v2698, %v2730
          %v2732 = vcombine.low %v2703, %v2707
          %v2733 = vcombine.low %v2711, %v2715
          %v2735 = vunpack.c.l.s4 1983009808
          %v2736 = vunpack.c.0.s8 %v2735
          %v2737 = vlaneseq
          %v2738 = vshrl.u32 %v2737, 7
          %v2739 = vsub.s32 %v2736, %v2738
          %v2740 = vrot.slane %v2732, %v2739
          %v2742 = vunpack.c.l.s4 1983009808
          %v2743 = vunpack.c.0.s8 %v2742
          %v2744 = vlaneseq
          %v2745 = vshrl.u32 %v2744, 7
          %v2746 = vsub.s32 %v2743, %v2745
          %v2747 = vrot.slane %v2733, %v2746
          %v2748 = vcombine.low %v2740, %v2747
          %v2749 = vcombine.low %v2719, %v2723
          %v2750 = vcombine.low %v2727, %v2731
          %v2752 = vunpack.c.l.s4 1983009808
          %v2753 = vunpack.c.0.s8 %v2752
          %v2754 = vlaneseq
          %v2755 = vshrl.u32 %v2754, 7
          %v2756 = vsub.s32 %v2753, %v2755
          %v2757 = vrot.slane %v2749, %v2756
          %v2759 = vunpack.c.l.s4 1983009808
          %v2760 = vunpack.c.0.s8 %v2759
          %v2761 = vlaneseq
          %v2762 = vshrl.u32 %v2761, 7
          %v2763 = vsub.s32 %v2760, %v2762
          %v2764 = vrot.slane %v2750, %v2763
          %v2765 = vcombine.low %v2757, %v2764
          %v2768 = vadd.f32 %v2696, %v2748
          %v2769 = vadd.f32 %v2697, %v2765
          %v2772 = vcombine.high %v2768, %v2768
          %v2774 = vunpack.c.l.s4 1983009808
          %v2775 = vunpack.c.0.s8 %v2774
          %v2776 = vlaneseq
          %v2777 = vshrl.u32 %v2776, 7
          %v2778 = vsub.s32 %v2775, %v2777
          %v2779 = vrot.slane %v2768, %v2778
          %v2781 = vunpack.c.l.s4 1983009808
          %v2782 = vunpack.c.0.s8 %v2781
          %v2783 = vlaneseq
          %v2784 = vshrl.u32 %v2783, 7
          %v2785 = vsub.s32 %v2782, %v2784
          %v2786 = vrot.slane %v2772, %v2785
          %v2787 = vcombine.high %v2779, %v2779
          %v2788 = vcombine.high %v2786, %v2786
          %v2789 = vcombine.high %v2769, %v2769
          %v2791 = vunpack.c.l.s4 1983009808
          %v2792 = vunpack.c.0.s8 %v2791
          %v2793 = vlaneseq
          %v2794 = vshrl.u32 %v2793, 7
          %v2795 = vsub.s32 %v2792, %v2794
          %v2796 = vrot.slane %v2769, %v2795
          %v2798 = vunpack.c.l.s4 1983009808
          %v2799 = vunpack.c.0.s8 %v2798
          %v2800 = vlaneseq
          %v2801 = vshrl.u32 %v2800, 7
          %v2802 = vsub.s32 %v2799, %v2801
          %v2803 = vrot.slane %v2789, %v2802
          %v2804 = vcombine.high %v2796, %v2796
          %v2805 = vcombine.high %v2803, %v2803
          %vm2814 = vcmask 1041408
          %v2815 = vsel %vm2814, %v2779, 0.0
          %v2816 = vrot.slane %v2815, 4
          %v2817 = vadd.f32 %v2815, %v2816
          %v2818 = vrot.slane %v2817, 2
          %v2819 = vadd.f32 %v2817, %v2818
          %v2820 = vrot.slane %v2819, 1
          %v2821 = vadd.f32 %v2819, %v2820
          %v2822 = vsel %vm2814, %v2787, 0.0
          %v2823 = vrot.slane %v2822, 4
          %v2824 = vadd.f32 %v2822, %v2823
          %v2825 = vrot.slane %v2824, 2
          %v2826 = vadd.f32 %v2824, %v2825
          %v2827 = vrot.slane %v2826, 1
          %v2828 = vadd.f32 %v2826, %v2827
          %v2829 = vsel %vm2814, %v2786, 0.0
          %v2830 = vrot.slane %v2829, 4
          %v2831 = vadd.f32 %v2829, %v2830
          %v2832 = vrot.slane %v2831, 2
          %v2833 = vadd.f32 %v2831, %v2832
          %v2834 = vrot.slane %v2833, 1
          %v2835 = vadd.f32 %v2833, %v2834
          %v2836 = vsel %vm2814, %v2788, 0.0
          %v2837 = vrot.slane %v2836, 4
          %v2838 = vadd.f32 %v2836, %v2837
          %v2839 = vrot.slane %v2838, 2
          %v2840 = vadd.f32 %v2838, %v2839
          %v2841 = vrot.slane %v2840, 1
          %v2842 = vadd.f32 %v2840, %v2841
          %v2843 = vsel %vm2814, %v2796, 0.0
          %v2844 = vrot.slane %v2843, 4
          %v2845 = vadd.f32 %v2843, %v2844
          %v2846 = vrot.slane %v2845, 2
          %v2847 = vadd.f32 %v2845, %v2846
          %v2848 = vrot.slane %v2847, 1
          %v2849 = vadd.f32 %v2847, %v2848
          %v2850 = vsel %vm2814, %v2804, 0.0
          %v2851 = vrot.slane %v2850, 4
          %v2852 = vadd.f32 %v2850, %v2851
          %v2853 = vrot.slane %v2852, 2
          %v2854 = vadd.f32 %v2852, %v2853
          %v2855 = vrot.slane %v2854, 1
          %v2856 = vadd.f32 %v2854, %v2855
          %v2857 = vsel %vm2814, %v2803, 0.0
          %v2858 = vrot.slane %v2857, 4
          %v2859 = vadd.f32 %v2857, %v2858
          %v2860 = vrot.slane %v2859, 2
          %v2861 = vadd.f32 %v2859, %v2860
          %v2862 = vrot.slane %v2861, 1
          %v2863 = vadd.f32 %v2861, %v2862
          %v2864 = vsel %vm2814, %v2805, 0.0
          %v2865 = vrot.slane %v2864, 4
          %v2866 = vadd.f32 %v2864, %v2865
          %v2867 = vrot.slane %v2866, 2
          %v2868 = vadd.f32 %v2866, %v2867
          %v2869 = vrot.slane %v2868, 1
          %v2870 = vadd.f32 %v2868, %v2869
          %v2871 = vrcp.pop 2.0
          %v2872 = vmul.f32 %v2821, %v2871
          %v2873 = vmul.f32 %v2828, %v2871
          %v2874 = vmul.f32 %v2835, %v2871
          %v2875 = vmul.f32 %v2842, %v2871
          %v2876 = vmul.f32 %v2849, %v2871
          %v2877 = vmul.f32 %v2856, %v2871
          %v2878 = vmul.f32 %v2863, %v2871
          %v2879 = vmul.f32 %v2870, %v2871
          %v2888 = vcombine.low %v2872, %v2873
          %v2889 = vcombine.low %v2874, %v2875
          %v2891 = vunpack.c.l.s4 1983009808
          %v2892 = vunpack.c.0.s8 %v2891
          %v2893 = vlaneseq
          %v2894 = vshrl.u32 %v2893, 7
          %v2895 = vsub.s32 %v2892, %v2894
          %v2896 = vrot.slane %v2888, %v2895
          %v2898 = vunpack.c.l.s4 1983009808
          %v2899 = vunpack.c.0.s8 %v2898
          %v2900 = vlaneseq
          %v2901 = vshrl.u32 %v2900, 7
          %v2902 = vsub.s32 %v2899, %v2901
          %v2903 = vrot.slane %v2889, %v2902
          %v2904 = vcombine.low %v2896, %v2903
          %v2905 = vcombine.low %v2876, %v2877
          %v2906 = vcombine.low %v2878, %v2879
          %v2908 = vunpack.c.l.s4 1983009808
          %v2909 = vunpack.c.0.s8 %v2908
          %v2910 = vlaneseq
          %v2911 = vshrl.u32 %v2910, 7
          %v2912 = vsub.s32 %v2909, %v2911
          %v2913 = vrot.slane %v2905, %v2912
          %v2915 = vunpack.c.l.s4 1983009808
          %v2916 = vunpack.c.0.s8 %v2915
          %v2917 = vlaneseq
          %v2918 = vshrl.u32 %v2917, 7
          %v2919 = vsub.s32 %v2916, %v2918
          %v2920 = vrot.slane %v2906, %v2919
          %v2921 = vcombine.low %v2913, %v2920
          %v2924 = vsub.f32 %v2768, %v2904
          %v2925 = vsub.f32 %v2769, %v2921
          %v2926 = vmul.f32 %v2924, %v2924
          %v2927 = vmul.f32 %v2925, %v2925
          %v2930 = vcombine.high %v2926, %v2926
          %v2932 = vunpack.c.l.s4 1983009808
          %v2933 = vunpack.c.0.s8 %v2932
          %v2934 = vlaneseq
          %v2935 = vshrl.u32 %v2934, 7
          %v2936 = vsub.s32 %v2933, %v2935
          %v2937 = vrot.slane %v2926, %v2936
          %v2939 = vunpack.c.l.s4 1983009808
          %v2940 = vunpack.c.0.s8 %v2939
          %v2941 = vlaneseq
          %v2942 = vshrl.u32 %v2941, 7
          %v2943 = vsub.s32 %v2940, %v2942
          %v2944 = vrot.slane %v2930, %v2943
          %v2945 = vcombine.high %v2937, %v2937
          %v2946 = vcombine.high %v2944, %v2944
          %v2947 = vcombine.high %v2927, %v2927
          %v2949 = vunpack.c.l.s4 1983009808
          %v2950 = vunpack.c.0.s8 %v2949
          %v2951 = vlaneseq
          %v2952 = vshrl.u32 %v2951, 7
          %v2953 = vsub.s32 %v2950, %v2952
          %v2954 = vrot.slane %v2927, %v2953
          %v2956 = vunpack.c.l.s4 1983009808
          %v2957 = vunpack.c.0.s8 %v2956
          %v2958 = vlaneseq
          %v2959 = vshrl.u32 %v2958, 7
          %v2960 = vsub.s32 %v2957, %v2959
          %v2961 = vrot.slane %v2947, %v2960
          %v2962 = vcombine.high %v2954, %v2954
          %v2963 = vcombine.high %v2961, %v2961
          %v2972 = vsel %vm2814, %v2937, 0.0
          %v2973 = vrot.slane %v2972, 4
          %v2974 = vadd.f32 %v2972, %v2973
          %v2975 = vrot.slane %v2974, 2
          %v2976 = vadd.f32 %v2974, %v2975
          %v2977 = vrot.slane %v2976, 1
          %v2978 = vadd.f32 %v2976, %v2977
          %v2979 = vsel %vm2814, %v2945, 0.0
          %v2980 = vrot.slane %v2979, 4
          %v2981 = vadd.f32 %v2979, %v2980
          %v2982 = vrot.slane %v2981, 2
          %v2983 = vadd.f32 %v2981, %v2982
          %v2984 = vrot.slane %v2983, 1
          %v2985 = vadd.f32 %v2983, %v2984
          %v2986 = vsel %vm2814, %v2944, 0.0
          %v2987 = vrot.slane %v2986, 4
          %v2988 = vadd.f32 %v2986, %v2987
          %v2989 = vrot.slane %v2988, 2
          %v2990 = vadd.f32 %v2988, %v2989
          %v2991 = vrot.slane %v2990, 1
          %v2992 = vadd.f32 %v2990, %v2991
          %v2993 = vsel %vm2814, %v2946, 0.0
          %v2994 = vrot.slane %v2993, 4
          %v2995 = vadd.f32 %v2993, %v2994
          %v2996 = vrot.slane %v2995, 2
          %v2997 = vadd.f32 %v2995, %v2996
          %v2998 = vrot.slane %v2997, 1
          %v2999 = vadd.f32 %v2997, %v2998
          %v3000 = vsel %vm2814, %v2954, 0.0
          %v3001 = vrot.slane %v3000, 4
          %v3002 = vadd.f32 %v3000, %v3001
          %v3003 = vrot.slane %v3002, 2
          %v3004 = vadd.f32 %v3002, %v3003
          %v3005 = vrot.slane %v3004, 1
          %v3006 = vadd.f32 %v3004, %v3005
          %v3007 = vsel %vm2814, %v2962, 0.0
          %v3008 = vrot.slane %v3007, 4
          %v3009 = vadd.f32 %v3007, %v3008
          %v3010 = vrot.slane %v3009, 2
          %v3011 = vadd.f32 %v3009, %v3010
          %v3012 = vrot.slane %v3011, 1
          %v3013 = vadd.f32 %v3011, %v3012
          %v3014 = vsel %vm2814, %v2961, 0.0
          %v3015 = vrot.slane %v3014, 4
          %v3016 = vadd.f32 %v3014, %v3015
          %v3017 = vrot.slane %v3016, 2
          %v3018 = vadd.f32 %v3016, %v3017
          %v3019 = vrot.slane %v3018, 1
          %v3020 = vadd.f32 %v3018, %v3019
          %v3021 = vsel %vm2814, %v2963, 0.0
          %v3022 = vrot.slane %v3021, 4
          %v3023 = vadd.f32 %v3021, %v3022
          %v3024 = vrot.slane %v3023, 2
          %v3025 = vadd.f32 %v3023, %v3024
          %v3026 = vrot.slane %v3025, 1
          %v3027 = vadd.f32 %v3025, %v3026
          %v3028 = vmul.f32 %v2978, %v2871
          %v3029 = vmul.f32 %v2985, %v2871
          %v3030 = vmul.f32 %v2992, %v2871
          %v3031 = vmul.f32 %v2999, %v2871
          %v3032 = vmul.f32 %v3006, %v2871
          %v3033 = vmul.f32 %v3013, %v2871
          %v3034 = vmul.f32 %v3020, %v2871
          %v3035 = vmul.f32 %v3027, %v2871
          %v3036 = vadd.f32 %v3028, 1e-05
          %v3037 = vadd.f32 %v3029, 1e-05
          %v3038 = vadd.f32 %v3030, 1e-05
          %v3039 = vadd.f32 %v3031, 1e-05
          %v3040 = vadd.f32 %v3032, 1e-05
          %v3041 = vadd.f32 %v3033, 1e-05
          %v3042 = vadd.f32 %v3034, 1e-05
          %v3043 = vadd.f32 %v3035, 1e-05
          %v3044 = vrsqrt.pop %v3036
          %v3045 = vrsqrt.pop %v3037
          %v3046 = vrsqrt.pop %v3038
          %v3047 = vrsqrt.pop %v3039
          %v3048 = vrsqrt.pop %v3040
          %v3049 = vrsqrt.pop %v3041
          %v3050 = vrsqrt.pop %v3042
          %v3051 = vrsqrt.pop %v3043
          %v3060 = vcombine.low %v3044, %v3045
          %v3061 = vcombine.low %v3046, %v3047
          %v3063 = vunpack.c.l.s4 1983009808
          %v3064 = vunpack.c.0.s8 %v3063
          %v3065 = vlaneseq
          %v3066 = vshrl.u32 %v3065, 7
          %v3067 = vsub.s32 %v3064, %v3066
          %v3068 = vrot.slane %v3060, %v3067
          %v3070 = vunpack.c.l.s4 1983009808
          %v3071 = vunpack.c.0.s8 %v3070
          %v3072 = vlaneseq
          %v3073 = vshrl.u32 %v3072, 7
          %v3074 = vsub.s32 %v3071, %v3073
          %v3075 = vrot.slane %v3061, %v3074
          %v3076 = vcombine.low %v3068, %v3075
          %v3077 = vcombine.low %v3048, %v3049
          %v3078 = vcombine.low %v3050, %v3051
          %v3080 = vunpack.c.l.s4 1983009808
          %v3081 = vunpack.c.0.s8 %v3080
          %v3082 = vlaneseq
          %v3083 = vshrl.u32 %v3082, 7
          %v3084 = vsub.s32 %v3081, %v3083
          %v3085 = vrot.slane %v3077, %v3084
          %v3087 = vunpack.c.l.s4 1983009808
          %v3088 = vunpack.c.0.s8 %v3087
          %v3089 = vlaneseq
          %v3090 = vshrl.u32 %v3089, 7
          %v3091 = vsub.s32 %v3088, %v3090
          %v3092 = vrot.slane %v3078, %v3091
          %v3093 = vcombine.low %v3085, %v3092
          %v3096 = vmul.f32 %v2924, %v3076
          %v3097 = vmul.f32 %v2925, %v3093
          %v3098 = vld [vmem:[#allocation8] sm:$0xff]
          %v3100 = vlaneseq
          %v3101 = vshrl.u32 %v3100, 7
          %v3102 = vsub.s32 0, %v3101
          %v3103 = vrot.slane %v3098, %v3102
          %v3104 = vlaneseq
          %v3105 = vshrl.u32 %v3104, 7
          %v3106 = vsub.s32 1, %v3105
          %v3107 = vrot.slane %v3098, %v3106
          %v3108 = vlaneseq
          %v3109 = vshrl.u32 %v3108, 7
          %v3110 = vsub.s32 2, %v3109
          %v3111 = vrot.slane %v3098, %v3110
          %v3112 = vlaneseq
          %v3113 = vshrl.u32 %v3112, 7
          %v3114 = vsub.s32 3, %v3113
          %v3115 = vrot.slane %v3098, %v3114
          %v3116 = vlaneseq
          %v3117 = vshrl.u32 %v3116, 7
          %v3118 = vsub.s32 4, %v3117
          %v3119 = vrot.slane %v3098, %v3118
          %v3120 = vlaneseq
          %v3121 = vshrl.u32 %v3120, 7
          %v3122 = vsub.s32 5, %v3121
          %v3123 = vrot.slane %v3098, %v3122
          %v3124 = vlaneseq
          %v3125 = vshrl.u32 %v3124, 7
          %v3126 = vsub.s32 6, %v3125
          %v3127 = vrot.slane %v3098, %v3126
          %v3128 = vlaneseq
          %v3129 = vshrl.u32 %v3128, 7
          %v3130 = vsub.s32 7, %v3129
          %v3131 = vrot.slane %v3098, %v3130
          %v3132 = vcombine.low %v3103, %v3107
          %v3133 = vcombine.low %v3111, %v3115
          %v3135 = vunpack.c.l.s4 1983009808
          %v3136 = vunpack.c.0.s8 %v3135
          %v3137 = vlaneseq
          %v3138 = vshrl.u32 %v3137, 7
          %v3139 = vsub.s32 %v3136, %v3138
          %v3140 = vrot.slane %v3132, %v3139
          %v3142 = vunpack.c.l.s4 1983009808
          %v3143 = vunpack.c.0.s8 %v3142
          %v3144 = vlaneseq
          %v3145 = vshrl.u32 %v3144, 7
          %v3146 = vsub.s32 %v3143, %v3145
          %v3147 = vrot.slane %v3133, %v3146
          %v3148 = vcombine.low %v3140, %v3147
          %v3149 = vcombine.low %v3119, %v3123
          %v3150 = vcombine.low %v3127, %v3131
          %v3152 = vunpack.c.l.s4 1983009808
          %v3153 = vunpack.c.0.s8 %v3152
          %v3154 = vlaneseq
          %v3155 = vshrl.u32 %v3154, 7
          %v3156 = vsub.s32 %v3153, %v3155
          %v3157 = vrot.slane %v3149, %v3156
          %v3159 = vunpack.c.l.s4 1983009808
          %v3160 = vunpack.c.0.s8 %v3159
          %v3161 = vlaneseq
          %v3162 = vshrl.u32 %v3161, 7
          %v3163 = vsub.s32 %v3160, %v3162
          %v3164 = vrot.slane %v3150, %v3163
          %v3165 = vcombine.low %v3157, %v3164
          %v3168 = vmul.f32 %v3096, %v3148
          %v3169 = vmul.f32 %v3097, %v3165
          %v3170 = vld [vmem:[#allocation9] sm:$0xff]
          %v3172 = vlaneseq
          %v3173 = vshrl.u32 %v3172, 7
          %v3174 = vsub.s32 0, %v3173
          %v3175 = vrot.slane %v3170, %v3174
          %v3176 = vlaneseq
          %v3177 = vshrl.u32 %v3176, 7
          %v3178 = vsub.s32 1, %v3177
          %v3179 = vrot.slane %v3170, %v3178
          %v3180 = vlaneseq
          %v3181 = vshrl.u32 %v3180, 7
          %v3182 = vsub.s32 2, %v3181
          %v3183 = vrot.slane %v3170, %v3182
          %v3184 = vlaneseq
          %v3185 = vshrl.u32 %v3184, 7
          %v3186 = vsub.s32 3, %v3185
          %v3187 = vrot.slane %v3170, %v3186
          %v3188 = vlaneseq
          %v3189 = vshrl.u32 %v3188, 7
          %v3190 = vsub.s32 4, %v3189
          %v3191 = vrot.slane %v3170, %v3190
          %v3192 = vlaneseq
          %v3193 = vshrl.u32 %v3192, 7
          %v3194 = vsub.s32 5, %v3193
          %v3195 = vrot.slane %v3170, %v3194
          %v3196 = vlaneseq
          %v3197 = vshrl.u32 %v3196, 7
          %v3198 = vsub.s32 6, %v3197
          %v3199 = vrot.slane %v3170, %v3198
          %v3200 = vlaneseq
          %v3201 = vshrl.u32 %v3200, 7
          %v3202 = vsub.s32 7, %v3201
          %v3203 = vrot.slane %v3170, %v3202
          %v3204 = vcombine.low %v3175, %v3179
          %v3205 = vcombine.low %v3183, %v3187
          %v3207 = vunpack.c.l.s4 1983009808
          %v3208 = vunpack.c.0.s8 %v3207
          %v3209 = vlaneseq
          %v3210 = vshrl.u32 %v3209, 7
          %v3211 = vsub.s32 %v3208, %v3210
          %v3212 = vrot.slane %v3204, %v3211
          %v3214 = vunpack.c.l.s4 1983009808
          %v3215 = vunpack.c.0.s8 %v3214
          %v3216 = vlaneseq
          %v3217 = vshrl.u32 %v3216, 7
          %v3218 = vsub.s32 %v3215, %v3217
          %v3219 = vrot.slane %v3205, %v3218
          %v3220 = vcombine.low %v3212, %v3219
          %v3221 = vcombine.low %v3191, %v3195
          %v3222 = vcombine.low %v3199, %v3203
          %v3224 = vunpack.c.l.s4 1983009808
          %v3225 = vunpack.c.0.s8 %v3224
          %v3226 = vlaneseq
          %v3227 = vshrl.u32 %v3226, 7
          %v3228 = vsub.s32 %v3225, %v3227
          %v3229 = vrot.slane %v3221, %v3228
          %v3231 = vunpack.c.l.s4 1983009808
          %v3232 = vunpack.c.0.s8 %v3231
          %v3233 = vlaneseq
          %v3234 = vshrl.u32 %v3233, 7
          %v3235 = vsub.s32 %v3232, %v3234
          %v3236 = vrot.slane %v3222, %v3235
          %v3237 = vcombine.low %v3229, %v3236
          %v3240 = vadd.f32 %v3168, %v3220
          %v3241 = vadd.f32 %v3169, %v3237
          %vm3242 = vcmp.ge.f32.partialorder %v3240, 0.0
          %vm3243 = vcmp.ge.f32.partialorder %v3241, 0.0
          %v3244 = vmul.f32 %v3240, 0.1
          %v3245 = vmul.f32 %v3241, 0.1
          %v3246 = vsel %vm3242, %v3240, %v3244
          %v3247 = vsel %vm3243, %v3241, %v3245
          %v3248 = vld [vmem:[#allocation11] sm:$0xff]
          %v3249 = vld [vmem:[#allocation11 + $0x8] sm:$0xff]
          %v3250 = vld [vmem:[#allocation11 + $0x10] sm:$0xff]
          %v3251 = vld [vmem:[#allocation11 + $0x18] sm:$0xff]
          %v3252 = vld [vmem:[#allocation11 + $0x20] sm:$0xff]
          %v3253 = vld [vmem:[#allocation11 + $0x28] sm:$0xff]
          %v3254 = vld [vmem:[#allocation11 + $0x30] sm:$0xff]
          %v3255 = vld [vmem:[#allocation11 + $0x38] sm:$0xff]
          %v3256 = vld [vmem:[#allocation11 + $0x40] sm:$0xff]
          %v3257 = vld [vmem:[#allocation11 + $0x48] sm:$0xff]
          %v3258 = vld [vmem:[#allocation11 + $0x50] sm:$0xff]
          %v3259 = vld [vmem:[#allocation11 + $0x58] sm:$0xff]
          %v3260 = vld [vmem:[#allocation11 + $0x60] sm:$0xff]
          %v3261 = vld [vmem:[#allocation11 + $0x68] sm:$0xff]
          %v3262 = vld [vmem:[#allocation11 + $0x70] sm:$0xff]
          %v3263 = vld [vmem:[#allocation11 + $0x78] sm:$0xff]
          %v3264 = vld [vmem:[#allocation11 + $0x80] sm:$0xff]
          %v3265 = vld [vmem:[#allocation11 + $0x88] sm:$0xff]
          %v3266 = vld [vmem:[#allocation11 + $0x90] sm:$0xff]
          %v3267 = vld [vmem:[#allocation11 + $0x98] sm:$0xff]
          %v3268 = vld [vmem:[#allocation11 + $0xa0] sm:$0xff]
          %v3269 = vld [vmem:[#allocation11 + $0xa8] sm:$0xff]
          %v3270 = vld [vmem:[#allocation11 + $0xb0] sm:$0xff]
          %v3271 = vld [vmem:[#allocation11 + $0xb8] sm:$0xff]
          %v3272 = vld [vmem:[#allocation11 + $0xc0] sm:$0xff]
          %v3273 = vld [vmem:[#allocation11 + $0xc8] sm:$0xff]
          %v3274 = vld [vmem:[#allocation11 + $0xd0] sm:$0xff]
          %v3275 = vld [vmem:[#allocation11 + $0xd8] sm:$0xff]
          %v3276 = vld [vmem:[#allocation11 + $0xe0] sm:$0xff]
          %v3277 = vld [vmem:[#allocation11 + $0xe8] sm:$0xff]
          %v3278 = vld [vmem:[#allocation11 + $0xf0] sm:$0xff]
          %v3279 = vld [vmem:[#allocation11 + $0xf8] sm:$0xff]
          %v3280 = vld [vmem:[#allocation11 + $0x100] sm:$0xff]
          %v3281 = vld [vmem:[#allocation11 + $0x108] sm:$0xff]
          %v3282 = vld [vmem:[#allocation11 + $0x110] sm:$0xff]
          %v3283 = vld [vmem:[#allocation11 + $0x118] sm:$0xff]
          %v3284 = vld [vmem:[#allocation11 + $0x120] sm:$0xff]
          %v3285 = vld [vmem:[#allocation11 + $0x128] sm:$0xff]
          %v3286 = vld [vmem:[#allocation11 + $0x130] sm:$0xff]
          %v3287 = vld [vmem:[#allocation11 + $0x138] sm:$0xff]
          %v3288 = vld [vmem:[#allocation11 + $0x140] sm:$0xff]
          %v3289 = vld [vmem:[#allocation11 + $0x148] sm:$0xff]
          %v3290 = vld [vmem:[#allocation11 + $0x150] sm:$0xff]
          %v3291 = vld [vmem:[#allocation11 + $0x158] sm:$0xff]
          %v3292 = vld [vmem:[#allocation11 + $0x160] sm:$0xff]
          %v3293 = vld [vmem:[#allocation11 + $0x168] sm:$0xff]
          %v3294 = vld [vmem:[#allocation11 + $0x170] sm:$0xff]
          %v3295 = vld [vmem:[#allocation11 + $0x178] sm:$0xff]
          %v3296 = vld [vmem:[#allocation11 + $0x180] sm:$0xff]
          %v3297 = vld [vmem:[#allocation11 + $0x188] sm:$0xff]
          %v3298 = vld [vmem:[#allocation11 + $0x190] sm:$0xff]
          %v3299 = vld [vmem:[#allocation11 + $0x198] sm:$0xff]
          %v3300 = vld [vmem:[#allocation11 + $0x1a0] sm:$0xff]
          %v3301 = vld [vmem:[#allocation11 + $0x1a8] sm:$0xff]
          %v3302 = vld [vmem:[#allocation11 + $0x1b0] sm:$0xff]
          %v3303 = vld [vmem:[#allocation11 + $0x1b8] sm:$0xff]
          %v3304 = vld [vmem:[#allocation11 + $0x1c0] sm:$0xff]
          %v3305 = vld [vmem:[#allocation11 + $0x1c8] sm:$0xff]
          %v3306 = vld [vmem:[#allocation11 + $0x1d0] sm:$0xff]
          %v3307 = vld [vmem:[#allocation11 + $0x1d8] sm:$0xff]
          %v3308 = vld [vmem:[#allocation11 + $0x1e0] sm:$0xff]
          %v3309 = vld [vmem:[#allocation11 + $0x1e8] sm:$0xff]
          %v3310 = vld [vmem:[#allocation11 + $0x1f0] sm:$0xff]
          %v3311 = vld [vmem:[#allocation11 + $0x1f8] sm:$0xff]
          %v3312 = vld [vmem:[#allocation11 + $0x200] sm:$0xff]
          %v3313 = vld [vmem:[#allocation11 + $0x208] sm:$0xff]
          %v3314 = vld [vmem:[#allocation11 + $0x210] sm:$0xff]
          %v3315 = vld [vmem:[#allocation11 + $0x218] sm:$0xff]
          %v3316 = vld [vmem:[#allocation11 + $0x220] sm:$0xff]
          %v3317 = vld [vmem:[#allocation11 + $0x228] sm:$0xff]
          %v3318 = vld [vmem:[#allocation11 + $0x230] sm:$0xff]
          %v3319 = vld [vmem:[#allocation11 + $0x238] sm:$0xff]
          %v3320 = vld [vmem:[#allocation11 + $0x240] sm:$0xff]
          %v3321 = vld [vmem:[#allocation11 + $0x248] sm:$0xff]
          %v3322 = vld [vmem:[#allocation11 + $0x250] sm:$0xff]
          %v3323 = vld [vmem:[#allocation11 + $0x258] sm:$0xff]
          %v3324 = vld [vmem:[#allocation11 + $0x260] sm:$0xff]
          %v3325 = vld [vmem:[#allocation11 + $0x268] sm:$0xff]
          %v3326 = vld [vmem:[#allocation11 + $0x270] sm:$0xff]
          %v3327 = vld [vmem:[#allocation11 + $0x278] sm:$0xff]
          %v3328 = vld [vmem:[#allocation11 + $0x280] sm:$0xff]
          %v3329 = vld [vmem:[#allocation11 + $0x288] sm:$0xff]
          %v3330 = vld [vmem:[#allocation11 + $0x290] sm:$0xff]
          %v3331 = vld [vmem:[#allocation11 + $0x298] sm:$0xff]
          %v3332 = vld [vmem:[#allocation11 + $0x2a0] sm:$0xff]
          %v3333 = vld [vmem:[#allocation11 + $0x2a8] sm:$0xff]
          %v3334 = vld [vmem:[#allocation11 + $0x2b0] sm:$0xff]
          %v3335 = vld [vmem:[#allocation11 + $0x2b8] sm:$0xff]
          %v3336 = vld [vmem:[#allocation11 + $0x2c0] sm:$0xff]
          %v3337 = vld [vmem:[#allocation11 + $0x2c8] sm:$0xff]
          %v3338 = vld [vmem:[#allocation11 + $0x2d0] sm:$0xff]
          %v3339 = vld [vmem:[#allocation11 + $0x2d8] sm:$0xff]
          %v3340 = vld [vmem:[#allocation11 + $0x2e0] sm:$0xff]
          %v3341 = vld [vmem:[#allocation11 + $0x2e8] sm:$0xff]
          %v3342 = vld [vmem:[#allocation11 + $0x2f0] sm:$0xff]
          %v3343 = vld [vmem:[#allocation11 + $0x2f8] sm:$0xff]
          %v3344 = vld [vmem:[#allocation11 + $0x300] sm:$0xff]
          %v3345 = vld [vmem:[#allocation11 + $0x308] sm:$0xff]
          %v3346 = vld [vmem:[#allocation11 + $0x310] sm:$0xff]
          %v3347 = vld [vmem:[#allocation11 + $0x318] sm:$0xff]
          %v3348 = vld [vmem:[#allocation11 + $0x320] sm:$0xff]
          %v3349 = vld [vmem:[#allocation11 + $0x328] sm:$0xff]
          %v3350 = vld [vmem:[#allocation11 + $0x330] sm:$0xff]
          %v3351 = vld [vmem:[#allocation11 + $0x338] sm:$0xff]
          %v3352 = vld [vmem:[#allocation11 + $0x340] sm:$0xff]
          %v3353 = vld [vmem:[#allocation11 + $0x348] sm:$0xff]
          %v3354 = vld [vmem:[#allocation11 + $0x350] sm:$0xff]
          %v3355 = vld [vmem:[#allocation11 + $0x358] sm:$0xff]
          %v3356 = vld [vmem:[#allocation11 + $0x360] sm:$0xff]
          %v3357 = vld [vmem:[#allocation11 + $0x368] sm:$0xff]
          %v3358 = vld [vmem:[#allocation11 + $0x370] sm:$0xff]
          %v3359 = vld [vmem:[#allocation11 + $0x378] sm:$0xff]
          %v3360 = vld [vmem:[#allocation11 + $0x380] sm:$0xff]
          %v3361 = vld [vmem:[#allocation11 + $0x388] sm:$0xff]
          %v3362 = vld [vmem:[#allocation11 + $0x390] sm:$0xff]
          %v3363 = vld [vmem:[#allocation11 + $0x398] sm:$0xff]
          %v3364 = vld [vmem:[#allocation11 + $0x3a0] sm:$0xff]
          %v3365 = vld [vmem:[#allocation11 + $0x3a8] sm:$0xff]
          %v3366 = vld [vmem:[#allocation11 + $0x3b0] sm:$0xff]
          %v3367 = vld [vmem:[#allocation11 + $0x3b8] sm:$0xff]
          %v3368 = vld [vmem:[#allocation11 + $0x3c0] sm:$0xff]
          %v3369 = vld [vmem:[#allocation11 + $0x3c8] sm:$0xff]
          %v3370 = vld [vmem:[#allocation11 + $0x3d0] sm:$0xff]
          %v3371 = vld [vmem:[#allocation11 + $0x3d8] sm:$0xff]
          %v3372 = vld [vmem:[#allocation11 + $0x3e0] sm:$0xff]
          %v3373 = vld [vmem:[#allocation11 + $0x3e8] sm:$0xff]
          %v3374 = vld [vmem:[#allocation11 + $0x3f0] sm:$0xff]
          %v3375 = vld [vmem:[#allocation11 + $0x3f8] sm:$0xff]
          %v3376 = vld [vmem:[#allocation11 + $0x400] sm:$0xff]
          %v3377 = vld [vmem:[#allocation11 + $0x408] sm:$0xff]
          %v3378 = vld [vmem:[#allocation11 + $0x410] sm:$0xff]
          %v3379 = vld [vmem:[#allocation11 + $0x418] sm:$0xff]
          %v3380 = vld [vmem:[#allocation11 + $0x420] sm:$0xff]
          %v3381 = vld [vmem:[#allocation11 + $0x428] sm:$0xff]
          %v3382 = vld [vmem:[#allocation11 + $0x430] sm:$0xff]
          %v3383 = vld [vmem:[#allocation11 + $0x438] sm:$0xff]
          %v3384 = vld [vmem:[#allocation11 + $0x440] sm:$0xff]
          %v3385 = vld [vmem:[#allocation11 + $0x448] sm:$0xff]
          %v3386 = vld [vmem:[#allocation11 + $0x450] sm:$0xff]
          %v3387 = vld [vmem:[#allocation11 + $0x458] sm:$0xff]
          %v3388 = vld [vmem:[#allocation11 + $0x460] sm:$0xff]
          %v3389 = vld [vmem:[#allocation11 + $0x468] sm:$0xff]
          %v3390 = vld [vmem:[#allocation11 + $0x470] sm:$0xff]
          %v3391 = vld [vmem:[#allocation11 + $0x478] sm:$0xff]
          %v3392 = vld [vmem:[#allocation11 + $0x480] sm:$0xff]
          %v3393 = vld [vmem:[#allocation11 + $0x488] sm:$0xff]
          %v3394 = vld [vmem:[#allocation11 + $0x490] sm:$0xff]
          %v3395 = vld [vmem:[#allocation11 + $0x498] sm:$0xff]
          %v3396 = vld [vmem:[#allocation11 + $0x4a0] sm:$0xff]
          %v3397 = vld [vmem:[#allocation11 + $0x4a8] sm:$0xff]
          %v3398 = vld [vmem:[#allocation11 + $0x4b0] sm:$0xff]
          %v3399 = vld [vmem:[#allocation11 + $0x4b8] sm:$0xff]
          %v3400 = vld [vmem:[#allocation11 + $0x4c0] sm:$0xff]
          %v3401 = vld [vmem:[#allocation11 + $0x4c8] sm:$0xff]
          %v3402 = vld [vmem:[#allocation11 + $0x4d0] sm:$0xff]
          %v3403 = vld [vmem:[#allocation11 + $0x4d8] sm:$0xff]
          %v3404 = vld [vmem:[#allocation11 + $0x4e0] sm:$0xff]
          %v3405 = vld [vmem:[#allocation11 + $0x4e8] sm:$0xff]
          %v3406 = vld [vmem:[#allocation11 + $0x4f0] sm:$0xff]
          %v3407 = vld [vmem:[#allocation11 + $0x4f8] sm:$0xff]
          %v3408 = vld [vmem:[#allocation11 + $0x500] sm:$0xff]
          %v3409 = vld [vmem:[#allocation11 + $0x508] sm:$0xff]
          %v3410 = vld [vmem:[#allocation11 + $0x510] sm:$0xff]
          %v3411 = vld [vmem:[#allocation11 + $0x518] sm:$0xff]
          %v3412 = vld [vmem:[#allocation11 + $0x520] sm:$0xff]
          %v3413 = vld [vmem:[#allocation11 + $0x528] sm:$0xff]
          %v3414 = vld [vmem:[#allocation11 + $0x530] sm:$0xff]
          %v3415 = vld [vmem:[#allocation11 + $0x538] sm:$0xff]
          %v3416 = vld [vmem:[#allocation11 + $0x540] sm:$0xff]
          %v3417 = vld [vmem:[#allocation11 + $0x548] sm:$0xff]
          %v3418 = vld [vmem:[#allocation11 + $0x550] sm:$0xff]
          %v3419 = vld [vmem:[#allocation11 + $0x558] sm:$0xff]
          %v3420 = vld [vmem:[#allocation11 + $0x560] sm:$0xff]
          %v3421 = vld [vmem:[#allocation11 + $0x568] sm:$0xff]
          %v3422 = vld [vmem:[#allocation11 + $0x570] sm:$0xff]
          %v3423 = vld [vmem:[#allocation11 + $0x578] sm:$0xff]
          %v3424 = vld [vmem:[#allocation11 + $0x580] sm:$0xff]
          %v3425 = vld [vmem:[#allocation11 + $0x588] sm:$0xff]
          %v3426 = vld [vmem:[#allocation11 + $0x590] sm:$0xff]
          %v3427 = vld [vmem:[#allocation11 + $0x598] sm:$0xff]
          %v3428 = vld [vmem:[#allocation11 + $0x5a0] sm:$0xff]
          %v3429 = vld [vmem:[#allocation11 + $0x5a8] sm:$0xff]
          %v3430 = vld [vmem:[#allocation11 + $0x5b0] sm:$0xff]
          %v3431 = vld [vmem:[#allocation11 + $0x5b8] sm:$0xff]
          %v3432 = vld [vmem:[#allocation11 + $0x5c0] sm:$0xff]
          %v3433 = vld [vmem:[#allocation11 + $0x5c8] sm:$0xff]
          %v3434 = vld [vmem:[#allocation11 + $0x5d0] sm:$0xff]
          %v3435 = vld [vmem:[#allocation11 + $0x5d8] sm:$0xff]
          %v3436 = vld [vmem:[#allocation11 + $0x5e0] sm:$0xff]
          %v3437 = vld [vmem:[#allocation11 + $0x5e8] sm:$0xff]
          %v3438 = vld [vmem:[#allocation11 + $0x5f0] sm:$0xff]
          %v3439 = vld [vmem:[#allocation11 + $0x5f8] sm:$0xff]
          %v3440 = vld [vmem:[#allocation11 + $0x600] sm:$0xff]
          %v3441 = vld [vmem:[#allocation11 + $0x608] sm:$0xff]
          %v3442 = vld [vmem:[#allocation11 + $0x610] sm:$0xff]
          %v3443 = vld [vmem:[#allocation11 + $0x618] sm:$0xff]
          %v3444 = vld [vmem:[#allocation11 + $0x620] sm:$0xff]
          %v3445 = vld [vmem:[#allocation11 + $0x628] sm:$0xff]
          %v3446 = vld [vmem:[#allocation11 + $0x630] sm:$0xff]
          %v3447 = vld [vmem:[#allocation11 + $0x638] sm:$0xff]
          %v3448 = vld [vmem:[#allocation11 + $0x640] sm:$0xff]
          %v3449 = vld [vmem:[#allocation11 + $0x648] sm:$0xff]
          %v3450 = vld [vmem:[#allocation11 + $0x650] sm:$0xff]
          %v3451 = vld [vmem:[#allocation11 + $0x658] sm:$0xff]
          %v3452 = vld [vmem:[#allocation11 + $0x660] sm:$0xff]
          %v3453 = vld [vmem:[#allocation11 + $0x668] sm:$0xff]
          %v3454 = vld [vmem:[#allocation11 + $0x670] sm:$0xff]
          %v3455 = vld [vmem:[#allocation11 + $0x678] sm:$0xff]
          %v3456 = vld [vmem:[#allocation11 + $0x680] sm:$0xff]
          %v3457 = vld [vmem:[#allocation11 + $0x688] sm:$0xff]
          %v3458 = vld [vmem:[#allocation11 + $0x690] sm:$0xff]
          %v3459 = vld [vmem:[#allocation11 + $0x698] sm:$0xff]
          %v3460 = vld [vmem:[#allocation11 + $0x6a0] sm:$0xff]
          %v3461 = vld [vmem:[#allocation11 + $0x6a8] sm:$0xff]
          %v3462 = vld [vmem:[#allocation11 + $0x6b0] sm:$0xff]
          %v3463 = vld [vmem:[#allocation11 + $0x6b8] sm:$0xff]
          %v3464 = vld [vmem:[#allocation11 + $0x6c0] sm:$0xff]
          %v3465 = vld [vmem:[#allocation11 + $0x6c8] sm:$0xff]
          %v3466 = vld [vmem:[#allocation11 + $0x6d0] sm:$0xff]
          %v3467 = vld [vmem:[#allocation11 + $0x6d8] sm:$0xff]
          %v3468 = vld [vmem:[#allocation11 + $0x6e0] sm:$0xff]
          %v3469 = vld [vmem:[#allocation11 + $0x6e8] sm:$0xff]
          %v3470 = vld [vmem:[#allocation11 + $0x6f0] sm:$0xff]
          %v3471 = vld [vmem:[#allocation11 + $0x6f8] sm:$0xff]
          %v3472 = vld [vmem:[#allocation11 + $0x700] sm:$0xff]
          %v3473 = vld [vmem:[#allocation11 + $0x708] sm:$0xff]
          %v3474 = vld [vmem:[#allocation11 + $0x710] sm:$0xff]
          %v3475 = vld [vmem:[#allocation11 + $0x718] sm:$0xff]
          %v3476 = vld [vmem:[#allocation11 + $0x720] sm:$0xff]
          %v3477 = vld [vmem:[#allocation11 + $0x728] sm:$0xff]
          %v3478 = vld [vmem:[#allocation11 + $0x730] sm:$0xff]
          %v3479 = vld [vmem:[#allocation11 + $0x738] sm:$0xff]
          %v3480 = vld [vmem:[#allocation11 + $0x740] sm:$0xff]
          %v3481 = vld [vmem:[#allocation11 + $0x748] sm:$0xff]
          %v3482 = vld [vmem:[#allocation11 + $0x750] sm:$0xff]
          %v3483 = vld [vmem:[#allocation11 + $0x758] sm:$0xff]
          %v3484 = vld [vmem:[#allocation11 + $0x760] sm:$0xff]
          %v3485 = vld [vmem:[#allocation11 + $0x768] sm:$0xff]
          %v3486 = vld [vmem:[#allocation11 + $0x770] sm:$0xff]
          %v3487 = vld [vmem:[#allocation11 + $0x778] sm:$0xff]
          %v3488 = vld [vmem:[#allocation11 + $0x780] sm:$0xff]
          %v3489 = vld [vmem:[#allocation11 + $0x788] sm:$0xff]
          %v3490 = vld [vmem:[#allocation11 + $0x790] sm:$0xff]
          %v3491 = vld [vmem:[#allocation11 + $0x798] sm:$0xff]
          %v3492 = vld [vmem:[#allocation11 + $0x7a0] sm:$0xff]
          %v3493 = vld [vmem:[#allocation11 + $0x7a8] sm:$0xff]
          %v3494 = vld [vmem:[#allocation11 + $0x7b0] sm:$0xff]
          %v3495 = vld [vmem:[#allocation11 + $0x7b8] sm:$0xff]
          %v3496 = vld [vmem:[#allocation11 + $0x7c0] sm:$0xff]
          %v3497 = vld [vmem:[#allocation11 + $0x7c8] sm:$0xff]
          %v3498 = vld [vmem:[#allocation11 + $0x7d0] sm:$0xff]
          %v3499 = vld [vmem:[#allocation11 + $0x7d8] sm:$0xff]
          %v3500 = vld [vmem:[#allocation11 + $0x7e0] sm:$0xff]
          %v3501 = vld [vmem:[#allocation11 + $0x7e8] sm:$0xff]
          %v3502 = vld [vmem:[#allocation11 + $0x7f0] sm:$0xff]
          %v3503 = vld [vmem:[#allocation11 + $0x7f8] sm:$0xff]
          %v3504 = vld [vmem:[#allocation12] sm:$0x3]
          %v3506 = vlaneseq
          %v3507 = vshrl.u32 %v3506, 7
          %v3508 = vsub.s32 0, %v3507
          %v3509 = vrot.slane %v3504, %v3508
          %v3510 = vlaneseq
          %v3511 = vshrl.u32 %v3510, 7
          %v3512 = vsub.s32 1, %v3511
          %v3513 = vrot.slane %v3504, %v3512
          %v3518 = vcombine.high %v3246, %v3246
          %v3520 = vunpack.c.l.s4 1983009808
          %v3521 = vunpack.c.0.s8 %v3520
          %v3522 = vlaneseq
          %v3523 = vshrl.u32 %v3522, 7
          %v3524 = vsub.s32 %v3521, %v3523
          %v3525 = vrot.slane %v3246, %v3524
          %v3527 = vunpack.c.l.s4 1983009808
          %v3528 = vunpack.c.0.s8 %v3527
          %v3529 = vlaneseq
          %v3530 = vshrl.u32 %v3529, 7
          %v3531 = vsub.s32 %v3528, %v3530
          %v3532 = vrot.slane %v3518, %v3531
          %v3533 = vcombine.high %v3525, %v3525
          %v3534 = vcombine.high %v3532, %v3532
          %v3535 = vcombine.high %v3247, %v3247
          %v3537 = vunpack.c.l.s4 1983009808
          %v3538 = vunpack.c.0.s8 %v3537
          %v3539 = vlaneseq
          %v3540 = vshrl.u32 %v3539, 7
          %v3541 = vsub.s32 %v3538, %v3540
          %v3542 = vrot.slane %v3247, %v3541
          %v3544 = vunpack.c.l.s4 1983009808
          %v3545 = vunpack.c.0.s8 %v3544
          %v3546 = vlaneseq
          %v3547 = vshrl.u32 %v3546, 7
          %v3548 = vsub.s32 %v3545, %v3547
          %v3549 = vrot.slane %v3535, %v3548
          %v3550 = vcombine.high %v3542, %v3542
          %v3551 = vcombine.high %v3549, %v3549
          %3560 = vmatprep.subr.mxu0 %v3249
          %3561 = vmatpush1.msra.mxu0 %v3248
          %3562 = vmatprep.subr.mxu0 %v3251
          %3563 = vmatpush1.msra.mxu0 %v3250
          %3564 = vmatprep.subr.mxu0 %v3253
          %3565 = vmatpush1.msra.mxu0 %v3252
          %3566 = vmatprep.subr.mxu0 %v3255
          %3567 = vmatpush1.msra.mxu0 %v3254
          %3568 = vmatprep.subr.mxu0 %v3257
          %3569 = vmatpush1.msra.mxu0 %v3256
          %3570 = vmatprep.subr.mxu0 %v3259
          %3571 = vmatpush1.msra.mxu0 %v3258
          %3572 = vmatprep.subr.mxu0 %v3261
          %3573 = vmatpush1.msra.mxu0 %v3260
          %3574 = vmatprep.subr.mxu0 %v3263
          %3575 = vmatpush1.msra.mxu0 %v3262
          %3576 = vmatprep.subr.mxu0 %v3265
          %3577 = vmatpush1.msra.mxu0 %v3264
          %3578 = vmatprep.subr.mxu0 %v3267
          %3579 = vmatpush1.msra.mxu0 %v3266
          %3580 = vmatprep.subr.mxu0 %v3269
          %3581 = vmatpush1.msra.mxu0 %v3268
          %3582 = vmatprep.subr.mxu0 %v3271
          %3583 = vmatpush1.msra.mxu0 %v3270
          %3584 = vmatprep.subr.mxu0 %v3273
          %3585 = vmatpush1.msra.mxu0 %v3272
          %3586 = vmatprep.subr.mxu0 %v3275
          %3587 = vmatpush1.msra.mxu0 %v3274
          %3588 = vmatprep.subr.mxu0 %v3277
          %3589 = vmatpush1.msra.mxu0 %v3276
          %3590 = vmatprep.subr.mxu0 %v3279
          %3591 = vmatpush1.msra.mxu0 %v3278
          %3592 = vmatprep.subr.mxu0 %v3281
          %3593 = vmatpush1.msra.mxu0 %v3280
          %3594 = vmatprep.subr.mxu0 %v3283
          %3595 = vmatpush1.msra.mxu0 %v3282
          %3596 = vmatprep.subr.mxu0 %v3285
          %3597 = vmatpush1.msra.mxu0 %v3284
          %3598 = vmatprep.subr.mxu0 %v3287
          %3599 = vmatpush1.msra.mxu0 %v3286
          %3600 = vmatprep.subr.mxu0 %v3289
          %3601 = vmatpush1.msra.mxu0 %v3288
          %3602 = vmatprep.subr.mxu0 %v3291
          %3603 = vmatpush1.msra.mxu0 %v3290
          %3604 = vmatprep.subr.mxu0 %v3293
          %3605 = vmatpush1.msra.mxu0 %v3292
          %3606 = vmatprep.subr.mxu0 %v3295
          %3607 = vmatpush1.msra.mxu0 %v3294
          %3608 = vmatprep.subr.mxu0 %v3297
          %3609 = vmatpush1.msra.mxu0 %v3296
          %3610 = vmatprep.subr.mxu0 %v3299
          %3611 = vmatpush1.msra.mxu0 %v3298
          %3612 = vmatprep.subr.mxu0 %v3301
          %3613 = vmatpush1.msra.mxu0 %v3300
          %3614 = vmatprep.subr.mxu0 %v3303
          %3615 = vmatpush1.msra.mxu0 %v3302
          %3616 = vmatprep.subr.mxu0 %v3305
          %3617 = vmatpush1.msra.mxu0 %v3304
          %3618 = vmatprep.subr.mxu0 %v3307
          %3619 = vmatpush1.msra.mxu0 %v3306
          %3620 = vmatprep.subr.mxu0 %v3309
          %3621 = vmatpush1.msra.mxu0 %v3308
          %3622 = vmatprep.subr.mxu0 %v3311
          %3623 = vmatpush1.msra.mxu0 %v3310
          %3624 = vmatprep.mubr.f32.mxu0 %v3533
          %3625 = vmatmul.mubr.f32.gmra.mrb[0].mxu0 %v3525
          %v3626 = vpop.f32.mrb[0].mxu0
          %v3627 = vadd.f32 %v3509, %v3626
          %v3628 = vpop.f32.mrb[0].mxu0
          %v3629 = vadd.f32 %v3513, %v3628
          %3630 = vdwg.mxu0
          %3631 = vmatprep.subr.mxu0 %v3313
          %3632 = vmatpush1.msra.mxu0 %v3312
          %3633 = vmatprep.subr.mxu0 %v3315
          %3634 = vmatpush1.msra.mxu0 %v3314
          %3635 = vmatprep.subr.mxu0 %v3317
          %3636 = vmatpush1.msra.mxu0 %v3316
          %3637 = vmatprep.subr.mxu0 %v3319
          %3638 = vmatpush1.msra.mxu0 %v3318
          %3639 = vmatprep.subr.mxu0 %v3321
          %3640 = vmatpush1.msra.mxu0 %v3320
          %3641 = vmatprep.subr.mxu0 %v3323
          %3642 = vmatpush1.msra.mxu0 %v3322
          %3643 = vmatprep.subr.mxu0 %v3325
          %3644 = vmatpush1.msra.mxu0 %v3324
          %3645 = vmatprep.subr.mxu0 %v3327
          %3646 = vmatpush1.msra.mxu0 %v3326
          %3647 = vmatprep.subr.mxu0 %v3329
          %3648 = vmatpush1.msra.mxu0 %v3328
          %3649 = vmatprep.subr.mxu0 %v3331
          %3650 = vmatpush1.msra.mxu0 %v3330
          %3651 = vmatprep.subr.mxu0 %v3333
          %3652 = vmatpush1.msra.mxu0 %v3332
          %3653 = vmatprep.subr.mxu0 %v3335
          %3654 = vmatpush1.msra.mxu0 %v3334
          %3655 = vmatprep.subr.mxu0 %v3337
          %3656 = vmatpush1.msra.mxu0 %v3336
          %3657 = vmatprep.subr.mxu0 %v3339
          %3658 = vmatpush1.msra.mxu0 %v3338
          %3659 = vmatprep.subr.mxu0 %v3341
          %3660 = vmatpush1.msra.mxu0 %v3340
          %3661 = vmatprep.subr.mxu0 %v3343
          %3662 = vmatpush1.msra.mxu0 %v3342
          %3663 = vmatprep.subr.mxu0 %v3345
          %3664 = vmatpush1.msra.mxu0 %v3344
          %3665 = vmatprep.subr.mxu0 %v3347
          %3666 = vmatpush1.msra.mxu0 %v3346
          %3667 = vmatprep.subr.mxu0 %v3349
          %3668 = vmatpush1.msra.mxu0 %v3348
          %3669 = vmatprep.subr.mxu0 %v3351
          %3670 = vmatpush1.msra.mxu0 %v3350
          %3671 = vmatprep.subr.mxu0 %v3353
          %3672 = vmatpush1.msra.mxu0 %v3352
          %3673 = vmatprep.subr.mxu0 %v3355
          %3674 = vmatpush1.msra.mxu0 %v3354
          %3675 = vmatprep.subr.mxu0 %v3357
          %3676 = vmatpush1.msra.mxu0 %v3356
          %3677 = vmatprep.subr.mxu0 %v3359
          %3678 = vmatpush1.msra.mxu0 %v3358
          %3679 = vmatprep.subr.mxu0 %v3361
          %3680 = vmatpush1.msra.mxu0 %v3360
          %3681 = vmatprep.subr.mxu0 %v3363
          %3682 = vmatpush1.msra.mxu0 %v3362
          %3683 = vmatprep.subr.mxu0 %v3365
          %3684 = vmatpush1.msra.mxu0 %v3364
          %3685 = vmatprep.subr.mxu0 %v3367
          %3686 = vmatpush1.msra.mxu0 %v3366
          %3687 = vmatprep.subr.mxu0 %v3369
          %3688 = vmatpush1.msra.mxu0 %v3368
          %3689 = vmatprep.subr.mxu0 %v3371
          %3690 = vmatpush1.msra.mxu0 %v3370
          %3691 = vmatprep.subr.mxu0 %v3373
          %3692 = vmatpush1.msra.mxu0 %v3372
          %3693 = vmatprep.subr.mxu0 %v3375
          %3694 = vmatpush1.msra.mxu0 %v3374
          %3695 = vmatprep.mubr.f32.mxu0 %v3534
          %3696 = vmatmul.mubr.f32.gmra.mrb[0].mxu0 %v3532
          %v3697 = vpop.f32.mrb[0].mxu0
          %v3698 = vadd.f32 %v3627, %v3697
          %v3699 = vpop.f32.mrb[0].mxu0
          %v3700 = vadd.f32 %v3629, %v3699
          %3701 = vdwg.mxu0
          %3702 = vmatprep.subr.mxu0 %v3377
          %3703 = vmatpush1.msra.mxu0 %v3376
          %3704 = vmatprep.subr.mxu0 %v3379
          %3705 = vmatpush1.msra.mxu0 %v3378
          %3706 = vmatprep.subr.mxu0 %v3381
          %3707 = vmatpush1.msra.mxu0 %v3380
          %3708 = vmatprep.subr.mxu0 %v3383
          %3709 = vmatpush1.msra.mxu0 %v3382
          %3710 = vmatprep.subr.mxu0 %v3385
          %3711 = vmatpush1.msra.mxu0 %v3384
          %3712 = vmatprep.subr.mxu0 %v3387
          %3713 = vmatpush1.msra.mxu0 %v3386
          %3714 = vmatprep.subr.mxu0 %v3389
          %3715 = vmatpush1.msra.mxu0 %v3388
          %3716 = vmatprep.subr.mxu0 %v3391
          %3717 = vmatpush1.msra.mxu0 %v3390
          %3718 = vmatprep.subr.mxu0 %v3393
          %3719 = vmatpush1.msra.mxu0 %v3392
          %3720 = vmatprep.subr.mxu0 %v3395
          %3721 = vmatpush1.msra.mxu0 %v3394
          %3722 = vmatprep.subr.mxu0 %v3397
          %3723 = vmatpush1.msra.mxu0 %v3396
          %3724 = vmatprep.subr.mxu0 %v3399
          %3725 = vmatpush1.msra.mxu0 %v3398
          %3726 = vmatprep.subr.mxu0 %v3401
          %3727 = vmatpush1.msra.mxu0 %v3400
          %3728 = vmatprep.subr.mxu0 %v3403
          %3729 = vmatpush1.msra.mxu0 %v3402
          %3730 = vmatprep.subr.mxu0 %v3405
          %3731 = vmatpush1.msra.mxu0 %v3404
          %3732 = vmatprep.subr.mxu0 %v3407
          %3733 = vmatpush1.msra.mxu0 %v3406
          %3734 = vmatprep.subr.mxu0 %v3409
          %3735 = vmatpush1.msra.mxu0 %v3408
          %3736 = vmatprep.subr.mxu0 %v3411
          %3737 = vmatpush1.msra.mxu0 %v3410
          %3738 = vmatprep.subr.mxu0 %v3413
          %3739 = vmatpush1.msra.mxu0 %v3412
          %3740 = vmatprep.subr.mxu0 %v3415
          %3741 = vmatpush1.msra.mxu0 %v3414
          %3742 = vmatprep.subr.mxu0 %v3417
          %3743 = vmatpush1.msra.mxu0 %v3416
          %3744 = vmatprep.subr.mxu0 %v3419
          %3745 = vmatpush1.msra.mxu0 %v3418
          %3746 = vmatprep.subr.mxu0 %v3421
          %3747 = vmatpush1.msra.mxu0 %v3420
          %3748 = vmatprep.subr.mxu0 %v3423
          %3749 = vmatpush1.msra.mxu0 %v3422
          %3750 = vmatprep.subr.mxu0 %v3425
          %3751 = vmatpush1.msra.mxu0 %v3424
          %3752 = vmatprep.subr.mxu0 %v3427
          %3753 = vmatpush1.msra.mxu0 %v3426
          %3754 = vmatprep.subr.mxu0 %v3429
          %3755 = vmatpush1.msra.mxu0 %v3428
          %3756 = vmatprep.subr.mxu0 %v3431
          %3757 = vmatpush1.msra.mxu0 %v3430
          %3758 = vmatprep.subr.mxu0 %v3433
          %3759 = vmatpush1.msra.mxu0 %v3432
          %3760 = vmatprep.subr.mxu0 %v3435
          %3761 = vmatpush1.msra.mxu0 %v3434
          %3762 = vmatprep.subr.mxu0 %v3437
          %3763 = vmatpush1.msra.mxu0 %v3436
          %3764 = vmatprep.subr.mxu0 %v3439
          %3765 = vmatpush1.msra.mxu0 %v3438
          %3766 = vmatprep.mubr.f32.mxu0 %v3550
          %3767 = vmatmul.mubr.f32.gmra.mrb[0].mxu0 %v3542
          %v3768 = vpop.f32.mrb[0].mxu0
          %v3769 = vadd.f32 %v3698, %v3768
          %v3770 = vpop.f32.mrb[0].mxu0
          %v3771 = vadd.f32 %v3700, %v3770
          %3772 = vdwg.mxu0
          %3773 = vmatprep.subr.mxu0 %v3441
          %3774 = vmatpush1.msra.mxu0 %v3440
          %3775 = vmatprep.subr.mxu0 %v3443
          %3776 = vmatpush1.msra.mxu0 %v3442
          %3777 = vmatprep.subr.mxu0 %v3445
          %3778 = vmatpush1.msra.mxu0 %v3444
          %3779 = vmatprep.subr.mxu0 %v3447
          %3780 = vmatpush1.msra.mxu0 %v3446
          %3781 = vmatprep.subr.mxu0 %v3449
          %3782 = vmatpush1.msra.mxu0 %v3448
          %3783 = vmatprep.subr.mxu0 %v3451
          %3784 = vmatpush1.msra.mxu0 %v3450
          %3785 = vmatprep.subr.mxu0 %v3453
          %3786 = vmatpush1.msra.mxu0 %v3452
          %3787 = vmatprep.subr.mxu0 %v3455
          %3788 = vmatpush1.msra.mxu0 %v3454
          %3789 = vmatprep.subr.mxu0 %v3457
          %3790 = vmatpush1.msra.mxu0 %v3456
          %3791 = vmatprep.subr.mxu0 %v3459
          %3792 = vmatpush1.msra.mxu0 %v3458
          %3793 = vmatprep.subr.mxu0 %v3461
          %3794 = vmatpush1.msra.mxu0 %v3460
          %3795 = vmatprep.subr.mxu0 %v3463
          %3796 = vmatpush1.msra.mxu0 %v3462
          %3797 = vmatprep.subr.mxu0 %v3465
          %3798 = vmatpush1.msra.mxu0 %v3464
          %3799 = vmatprep.subr.mxu0 %v3467
          %3800 = vmatpush1.msra.mxu0 %v3466
          %3801 = vmatprep.subr.mxu0 %v3469
          %3802 = vmatpush1.msra.mxu0 %v3468
          %3803 = vmatprep.subr.mxu0 %v3471
          %3804 = vmatpush1.msra.mxu0 %v3470
          %3805 = vmatprep.subr.mxu0 %v3473
          %3806 = vmatpush1.msra.mxu0 %v3472
          %3807 = vmatprep.subr.mxu0 %v3475
          %3808 = vmatpush1.msra.mxu0 %v3474
          %3809 = vmatprep.subr.mxu0 %v3477
          %3810 = vmatpush1.msra.mxu0 %v3476
          %3811 = vmatprep.subr.mxu0 %v3479
          %3812 = vmatpush1.msra.mxu0 %v3478
          %3813 = vmatprep.subr.mxu0 %v3481
          %3814 = vmatpush1.msra.mxu0 %v3480
          %3815 = vmatprep.subr.mxu0 %v3483
          %3816 = vmatpush1.msra.mxu0 %v3482
          %3817 = vmatprep.subr.mxu0 %v3485
          %3818 = vmatpush1.msra.mxu0 %v3484
          %3819 = vmatprep.subr.mxu0 %v3487
          %3820 = vmatpush1.msra.mxu0 %v3486
          %3821 = vmatprep.subr.mxu0 %v3489
          %3822 = vmatpush1.msra.mxu0 %v3488
          %3823 = vmatprep.subr.mxu0 %v3491
          %3824 = vmatpush1.msra.mxu0 %v3490
          %3825 = vmatprep.subr.mxu0 %v3493
          %3826 = vmatpush1.msra.mxu0 %v3492
          %3827 = vmatprep.subr.mxu0 %v3495
          %3828 = vmatpush1.msra.mxu0 %v3494
          %3829 = vmatprep.subr.mxu0 %v3497
          %3830 = vmatpush1.msra.mxu0 %v3496
          %3831 = vmatprep.subr.mxu0 %v3499
          %3832 = vmatpush1.msra.mxu0 %v3498
          %3833 = vmatprep.subr.mxu0 %v3501
          %3834 = vmatpush1.msra.mxu0 %v3500
          %3835 = vmatprep.subr.mxu0 %v3503
          %3836 = vmatpush1.msra.mxu0 %v3502
          %3837 = vmatprep.mubr.f32.mxu0 %v3551
          %3838 = vmatmul.mubr.f32.gmra.mrb[0].mxu0 %v3549
          %v3839 = vpop.f32.mrb[0].mxu0
          %v3840 = vadd.f32 %v3769, %v3839
          %v3841 = vpop.f32.mrb[0].mxu0
          %v3842 = vadd.f32 %v3771, %v3841
          %3843 = vdwg.mxu0
          %v3844 = vlaneseq
          %v3845 = vand.u32 %v3844, 127
          %vm3846 = vcmp.lt.s32.totalorder %v3845, 2
          %v3847 = vsel %vm3846, %v3840, -inf
          %v3848 = vsel %vm2814, %v3847, -inf
          %3849 = vmax.xlane.f32.xlu0 %v3848
          %v3850 = vpop.xlane.xlu0 %3849
          %v3851 = vsub.f32 %v3847, %v3850
          %v3852 = vmul.f32 %v3851, 1.442695
          %v3853 = vpow.pop %v3852
          %v3854 = vsel %vm2814, %v3853, 0.0
          %3855 = vadd.xlane.f32.xlu0 %v3854
          %v3856 = vpop.xlane.xlu0 %3855
          %v3857 = vrcp.pop %v3856
          %v3858 = vmul.f32 %v3853, %v3857
          %3859 = vst [vmem:[#allocation20] sm:$0x3] %v3858
          %v3860 = vsel %vm2814, %v3842, 0.0
          %v3861 = vrot.slane %v3860, 4
          %v3862 = vadd.f32 %v3860, %v3861
          %v3863 = vrot.slane %v3862, 2
          %v3864 = vadd.f32 %v3862, %v3863
          %v3865 = vrot.slane %v3864, 1
          %v3866 = vadd.f32 %v3864, %v3865
          %v3867 = vmul.f32 %v3866, %v2871
          %v3868 = vsub.f32 %v3842, %v3867
          %v3869 = vmul.f32 %v3868, %v3868
          %v3870 = vsel %vm2814, %v3869, 0.0
          %v3871 = vrot.slane %v3870, 4
          %v3872 = vadd.f32 %v3870, %v3871
          %v3873 = vrot.slane %v3872, 2
          %v3874 = vadd.f32 %v3872, %v3873
          %v3875 = vrot.slane %v3874, 1
          %v3876 = vadd.f32 %v3874, %v3875
          %v3877 = vmul.f32 %v3876, %v2871
          %v3878 = vadd.f32 %v3877, 1e-05
          %v3879 = vrsqrt.pop %v3878
          %v3880 = vmul.f32 %v3868, %v3879
          %v3881 = vld [vmem:[#allocation14] sm:$0x1]
          %v3883 = vlaneseq
          %v3884 = vshrl.u32 %v3883, 7
          %v3885 = vsub.s32 0, %v3884
          %v3886 = vrot.slane %v3881, %v3885
          %v3888 = vmul.f32 %v3880, %v3886
          %v3889 = vld [vmem:[#allocation15] sm:$0x1]
          %v3891 = vlaneseq
          %v3892 = vshrl.u32 %v3891, 7
          %v3893 = vsub.s32 0, %v3892
          %v3894 = vrot.slane %v3889, %v3893
          %v3896 = vadd.f32 %v3888, %v3894
          %vm3897 = vcmp.ge.f32.partialorder %v3896, 0.0
          %v3898 = vmul.f32 %v3896, 0.1
          %v3899 = vsel %vm3897, %v3896, %v3898
          %v3900 = vld [vmem:[#allocation17] sm:$0xff]
          %v3901 = vld [vmem:[#allocation17 + $0x8] sm:$0xff]
          %v3902 = vld [vmem:[#allocation17 + $0x10] sm:$0xff]
          %v3903 = vld [vmem:[#allocation17 + $0x18] sm:$0xff]
          %v3904 = vld [vmem:[#allocation17 + $0x20] sm:$0xff]
          %v3905 = vld [vmem:[#allocation17 + $0x28] sm:$0xff]
          %v3906 = vld [vmem:[#allocation17 + $0x30] sm:$0xff]
          %v3907 = vld [vmem:[#allocation17 + $0x38] sm:$0xff]
          %v3908 = vld [vmem:[#allocation17 + $0x40] sm:$0xff]
          %v3909 = vld [vmem:[#allocation17 + $0x48] sm:$0xff]
          %v3910 = vld [vmem:[#allocation17 + $0x50] sm:$0xff]
          %v3911 = vld [vmem:[#allocation17 + $0x58] sm:$0xff]
          %v3912 = vld [vmem:[#allocation17 + $0x60] sm:$0xff]
          %v3913 = vld [vmem:[#allocation17 + $0x68] sm:$0xff]
          %v3914 = vld [vmem:[#allocation17 + $0x70] sm:$0xff]
          %v3915 = vld [vmem:[#allocation17 + $0x78] sm:$0xff]
          %v3916 = vld [vmem:[#allocation18] sm:$0x1]
          %v3918 = vlaneseq
          %v3919 = vshrl.u32 %v3918, 7
          %v3920 = vsub.s32 0, %v3919
          %v3921 = vrot.slane %v3916, %v3920
          %3923 = vmatprep.subr.mxu0 0.0
          %3924 = vmatpush1.msra.mxu0 %v3900
          %3925 = vmatprep.subr.mxu0 0.0
          %3926 = vmatpush1.msra.mxu0 %v3901
          %3927 = vmatprep.subr.mxu0 0.0
          %3928 = vmatpush1.msra.mxu0 %v3902
          %3929 = vmatprep.subr.mxu0 0.0
          %3930 = vmatpush1.msra.mxu0 %v3903
          %3931 = vmatprep.subr.mxu0 0.0
          %3932 = vmatpush1.msra.mxu0 %v3904
          %3933 = vmatprep.subr.mxu0 0.0
          %3934 = vmatpush1.msra.mxu0 %v3905
          %3935 = vmatprep.subr.mxu0 0.0
          %3936 = vmatpush1.msra.mxu0 %v3906
          %3937 = vmatprep.subr.mxu0 0.0
          %3938 = vmatpush1.msra.mxu0 %v3907
          %3939 = vmatprep.subr.mxu0 0.0
          %3940 = vmatpush1.msra.mxu0 %v3908
          %3941 = vmatprep.subr.mxu0 0.0
          %3942 = vmatpush1.msra.mxu0 %v3909
          %3943 = vmatprep.subr.mxu0 0.0
          %3944 = vmatpush1.msra.mxu0 %v3910
          %3945 = vmatprep.subr.mxu0 0.0
          %3946 = vmatpush1.msra.mxu0 %v3911
          %3947 = vmatprep.subr.mxu0 0.0
          %3948 = vmatpush1.msra.mxu0 %v3912
          %3949 = vmatprep.subr.mxu0 0.0
          %3950 = vmatpush1.msra.mxu0 %v3913
          %3951 = vmatprep.subr.mxu0 0.0
          %3952 = vmatpush1.msra.mxu0 %v3914
          %3953 = vmatprep.subr.mxu0 0.0
          %3954 = vmatpush1.msra.mxu0 %v3915
          %3955 = vmatprep.subr.mxu0 0.0
          %3956 = vmatpush1.msra.mxu0 0.0
          %3957 = vmatprep.subr.mxu0 0.0
          %3958 = vmatpush1.msra.mxu0 0.0
          %3959 = vmatprep.subr.mxu0 0.0
          %3960 = vmatpush1.msra.mxu0 0.0
          %3961 = vmatprep.subr.mxu0 0.0
          %3962 = vmatpush1.msra.mxu0 0.0
          %3963 = vmatprep.subr.mxu0 0.0
          %3964 = vmatpush1.msra.mxu0 0.0
          %3965 = vmatprep.subr.mxu0 0.0
          %3966 = vmatpush1.msra.mxu0 0.0
          %3967 = vmatprep.subr.mxu0 0.0
          %3968 = vmatpush1.msra.mxu0 0.0
          %3969 = vmatprep.subr.mxu0 0.0
          %3970 = vmatpush1.msra.mxu0 0.0
          %3971 = vmatprep.subr.mxu0 0.0
          %3972 = vmatpush1.msra.mxu0 0.0
          %3973 = vmatprep.subr.mxu0 0.0
          %3974 = vmatpush1.msra.mxu0 0.0
          %3975 = vmatprep.subr.mxu0 0.0
          %3976 = vmatpush1.msra.mxu0 0.0
          %3977 = vmatprep.subr.mxu0 0.0
          %3978 = vmatpush1.msra.mxu0 0.0
          %3979 = vmatprep.subr.mxu0 0.0
          %3980 = vmatpush1.msra.mxu0 0.0
          %3981 = vmatprep.subr.mxu0 0.0
          %3982 = vmatpush1.msra.mxu0 0.0
          %3983 = vmatprep.subr.mxu0 0.0
          %3984 = vmatpush1.msra.mxu0 0.0
          %3985 = vmatprep.subr.mxu0 0.0
          %3986 = vmatpush1.msra.mxu0 0.0
          %3987 = vmatprep.mubr.f32.mxu0 0.0
          %3988 = vmatmul.mubr.f32.gmra.mrb[0].mxu0 %v3899
          %v3989 = vpop.f32.mrb[0].mxu0
          %v3990 = vadd.f32 %v3921, %v3989
          %v3991 = vpop.f32.mrb[0].mxu0
          %3992 = vdwg.mxu0
          %3993 = vst [vmem:[#allocation21] sm:$0x3] %v3990
        $region112: #{netD_forward.5} parent=63 // pred_fallthru
          _
        // Predicated region
        $region113: #{netD_forward.5} parent=63 // pred_check
          %p3994 = pneg %p288
        $region114: #{netD_forward.5} parent=63 // pred_check_branch
          %3996 = sbr.rel (%p3994) target = $region116
        $region115: #{netD_forward.5} parent=63 // pred_region
          %s3998 = ssub.s32 32, 32
          %3999 = vsyncadd [#allocation5], %s3998
          %s4001 = sshll.u32 [#allocation20], 4
          %s4002 = int_to_ptr.vmem [resolvable:$true] %s4001
          %4004 = dma.vmem_to_hbm [thread:$0]  %s4002, 32, %s11, [#allocation5]
        $region116: #{netD_forward.5} parent=63 // pred_fallthru
          _
        // Predicated region
        $region117: #{netD_forward.5} parent=63 // pred_check
          %p4005 = pneg %p309
        $region118: #{netD_forward.5} parent=63 // pred_check_branch
          %4007 = sbr.rel (%p4005) target = $region120
        $region119: #{netD_forward.5} parent=63 // pred_region
          %s4009 = ssub.s32 32, 32
          %4010 = vsyncadd [#allocation22], %s4009
          %s4012 = sshll.u32 [#allocation21], 4
          %s4013 = int_to_ptr.vmem [resolvable:$true] %s4012
          %4015 = dma.vmem_to_hbm [thread:$0]  %s4013, 32, %s12, [#allocation22]
        $region120: #{netD_forward.5} parent=63 // pred_fallthru
          _
        // Predicated region
        $region121: #{netD_forward.5} parent=63 // pred_check
          %p4016 = pneg %p288
        $region122: #{netD_forward.5} parent=63 // pred_check_branch
          %4018 = sbr.rel (%p4016) target = $region124
        $region123: #{netD_forward.5} parent=63 // pred_region
          %4019 = dma.done [#allocation5], 32
        $region124: #{netD_forward.5} parent=63 // pred_fallthru
          _
        // Predicated region
        $region125: #{netD_forward.5} parent=63 // pred_check
          %p4020 = pneg %p309
        $region126: #{netD_forward.5} parent=63 // pred_check_branch
          %4022 = sbr.rel (%p4020) target = $region128
        $region127: #{netD_forward.5} parent=63 // pred_region
          %4023 = dma.done [#allocation22], 32
        $region128: #{netD_forward.5} parent=63 // pred_fallthru
          _
      $region64: #{netD_forward.5} parent=5 // pred_fallthru
        _
      %p4024 = scmp.le.s32.totalorder 2, %s29
      // Predicated region
      $region129: #{netD_forward.5} parent=5 // pred_check
        %p4025 = pneg %p4024
      $region130: #{netD_forward.5} parent=5 // pred_check_branch
        %4027 = sbr.rel (%p4025) target = $region132
      $region131: #{netD_forward.5} parent=5 // pred_region
        %s4028 = ssub.s32 %s29, 2
      $region132: #{netD_forward.5} parent=5 // pred_fallthru
        _
    $region6: #{netD_forward.5} parent=1 // loop_footer
      %s33 = sadd.s32 1, %s29
    $region7: #{netD_forward.5} parent=1 // loop_footer_branch
      %28 = sbr.rel target = $region3
    $region8: #{netD_forward.5} parent=1 // loop_exit
      _
    %4029 = vsyncpa [#allocation4], 1
    %s4030 = scalar_lea.sflag [#allocation4], 1
    %4031 = vsyncpa %s4030, 1
    %4032 = vsyncpa [#allocation7], 1
    %4033 = vsyncpa [#allocation10], 1
    %4034 = vsyncpa [#allocation13], 1
    %4035 = vsyncpa [#allocation16], 1
    %4036 = vsyncpa [#allocation19], 1
    %4037 = vsyncpa [#allocation5], 1
    %s4038 = scalar_lea.sflag [#allocation5], 1
    %4039 = vsyncpa %s4038, 1
    %4040 = vsyncpa [#allocation22], 1

</llo_original>
